<compile_context>
chip_gen: v7x
topology: tpu7x:2x2x1
jax: 0.10.0
libtpu: 0.0.40
codegen_flags: <defaults>
</compile_context>

<pallas_src>
import jax
import jax.numpy as jnp
from jax.experimental import pallas as pl
from jax.experimental.pallas import tpu as pltpu

K = 7      # conv kernel size
PAD = 3    # configured Conv2d padding


# ---------------- fused Pallas kernel (one batch element per grid step) ----

def fused_forward_kernel(x1_ref, x2_ref, w13_ref, b13_ref, w2_ref, b2_ref,
                         o_ref, xpad_ref, p_ref):
    # x1_ref, x2_ref : (1, C, H*W)    NCHW inputs, spatial flattened (lane-dense)
    # w13_ref        : (2C, K*K*C)    conv1|conv3 weights, row=o, col=(kh,kw,ci)
    # b13_ref        : (2C, 1)
    # w2_ref         : (C, K*K*C)     conv2 weights
    # b2_ref         : (C, 1)
    # o_ref          : (1, C, H*W)    relu(v10) in NCHW-flat order
    # xpad_ref       : (H+6, W+6, C)  zero-padded conv input (VMEM, reused)
    # p_ref          : (K*K*C, H*W)   im2col patch matrix (VMEM)
    _, C, HW = x1_ref.shape
    Hp, Wp, _ = xpad_ref.shape
    H, W = Hp - 2 * PAD, Wp - 2 * PAD

    # -- zero only the PAD border; the interior is overwritten below.
    zrow = jnp.zeros((PAD, Wp, C), jnp.float32)
    zcol = jnp.zeros((H, PAD, C), jnp.float32)
    xpad_ref[0:PAD, :, :] = zrow
    xpad_ref[H + PAD:Hp, :, :] = zrow
    xpad_ref[PAD:H + PAD, 0:PAD, :] = zcol
    xpad_ref[PAD:H + PAD, W + PAD:Wp, :] = zcol

    def fill_interior(v_cm):
        # v_cm: (C, H*W) channel-major value -> xpad interior as (H, W, C).
        xpad_ref[PAD:H + PAD, PAD:W + PAD, :] = v_cm.T.reshape(H, W, C)

    def conv_im2col(w_ref, b_ref):
        # Build P[(kh*K + kw)*C + c, i*W + j] = xpad[i+kh, j+kw, c], then one
        # MXU matmul.  Per kw, one (Hp, W, C) slab is flattened + transposed
        # once; the 7 kh taps are then pure lane slices + aligned sublane-slab
        # stores into the patch scratch.
        for kw in range(K):
            slab = xpad_ref[:, kw:kw + W, :].reshape(Hp * W, C)   # (Hp*W, C)
            slab_t = slab.T                                       # (C, Hp*W)
            for kh in range(K):
                t = kh * K + kw
                p_ref[t * C:(t + 1) * C, :] = slab_t[:, kh * W:kh * W + HW]
        return (jnp.dot(w_ref[...], p_ref[...],
                        preferred_element_type=jnp.float32) + b_ref[...])

    # ---- stage 1: v1 = conv1(x1), v3 = conv3(x1) in one fused matmul ----
    fill_interior(x1_ref[0])
    out13 = conv_im2col(w13_ref, b13_ref)            # (2C, HW)
    v1, v3 = out13[:C, :], out13[C:, :]
    v6 = jnp.maximum(v1 + x2_ref[0], 0.0) + v3       # relu(v1 + x2) + v3

    # ---- stage 2: v7 = conv2(v6); scratch border is still zero ----
    fill_interior(v6)
    v7 = conv_im2col(w2_ref, b2_ref)                 # (C, HW)
    v9 = jnp.maximum(v7 + v6, 0.0)                   # relu(v7 + v6)
    v13 = jnp.maximum(v9 + v6, 0.0)                  # relu(v10); relu/flatten commute
    o_ref[...] = v13.reshape(1, C, HW).astype(o_ref.dtype)


def fused_forward(x1f, x2f, w13, b13, w2r, b2c, H, W):
    N, C, HW = x1f.shape
    C2, KKC = w13.shape
    return pl.pallas_call(
        fused_forward_kernel,
        out_shape=jax.ShapeDtypeStruct((N, C, HW), x1f.dtype),
        grid=(N,),
        in_specs=[
            pl.BlockSpec((1, C, HW), lambda n: (n, 0, 0)),   # x1 (NCHW flat)
            pl.BlockSpec((1, C, HW), lambda n: (n, 0, 0)),   # x2 (NCHW flat)
            pl.BlockSpec((C2, KKC), lambda n: (0, 0)),       # conv1|conv3 weights
            pl.BlockSpec((C2, 1), lambda n: (0, 0)),         # conv1|conv3 bias
            pl.BlockSpec((C, KKC), lambda n: (0, 0)),        # conv2 weights
            pl.BlockSpec((C, 1), lambda n: (0, 0)),          # conv2 bias
        ],
        out_specs=pl.BlockSpec((1, C, HW), lambda n: (n, 0, 0)),
        scratch_shapes=[
            pltpu.VMEM((H + 2 * PAD, W + 2 * PAD, C), jnp.float32),  # xpad
            pltpu.VMEM((K * K * C, HW), jnp.float32),                # patches
        ],
        compiler_params=pltpu.CompilerParams(
            dimension_semantics=("parallel",)),
    )(x1f, x2f, w13, b13, w2r, b2c)


# ---------------- params & wrapper ----------------

def init_params(key, cin=16, cout=16):
    # Deterministic Conv2d-style init: U(-1/sqrt(fan_in), 1/sqrt(fan_in)).
    fan_in = cin * K * K
    bound = 1.0 / jnp.sqrt(fan_in)
    params = []
    for i in range(3):
        kw_, kb_ = jax.random.split(jax.random.fold_in(key, i))
        w = jax.random.uniform(kw_, (K, K, cin, cout), jnp.float32,
                               -bound, bound)          # HWIO
        b = jax.random.uniform(kb_, (1, cout), jnp.float32, -bound, bound)
        params += [w, b]
    return tuple(params)


def _pack_w(w):
    # (K, K, Cin, Cout) HWIO -> (Cout, K*K*Cin), column index (kh*K+kw)*Cin+ci
    # to match the im2col patch-row ordering inside the kernel.
    return jnp.transpose(w, (3, 0, 1, 2)).reshape(w.shape[3], -1)


@jax.jit
def model_forward(params, x1, x2, x3, x4, x5):
    # x1, x2: NCHW float32.  x3, x4, x5 are unused (as in the PyTorch forward).
    del x3, x4, x5
    w1, b1, w2, b2, w3, b3 = params
    N, C, H, W = x1.shape

    x1f = x1.reshape(N, C, H * W)     # free reshapes: NCHW is already c-major
    x2f = x2.reshape(N, C, H * W)

    # pack conv1|conv3 along Cout so one patch matrix serves both convs
    w13 = jnp.concatenate([_pack_w(w1), _pack_w(w3)], axis=0)   # (2C, K*K*C)
    b13 = jnp.concatenate([b1, b3], axis=1).reshape(-1, 1)      # (2C, 1)
    w2r = _pack_w(w2)                                           # (C, K*K*C)
    b2c = b2.reshape(-1, 1)                                     # (C, 1)

    out = fused_forward(x1f, x2f, w13, b13, w2r, b2c, H, W)     # (N, C, H*W)
    # kernel output is already in NCHW order -> flatten(v10, 1) is a free reshape
    return out.reshape(N, -1)


# ---------------- reference (pure JAX) for a sanity check ----------------

def _ref_conv(x_nchw, w_khkwcico, b):
    w_oihw = jnp.transpose(w_khkwcico, (3, 2, 0, 1))
    y = jax.lax.conv_general_dilated(
        x_nchw, w_oihw, window_strides=(1, 1),
        padding=((PAD, PAD), (PAD, PAD)),
        dimension_numbers=("NCHW", "OIHW", "NCHW"))
    return y + b.reshape(1, -1, 1, 1)


def _ref_forward(params, x1, x2):
    w1, b1, w2, b2, w3, b3 = params
    v1 = _ref_conv(x1, w1, b1)
    v3 = _ref_conv(x1, w3, b3)
    v6 = jnp.maximum(v1 + x2, 0.0) + v3
    v7 = _ref_conv(v6, w2, b2)
    v10 = jnp.maximum(v7 + v6, 0.0) + v6
    return jnp.maximum(v10.reshape(v10.shape[0], -1), 0.0)


if __name__ == "__main__":
    key = jax.random.PRNGKey(0)
    kp, k1, k2, k3, k4, k5 = jax.random.split(key, 6)

    N, C, H, W = 2, 16, 16, 16
    x1 = jax.random.normal(k1, (N, C, H, W), jnp.float32)
    x2 = jax.random.normal(k2, (N, C, H, W), jnp.float32)
    x3 = jax.random.normal(k3, (N, C, H, W), jnp.float32)
    x4 = jax.random.normal(k4, (N, C, H, W), jnp.float32)
    x5 = jax.random.normal(k5, (N, C, H, W), jnp.float32)

    params = init_params(kp, C, C)

    out = model_forward(params, x1, x2, x3, x4, x5)
    jax.block_until_ready(out)

    ref = _ref_forward(params, x1, x2)
    assert out.shape == (N, C * H * W), out.shape
    assert jnp.allclose(out, ref, atol=5e-4, rtol=5e-4), \
        float(jnp.max(jnp.abs(out - ref)))

    print("KERNEL_OK")
</pallas_src>

<mosaic_0001>
module attributes {stable_mosaic.version = 11 : i64} {
  func.func @fused_forward_kernel(%arg0: i32, %arg1: memref<1x16x256xf32, #tpu.memory_space<vmem>>, %arg2: memref<1x16x256xf32, #tpu.memory_space<vmem>>, %arg3: memref<32x784xf32, #tpu.memory_space<vmem>>, %arg4: memref<32x1xf32, #tpu.memory_space<vmem>>, %arg5: memref<16x784xf32, #tpu.memory_space<vmem>>, %arg6: memref<16x1xf32, #tpu.memory_space<vmem>>, %arg7: memref<1x16x256xf32, #tpu.memory_space<vmem>>, %arg8: memref<22x22x16xf32, #tpu.memory_space<vmem>>, %arg9: memref<784x256xf32, #tpu.memory_space<vmem>>) attributes {dimension_semantics = [#tpu.dimension_semantics<parallel>], iteration_bounds = array<i64: 2>, scalar_prefetch = 0 : i64, scratch_operands = 2 : i64, tpu.core_type = #tpu.core_type<tc>, window_params = [{transform_indices = @transform_0, window_bounds = array<i64: 1, 16, 256>}, {transform_indices = @transform_1, window_bounds = array<i64: 1, 16, 256>}, {pipeline_mode = #tpu.pipeline_mode<synchronous>, transform_indices = @transform_2, window_bounds = array<i64: 32, 784>}, {pipeline_mode = #tpu.pipeline_mode<synchronous>, transform_indices = @transform_3, window_bounds = array<i64: 32, 1>}, {pipeline_mode = #tpu.pipeline_mode<synchronous>, transform_indices = @transform_4, window_bounds = array<i64: 16, 784>}, {pipeline_mode = #tpu.pipeline_mode<synchronous>, transform_indices = @transform_5, window_bounds = array<i64: 16, 1>}, {transform_indices = @transform_6, window_bounds = array<i64: 1, 16, 256>}]} {
    %cst = arith.constant 0.000000e+00 : f32
    %0 = vector.broadcast %cst : f32 to vector<3x22x16xf32>
    %cst_0 = arith.constant 0.000000e+00 : f32
    %1 = vector.broadcast %cst_0 : f32 to vector<16x3x16xf32>
    %c0 = arith.constant 0 : index
    %c0_1 = arith.constant 0 : index
    %c0_2 = arith.constant 0 : index
    %2 = vector.load %arg8[%c0, %c0_1, %c0_2] : memref<22x22x16xf32, #tpu.memory_space<vmem>>, vector<3x22x16xf32>
    tpu.vector_store %arg8[%c0, %c0_1, %c0_2], %0 {strides = array<i32>} : memref<22x22x16xf32, #tpu.memory_space<vmem>>, vector<3x22x16xf32>,
    %c19 = arith.constant 19 : index
    %c0_3 = arith.constant 0 : index
    %c0_4 = arith.constant 0 : index
    %3 = vector.load %arg8[%c19, %c0_3, %c0_4] : memref<22x22x16xf32, #tpu.memory_space<vmem>>, vector<3x22x16xf32>
    tpu.vector_store %arg8[%c19, %c0_3, %c0_4], %0 {strides = array<i32>} : memref<22x22x16xf32, #tpu.memory_space<vmem>>, vector<3x22x16xf32>,
    %c3 = arith.constant 3 : index
    %c0_5 = arith.constant 0 : index
    %c0_6 = arith.constant 0 : index
    %4 = vector.load %arg8[%c3, %c0_5, %c0_6] : memref<22x22x16xf32, #tpu.memory_space<vmem>>, vector<16x3x16xf32>
    tpu.vector_store %arg8[%c3, %c0_5, %c0_6], %1 {strides = array<i32>} : memref<22x22x16xf32, #tpu.memory_space<vmem>>, vector<16x3x16xf32>,
    %c3_7 = arith.constant 3 : index
    %c19_8 = arith.constant 19 : index
    %c0_9 = arith.constant 0 : index
    %5 = vector.load %arg8[%c3_7, %c19_8, %c0_9] : memref<22x22x16xf32, #tpu.memory_space<vmem>>, vector<16x3x16xf32>
    tpu.vector_store %arg8[%c3_7, %c19_8, %c0_9], %1 {strides = array<i32>} : memref<22x22x16xf32, #tpu.memory_space<vmem>>, vector<16x3x16xf32>,
    %c0_10 = arith.constant 0 : index
    %c0_11 = arith.constant 0 : index
    %c0_12 = arith.constant 0 : index
    %6 = vector.load %arg1[%c0_10, %c0_11, %c0_12] : memref<1x16x256xf32, #tpu.memory_space<vmem>>, vector<1x16x256xf32>
    %7 = vector.shape_cast %6 : vector<1x16x256xf32> to vector<16x256xf32>
    %8 = tpu.transpose %7, [1, 0] : vector<16x256xf32> -> vector<256x16xf32>
    %9 = vector.shape_cast %8 : vector<256x16xf32> to vector<16x16x16xf32>
    %c3_13 = arith.constant 3 : index
    %c3_14 = arith.constant 3 : index
    %c0_15 = arith.constant 0 : index
    %10 = vector.load %arg8[%c3_13, %c3_14, %c0_15] : memref<22x22x16xf32, #tpu.memory_space<vmem>>, vector<16x16x16xf32>
    tpu.vector_store %arg8[%c3_13, %c3_14, %c0_15], %9 {strides = array<i32>} : memref<22x22x16xf32, #tpu.memory_space<vmem>>, vector<16x16x16xf32>,
    %c0_16 = arith.constant 0 : index
    %c0_17 = arith.constant 0 : index
    %c0_18 = arith.constant 0 : index
    %11 = vector.load %arg8[%c0_16, %c0_17, %c0_18] : memref<22x22x16xf32, #tpu.memory_space<vmem>>, vector<22x16x16xf32>
    %12 = vector.shape_cast %11 : vector<22x16x16xf32> to vector<352x16xf32>
    %13 = tpu.transpose %12, [1, 0] : vector<352x16xf32> -> vector<16x352xf32>
    %14 = vector.extract_strided_slice %13 {offsets = [0, 0], sizes = [16, 256], strides = [1, 1]} : vector<16x352xf32> to vector<16x256xf32>
    %c0_19 = arith.constant 0 : index
    %c0_20 = arith.constant 0 : index
    %15 = vector.load %arg9[%c0_19, %c0_20] : memref<784x256xf32, #tpu.memory_space<vmem>>, vector<16x256xf32>
    tpu.vector_store %arg9[%c0_19, %c0_20], %14 {strides = array<i32>} : memref<784x256xf32, #tpu.memory_space<vmem>>, vector<16x256xf32>,
    %16 = vector.extract_strided_slice %13 {offsets = [0, 16], sizes = [16, 256], strides = [1, 1]} : vector<16x352xf32> to vector<16x256xf32>
    %c112 = arith.constant 112 : index
    %c0_21 = arith.constant 0 : index
    %17 = vector.load %arg9[%c112, %c0_21] : memref<784x256xf32, #tpu.memory_space<vmem>>, vector<16x256xf32>
    tpu.vector_store %arg9[%c112, %c0_21], %16 {strides = array<i32>} : memref<784x256xf32, #tpu.memory_space<vmem>>, vector<16x256xf32>,
    %18 = vector.extract_strided_slice %13 {offsets = [0, 32], sizes = [16, 256], strides = [1, 1]} : vector<16x352xf32> to vector<16x256xf32>
    %c224 = arith.constant 224 : index
    %c0_22 = arith.constant 0 : index
    %19 = vector.load %arg9[%c224, %c0_22] : memref<784x256xf32, #tpu.memory_space<vmem>>, vector<16x256xf32>
    tpu.vector_store %arg9[%c224, %c0_22], %18 {strides = array<i32>} : memref<784x256xf32, #tpu.memory_space<vmem>>, vector<16x256xf32>,
    %20 = vector.extract_strided_slice %13 {offsets = [0, 48], sizes = [16, 256], strides = [1, 1]} : vector<16x352xf32> to vector<16x256xf32>
    %c336 = arith.constant 336 : index
    %c0_23 = arith.constant 0 : index
    %21 = vector.load %arg9[%c336, %c0_23] : memref<784x256xf32, #tpu.memory_space<vmem>>, vector<16x256xf32>
    tpu.vector_store %arg9[%c336, %c0_23], %20 {strides = array<i32>} : memref<784x256xf32, #tpu.memory_space<vmem>>, vector<16x256xf32>,
    %22 = vector.extract_strided_slice %13 {offsets = [0, 64], sizes = [16, 256], strides = [1, 1]} : vector<16x352xf32> to vector<16x256xf32>
    %c448 = arith.constant 448 : index
    %c0_24 = arith.constant 0 : index
    %23 = vector.load %arg9[%c448, %c0_24] : memref<784x256xf32, #tpu.memory_space<vmem>>, vector<16x256xf32>
    tpu.vector_store %arg9[%c448, %c0_24], %22 {strides = array<i32>} : memref<784x256xf32, #tpu.memory_space<vmem>>, vector<16x256xf32>,
    %24 = vector.extract_strided_slice %13 {offsets = [0, 80], sizes = [16, 256], strides = [1, 1]} : vector<16x352xf32> to vector<16x256xf32>
    %c560 = arith.constant 560 : index
    %c0_25 = arith.constant 0 : index
    %25 = vector.load %arg9[%c560, %c0_25] : memref<784x256xf32, #tpu.memory_space<vmem>>, vector<16x256xf32>
    tpu.vector_store %arg9[%c560, %c0_25], %24 {strides = array<i32>} : memref<784x256xf32, #tpu.memory_space<vmem>>, vector<16x256xf32>,
    %26 = vector.extract_strided_slice %13 {offsets = [0, 96], sizes = [16, 256], strides = [1, 1]} : vector<16x352xf32> to vector<16x256xf32>
    %c672 = arith.constant 672 : index
    %c0_26 = arith.constant 0 : index
    %27 = vector.load %arg9[%c672, %c0_26] : memref<784x256xf32, #tpu.memory_space<vmem>>, vector<16x256xf32>
    tpu.vector_store %arg9[%c672, %c0_26], %26 {strides = array<i32>} : memref<784x256xf32, #tpu.memory_space<vmem>>, vector<16x256xf32>,
    %c0_27 = arith.constant 0 : index
    %c1 = arith.constant 1 : index
    %c0_28 = arith.constant 0 : index
    %28 = vector.load %arg8[%c0_27, %c1, %c0_28] : memref<22x22x16xf32, #tpu.memory_space<vmem>>, vector<22x16x16xf32>
    %29 = vector.shape_cast %28 : vector<22x16x16xf32> to vector<352x16xf32>
    %30 = tpu.transpose %29, [1, 0] : vector<352x16xf32> -> vector<16x352xf32>
    %31 = vector.extract_strided_slice %30 {offsets = [0, 0], sizes = [16, 256], strides = [1, 1]} : vector<16x352xf32> to vector<16x256xf32>
    %c16 = arith.constant 16 : index
    %c0_29 = arith.constant 0 : index
    %32 = vector.load %arg9[%c16, %c0_29] : memref<784x256xf32, #tpu.memory_space<vmem>>, vector<16x256xf32>
    tpu.vector_store %arg9[%c16, %c0_29], %31 {strides = array<i32>} : memref<784x256xf32, #tpu.memory_space<vmem>>, vector<16x256xf32>,
    %33 = vector.extract_strided_slice %30 {offsets = [0, 16], sizes = [16, 256], strides = [1, 1]} : vector<16x352xf32> to vector<16x256xf32>
    %c128 = arith.constant 128 : index
    %c0_30 = arith.constant 0 : index
    %34 = vector.load %arg9[%c128, %c0_30] : memref<784x256xf32, #tpu.memory_space<vmem>>, vector<16x256xf32>
    tpu.vector_store %arg9[%c128, %c0_30], %33 {strides = array<i32>} : memref<784x256xf32, #tpu.memory_space<vmem>>, vector<16x256xf32>,
    %35 = vector.extract_strided_slice %30 {offsets = [0, 32], sizes = [16, 256], strides = [1, 1]} : vector<16x352xf32> to vector<16x256xf32>
    %c240 = arith.constant 240 : index
    %c0_31 = arith.constant 0 : index
    %36 = vector.load %arg9[%c240, %c0_31] : memref<784x256xf32, #tpu.memory_space<vmem>>, vector<16x256xf32>
    tpu.vector_store %arg9[%c240, %c0_31], %35 {strides = array<i32>} : memref<784x256xf32, #tpu.memory_space<vmem>>, vector<16x256xf32>,
    %37 = vector.extract_strided_slice %30 {offsets = [0, 48], sizes = [16, 256], strides = [1, 1]} : vector<16x352xf32> to vector<16x256xf32>
    %c352 = arith.constant 352 : index
    %c0_32 = arith.constant 0 : index
    %38 = vector.load %arg9[%c352, %c0_32] : memref<784x256xf32, #tpu.memory_space<vmem>>, vector<16x256xf32>
    tpu.vector_store %arg9[%c352, %c0_32], %37 {strides = array<i32>} : memref<784x256xf32, #tpu.memory_space<vmem>>, vector<16x256xf32>,
    %39 = vector.extract_strided_slice %30 {offsets = [0, 64], sizes = [16, 256], strides = [1, 1]} : vector<16x352xf32> to vector<16x256xf32>
    %c464 = arith.constant 464 : index
    %c0_33 = arith.constant 0 : index
    %40 = vector.load %arg9[%c464, %c0_33] : memref<784x256xf32, #tpu.memory_space<vmem>>, vector<16x256xf32>
    tpu.vector_store %arg9[%c464, %c0_33], %39 {strides = array<i32>} : memref<784x256xf32, #tpu.memory_space<vmem>>, vector<16x256xf32>,
    %41 = vector.extract_strided_slice %30 {offsets = [0, 80], sizes = [16, 256], strides = [1, 1]} : vector<16x352xf32> to vector<16x256xf32>
    %c576 = arith.constant 576 : index
    %c0_34 = arith.constant 0 : index
    %42 = vector.load %arg9[%c576, %c0_34] : memref<784x256xf32, #tpu.memory_space<vmem>>, vector<16x256xf32>
    tpu.vector_store %arg9[%c576, %c0_34], %41 {strides = array<i32>} : memref<784x256xf32, #tpu.memory_space<vmem>>, vector<16x256xf32>,
    %43 = vector.extract_strided_slice %30 {offsets = [0, 96], sizes = [16, 256], strides = [1, 1]} : vector<16x352xf32> to vector<16x256xf32>
    %c688 = arith.constant 688 : index
    %c0_35 = arith.constant 0 : index
    %44 = vector.load %arg9[%c688, %c0_35] : memref<784x256xf32, #tpu.memory_space<vmem>>, vector<16x256xf32>
    tpu.vector_store %arg9[%c688, %c0_35], %43 {strides = array<i32>} : memref<784x256xf32, #tpu.memory_space<vmem>>, vector<16x256xf32>,
    %c0_36 = arith.constant 0 : index
    %c2 = arith.constant 2 : index
    %c0_37 = arith.constant 0 : index
    %45 = vector.load %arg8[%c0_36, %c2, %c0_37] : memref<22x22x16xf32, #tpu.memory_space<vmem>>, vector<22x16x16xf32>
    %46 = vector.shape_cast %45 : vector<22x16x16xf32> to vector<352x16xf32>
    %47 = tpu.transpose %46, [1, 0] : vector<352x16xf32> -> vector<16x352xf32>
    %48 = vector.extract_strided_slice %47 {offsets = [0, 0], sizes = [16, 256], strides = [1, 1]} : vector<16x352xf32> to vector<16x256xf32>
    %c32 = arith.constant 32 : index
    %c0_38 = arith.constant 0 : index
    %49 = vector.load %arg9[%c32, %c0_38] : memref<784x256xf32, #tpu.memory_space<vmem>>, vector<16x256xf32>
    tpu.vector_store %arg9[%c32, %c0_38], %48 {strides = array<i32>} : memref<784x256xf32, #tpu.memory_space<vmem>>, vector<16x256xf32>,
    %50 = vector.extract_strided_slice %47 {offsets = [0, 16], sizes = [16, 256], strides = [1, 1]} : vector<16x352xf32> to vector<16x256xf32>
    %c144 = arith.constant 144 : index
    %c0_39 = arith.constant 0 : index
    %51 = vector.load %arg9[%c144, %c0_39] : memref<784x256xf32, #tpu.memory_space<vmem>>, vector<16x256xf32>
    tpu.vector_store %arg9[%c144, %c0_39], %50 {strides = array<i32>} : memref<784x256xf32, #tpu.memory_space<vmem>>, vector<16x256xf32>,
    %52 = vector.extract_strided_slice %47 {offsets = [0, 32], sizes = [16, 256], strides = [1, 1]} : vector<16x352xf32> to vector<16x256xf32>
    %c256 = arith.constant 256 : index
    %c0_40 = arith.constant 0 : index
    %53 = vector.load %arg9[%c256, %c0_40] : memref<784x256xf32, #tpu.memory_space<vmem>>, vector<16x256xf32>
    tpu.vector_store %arg9[%c256, %c0_40], %52 {strides = array<i32>} : memref<784x256xf32, #tpu.memory_space<vmem>>, vector<16x256xf32>,
    %54 = vector.extract_strided_slice %47 {offsets = [0, 48], sizes = [16, 256], strides = [1, 1]} : vector<16x352xf32> to vector<16x256xf32>
    %c368 = arith.constant 368 : index
    %c0_41 = arith.constant 0 : index
    %55 = vector.load %arg9[%c368, %c0_41] : memref<784x256xf32, #tpu.memory_space<vmem>>, vector<16x256xf32>
    tpu.vector_store %arg9[%c368, %c0_41], %54 {strides = array<i32>} : memref<784x256xf32, #tpu.memory_space<vmem>>, vector<16x256xf32>,
    %56 = vector.extract_strided_slice %47 {offsets = [0, 64], sizes = [16, 256], strides = [1, 1]} : vector<16x352xf32> to vector<16x256xf32>
    %c480 = arith.constant 480 : index
    %c0_42 = arith.constant 0 : index
    %57 = vector.load %arg9[%c480, %c0_42] : memref<784x256xf32, #tpu.memory_space<vmem>>, vector<16x256xf32>
    tpu.vector_store %arg9[%c480, %c0_42], %56 {strides = array<i32>} : memref<784x256xf32, #tpu.memory_space<vmem>>, vector<16x256xf32>,
    %58 = vector.extract_strided_slice %47 {offsets = [0, 80], sizes = [16, 256], strides = [1, 1]} : vector<16x352xf32> to vector<16x256xf32>
    %c592 = arith.constant 592 : index
    %c0_43 = arith.constant 0 : index
    %59 = vector.load %arg9[%c592, %c0_43] : memref<784x256xf32, #tpu.memory_space<vmem>>, vector<16x256xf32>
    tpu.vector_store %arg9[%c592, %c0_43], %58 {strides = array<i32>} : memref<784x256xf32, #tpu.memory_space<vmem>>, vector<16x256xf32>,
    %60 = vector.extract_strided_slice %47 {offsets = [0, 96], sizes = [16, 256], strides = [1, 1]} : vector<16x352xf32> to vector<16x256xf32>
    %c704 = arith.constant 704 : index
    %c0_44 = arith.constant 0 : index
    %61 = vector.load %arg9[%c704, %c0_44] : memref<784x256xf32, #tpu.memory_space<vmem>>, vector<16x256xf32>
    tpu.vector_store %arg9[%c704, %c0_44], %60 {strides = array<i32>} : memref<784x256xf32, #tpu.memory_space<vmem>>, vector<16x256xf32>,
    %c0_45 = arith.constant 0 : index
    %c3_46 = arith.constant 3 : index
    %c0_47 = arith.constant 0 : index
    %62 = vector.load %arg8[%c0_45, %c3_46, %c0_47] : memref<22x22x16xf32, #tpu.memory_space<vmem>>, vector<22x16x16xf32>
    %63 = vector.shape_cast %62 : vector<22x16x16xf32> to vector<352x16xf32>
    %64 = tpu.transpose %63, [1, 0] : vector<352x16xf32> -> vector<16x352xf32>
    %65 = vector.extract_strided_slice %64 {offsets = [0, 0], sizes = [16, 256], strides = [1, 1]} : vector<16x352xf32> to vector<16x256xf32>
    %c48 = arith.constant 48 : index
    %c0_48 = arith.constant 0 : index
    %66 = vector.load %arg9[%c48, %c0_48] : memref<784x256xf32, #tpu.memory_space<vmem>>, vector<16x256xf32>
    tpu.vector_store %arg9[%c48, %c0_48], %65 {strides = array<i32>} : memref<784x256xf32, #tpu.memory_space<vmem>>, vector<16x256xf32>,
    %67 = vector.extract_strided_slice %64 {offsets = [0, 16], sizes = [16, 256], strides = [1, 1]} : vector<16x352xf32> to vector<16x256xf32>
    %c160 = arith.constant 160 : index
    %c0_49 = arith.constant 0 : index
    %68 = vector.load %arg9[%c160, %c0_49] : memref<784x256xf32, #tpu.memory_space<vmem>>, vector<16x256xf32>
    tpu.vector_store %arg9[%c160, %c0_49], %67 {strides = array<i32>} : memref<784x256xf32, #tpu.memory_space<vmem>>, vector<16x256xf32>,
    %69 = vector.extract_strided_slice %64 {offsets = [0, 32], sizes = [16, 256], strides = [1, 1]} : vector<16x352xf32> to vector<16x256xf32>
    %c272 = arith.constant 272 : index
    %c0_50 = arith.constant 0 : index
    %70 = vector.load %arg9[%c272, %c0_50] : memref<784x256xf32, #tpu.memory_space<vmem>>, vector<16x256xf32>
    tpu.vector_store %arg9[%c272, %c0_50], %69 {strides = array<i32>} : memref<784x256xf32, #tpu.memory_space<vmem>>, vector<16x256xf32>,
    %71 = vector.extract_strided_slice %64 {offsets = [0, 48], sizes = [16, 256], strides = [1, 1]} : vector<16x352xf32> to vector<16x256xf32>
    %c384 = arith.constant 384 : index
    %c0_51 = arith.constant 0 : index
    %72 = vector.load %arg9[%c384, %c0_51] : memref<784x256xf32, #tpu.memory_space<vmem>>, vector<16x256xf32>
    tpu.vector_store %arg9[%c384, %c0_51], %71 {strides = array<i32>} : memref<784x256xf32, #tpu.memory_space<vmem>>, vector<16x256xf32>,
    %73 = vector.extract_strided_slice %64 {offsets = [0, 64], sizes = [16, 256], strides = [1, 1]} : vector<16x352xf32> to vector<16x256xf32>
    %c496 = arith.constant 496 : index
    %c0_52 = arith.constant 0 : index
    %74 = vector.load %arg9[%c496, %c0_52] : memref<784x256xf32, #tpu.memory_space<vmem>>, vector<16x256xf32>
    tpu.vector_store %arg9[%c496, %c0_52], %73 {strides = array<i32>} : memref<784x256xf32, #tpu.memory_space<vmem>>, vector<16x256xf32>,
    %75 = vector.extract_strided_slice %64 {offsets = [0, 80], sizes = [16, 256], strides = [1, 1]} : vector<16x352xf32> to vector<16x256xf32>
    %c608 = arith.constant 608 : index
    %c0_53 = arith.constant 0 : index
    %76 = vector.load %arg9[%c608, %c0_53] : memref<784x256xf32, #tpu.memory_space<vmem>>, vector<16x256xf32>
    tpu.vector_store %arg9[%c608, %c0_53], %75 {strides = array<i32>} : memref<784x256xf32, #tpu.memory_space<vmem>>, vector<16x256xf32>,
    %77 = vector.extract_strided_slice %64 {offsets = [0, 96], sizes = [16, 256], strides = [1, 1]} : vector<16x352xf32> to vector<16x256xf32>
    %c720 = arith.constant 720 : index
    %c0_54 = arith.constant 0 : index
    %78 = vector.load %arg9[%c720, %c0_54] : memref<784x256xf32, #tpu.memory_space<vmem>>, vector<16x256xf32>
    tpu.vector_store %arg9[%c720, %c0_54], %77 {strides = array<i32>} : memref<784x256xf32, #tpu.memory_space<vmem>>, vector<16x256xf32>,
    %c0_55 = arith.constant 0 : index
    %c4 = arith.constant 4 : index
    %c0_56 = arith.constant 0 : index
    %79 = vector.load %arg8[%c0_55, %c4, %c0_56] : memref<22x22x16xf32, #tpu.memory_space<vmem>>, vector<22x16x16xf32>
    %80 = vector.shape_cast %79 : vector<22x16x16xf32> to vector<352x16xf32>
    %81 = tpu.transpose %80, [1, 0] : vector<352x16xf32> -> vector<16x352xf32>
    %82 = vector.extract_strided_slice %81 {offsets = [0, 0], sizes = [16, 256], strides = [1, 1]} : vector<16x352xf32> to vector<16x256xf32>
    %c64 = arith.constant 64 : index
    %c0_57 = arith.constant 0 : index
    %83 = vector.load %arg9[%c64, %c0_57] : memref<784x256xf32, #tpu.memory_space<vmem>>, vector<16x256xf32>
    tpu.vector_store %arg9[%c64, %c0_57], %82 {strides = array<i32>} : memref<784x256xf32, #tpu.memory_space<vmem>>, vector<16x256xf32>,
    %84 = vector.extract_strided_slice %81 {offsets = [0, 16], sizes = [16, 256], strides = [1, 1]} : vector<16x352xf32> to vector<16x256xf32>
    %c176 = arith.constant 176 : index
    %c0_58 = arith.constant 0 : index
    %85 = vector.load %arg9[%c176, %c0_58] : memref<784x256xf32, #tpu.memory_space<vmem>>, vector<16x256xf32>
    tpu.vector_store %arg9[%c176, %c0_58], %84 {strides = array<i32>} : memref<784x256xf32, #tpu.memory_space<vmem>>, vector<16x256xf32>,
    %86 = vector.extract_strided_slice %81 {offsets = [0, 32], sizes = [16, 256], strides = [1, 1]} : vector<16x352xf32> to vector<16x256xf32>
    %c288 = arith.constant 288 : index
    %c0_59 = arith.constant 0 : index
    %87 = vector.load %arg9[%c288, %c0_59] : memref<784x256xf32, #tpu.memory_space<vmem>>, vector<16x256xf32>
    tpu.vector_store %arg9[%c288, %c0_59], %86 {strides = array<i32>} : memref<784x256xf32, #tpu.memory_space<vmem>>, vector<16x256xf32>,
    %88 = vector.extract_strided_slice %81 {offsets = [0, 48], sizes = [16, 256], strides = [1, 1]} : vector<16x352xf32> to vector<16x256xf32>
    %c400 = arith.constant 400 : index
    %c0_60 = arith.constant 0 : index
    %89 = vector.load %arg9[%c400, %c0_60] : memref<784x256xf32, #tpu.memory_space<vmem>>, vector<16x256xf32>
    tpu.vector_store %arg9[%c400, %c0_60], %88 {strides = array<i32>} : memref<784x256xf32, #tpu.memory_space<vmem>>, vector<16x256xf32>,
    %90 = vector.extract_strided_slice %81 {offsets = [0, 64], sizes = [16, 256], strides = [1, 1]} : vector<16x352xf32> to vector<16x256xf32>
    %c512 = arith.constant 512 : index
    %c0_61 = arith.constant 0 : index
    %91 = vector.load %arg9[%c512, %c0_61] : memref<784x256xf32, #tpu.memory_space<vmem>>, vector<16x256xf32>
    tpu.vector_store %arg9[%c512, %c0_61], %90 {strides = array<i32>} : memref<784x256xf32, #tpu.memory_space<vmem>>, vector<16x256xf32>,
    %92 = vector.extract_strided_slice %81 {offsets = [0, 80], sizes = [16, 256], strides = [1, 1]} : vector<16x352xf32> to vector<16x256xf32>
    %c624 = arith.constant 624 : index
    %c0_62 = arith.constant 0 : index
    %93 = vector.load %arg9[%c624, %c0_62] : memref<784x256xf32, #tpu.memory_space<vmem>>, vector<16x256xf32>
    tpu.vector_store %arg9[%c624, %c0_62], %92 {strides = array<i32>} : memref<784x256xf32, #tpu.memory_space<vmem>>, vector<16x256xf32>,
    %94 = vector.extract_strided_slice %81 {offsets = [0, 96], sizes = [16, 256], strides = [1, 1]} : vector<16x352xf32> to vector<16x256xf32>
    %c736 = arith.constant 736 : index
    %c0_63 = arith.constant 0 : index
    %95 = vector.load %arg9[%c736, %c0_63] : memref<784x256xf32, #tpu.memory_space<vmem>>, vector<16x256xf32>
    tpu.vector_store %arg9[%c736, %c0_63], %94 {strides = array<i32>} : memref<784x256xf32, #tpu.memory_space<vmem>>, vector<16x256xf32>,
    %c0_64 = arith.constant 0 : index
    %c5 = arith.constant 5 : index
    %c0_65 = arith.constant 0 : index
    %96 = vector.load %arg8[%c0_64, %c5, %c0_65] : memref<22x22x16xf32, #tpu.memory_space<vmem>>, vector<22x16x16xf32>
    %97 = vector.shape_cast %96 : vector<22x16x16xf32> to vector<352x16xf32>
    %98 = tpu.transpose %97, [1, 0] : vector<352x16xf32> -> vector<16x352xf32>
    %99 = vector.extract_strided_slice %98 {offsets = [0, 0], sizes = [16, 256], strides = [1, 1]} : vector<16x352xf32> to vector<16x256xf32>
    %c80 = arith.constant 80 : index
    %c0_66 = arith.constant 0 : index
    %100 = vector.load %arg9[%c80, %c0_66] : memref<784x256xf32, #tpu.memory_space<vmem>>, vector<16x256xf32>
    tpu.vector_store %arg9[%c80, %c0_66], %99 {strides = array<i32>} : memref<784x256xf32, #tpu.memory_space<vmem>>, vector<16x256xf32>,
    %101 = vector.extract_strided_slice %98 {offsets = [0, 16], sizes = [16, 256], strides = [1, 1]} : vector<16x352xf32> to vector<16x256xf32>
    %c192 = arith.constant 192 : index
    %c0_67 = arith.constant 0 : index
    %102 = vector.load %arg9[%c192, %c0_67] : memref<784x256xf32, #tpu.memory_space<vmem>>, vector<16x256xf32>
    tpu.vector_store %arg9[%c192, %c0_67], %101 {strides = array<i32>} : memref<784x256xf32, #tpu.memory_space<vmem>>, vector<16x256xf32>,
    %103 = vector.extract_strided_slice %98 {offsets = [0, 32], sizes = [16, 256], strides = [1, 1]} : vector<16x352xf32> to vector<16x256xf32>
    %c304 = arith.constant 304 : index
    %c0_68 = arith.constant 0 : index
    %104 = vector.load %arg9[%c304, %c0_68] : memref<784x256xf32, #tpu.memory_space<vmem>>, vector<16x256xf32>
    tpu.vector_store %arg9[%c304, %c0_68], %103 {strides = array<i32>} : memref<784x256xf32, #tpu.memory_space<vmem>>, vector<16x256xf32>,
    %105 = vector.extract_strided_slice %98 {offsets = [0, 48], sizes = [16, 256], strides = [1, 1]} : vector<16x352xf32> to vector<16x256xf32>
    %c416 = arith.constant 416 : index
    %c0_69 = arith.constant 0 : index
    %106 = vector.load %arg9[%c416, %c0_69] : memref<784x256xf32, #tpu.memory_space<vmem>>, vector<16x256xf32>
    tpu.vector_store %arg9[%c416, %c0_69], %105 {strides = array<i32>} : memref<784x256xf32, #tpu.memory_space<vmem>>, vector<16x256xf32>,
    %107 = vector.extract_strided_slice %98 {offsets = [0, 64], sizes = [16, 256], strides = [1, 1]} : vector<16x352xf32> to vector<16x256xf32>
    %c528 = arith.constant 528 : index
    %c0_70 = arith.constant 0 : index
    %108 = vector.load %arg9[%c528, %c0_70] : memref<784x256xf32, #tpu.memory_space<vmem>>, vector<16x256xf32>
    tpu.vector_store %arg9[%c528, %c0_70], %107 {strides = array<i32>} : memref<784x256xf32, #tpu.memory_space<vmem>>, vector<16x256xf32>,
    %109 = vector.extract_strided_slice %98 {offsets = [0, 80], sizes = [16, 256], strides = [1, 1]} : vector<16x352xf32> to vector<16x256xf32>
    %c640 = arith.constant 640 : index
    %c0_71 = arith.constant 0 : index
    %110 = vector.load %arg9[%c640, %c0_71] : memref<784x256xf32, #tpu.memory_space<vmem>>, vector<16x256xf32>
    tpu.vector_store %arg9[%c640, %c0_71], %109 {strides = array<i32>} : memref<784x256xf32, #tpu.memory_space<vmem>>, vector<16x256xf32>,
    %111 = vector.extract_strided_slice %98 {offsets = [0, 96], sizes = [16, 256], strides = [1, 1]} : vector<16x352xf32> to vector<16x256xf32>
    %c752 = arith.constant 752 : index
    %c0_72 = arith.constant 0 : index
    %112 = vector.load %arg9[%c752, %c0_72] : memref<784x256xf32, #tpu.memory_space<vmem>>, vector<16x256xf32>
    tpu.vector_store %arg9[%c752, %c0_72], %111 {strides = array<i32>} : memref<784x256xf32, #tpu.memory_space<vmem>>, vector<16x256xf32>,
    %c0_73 = arith.constant 0 : index
    %c6 = arith.constant 6 : index
    %c0_74 = arith.constant 0 : index
    %113 = vector.load %arg8[%c0_73, %c6, %c0_74] : memref<22x22x16xf32, #tpu.memory_space<vmem>>, vector<22x16x16xf32>
    %114 = vector.shape_cast %113 : vector<22x16x16xf32> to vector<352x16xf32>
    %115 = tpu.transpose %114, [1, 0] : vector<352x16xf32> -> vector<16x352xf32>
    %116 = vector.extract_strided_slice %115 {offsets = [0, 0], sizes = [16, 256], strides = [1, 1]} : vector<16x352xf32> to vector<16x256xf32>
    %c96 = arith.constant 96 : index
    %c0_75 = arith.constant 0 : index
    %117 = vector.load %arg9[%c96, %c0_75] : memref<784x256xf32, #tpu.memory_space<vmem>>, vector<16x256xf32>
    tpu.vector_store %arg9[%c96, %c0_75], %116 {strides = array<i32>} : memref<784x256xf32, #tpu.memory_space<vmem>>, vector<16x256xf32>,
    %118 = vector.extract_strided_slice %115 {offsets = [0, 16], sizes = [16, 256], strides = [1, 1]} : vector<16x352xf32> to vector<16x256xf32>
    %c208 = arith.constant 208 : index
    %c0_76 = arith.constant 0 : index
    %119 = vector.load %arg9[%c208, %c0_76] : memref<784x256xf32, #tpu.memory_space<vmem>>, vector<16x256xf32>
    tpu.vector_store %arg9[%c208, %c0_76], %118 {strides = array<i32>} : memref<784x256xf32, #tpu.memory_space<vmem>>, vector<16x256xf32>,
    %120 = vector.extract_strided_slice %115 {offsets = [0, 32], sizes = [16, 256], strides = [1, 1]} : vector<16x352xf32> to vector<16x256xf32>
    %c320 = arith.constant 320 : index
    %c0_77 = arith.constant 0 : index
    %121 = vector.load %arg9[%c320, %c0_77] : memref<784x256xf32, #tpu.memory_space<vmem>>, vector<16x256xf32>
    tpu.vector_store %arg9[%c320, %c0_77], %120 {strides = array<i32>} : memref<784x256xf32, #tpu.memory_space<vmem>>, vector<16x256xf32>,
    %122 = vector.extract_strided_slice %115 {offsets = [0, 48], sizes = [16, 256], strides = [1, 1]} : vector<16x352xf32> to vector<16x256xf32>
    %c432 = arith.constant 432 : index
    %c0_78 = arith.constant 0 : index
    %123 = vector.load %arg9[%c432, %c0_78] : memref<784x256xf32, #tpu.memory_space<vmem>>, vector<16x256xf32>
    tpu.vector_store %arg9[%c432, %c0_78], %122 {strides = array<i32>} : memref<784x256xf32, #tpu.memory_space<vmem>>, vector<16x256xf32>,
    %124 = vector.extract_strided_slice %115 {offsets = [0, 64], sizes = [16, 256], strides = [1, 1]} : vector<16x352xf32> to vector<16x256xf32>
    %c544 = arith.constant 544 : index
    %c0_79 = arith.constant 0 : index
    %125 = vector.load %arg9[%c544, %c0_79] : memref<784x256xf32, #tpu.memory_space<vmem>>, vector<16x256xf32>
    tpu.vector_store %arg9[%c544, %c0_79], %124 {strides = array<i32>} : memref<784x256xf32, #tpu.memory_space<vmem>>, vector<16x256xf32>,
    %126 = vector.extract_strided_slice %115 {offsets = [0, 80], sizes = [16, 256], strides = [1, 1]} : vector<16x352xf32> to vector<16x256xf32>
    %c656 = arith.constant 656 : index
    %c0_80 = arith.constant 0 : index
    %127 = vector.load %arg9[%c656, %c0_80] : memref<784x256xf32, #tpu.memory_space<vmem>>, vector<16x256xf32>
    tpu.vector_store %arg9[%c656, %c0_80], %126 {strides = array<i32>} : memref<784x256xf32, #tpu.memory_space<vmem>>, vector<16x256xf32>,
    %128 = vector.extract_strided_slice %115 {offsets = [0, 96], sizes = [16, 256], strides = [1, 1]} : vector<16x352xf32> to vector<16x256xf32>
    %c768 = arith.constant 768 : index
    %c0_81 = arith.constant 0 : index
    %129 = vector.load %arg9[%c768, %c0_81] : memref<784x256xf32, #tpu.memory_space<vmem>>, vector<16x256xf32>
    tpu.vector_store %arg9[%c768, %c0_81], %128 {strides = array<i32>} : memref<784x256xf32, #tpu.memory_space<vmem>>, vector<16x256xf32>,
    %c0_82 = arith.constant 0 : index
    %c0_83 = arith.constant 0 : index
    %130 = vector.load %arg3[%c0_82, %c0_83] : memref<32x784xf32, #tpu.memory_space<vmem>>, vector<32x784xf32>
    %c0_84 = arith.constant 0 : index
    %c0_85 = arith.constant 0 : index
    %131 = vector.load %arg9[%c0_84, %c0_85] : memref<784x256xf32, #tpu.memory_space<vmem>>, vector<784x256xf32>
    %cst_86 = arith.constant dense<0.000000e+00> : vector<32x256xf32>
    %132 = tpu.matmul %130, %131, %cst_86 {dimension_numbers = #tpu.dot_dimension_numbers<[1], [0], [0], [1], [0, 0, 1, 1], [], []>} : vector<32x784xf32>, vector<784x256xf32>, vector<32x256xf32> -> vector<32x256xf32>
    %c0_87 = arith.constant 0 : index
    %c0_88 = arith.constant 0 : index
    %133 = vector.load %arg4[%c0_87, %c0_88] : memref<32x1xf32, #tpu.memory_space<vmem>>, vector<32x1xf32>
    %134 = vector.broadcast %133 : vector<32x1xf32> to vector<32x256xf32>
    %135 = arith.addf %132, %134 : vector<32x256xf32>
    %136 = vector.extract_strided_slice %135 {offsets = [0, 0], sizes = [16, 256], strides = [1, 1]} : vector<32x256xf32> to vector<16x256xf32>
    %137 = vector.extract_strided_slice %135 {offsets = [16, 0], sizes = [16, 256], strides = [1, 1]} : vector<32x256xf32> to vector<16x256xf32>
    %c0_89 = arith.constant 0 : index
    %c0_90 = arith.constant 0 : index
    %c0_91 = arith.constant 0 : index
    %138 = vector.load %arg2[%c0_89, %c0_90, %c0_91] : memref<1x16x256xf32, #tpu.memory_space<vmem>>, vector<1x16x256xf32>
    %139 = vector.shape_cast %138 : vector<1x16x256xf32> to vector<16x256xf32>
    %140 = arith.addf %136, %139 : vector<16x256xf32>
    %cst_92 = arith.constant 0.000000e+00 : f32
    %141 = vector.broadcast %cst_92 : f32 to vector<16x256xf32>
    %142 = arith.maximumf %140, %141 : vector<16x256xf32>
    %143 = arith.addf %142, %137 : vector<16x256xf32>
    %144 = tpu.transpose %143, [1, 0] : vector<16x256xf32> -> vector<256x16xf32>
    %145 = vector.shape_cast %144 : vector<256x16xf32> to vector<16x16x16xf32>
    %c3_93 = arith.constant 3 : index
    %c3_94 = arith.constant 3 : index
    %c0_95 = arith.constant 0 : index
    %146 = vector.load %arg8[%c3_93, %c3_94, %c0_95] : memref<22x22x16xf32, #tpu.memory_space<vmem>>, vector<16x16x16xf32>
    tpu.vector_store %arg8[%c3_93, %c3_94, %c0_95], %145 {strides = array<i32>} : memref<22x22x16xf32, #tpu.memory_space<vmem>>, vector<16x16x16xf32>,
    %c0_96 = arith.constant 0 : index
    %c0_97 = arith.constant 0 : index
    %c0_98 = arith.constant 0 : index
    %147 = vector.load %arg8[%c0_96, %c0_97, %c0_98] : memref<22x22x16xf32, #tpu.memory_space<vmem>>, vector<22x16x16xf32>
    %148 = vector.shape_cast %147 : vector<22x16x16xf32> to vector<352x16xf32>
    %149 = tpu.transpose %148, [1, 0] : vector<352x16xf32> -> vector<16x352xf32>
    %150 = vector.extract_strided_slice %149 {offsets = [0, 0], sizes = [16, 256], strides = [1, 1]} : vector<16x352xf32> to vector<16x256xf32>
    %c0_99 = arith.constant 0 : index
    %c0_100 = arith.constant 0 : index
    %151 = vector.load %arg9[%c0_99, %c0_100] : memref<784x256xf32, #tpu.memory_space<vmem>>, vector<16x256xf32>
    tpu.vector_store %arg9[%c0_99, %c0_100], %150 {strides = array<i32>} : memref<784x256xf32, #tpu.memory_space<vmem>>, vector<16x256xf32>,
    %152 = vector.extract_strided_slice %149 {offsets = [0, 16], sizes = [16, 256], strides = [1, 1]} : vector<16x352xf32> to vector<16x256xf32>
    %c112_101 = arith.constant 112 : index
    %c0_102 = arith.constant 0 : index
    %153 = vector.load %arg9[%c112_101, %c0_102] : memref<784x256xf32, #tpu.memory_space<vmem>>, vector<16x256xf32>
    tpu.vector_store %arg9[%c112_101, %c0_102], %152 {strides = array<i32>} : memref<784x256xf32, #tpu.memory_space<vmem>>, vector<16x256xf32>,
    %154 = vector.extract_strided_slice %149 {offsets = [0, 32], sizes = [16, 256], strides = [1, 1]} : vector<16x352xf32> to vector<16x256xf32>
    %c224_103 = arith.constant 224 : index
    %c0_104 = arith.constant 0 : index
    %155 = vector.load %arg9[%c224_103, %c0_104] : memref<784x256xf32, #tpu.memory_space<vmem>>, vector<16x256xf32>
    tpu.vector_store %arg9[%c224_103, %c0_104], %154 {strides = array<i32>} : memref<784x256xf32, #tpu.memory_space<vmem>>, vector<16x256xf32>,
    %156 = vector.extract_strided_slice %149 {offsets = [0, 48], sizes = [16, 256], strides = [1, 1]} : vector<16x352xf32> to vector<16x256xf32>
    %c336_105 = arith.constant 336 : index
    %c0_106 = arith.constant 0 : index
    %157 = vector.load %arg9[%c336_105, %c0_106] : memref<784x256xf32, #tpu.memory_space<vmem>>, vector<16x256xf32>
    tpu.vector_store %arg9[%c336_105, %c0_106], %156 {strides = array<i32>} : memref<784x256xf32, #tpu.memory_space<vmem>>, vector<16x256xf32>,
    %158 = vector.extract_strided_slice %149 {offsets = [0, 64], sizes = [16, 256], strides = [1, 1]} : vector<16x352xf32> to vector<16x256xf32>
    %c448_107 = arith.constant 448 : index
    %c0_108 = arith.constant 0 : index
    %159 = vector.load %arg9[%c448_107, %c0_108] : memref<784x256xf32, #tpu.memory_space<vmem>>, vector<16x256xf32>
    tpu.vector_store %arg9[%c448_107, %c0_108], %158 {strides = array<i32>} : memref<784x256xf32, #tpu.memory_space<vmem>>, vector<16x256xf32>,
    %160 = vector.extract_strided_slice %149 {offsets = [0, 80], sizes = [16, 256], strides = [1, 1]} : vector<16x352xf32> to vector<16x256xf32>
    %c560_109 = arith.constant 560 : index
    %c0_110 = arith.constant 0 : index
    %161 = vector.load %arg9[%c560_109, %c0_110] : memref<784x256xf32, #tpu.memory_space<vmem>>, vector<16x256xf32>
    tpu.vector_store %arg9[%c560_109, %c0_110], %160 {strides = array<i32>} : memref<784x256xf32, #tpu.memory_space<vmem>>, vector<16x256xf32>,
    %162 = vector.extract_strided_slice %149 {offsets = [0, 96], sizes = [16, 256], strides = [1, 1]} : vector<16x352xf32> to vector<16x256xf32>
    %c672_111 = arith.constant 672 : index
    %c0_112 = arith.constant 0 : index
    %163 = vector.load %arg9[%c672_111, %c0_112] : memref<784x256xf32, #tpu.memory_space<vmem>>, vector<16x256xf32>
    tpu.vector_store %arg9[%c672_111, %c0_112], %162 {strides = array<i32>} : memref<784x256xf32, #tpu.memory_space<vmem>>, vector<16x256xf32>,
    %c0_113 = arith.constant 0 : index
    %c1_114 = arith.constant 1 : index
    %c0_115 = arith.constant 0 : index
    %164 = vector.load %arg8[%c0_113, %c1_114, %c0_115] : memref<22x22x16xf32, #tpu.memory_space<vmem>>, vector<22x16x16xf32>
    %165 = vector.shape_cast %164 : vector<22x16x16xf32> to vector<352x16xf32>
    %166 = tpu.transpose %165, [1, 0] : vector<352x16xf32> -> vector<16x352xf32>
    %167 = vector.extract_strided_slice %166 {offsets = [0, 0], sizes = [16, 256], strides = [1, 1]} : vector<16x352xf32> to vector<16x256xf32>
    %c16_116 = arith.constant 16 : index
    %c0_117 = arith.constant 0 : index
    %168 = vector.load %arg9[%c16_116, %c0_117] : memref<784x256xf32, #tpu.memory_space<vmem>>, vector<16x256xf32>
    tpu.vector_store %arg9[%c16_116, %c0_117], %167 {strides = array<i32>} : memref<784x256xf32, #tpu.memory_space<vmem>>, vector<16x256xf32>,
    %169 = vector.extract_strided_slice %166 {offsets = [0, 16], sizes = [16, 256], strides = [1, 1]} : vector<16x352xf32> to vector<16x256xf32>
    %c128_118 = arith.constant 128 : index
    %c0_119 = arith.constant 0 : index
    %170 = vector.load %arg9[%c128_118, %c0_119] : memref<784x256xf32, #tpu.memory_space<vmem>>, vector<16x256xf32>
    tpu.vector_store %arg9[%c128_118, %c0_119], %169 {strides = array<i32>} : memref<784x256xf32, #tpu.memory_space<vmem>>, vector<16x256xf32>,
    %171 = vector.extract_strided_slice %166 {offsets = [0, 32], sizes = [16, 256], strides = [1, 1]} : vector<16x352xf32> to vector<16x256xf32>
    %c240_120 = arith.constant 240 : index
    %c0_121 = arith.constant 0 : index
    %172 = vector.load %arg9[%c240_120, %c0_121] : memref<784x256xf32, #tpu.memory_space<vmem>>, vector<16x256xf32>
    tpu.vector_store %arg9[%c240_120, %c0_121], %171 {strides = array<i32>} : memref<784x256xf32, #tpu.memory_space<vmem>>, vector<16x256xf32>,
    %173 = vector.extract_strided_slice %166 {offsets = [0, 48], sizes = [16, 256], strides = [1, 1]} : vector<16x352xf32> to vector<16x256xf32>
    %c352_122 = arith.constant 352 : index
    %c0_123 = arith.constant 0 : index
    %174 = vector.load %arg9[%c352_122, %c0_123] : memref<784x256xf32, #tpu.memory_space<vmem>>, vector<16x256xf32>
    tpu.vector_store %arg9[%c352_122, %c0_123], %173 {strides = array<i32>} : memref<784x256xf32, #tpu.memory_space<vmem>>, vector<16x256xf32>,
    %175 = vector.extract_strided_slice %166 {offsets = [0, 64], sizes = [16, 256], strides = [1, 1]} : vector<16x352xf32> to vector<16x256xf32>
    %c464_124 = arith.constant 464 : index
    %c0_125 = arith.constant 0 : index
    %176 = vector.load %arg9[%c464_124, %c0_125] : memref<784x256xf32, #tpu.memory_space<vmem>>, vector<16x256xf32>
    tpu.vector_store %arg9[%c464_124, %c0_125], %175 {strides = array<i32>} : memref<784x256xf32, #tpu.memory_space<vmem>>, vector<16x256xf32>,
    %177 = vector.extract_strided_slice %166 {offsets = [0, 80], sizes = [16, 256], strides = [1, 1]} : vector<16x352xf32> to vector<16x256xf32>
    %c576_126 = arith.constant 576 : index
    %c0_127 = arith.constant 0 : index
    %178 = vector.load %arg9[%c576_126, %c0_127] : memref<784x256xf32, #tpu.memory_space<vmem>>, vector<16x256xf32>
    tpu.vector_store %arg9[%c576_126, %c0_127], %177 {strides = array<i32>} : memref<784x256xf32, #tpu.memory_space<vmem>>, vector<16x256xf32>,
    %179 = vector.extract_strided_slice %166 {offsets = [0, 96], sizes = [16, 256], strides = [1, 1]} : vector<16x352xf32> to vector<16x256xf32>
    %c688_128 = arith.constant 688 : index
    %c0_129 = arith.constant 0 : index
    %180 = vector.load %arg9[%c688_128, %c0_129] : memref<784x256xf32, #tpu.memory_space<vmem>>, vector<16x256xf32>
    tpu.vector_store %arg9[%c688_128, %c0_129], %179 {strides = array<i32>} : memref<784x256xf32, #tpu.memory_space<vmem>>, vector<16x256xf32>,
    %c0_130 = arith.constant 0 : index
    %c2_131 = arith.constant 2 : index
    %c0_132 = arith.constant 0 : index
    %181 = vector.load %arg8[%c0_130, %c2_131, %c0_132] : memref<22x22x16xf32, #tpu.memory_space<vmem>>, vector<22x16x16xf32>
    %182 = vector.shape_cast %181 : vector<22x16x16xf32> to vector<352x16xf32>
    %183 = tpu.transpose %182, [1, 0] : vector<352x16xf32> -> vector<16x352xf32>
    %184 = vector.extract_strided_slice %183 {offsets = [0, 0], sizes = [16, 256], strides = [1, 1]} : vector<16x352xf32> to vector<16x256xf32>
    %c32_133 = arith.constant 32 : index
    %c0_134 = arith.constant 0 : index
    %185 = vector.load %arg9[%c32_133, %c0_134] : memref<784x256xf32, #tpu.memory_space<vmem>>, vector<16x256xf32>
    tpu.vector_store %arg9[%c32_133, %c0_134], %184 {strides = array<i32>} : memref<784x256xf32, #tpu.memory_space<vmem>>, vector<16x256xf32>,
    %186 = vector.extract_strided_slice %183 {offsets = [0, 16], sizes = [16, 256], strides = [1, 1]} : vector<16x352xf32> to vector<16x256xf32>
    %c144_135 = arith.constant 144 : index
    %c0_136 = arith.constant 0 : index
    %187 = vector.load %arg9[%c144_135, %c0_136] : memref<784x256xf32, #tpu.memory_space<vmem>>, vector<16x256xf32>
    tpu.vector_store %arg9[%c144_135, %c0_136], %186 {strides = array<i32>} : memref<784x256xf32, #tpu.memory_space<vmem>>, vector<16x256xf32>,
    %188 = vector.extract_strided_slice %183 {offsets = [0, 32], sizes = [16, 256], strides = [1, 1]} : vector<16x352xf32> to vector<16x256xf32>
    %c256_137 = arith.constant 256 : index
    %c0_138 = arith.constant 0 : index
    %189 = vector.load %arg9[%c256_137, %c0_138] : memref<784x256xf32, #tpu.memory_space<vmem>>, vector<16x256xf32>
    tpu.vector_store %arg9[%c256_137, %c0_138], %188 {strides = array<i32>} : memref<784x256xf32, #tpu.memory_space<vmem>>, vector<16x256xf32>,
    %190 = vector.extract_strided_slice %183 {offsets = [0, 48], sizes = [16, 256], strides = [1, 1]} : vector<16x352xf32> to vector<16x256xf32>
    %c368_139 = arith.constant 368 : index
    %c0_140 = arith.constant 0 : index
    %191 = vector.load %arg9[%c368_139, %c0_140] : memref<784x256xf32, #tpu.memory_space<vmem>>, vector<16x256xf32>
    tpu.vector_store %arg9[%c368_139, %c0_140], %190 {strides = array<i32>} : memref<784x256xf32, #tpu.memory_space<vmem>>, vector<16x256xf32>,
    %192 = vector.extract_strided_slice %183 {offsets = [0, 64], sizes = [16, 256], strides = [1, 1]} : vector<16x352xf32> to vector<16x256xf32>
    %c480_141 = arith.constant 480 : index
    %c0_142 = arith.constant 0 : index
    %193 = vector.load %arg9[%c480_141, %c0_142] : memref<784x256xf32, #tpu.memory_space<vmem>>, vector<16x256xf32>
    tpu.vector_store %arg9[%c480_141, %c0_142], %192 {strides = array<i32>} : memref<784x256xf32, #tpu.memory_space<vmem>>, vector<16x256xf32>,
    %194 = vector.extract_strided_slice %183 {offsets = [0, 80], sizes = [16, 256], strides = [1, 1]} : vector<16x352xf32> to vector<16x256xf32>
    %c592_143 = arith.constant 592 : index
    %c0_144 = arith.constant 0 : index
    %195 = vector.load %arg9[%c592_143, %c0_144] : memref<784x256xf32, #tpu.memory_space<vmem>>, vector<16x256xf32>
    tpu.vector_store %arg9[%c592_143, %c0_144], %194 {strides = array<i32>} : memref<784x256xf32, #tpu.memory_space<vmem>>, vector<16x256xf32>,
    %196 = vector.extract_strided_slice %183 {offsets = [0, 96], sizes = [16, 256], strides = [1, 1]} : vector<16x352xf32> to vector<16x256xf32>
    %c704_145 = arith.constant 704 : index
    %c0_146 = arith.constant 0 : index
    %197 = vector.load %arg9[%c704_145, %c0_146] : memref<784x256xf32, #tpu.memory_space<vmem>>, vector<16x256xf32>
    tpu.vector_store %arg9[%c704_145, %c0_146], %196 {strides = array<i32>} : memref<784x256xf32, #tpu.memory_space<vmem>>, vector<16x256xf32>,
    %c0_147 = arith.constant 0 : index
    %c3_148 = arith.constant 3 : index
    %c0_149 = arith.constant 0 : index
    %198 = vector.load %arg8[%c0_147, %c3_148, %c0_149] : memref<22x22x16xf32, #tpu.memory_space<vmem>>, vector<22x16x16xf32>
    %199 = vector.shape_cast %198 : vector<22x16x16xf32> to vector<352x16xf32>
    %200 = tpu.transpose %199, [1, 0] : vector<352x16xf32> -> vector<16x352xf32>
    %201 = vector.extract_strided_slice %200 {offsets = [0, 0], sizes = [16, 256], strides = [1, 1]} : vector<16x352xf32> to vector<16x256xf32>
    %c48_150 = arith.constant 48 : index
    %c0_151 = arith.constant 0 : index
    %202 = vector.load %arg9[%c48_150, %c0_151] : memref<784x256xf32, #tpu.memory_space<vmem>>, vector<16x256xf32>
    tpu.vector_store %arg9[%c48_150, %c0_151], %201 {strides = array<i32>} : memref<784x256xf32, #tpu.memory_space<vmem>>, vector<16x256xf32>,
    %203 = vector.extract_strided_slice %200 {offsets = [0, 16], sizes = [16, 256], strides = [1, 1]} : vector<16x352xf32> to vector<16x256xf32>
    %c160_152 = arith.constant 160 : index
    %c0_153 = arith.constant 0 : index
    %204 = vector.load %arg9[%c160_152, %c0_153] : memref<784x256xf32, #tpu.memory_space<vmem>>, vector<16x256xf32>
    tpu.vector_store %arg9[%c160_152, %c0_153], %203 {strides = array<i32>} : memref<784x256xf32, #tpu.memory_space<vmem>>, vector<16x256xf32>,
    %205 = vector.extract_strided_slice %200 {offsets = [0, 32], sizes = [16, 256], strides = [1, 1]} : vector<16x352xf32> to vector<16x256xf32>
    %c272_154 = arith.constant 272 : index
    %c0_155 = arith.constant 0 : index
    %206 = vector.load %arg9[%c272_154, %c0_155] : memref<784x256xf32, #tpu.memory_space<vmem>>, vector<16x256xf32>
    tpu.vector_store %arg9[%c272_154, %c0_155], %205 {strides = array<i32>} : memref<784x256xf32, #tpu.memory_space<vmem>>, vector<16x256xf32>,
    %207 = vector.extract_strided_slice %200 {offsets = [0, 48], sizes = [16, 256], strides = [1, 1]} : vector<16x352xf32> to vector<16x256xf32>
    %c384_156 = arith.constant 384 : index
    %c0_157 = arith.constant 0 : index
    %208 = vector.load %arg9[%c384_156, %c0_157] : memref<784x256xf32, #tpu.memory_space<vmem>>, vector<16x256xf32>
    tpu.vector_store %arg9[%c384_156, %c0_157], %207 {strides = array<i32>} : memref<784x256xf32, #tpu.memory_space<vmem>>, vector<16x256xf32>,
    %209 = vector.extract_strided_slice %200 {offsets = [0, 64], sizes = [16, 256], strides = [1, 1]} : vector<16x352xf32> to vector<16x256xf32>
    %c496_158 = arith.constant 496 : index
    %c0_159 = arith.constant 0 : index
    %210 = vector.load %arg9[%c496_158, %c0_159] : memref<784x256xf32, #tpu.memory_space<vmem>>, vector<16x256xf32>
    tpu.vector_store %arg9[%c496_158, %c0_159], %209 {strides = array<i32>} : memref<784x256xf32, #tpu.memory_space<vmem>>, vector<16x256xf32>,
    %211 = vector.extract_strided_slice %200 {offsets = [0, 80], sizes = [16, 256], strides = [1, 1]} : vector<16x352xf32> to vector<16x256xf32>
    %c608_160 = arith.constant 608 : index
    %c0_161 = arith.constant 0 : index
    %212 = vector.load %arg9[%c608_160, %c0_161] : memref<784x256xf32, #tpu.memory_space<vmem>>, vector<16x256xf32>
    tpu.vector_store %arg9[%c608_160, %c0_161], %211 {strides = array<i32>} : memref<784x256xf32, #tpu.memory_space<vmem>>, vector<16x256xf32>,
    %213 = vector.extract_strided_slice %200 {offsets = [0, 96], sizes = [16, 256], strides = [1, 1]} : vector<16x352xf32> to vector<16x256xf32>
    %c720_162 = arith.constant 720 : index
    %c0_163 = arith.constant 0 : index
    %214 = vector.load %arg9[%c720_162, %c0_163] : memref<784x256xf32, #tpu.memory_space<vmem>>, vector<16x256xf32>
    tpu.vector_store %arg9[%c720_162, %c0_163], %213 {strides = array<i32>} : memref<784x256xf32, #tpu.memory_space<vmem>>, vector<16x256xf32>,
    %c0_164 = arith.constant 0 : index
    %c4_165 = arith.constant 4 : index
    %c0_166 = arith.constant 0 : index
    %215 = vector.load %arg8[%c0_164, %c4_165, %c0_166] : memref<22x22x16xf32, #tpu.memory_space<vmem>>, vector<22x16x16xf32>
    %216 = vector.shape_cast %215 : vector<22x16x16xf32> to vector<352x16xf32>
    %217 = tpu.transpose %216, [1, 0] : vector<352x16xf32> -> vector<16x352xf32>
    %218 = vector.extract_strided_slice %217 {offsets = [0, 0], sizes = [16, 256], strides = [1, 1]} : vector<16x352xf32> to vector<16x256xf32>
    %c64_167 = arith.constant 64 : index
    %c0_168 = arith.constant 0 : index
    %219 = vector.load %arg9[%c64_167, %c0_168] : memref<784x256xf32, #tpu.memory_space<vmem>>, vector<16x256xf32>
    tpu.vector_store %arg9[%c64_167, %c0_168], %218 {strides = array<i32>} : memref<784x256xf32, #tpu.memory_space<vmem>>, vector<16x256xf32>,
    %220 = vector.extract_strided_slice %217 {offsets = [0, 16], sizes = [16, 256], strides = [1, 1]} : vector<16x352xf32> to vector<16x256xf32>
    %c176_169 = arith.constant 176 : index
    %c0_170 = arith.constant 0 : index
    %221 = vector.load %arg9[%c176_169, %c0_170] : memref<784x256xf32, #tpu.memory_space<vmem>>, vector<16x256xf32>
    tpu.vector_store %arg9[%c176_169, %c0_170], %220 {strides = array<i32>} : memref<784x256xf32, #tpu.memory_space<vmem>>, vector<16x256xf32>,
    %222 = vector.extract_strided_slice %217 {offsets = [0, 32], sizes = [16, 256], strides = [1, 1]} : vector<16x352xf32> to vector<16x256xf32>
    %c288_171 = arith.constant 288 : index
    %c0_172 = arith.constant 0 : index
    %223 = vector.load %arg9[%c288_171, %c0_172] : memref<784x256xf32, #tpu.memory_space<vmem>>, vector<16x256xf32>
    tpu.vector_store %arg9[%c288_171, %c0_172], %222 {strides = array<i32>} : memref<784x256xf32, #tpu.memory_space<vmem>>, vector<16x256xf32>,
    %224 = vector.extract_strided_slice %217 {offsets = [0, 48], sizes = [16, 256], strides = [1, 1]} : vector<16x352xf32> to vector<16x256xf32>
    %c400_173 = arith.constant 400 : index
    %c0_174 = arith.constant 0 : index
    %225 = vector.load %arg9[%c400_173, %c0_174] : memref<784x256xf32, #tpu.memory_space<vmem>>, vector<16x256xf32>
    tpu.vector_store %arg9[%c400_173, %c0_174], %224 {strides = array<i32>} : memref<784x256xf32, #tpu.memory_space<vmem>>, vector<16x256xf32>,
    %226 = vector.extract_strided_slice %217 {offsets = [0, 64], sizes = [16, 256], strides = [1, 1]} : vector<16x352xf32> to vector<16x256xf32>
    %c512_175 = arith.constant 512 : index
    %c0_176 = arith.constant 0 : index
    %227 = vector.load %arg9[%c512_175, %c0_176] : memref<784x256xf32, #tpu.memory_space<vmem>>, vector<16x256xf32>
    tpu.vector_store %arg9[%c512_175, %c0_176], %226 {strides = array<i32>} : memref<784x256xf32, #tpu.memory_space<vmem>>, vector<16x256xf32>,
    %228 = vector.extract_strided_slice %217 {offsets = [0, 80], sizes = [16, 256], strides = [1, 1]} : vector<16x352xf32> to vector<16x256xf32>
    %c624_177 = arith.constant 624 : index
    %c0_178 = arith.constant 0 : index
    %229 = vector.load %arg9[%c624_177, %c0_178] : memref<784x256xf32, #tpu.memory_space<vmem>>, vector<16x256xf32>
    tpu.vector_store %arg9[%c624_177, %c0_178], %228 {strides = array<i32>} : memref<784x256xf32, #tpu.memory_space<vmem>>, vector<16x256xf32>,
    %230 = vector.extract_strided_slice %217 {offsets = [0, 96], sizes = [16, 256], strides = [1, 1]} : vector<16x352xf32> to vector<16x256xf32>
    %c736_179 = arith.constant 736 : index
    %c0_180 = arith.constant 0 : index
    %231 = vector.load %arg9[%c736_179, %c0_180] : memref<784x256xf32, #tpu.memory_space<vmem>>, vector<16x256xf32>
    tpu.vector_store %arg9[%c736_179, %c0_180], %230 {strides = array<i32>} : memref<784x256xf32, #tpu.memory_space<vmem>>, vector<16x256xf32>,
    %c0_181 = arith.constant 0 : index
    %c5_182 = arith.constant 5 : index
    %c0_183 = arith.constant 0 : index
    %232 = vector.load %arg8[%c0_181, %c5_182, %c0_183] : memref<22x22x16xf32, #tpu.memory_space<vmem>>, vector<22x16x16xf32>
    %233 = vector.shape_cast %232 : vector<22x16x16xf32> to vector<352x16xf32>
    %234 = tpu.transpose %233, [1, 0] : vector<352x16xf32> -> vector<16x352xf32>
    %235 = vector.extract_strided_slice %234 {offsets = [0, 0], sizes = [16, 256], strides = [1, 1]} : vector<16x352xf32> to vector<16x256xf32>
    %c80_184 = arith.constant 80 : index
    %c0_185 = arith.constant 0 : index
    %236 = vector.load %arg9[%c80_184, %c0_185] : memref<784x256xf32, #tpu.memory_space<vmem>>, vector<16x256xf32>
    tpu.vector_store %arg9[%c80_184, %c0_185], %235 {strides = array<i32>} : memref<784x256xf32, #tpu.memory_space<vmem>>, vector<16x256xf32>,
    %237 = vector.extract_strided_slice %234 {offsets = [0, 16], sizes = [16, 256], strides = [1, 1]} : vector<16x352xf32> to vector<16x256xf32>
    %c192_186 = arith.constant 192 : index
    %c0_187 = arith.constant 0 : index
    %238 = vector.load %arg9[%c192_186, %c0_187] : memref<784x256xf32, #tpu.memory_space<vmem>>, vector<16x256xf32>
    tpu.vector_store %arg9[%c192_186, %c0_187], %237 {strides = array<i32>} : memref<784x256xf32, #tpu.memory_space<vmem>>, vector<16x256xf32>,
    %239 = vector.extract_strided_slice %234 {offsets = [0, 32], sizes = [16, 256], strides = [1, 1]} : vector<16x352xf32> to vector<16x256xf32>
    %c304_188 = arith.constant 304 : index
    %c0_189 = arith.constant 0 : index
    %240 = vector.load %arg9[%c304_188, %c0_189] : memref<784x256xf32, #tpu.memory_space<vmem>>, vector<16x256xf32>
    tpu.vector_store %arg9[%c304_188, %c0_189], %239 {strides = array<i32>} : memref<784x256xf32, #tpu.memory_space<vmem>>, vector<16x256xf32>,
    %241 = vector.extract_strided_slice %234 {offsets = [0, 48], sizes = [16, 256], strides = [1, 1]} : vector<16x352xf32> to vector<16x256xf32>
    %c416_190 = arith.constant 416 : index
    %c0_191 = arith.constant 0 : index
    %242 = vector.load %arg9[%c416_190, %c0_191] : memref<784x256xf32, #tpu.memory_space<vmem>>, vector<16x256xf32>
    tpu.vector_store %arg9[%c416_190, %c0_191], %241 {strides = array<i32>} : memref<784x256xf32, #tpu.memory_space<vmem>>, vector<16x256xf32>,
    %243 = vector.extract_strided_slice %234 {offsets = [0, 64], sizes = [16, 256], strides = [1, 1]} : vector<16x352xf32> to vector<16x256xf32>
    %c528_192 = arith.constant 528 : index
    %c0_193 = arith.constant 0 : index
    %244 = vector.load %arg9[%c528_192, %c0_193] : memref<784x256xf32, #tpu.memory_space<vmem>>, vector<16x256xf32>
    tpu.vector_store %arg9[%c528_192, %c0_193], %243 {strides = array<i32>} : memref<784x256xf32, #tpu.memory_space<vmem>>, vector<16x256xf32>,
    %245 = vector.extract_strided_slice %234 {offsets = [0, 80], sizes = [16, 256], strides = [1, 1]} : vector<16x352xf32> to vector<16x256xf32>
    %c640_194 = arith.constant 640 : index
    %c0_195 = arith.constant 0 : index
    %246 = vector.load %arg9[%c640_194, %c0_195] : memref<784x256xf32, #tpu.memory_space<vmem>>, vector<16x256xf32>
    tpu.vector_store %arg9[%c640_194, %c0_195], %245 {strides = array<i32>} : memref<784x256xf32, #tpu.memory_space<vmem>>, vector<16x256xf32>,
    %247 = vector.extract_strided_slice %234 {offsets = [0, 96], sizes = [16, 256], strides = [1, 1]} : vector<16x352xf32> to vector<16x256xf32>
    %c752_196 = arith.constant 752 : index
    %c0_197 = arith.constant 0 : index
    %248 = vector.load %arg9[%c752_196, %c0_197] : memref<784x256xf32, #tpu.memory_space<vmem>>, vector<16x256xf32>
    tpu.vector_store %arg9[%c752_196, %c0_197], %247 {strides = array<i32>} : memref<784x256xf32, #tpu.memory_space<vmem>>, vector<16x256xf32>,
    %c0_198 = arith.constant 0 : index
    %c6_199 = arith.constant 6 : index
    %c0_200 = arith.constant 0 : index
    %249 = vector.load %arg8[%c0_198, %c6_199, %c0_200] : memref<22x22x16xf32, #tpu.memory_space<vmem>>, vector<22x16x16xf32>
    %250 = vector.shape_cast %249 : vector<22x16x16xf32> to vector<352x16xf32>
    %251 = tpu.transpose %250, [1, 0] : vector<352x16xf32> -> vector<16x352xf32>
    %252 = vector.extract_strided_slice %251 {offsets = [0, 0], sizes = [16, 256], strides = [1, 1]} : vector<16x352xf32> to vector<16x256xf32>
    %c96_201 = arith.constant 96 : index
    %c0_202 = arith.constant 0 : index
    %253 = vector.load %arg9[%c96_201, %c0_202] : memref<784x256xf32, #tpu.memory_space<vmem>>, vector<16x256xf32>
    tpu.vector_store %arg9[%c96_201, %c0_202], %252 {strides = array<i32>} : memref<784x256xf32, #tpu.memory_space<vmem>>, vector<16x256xf32>,
    %254 = vector.extract_strided_slice %251 {offsets = [0, 16], sizes = [16, 256], strides = [1, 1]} : vector<16x352xf32> to vector<16x256xf32>
    %c208_203 = arith.constant 208 : index
    %c0_204 = arith.constant 0 : index
    %255 = vector.load %arg9[%c208_203, %c0_204] : memref<784x256xf32, #tpu.memory_space<vmem>>, vector<16x256xf32>
    tpu.vector_store %arg9[%c208_203, %c0_204], %254 {strides = array<i32>} : memref<784x256xf32, #tpu.memory_space<vmem>>, vector<16x256xf32>,
    %256 = vector.extract_strided_slice %251 {offsets = [0, 32], sizes = [16, 256], strides = [1, 1]} : vector<16x352xf32> to vector<16x256xf32>
    %c320_205 = arith.constant 320 : index
    %c0_206 = arith.constant 0 : index
    %257 = vector.load %arg9[%c320_205, %c0_206] : memref<784x256xf32, #tpu.memory_space<vmem>>, vector<16x256xf32>
    tpu.vector_store %arg9[%c320_205, %c0_206], %256 {strides = array<i32>} : memref<784x256xf32, #tpu.memory_space<vmem>>, vector<16x256xf32>,
    %258 = vector.extract_strided_slice %251 {offsets = [0, 48], sizes = [16, 256], strides = [1, 1]} : vector<16x352xf32> to vector<16x256xf32>
    %c432_207 = arith.constant 432 : index
    %c0_208 = arith.constant 0 : index
    %259 = vector.load %arg9[%c432_207, %c0_208] : memref<784x256xf32, #tpu.memory_space<vmem>>, vector<16x256xf32>
    tpu.vector_store %arg9[%c432_207, %c0_208], %258 {strides = array<i32>} : memref<784x256xf32, #tpu.memory_space<vmem>>, vector<16x256xf32>,
    %260 = vector.extract_strided_slice %251 {offsets = [0, 64], sizes = [16, 256], strides = [1, 1]} : vector<16x352xf32> to vector<16x256xf32>
    %c544_209 = arith.constant 544 : index
    %c0_210 = arith.constant 0 : index
    %261 = vector.load %arg9[%c544_209, %c0_210] : memref<784x256xf32, #tpu.memory_space<vmem>>, vector<16x256xf32>
    tpu.vector_store %arg9[%c544_209, %c0_210], %260 {strides = array<i32>} : memref<784x256xf32, #tpu.memory_space<vmem>>, vector<16x256xf32>,
    %262 = vector.extract_strided_slice %251 {offsets = [0, 80], sizes = [16, 256], strides = [1, 1]} : vector<16x352xf32> to vector<16x256xf32>
    %c656_211 = arith.constant 656 : index
    %c0_212 = arith.constant 0 : index
    %263 = vector.load %arg9[%c656_211, %c0_212] : memref<784x256xf32, #tpu.memory_space<vmem>>, vector<16x256xf32>
    tpu.vector_store %arg9[%c656_211, %c0_212], %262 {strides = array<i32>} : memref<784x256xf32, #tpu.memory_space<vmem>>, vector<16x256xf32>,
    %264 = vector.extract_strided_slice %251 {offsets = [0, 96], sizes = [16, 256], strides = [1, 1]} : vector<16x352xf32> to vector<16x256xf32>
    %c768_213 = arith.constant 768 : index
    %c0_214 = arith.constant 0 : index
    %265 = vector.load %arg9[%c768_213, %c0_214] : memref<784x256xf32, #tpu.memory_space<vmem>>, vector<16x256xf32>
    tpu.vector_store %arg9[%c768_213, %c0_214], %264 {strides = array<i32>} : memref<784x256xf32, #tpu.memory_space<vmem>>, vector<16x256xf32>,
    %c0_215 = arith.constant 0 : index
    %c0_216 = arith.constant 0 : index
    %266 = vector.load %arg5[%c0_215, %c0_216] : memref<16x784xf32, #tpu.memory_space<vmem>>, vector<16x784xf32>
    %c0_217 = arith.constant 0 : index
    %c0_218 = arith.constant 0 : index
    %267 = vector.load %arg9[%c0_217, %c0_218] : memref<784x256xf32, #tpu.memory_space<vmem>>, vector<784x256xf32>
    %cst_219 = arith.constant dense<0.000000e+00> : vector<16x256xf32>
    %268 = tpu.matmul %266, %267, %cst_219 {dimension_numbers = #tpu.dot_dimension_numbers<[1], [0], [0], [1], [0, 0, 1, 1], [], []>} : vector<16x784xf32>, vector<784x256xf32>, vector<16x256xf32> -> vector<16x256xf32>
    %c0_220 = arith.constant 0 : index
    %c0_221 = arith.constant 0 : index
    %269 = vector.load %arg6[%c0_220, %c0_221] : memref<16x1xf32, #tpu.memory_space<vmem>>, vector<16x1xf32>
    %270 = vector.broadcast %269 : vector<16x1xf32> to vector<16x256xf32>
    %271 = arith.addf %268, %270 : vector<16x256xf32>
    %272 = arith.addf %271, %143 : vector<16x256xf32>
    %cst_222 = arith.constant 0.000000e+00 : f32
    %273 = vector.broadcast %cst_222 : f32 to vector<16x256xf32>
    %274 = arith.maximumf %272, %273 : vector<16x256xf32>
    %275 = arith.addf %274, %143 : vector<16x256xf32>
    %cst_223 = arith.constant 0.000000e+00 : f32
    %276 = vector.broadcast %cst_223 : f32 to vector<16x256xf32>
    %277 = arith.maximumf %275, %276 : vector<16x256xf32>
    %278 = vector.shape_cast %277 : vector<16x256xf32> to vector<1x16x256xf32>
    %c0_224 = arith.constant 0 : index
    %c0_225 = arith.constant 0 : index
    %c0_226 = arith.constant 0 : index
    %279 = vector.load %arg7[%c0_224, %c0_225, %c0_226] : memref<1x16x256xf32, #tpu.memory_space<vmem>>, vector<1x16x256xf32>
    tpu.vector_store %arg7[%c0_224, %c0_225, %c0_226], %278 {strides = array<i32>} : memref<1x16x256xf32, #tpu.memory_space<vmem>>, vector<1x16x256xf32>,
    return
  }
  func.func @transform_0(%arg0: i32) -> (i32, i32, i32) {
    %c0_i32 = arith.constant 0 : i32
    %c0_i32_0 = arith.constant 0 : i32
    %c0_i32_1 = arith.constant 0 : i32
    return %arg0, %c0_i32, %c0_i32_0 : i32, i32, i32
  }
  func.func @transform_1(%arg0: i32) -> (i32, i32, i32) {
    %c0_i32 = arith.constant 0 : i32
    %c0_i32_0 = arith.constant 0 : i32
    %c0_i32_1 = arith.constant 0 : i32
    return %arg0, %c0_i32, %c0_i32_0 : i32, i32, i32
  }
  func.func @transform_2(%arg0: i32) -> (i32, i32) {
    %c0_i32 = arith.constant 0 : i32
    %c0_i32_0 = arith.constant 0 : i32
    %c0_i32_1 = arith.constant 0 : i32
    return %c0_i32, %c0_i32_0 : i32, i32
  }
  func.func @transform_3(%arg0: i32) -> (i32, i32) {
    %c0_i32 = arith.constant 0 : i32
    %c0_i32_0 = arith.constant 0 : i32
    %c0_i32_1 = arith.constant 0 : i32
    return %c0_i32, %c0_i32_0 : i32, i32
  }
  func.func @transform_4(%arg0: i32) -> (i32, i32) {
    %c0_i32 = arith.constant 0 : i32
    %c0_i32_0 = arith.constant 0 : i32
    %c0_i32_1 = arith.constant 0 : i32
    return %c0_i32, %c0_i32_0 : i32, i32
  }
  func.func @transform_5(%arg0: i32) -> (i32, i32) {
    %c0_i32 = arith.constant 0 : i32
    %c0_i32_0 = arith.constant 0 : i32
    %c0_i32_1 = arith.constant 0 : i32
    return %c0_i32, %c0_i32_0 : i32, i32
  }
  func.func @transform_6(%arg0: i32) -> (i32, i32, i32) {
    %c0_i32 = arith.constant 0 : i32
    %c0_i32_0 = arith.constant 0 : i32
    %c0_i32_1 = arith.constant 0 : i32
    return %arg0, %c0_i32, %c0_i32_0 : i32, i32, i32
  }
}

</mosaic_0001>

<llo_original>
// kernel: model_forward.1
$region0: #{model_forward.1}
  #allocation0 [shape = 'u32[]', space=smem, size = 0x4, offset = 0x4, fixed_abs, tag = 'smem constant byte address 0x4 - core index']
  #allocation1 [shape = 'u32[144,128]{1,0:T(1,128)}', space=vmem, size = 0x12000, scoped, tag = 'internal scratch']
  #allocation2 [shape = 'f32[22,22,16]{2,1,0:T(8,128)}', space=vmem, size = 0x42000, scoped, tag = 'scratch operand']
  #allocation3 [shape = 'f32[784,256]{1,0:T(8,128)}', space=vmem, size = 0xc4000, scoped, tag = 'scratch operand']
  %s0 = inlined_call_operand.vmem [shape: f32[2,16,256], index: 0, kind: input, shape index: {}]
  %s1 = inlined_call_operand.vmem [shape: f32[2,16,256], index: 1, kind: input, shape index: {}]
  %s2 = inlined_call_operand.vmem [shape: f32[32,784], index: 2, kind: input, shape index: {}]
  %s3 = inlined_call_operand.vmem [shape: f32[32,1], index: 3, kind: input, shape index: {}]
  %s4 = inlined_call_operand.vmem [shape: f32[16,784], index: 4, kind: input, shape index: {}]
  %s5 = inlined_call_operand.vmem [shape: f32[16,1], index: 5, kind: input, shape index: {}]
  %s6 = inlined_call_operand.vmem [shape: f32[2,16,256], index: 6, kind: output, shape index: {}]
  %s7 = sld [smem:[#allocation0]]
  $region57: #{model_forward.1} parent=0
    _
  %s9 = ssub.s32 1, %s7
  %s10 = scalar_select 0, %s9, %s7
  loop: start=0, step=1, limit=4
  $region2: #{model_forward.1} parent=0 // loop_pre_header
    _
  $region3: #{model_forward.1} parent=0 // loop_header
    %s12 = sphi 0, %s16
    %p13 = scmp.ge.s32.totalorder %s12, 4
    %s22 = sphi 0, %s24
    %s25 = sphi 0, %s22
    %s26 = sphi 0, %s25
    %s42 = sphi 0, %s26
    %s48 = sphi 0, %s50
    %s51 = sphi 0, %s48
    %s52 = sphi 0, %s51
    %s68 = sphi 0, %s52
    %s72 = sphi 0, %s72
    %s74 = sphi 0, %s72
    %s75 = sphi 0, %s74
    %s89 = sphi 0, %s75
    %s93 = sphi 0, %s93
    %s95 = sphi 0, %s93
    %s96 = sphi 0, %s95
    %s110 = sphi 0, %s96
    %s114 = sphi 0, %s114
    %s116 = sphi 0, %s114
    %s117 = sphi 0, %s116
    %s131 = sphi 0, %s117
    %s135 = sphi 0, %s135
    %s137 = sphi 0, %s135
    %s138 = sphi 0, %s137
    %s152 = sphi 0, %s138
    %s158 = sphi 0, %s160
    %s161 = sphi 0, %s158
    %s162 = sphi 0, %s161
    %s178 = sphi 0, %s162
  $region4: #{model_forward.1} parent=0 // loop_header_branch
    %15 = sbr.rel (%p13) target = $region8
  $region5: #{model_forward.1} parent=0 // loop_body
    %s17 = ssub.s32 %s12, 1
    %s18 = ssub.s32 %s12, 2
    %s19 = sadd.s32 %s12, 1
    %s20 = ssub.s32 %s12, %s19
    %p21 = scmp.eq.s32.totalorder %s20, 0
    %s23 = sadd.s32 %s22, 1
    %s24 = scalar_select %p21, %s22, %s23
    %p27 = pneg %p21
    %p28 = scmp.eq.s32.totalorder %s12, 1
    %p29 = por %p27, %p28
    %p30 = scmp.ne.s32.totalorder %s22, %s25
    %p31 = scmp.eq.s32.totalorder %s12, 0
    %p32 = por %p30, %p31
    %p33 = scmp.ne.s32.totalorder %s22, %s25
    %p34 = scmp.eq.s32.totalorder %s17, 1
    %p35 = por %p33, %p34
    %p36 = scmp.ne.s32.totalorder %s25, %s26
    %p37 = scmp.eq.s32.totalorder %s17, 0
    %p38 = por %p36, %p37
    %p39 = scmp.ne.s32.totalorder %s25, %s26
    %p40 = scmp.eq.s32.totalorder %s18, 1
    %p41 = por %p39, %p40
    %p43 = scmp.ne.s32.totalorder %s26, %s42
    %p44 = scmp.eq.s32.totalorder %s18, 0
    %p45 = por %p43, %p44
    %s46 = ssub.s32 %s12, %s19
    %p47 = scmp.eq.s32.totalorder %s46, 0
    %s49 = sadd.s32 %s48, 1
    %s50 = scalar_select %p47, %s48, %s49
    %p53 = pneg %p47
    %p54 = scmp.eq.s32.totalorder %s12, 1
    %p55 = por %p53, %p54
    %p56 = scmp.ne.s32.totalorder %s48, %s51
    %p57 = scmp.eq.s32.totalorder %s12, 0
    %p58 = por %p56, %p57
    %p59 = scmp.ne.s32.totalorder %s48, %s51
    %p60 = scmp.eq.s32.totalorder %s17, 1
    %p61 = por %p59, %p60
    %p62 = scmp.ne.s32.totalorder %s51, %s52
    %p63 = scmp.eq.s32.totalorder %s17, 0
    %p64 = por %p62, %p63
    %p65 = scmp.ne.s32.totalorder %s51, %s52
    %p66 = scmp.eq.s32.totalorder %s18, 1
    %p67 = por %p65, %p66
    %p69 = scmp.ne.s32.totalorder %s52, %s68
    %p70 = scmp.eq.s32.totalorder %s18, 0
    %p71 = por %p69, %p70
    %s73 = sadd.s32 %s72, 1
    %p76 = scmp.eq.s32.totalorder %s12, 1
    %p77 = scmp.ne.s32.totalorder %s72, %s74
    %p78 = scmp.eq.s32.totalorder %s12, 0
    %p79 = por %p77, %p78
    %p80 = scmp.ne.s32.totalorder %s72, %s74
    %p81 = scmp.eq.s32.totalorder %s17, 1
    %p82 = por %p80, %p81
    %p83 = scmp.ne.s32.totalorder %s74, %s75
    %p84 = scmp.eq.s32.totalorder %s17, 0
    %p85 = por %p83, %p84
    %p86 = scmp.ne.s32.totalorder %s74, %s75
    %p87 = scmp.eq.s32.totalorder %s18, 1
    %p88 = por %p86, %p87
    %p90 = scmp.ne.s32.totalorder %s75, %s89
    %p91 = scmp.eq.s32.totalorder %s18, 0
    %p92 = por %p90, %p91
    %s94 = sadd.s32 %s93, 1
    %p97 = scmp.eq.s32.totalorder %s12, 1
    %p98 = scmp.ne.s32.totalorder %s93, %s95
    %p99 = scmp.eq.s32.totalorder %s12, 0
    %p100 = por %p98, %p99
    %p101 = scmp.ne.s32.totalorder %s93, %s95
    %p102 = scmp.eq.s32.totalorder %s17, 1
    %p103 = por %p101, %p102
    %p104 = scmp.ne.s32.totalorder %s95, %s96
    %p105 = scmp.eq.s32.totalorder %s17, 0
    %p106 = por %p104, %p105
    %p107 = scmp.ne.s32.totalorder %s95, %s96
    %p108 = scmp.eq.s32.totalorder %s18, 1
    %p109 = por %p107, %p108
    %p111 = scmp.ne.s32.totalorder %s96, %s110
    %p112 = scmp.eq.s32.totalorder %s18, 0
    %p113 = por %p111, %p112
    %s115 = sadd.s32 %s114, 1
    %p118 = scmp.eq.s32.totalorder %s12, 1
    %p119 = scmp.ne.s32.totalorder %s114, %s116
    %p120 = scmp.eq.s32.totalorder %s12, 0
    %p121 = por %p119, %p120
    %p122 = scmp.ne.s32.totalorder %s114, %s116
    %p123 = scmp.eq.s32.totalorder %s17, 1
    %p124 = por %p122, %p123
    %p125 = scmp.ne.s32.totalorder %s116, %s117
    %p126 = scmp.eq.s32.totalorder %s17, 0
    %p127 = por %p125, %p126
    %p128 = scmp.ne.s32.totalorder %s116, %s117
    %p129 = scmp.eq.s32.totalorder %s18, 1
    %p130 = por %p128, %p129
    %p132 = scmp.ne.s32.totalorder %s117, %s131
    %p133 = scmp.eq.s32.totalorder %s18, 0
    %p134 = por %p132, %p133
    %s136 = sadd.s32 %s135, 1
    %p139 = scmp.eq.s32.totalorder %s12, 1
    %p140 = scmp.ne.s32.totalorder %s135, %s137
    %p141 = scmp.eq.s32.totalorder %s12, 0
    %p142 = por %p140, %p141
    %p143 = scmp.ne.s32.totalorder %s135, %s137
    %p144 = scmp.eq.s32.totalorder %s17, 1
    %p145 = por %p143, %p144
    %p146 = scmp.ne.s32.totalorder %s137, %s138
    %p147 = scmp.eq.s32.totalorder %s17, 0
    %p148 = por %p146, %p147
    %p149 = scmp.ne.s32.totalorder %s137, %s138
    %p150 = scmp.eq.s32.totalorder %s18, 1
    %p151 = por %p149, %p150
    %p153 = scmp.ne.s32.totalorder %s138, %s152
    %p154 = scmp.eq.s32.totalorder %s18, 0
    %p155 = por %p153, %p154
    %s156 = ssub.s32 %s12, %s19
    %p157 = scmp.eq.s32.totalorder %s156, 0
    %s159 = sadd.s32 %s158, 1
    %s160 = scalar_select %p157, %s158, %s159
    %p163 = pneg %p157
    %p164 = scmp.eq.s32.totalorder %s12, 1
    %p165 = por %p163, %p164
    %p166 = scmp.ne.s32.totalorder %s158, %s161
    %p167 = scmp.eq.s32.totalorder %s12, 0
    %p168 = por %p166, %p167
    %p169 = scmp.ne.s32.totalorder %s158, %s161
    %p170 = scmp.eq.s32.totalorder %s17, 1
    %p171 = por %p169, %p170
    %p172 = scmp.ne.s32.totalorder %s161, %s162
    %p173 = scmp.eq.s32.totalorder %s17, 0
    %p174 = por %p172, %p173
    %p175 = scmp.ne.s32.totalorder %s161, %s162
    %p176 = scmp.eq.s32.totalorder %s18, 1
    %p177 = por %p175, %p176
    %p179 = scmp.ne.s32.totalorder %s162, %s178
    %p180 = scmp.eq.s32.totalorder %s18, 0
    %p181 = por %p179, %p180
    %p182 = scmp.le.s32.totalorder 1, %s12
    %p183 = scmp.lt.s32.totalorder %s12, 3
    %p184 = pnand %p182, %p183
    %p185 = pneg %p184
    // Predicated region
    $region9: #{model_forward.1} parent=5 // pred_check
      _
    $region10: #{model_forward.1} parent=5 // pred_check_branch
      %187 = sbr.rel (%p184) target = $region12
    $region11: #{model_forward.1} parent=5 // pred_region
      %s188 = ssub.s32 %s12, 1
      // Predicated region
      $region13: #{model_forward.1} parent=11 // pred_check
        %p189 = pneg %p85
      $region14: #{model_forward.1} parent=11 // pred_check_branch
        %191 = sbr.rel (%p189) target = $region16
      $region15: #{model_forward.1} parent=11 // pred_region
        _
      $region16: #{model_forward.1} parent=11 // pred_fallthru
        _
      // Predicated region
      $region17: #{model_forward.1} parent=11 // pred_check
        %p192 = pneg %p106
      $region18: #{model_forward.1} parent=11 // pred_check_branch
        %194 = sbr.rel (%p192) target = $region20
      $region19: #{model_forward.1} parent=11 // pred_region
        _
      $region20: #{model_forward.1} parent=11 // pred_fallthru
        _
      // Predicated region
      $region21: #{model_forward.1} parent=11 // pred_check
        %p195 = pneg %p127
      $region22: #{model_forward.1} parent=11 // pred_check_branch
        %197 = sbr.rel (%p195) target = $region24
      $region23: #{model_forward.1} parent=11 // pred_region
        _
      $region24: #{model_forward.1} parent=11 // pred_fallthru
        _
      // Predicated region
      $region25: #{model_forward.1} parent=11 // pred_check
        %p198 = pneg %p148
      $region26: #{model_forward.1} parent=11 // pred_check_branch
        %200 = sbr.rel (%p198) target = $region28
      $region27: #{model_forward.1} parent=11 // pred_region
        _
      $region28: #{model_forward.1} parent=11 // pred_fallthru
        _
    $region12: #{model_forward.1} parent=5 // pred_fallthru
      _
    %p201 = scmp.lt.s32.totalorder %s12, 2
    // Predicated region
    $region29: #{model_forward.1} parent=5 // pred_check
      %p202 = pneg %p201
    $region30: #{model_forward.1} parent=5 // pred_check_branch
      %204 = sbr.rel (%p202) target = $region32
    $region31: #{model_forward.1} parent=5 // pred_region
      // Predicated region
      $region33: #{model_forward.1} parent=31 // pred_check
        %p205 = pneg %p32
      $region34: #{model_forward.1} parent=31 // pred_check_branch
        %207 = sbr.rel (%p205) target = $region36
      $region35: #{model_forward.1} parent=31 // pred_region
        %p208 = scmp.lt.s32.totalorder %s12, 1
        %s209 = scalar_select %p208, %s12, 1
        %s210 = smul.addr %s209, 4
        %s211 = smul.addr %s210, 8
        %s212 = scalar_lea.vmem %s0, %s211
      $region36: #{model_forward.1} parent=31 // pred_fallthru
        _
      // Predicated region
      $region37: #{model_forward.1} parent=31 // pred_check
        %p213 = pneg %p58
      $region38: #{model_forward.1} parent=31 // pred_check_branch
        %215 = sbr.rel (%p213) target = $region40
      $region39: #{model_forward.1} parent=31 // pred_region
        %p216 = scmp.lt.s32.totalorder %s12, 1
        %s217 = scalar_select %p216, %s12, 1
        %s218 = smul.addr %s217, 4
        %s219 = smul.addr %s218, 8
        %s220 = scalar_lea.vmem %s1, %s219
      $region40: #{model_forward.1} parent=31 // pred_fallthru
        _
    $region32: #{model_forward.1} parent=5 // pred_fallthru
      _
    %p221 = scmp.le.s32.totalorder 1, %s12
    %p222 = scmp.lt.s32.totalorder %s12, 3
    %p223 = pnand %p221, %p222
    %p224 = pneg %p223
    // Predicated region
    $region41: #{model_forward.1} parent=5 // pred_check
      _
    $region42: #{model_forward.1} parent=5 // pred_check_branch
      %226 = sbr.rel (%p223) target = $region44
    $region43: #{model_forward.1} parent=5 // pred_region
      %s227 = ssub.s32 %s12, 1
      %p228 = scmp.lt.s32.totalorder %s17, 1
      %s229 = scalar_select %p228, %s17, 1
      %s230 = smul.addr %s229, 4
      %s231 = smul.addr %s230, 8
      %s232 = scalar_lea.vmem %s0, %s231
      %p233 = pneg %p38
      %p234 = pneg %p35
      %p235 = scmp.lt.s32.totalorder %s17, 1
      %s236 = scalar_select %p235, %s17, 1
      %s237 = smul.addr %s236, 4
      %s238 = smul.addr %s237, 8
      %s239 = scalar_lea.vmem %s1, %s238
      %p240 = pneg %p64
      %p241 = pneg %p61
      %p242 = pneg %p85
      %p243 = pneg %p82
      %p244 = pneg %p106
      %p245 = pneg %p103
      %p246 = pneg %p127
      %p247 = pneg %p124
      %p248 = pneg %p148
      %p249 = pneg %p145
      %p250 = pneg %p174
      %p251 = pneg %p171
      %p252 = scmp.lt.s32.totalorder %s17, 1
      %s253 = scalar_select %p252, %s17, 1
      %s254 = smul.addr %s253, 4
      %s255 = smul.addr %s254, 8
      %s256 = scalar_lea.vmem %s6, %s255
      %p257 = scmp.lt.s32.totalorder %s17, 1
      %s258 = scalar_select %p257, %s17, 1
      %s259 = smul.addr %s258, 4
      %s260 = smul.addr %s259, 8
      %s261 = scalar_lea.vmem %s0, %s260
      %p262 = scmp.lt.s32.totalorder %s17, 1
      %s263 = scalar_select %p262, %s17, 1
      %s264 = smul.addr %s263, 4
      %s265 = smul.addr %s264, 8
      %s266 = scalar_lea.vmem %s1, %s265
      %p267 = scmp.lt.s32.totalorder %s17, 1
      %s268 = scalar_select %p267, %s17, 1
      %s269 = smul.addr %s268, 4
      %s270 = smul.addr %s269, 8
      %s271 = scalar_lea.vmem %s6, %s270
      %vm272 = vcmask 130048
      %273 = vst.msk [vmem:[#allocation2] sm:$0xff] %vm272, 0.0
      %274 = vst.msk [vmem:[#allocation2 + $0x8] sm:$0xff] %vm272, 0.0
      %vm275 = vcmask 128000
      %276 = vst.msk [vmem:[#allocation2 + $0x10] sm:$0x3f] %vm275, 0.0
      %277 = vst.msk [vmem:[#allocation2 + $0x18] sm:$0xff] %vm272, 0.0
      %278 = vst.msk [vmem:[#allocation2 + $0x20] sm:$0xff] %vm272, 0.0
      %279 = vst.msk [vmem:[#allocation2 + $0x28] sm:$0x3f] %vm275, 0.0
      %280 = vst.msk [vmem:[#allocation2 + $0x30] sm:$0xff] %vm272, 0.0
      %281 = vst.msk [vmem:[#allocation2 + $0x38] sm:$0xff] %vm272, 0.0
      %282 = vst.msk [vmem:[#allocation2 + $0x40] sm:$0x3f] %vm275, 0.0
      %s283 = scalar_lea.vmem [#allocation2], 456
      %284 = vst.msk [vmem:[%s283] sm:$0xff] %vm272, 0.0
      %285 = vst.msk [vmem:[%s283 + $0x8] sm:$0xff] %vm272, 0.0
      %286 = vst.msk [vmem:[%s283 + $0x10] sm:$0x3f] %vm275, 0.0
      %287 = vst.msk [vmem:[%s283 + $0x18] sm:$0xff] %vm272, 0.0
      %288 = vst.msk [vmem:[%s283 + $0x20] sm:$0xff] %vm272, 0.0
      %289 = vst.msk [vmem:[%s283 + $0x28] sm:$0x3f] %vm275, 0.0
      %290 = vst.msk [vmem:[%s283 + $0x30] sm:$0xff] %vm272, 0.0
      %291 = vst.msk [vmem:[%s283 + $0x38] sm:$0xff] %vm272, 0.0
      %292 = vst.msk [vmem:[%s283 + $0x40] sm:$0x3f] %vm275, 0.0
      %s293 = scalar_lea.vmem [#allocation2], 72
      %vm294 = vcmask 124928
      %295 = vst.msk [vmem:[%s293] sm:$0x7] %vm294, 0.0
      %296 = vst.msk [vmem:[%s293 + $0x18] sm:$0x7] %vm294, 0.0
      %297 = vst.msk [vmem:[%s293 + $0x30] sm:$0x7] %vm294, 0.0
      %298 = vst.msk [vmem:[%s293 + $0x48] sm:$0x7] %vm294, 0.0
      %299 = vst.msk [vmem:[%s293 + $0x60] sm:$0x7] %vm294, 0.0
      %300 = vst.msk [vmem:[%s293 + $0x78] sm:$0x7] %vm294, 0.0
      %301 = vst.msk [vmem:[%s293 + $0x90] sm:$0x7] %vm294, 0.0
      %302 = vst.msk [vmem:[%s293 + $0xa8] sm:$0x7] %vm294, 0.0
      %303 = vst.msk [vmem:[%s293 + $0xc0] sm:$0x7] %vm294, 0.0
      %304 = vst.msk [vmem:[%s293 + $0xd8] sm:$0x7] %vm294, 0.0
      %305 = vst.msk [vmem:[%s293 + $0xf0] sm:$0x7] %vm294, 0.0
      %306 = vst.msk [vmem:[%s293 + $0x108] sm:$0x7] %vm294, 0.0
      %307 = vst.msk [vmem:[%s293 + $0x120] sm:$0x7] %vm294, 0.0
      %308 = vst.msk [vmem:[%s293 + $0x138] sm:$0x7] %vm294, 0.0
      %309 = vst.msk [vmem:[%s293 + $0x150] sm:$0x7] %vm294, 0.0
      %310 = vst.msk [vmem:[%s293 + $0x168] sm:$0x7] %vm294, 0.0
      %311 = vst.msk [vmem:[%s293 + $0x13] sm:$0x7] %vm294, 0.0
      %312 = vst.msk [vmem:[%s293 + $0x2b] sm:$0x7] %vm294, 0.0
      %313 = vst.msk [vmem:[%s293 + $0x43] sm:$0x7] %vm294, 0.0
      %314 = vst.msk [vmem:[%s293 + $0x5b] sm:$0x7] %vm294, 0.0
      %315 = vst.msk [vmem:[%s293 + $0x73] sm:$0x7] %vm294, 0.0
      %316 = vst.msk [vmem:[%s293 + $0x8b] sm:$0x7] %vm294, 0.0
      %317 = vst.msk [vmem:[%s293 + $0xa3] sm:$0x7] %vm294, 0.0
      %318 = vst.msk [vmem:[%s293 + $0xbb] sm:$0x7] %vm294, 0.0
      %319 = vst.msk [vmem:[%s293 + $0xd3] sm:$0x7] %vm294, 0.0
      %320 = vst.msk [vmem:[%s293 + $0xeb] sm:$0x7] %vm294, 0.0
      %321 = vst.msk [vmem:[%s293 + $0x103] sm:$0x7] %vm294, 0.0
      %322 = vst.msk [vmem:[%s293 + $0x11b] sm:$0x7] %vm294, 0.0
      %323 = vst.msk [vmem:[%s293 + $0x133] sm:$0x7] %vm294, 0.0
      %324 = vst.msk [vmem:[%s293 + $0x14b] sm:$0x7] %vm294, 0.0
      %325 = vst.msk [vmem:[%s293 + $0x163] sm:$0x7] %vm294, 0.0
      %326 = vst.msk [vmem:[%s293 + $0x17b] sm:$0x7] %vm294, 0.0
      %v327 = vld [vmem:[%s261] sm:$0xff]
      %v328 = vld [vmem:[%s261 + $0x8] sm:$0xff]
      %v329 = vld [vmem:[%s261 + $0x10] sm:$0xff]
      %v330 = vld [vmem:[%s261 + $0x18] sm:$0xff]
      %331 = vxpose.xlu0.b32.start [1/16] %v327, 128
      %332 = vxpose.xlu0.b32.cont [2/16] %v329, 128
      %333 = vxpose.xlu0.b32.cont [3/16] 0.0, 128
      %334 = vxpose.xlu0.b32.cont [4/16] 0.0, 128
      %335 = vxpose.xlu0.b32.cont [5/16] 0.0, 128
      %336 = vxpose.xlu0.b32.cont [6/16] 0.0, 128
      %337 = vxpose.xlu0.b32.cont [7/16] 0.0, 128
      %338 = vxpose.xlu0.b32.cont [8/16] 0.0, 128
      %339 = vxpose.xlu0.b32.cont [9/16] 0.0, 128
      %340 = vxpose.xlu0.b32.cont [10/16] 0.0, 128
      %341 = vxpose.xlu0.b32.cont [11/16] 0.0, 128
      %342 = vxpose.xlu0.b32.cont [12/16] 0.0, 128
      %343 = vxpose.xlu0.b32.cont [13/16] 0.0, 128
      %344 = vxpose.xlu0.b32.cont [14/16] 0.0, 128
      %345 = vxpose.xlu0.b32.cont [15/16] 0.0, 128
      %346 = vxpose.xlu0.b32.end [16/16] 0.0, 128
      %v347 = vpop.trf.xlu0
      %v348 = vpop.trf.xlu0
      %v349 = vpop.trf.xlu0
      %v350 = vpop.trf.xlu0
      %v351 = vpop.trf.xlu0
      %v352 = vpop.trf.xlu0
      %v353 = vpop.trf.xlu0
      %v354 = vpop.trf.xlu0
      %v355 = vpop.trf.xlu0
      %v356 = vpop.trf.xlu0
      %v357 = vpop.trf.xlu0
      %v358 = vpop.trf.xlu0
      %v359 = vpop.trf.xlu0
      %v360 = vpop.trf.xlu0
      %v361 = vpop.trf.xlu0
      %v362 = vpop.trf.xlu0
      %363 = vxpose.xlu0.b32.start [1/16] %v328, 128
      %364 = vxpose.xlu0.b32.cont [2/16] %v330, 128
      %365 = vxpose.xlu0.b32.cont [3/16] 0.0, 128
      %366 = vxpose.xlu0.b32.cont [4/16] 0.0, 128
      %367 = vxpose.xlu0.b32.cont [5/16] 0.0, 128
      %368 = vxpose.xlu0.b32.cont [6/16] 0.0, 128
      %369 = vxpose.xlu0.b32.cont [7/16] 0.0, 128
      %370 = vxpose.xlu0.b32.cont [8/16] 0.0, 128
      %371 = vxpose.xlu0.b32.cont [9/16] 0.0, 128
      %372 = vxpose.xlu0.b32.cont [10/16] 0.0, 128
      %373 = vxpose.xlu0.b32.cont [11/16] 0.0, 128
      %374 = vxpose.xlu0.b32.cont [12/16] 0.0, 128
      %375 = vxpose.xlu0.b32.cont [13/16] 0.0, 128
      %376 = vxpose.xlu0.b32.cont [14/16] 0.0, 128
      %377 = vxpose.xlu0.b32.cont [15/16] 0.0, 128
      %378 = vxpose.xlu0.b32.end [16/16] 0.0, 128
      %v379 = vpop.trf.xlu0
      %v380 = vpop.trf.xlu0
      %v381 = vpop.trf.xlu0
      %v382 = vpop.trf.xlu0
      %v383 = vpop.trf.xlu0
      %v384 = vpop.trf.xlu0
      %v385 = vpop.trf.xlu0
      %v386 = vpop.trf.xlu0
      %v387 = vpop.trf.xlu0
      %v388 = vpop.trf.xlu0
      %v389 = vpop.trf.xlu0
      %v390 = vpop.trf.xlu0
      %v391 = vpop.trf.xlu0
      %v392 = vpop.trf.xlu0
      %v393 = vpop.trf.xlu0
      %v394 = vpop.trf.xlu0
      %395 = vst.msk [vmem:[%s293 + $0x3] sm:$0xff] %vm272, %v347
      %396 = vst.msk [vmem:[%s293 + $0xb] sm:$0xff] %vm272, %v348
      %397 = vst.msk [vmem:[%s293 + $0x1b] sm:$0xff] %vm272, %v349
      %398 = vst.msk [vmem:[%s293 + $0x23] sm:$0xff] %vm272, %v350
      %399 = vst.msk [vmem:[%s293 + $0x33] sm:$0xff] %vm272, %v351
      %400 = vst.msk [vmem:[%s293 + $0x3b] sm:$0xff] %vm272, %v352
      %401 = vst.msk [vmem:[%s293 + $0x4b] sm:$0xff] %vm272, %v353
      %402 = vst.msk [vmem:[%s293 + $0x53] sm:$0xff] %vm272, %v354
      %403 = vst.msk [vmem:[%s293 + $0x63] sm:$0xff] %vm272, %v355
      %404 = vst.msk [vmem:[%s293 + $0x6b] sm:$0xff] %vm272, %v356
      %405 = vst.msk [vmem:[%s293 + $0x7b] sm:$0xff] %vm272, %v357
      %406 = vst.msk [vmem:[%s293 + $0x83] sm:$0xff] %vm272, %v358
      %407 = vst.msk [vmem:[%s293 + $0x93] sm:$0xff] %vm272, %v359
      %408 = vst.msk [vmem:[%s293 + $0x9b] sm:$0xff] %vm272, %v360
      %409 = vst.msk [vmem:[%s293 + $0xab] sm:$0xff] %vm272, %v361
      %410 = vst.msk [vmem:[%s293 + $0xb3] sm:$0xff] %vm272, %v362
      %411 = vst.msk [vmem:[%s293 + $0xc3] sm:$0xff] %vm272, %v379
      %412 = vst.msk [vmem:[%s293 + $0xcb] sm:$0xff] %vm272, %v380
      %413 = vst.msk [vmem:[%s293 + $0xdb] sm:$0xff] %vm272, %v381
      %414 = vst.msk [vmem:[%s293 + $0xe3] sm:$0xff] %vm272, %v382
      %415 = vst.msk [vmem:[%s293 + $0xf3] sm:$0xff] %vm272, %v383
      %416 = vst.msk [vmem:[%s293 + $0xfb] sm:$0xff] %vm272, %v384
      %417 = vst.msk [vmem:[%s293 + $0x10b] sm:$0xff] %vm272, %v385
      %418 = vst.msk [vmem:[%s293 + $0x113] sm:$0xff] %vm272, %v386
      %419 = vst.msk [vmem:[%s293 + $0x123] sm:$0xff] %vm272, %v387
      %420 = vst.msk [vmem:[%s293 + $0x12b] sm:$0xff] %vm272, %v388
      %421 = vst.msk [vmem:[%s293 + $0x13b] sm:$0xff] %vm272, %v389
      %422 = vst.msk [vmem:[%s293 + $0x143] sm:$0xff] %vm272, %v390
      %423 = vst.msk [vmem:[%s293 + $0x153] sm:$0xff] %vm272, %v391
      %424 = vst.msk [vmem:[%s293 + $0x15b] sm:$0xff] %vm272, %v392
      %425 = vst.msk [vmem:[%s293 + $0x16b] sm:$0xff] %vm272, %v393
      %426 = vst.msk [vmem:[%s293 + $0x173] sm:$0xff] %vm272, %v394
      %v427 = vld [vmem:[#allocation2] sm:$0xff]
      %v428 = vld [vmem:[#allocation2 + $0x8] sm:$0xff]
      %v429 = vld [vmem:[#allocation2 + $0x18] sm:$0xff]
      %v430 = vld [vmem:[#allocation2 + $0x20] sm:$0xff]
      %v431 = vld [vmem:[#allocation2 + $0x30] sm:$0xff]
      %v432 = vld [vmem:[#allocation2 + $0x38] sm:$0xff]
      %v433 = vld [vmem:[#allocation2 + $0x48] sm:$0xff]
      %v434 = vld [vmem:[#allocation2 + $0x50] sm:$0xff]
      %v435 = vld [vmem:[#allocation2 + $0x60] sm:$0xff]
      %v436 = vld [vmem:[#allocation2 + $0x68] sm:$0xff]
      %v437 = vld [vmem:[#allocation2 + $0x78] sm:$0xff]
      %v438 = vld [vmem:[#allocation2 + $0x80] sm:$0xff]
      %v439 = vld [vmem:[#allocation2 + $0x90] sm:$0xff]
      %v440 = vld [vmem:[#allocation2 + $0x98] sm:$0xff]
      %v441 = vld [vmem:[#allocation2 + $0xa8] sm:$0xff]
      %v442 = vld [vmem:[#allocation2 + $0xb0] sm:$0xff]
      %v443 = vld [vmem:[#allocation2 + $0xc0] sm:$0xff]
      %v444 = vld [vmem:[#allocation2 + $0xc8] sm:$0xff]
      %v445 = vld [vmem:[#allocation2 + $0xd8] sm:$0xff]
      %v446 = vld [vmem:[#allocation2 + $0xe0] sm:$0xff]
      %v447 = vld [vmem:[#allocation2 + $0xf0] sm:$0xff]
      %v448 = vld [vmem:[#allocation2 + $0xf8] sm:$0xff]
      %v449 = vld [vmem:[#allocation2 + $0x108] sm:$0xff]
      %v450 = vld [vmem:[#allocation2 + $0x110] sm:$0xff]
      %v451 = vld [vmem:[#allocation2 + $0x120] sm:$0xff]
      %v452 = vld [vmem:[#allocation2 + $0x128] sm:$0xff]
      %v453 = vld [vmem:[#allocation2 + $0x138] sm:$0xff]
      %v454 = vld [vmem:[#allocation2 + $0x140] sm:$0xff]
      %v455 = vld [vmem:[#allocation2 + $0x150] sm:$0xff]
      %v456 = vld [vmem:[#allocation2 + $0x158] sm:$0xff]
      %v457 = vld [vmem:[#allocation2 + $0x168] sm:$0xff]
      %v458 = vld [vmem:[#allocation2 + $0x170] sm:$0xff]
      %v459 = vld [vmem:[#allocation2 + $0x180] sm:$0xff]
      %v460 = vld [vmem:[#allocation2 + $0x188] sm:$0xff]
      %v461 = vld [vmem:[#allocation2 + $0x198] sm:$0xff]
      %v462 = vld [vmem:[#allocation2 + $0x1a0] sm:$0xff]
      %v463 = vld [vmem:[#allocation2 + $0x1b0] sm:$0xff]
      %v464 = vld [vmem:[#allocation2 + $0x1b8] sm:$0xff]
      %v465 = vld [vmem:[#allocation2 + $0x1c8] sm:$0xff]
      %v466 = vld [vmem:[#allocation2 + $0x1d0] sm:$0xff]
      %v467 = vld [vmem:[#allocation2 + $0x1e0] sm:$0xff]
      %v468 = vld [vmem:[#allocation2 + $0x1e8] sm:$0xff]
      %v469 = vld [vmem:[#allocation2 + $0x1f8] sm:$0xff]
      %v470 = vld [vmem:[#allocation2 + $0x200] sm:$0xff]
      %471 = vxpose.xlu0.b32.start [1/16] %v427, 128
      %472 = vxpose.xlu0.b32.cont [2/16] %v428, 128
      %473 = vxpose.xlu0.b32.cont [3/16] %v429, 128
      %474 = vxpose.xlu0.b32.cont [4/16] %v430, 128
      %475 = vxpose.xlu0.b32.cont [5/16] %v431, 128
      %476 = vxpose.xlu0.b32.cont [6/16] %v432, 128
      %477 = vxpose.xlu0.b32.cont [7/16] %v433, 128
      %478 = vxpose.xlu0.b32.cont [8/16] %v434, 128
      %479 = vxpose.xlu0.b32.cont [9/16] %v435, 128
      %480 = vxpose.xlu0.b32.cont [10/16] %v436, 128
      %481 = vxpose.xlu0.b32.cont [11/16] %v437, 128
      %482 = vxpose.xlu0.b32.cont [12/16] %v438, 128
      %483 = vxpose.xlu0.b32.cont [13/16] %v439, 128
      %484 = vxpose.xlu0.b32.cont [14/16] %v440, 128
      %485 = vxpose.xlu0.b32.cont [15/16] %v441, 128
      %486 = vxpose.xlu0.b32.end [16/16] %v442, 128
      %v487 = vpop.trf.xlu0
      %v488 = vpop.trf.xlu0
      %v489 = vpop.trf.xlu0
      %v490 = vpop.trf.xlu0
      %v491 = vpop.trf.xlu0
      %v492 = vpop.trf.xlu0
      %v493 = vpop.trf.xlu0
      %v494 = vpop.trf.xlu0
      %v495 = vpop.trf.xlu0
      %v496 = vpop.trf.xlu0
      %v497 = vpop.trf.xlu0
      %v498 = vpop.trf.xlu0
      %v499 = vpop.trf.xlu0
      %v500 = vpop.trf.xlu0
      %v501 = vpop.trf.xlu0
      %v502 = vpop.trf.xlu0
      %503 = vxpose.xlu0.b32.start [1/16] %v443, 128
      %504 = vxpose.xlu0.b32.cont [2/16] %v444, 128
      %505 = vxpose.xlu0.b32.cont [3/16] %v445, 128
      %506 = vxpose.xlu0.b32.cont [4/16] %v446, 128
      %507 = vxpose.xlu0.b32.cont [5/16] %v447, 128
      %508 = vxpose.xlu0.b32.cont [6/16] %v448, 128
      %509 = vxpose.xlu0.b32.cont [7/16] %v449, 128
      %510 = vxpose.xlu0.b32.cont [8/16] %v450, 128
      %511 = vxpose.xlu0.b32.cont [9/16] %v451, 128
      %512 = vxpose.xlu0.b32.cont [10/16] %v452, 128
      %513 = vxpose.xlu0.b32.cont [11/16] %v453, 128
      %514 = vxpose.xlu0.b32.cont [12/16] %v454, 128
      %515 = vxpose.xlu0.b32.cont [13/16] %v455, 128
      %516 = vxpose.xlu0.b32.cont [14/16] %v456, 128
      %517 = vxpose.xlu0.b32.cont [15/16] %v457, 128
      %518 = vxpose.xlu0.b32.end [16/16] %v458, 128
      %v519 = vpop.trf.xlu0
      %v520 = vpop.trf.xlu0
      %v521 = vpop.trf.xlu0
      %v522 = vpop.trf.xlu0
      %v523 = vpop.trf.xlu0
      %v524 = vpop.trf.xlu0
      %v525 = vpop.trf.xlu0
      %v526 = vpop.trf.xlu0
      %v527 = vpop.trf.xlu0
      %v528 = vpop.trf.xlu0
      %v529 = vpop.trf.xlu0
      %v530 = vpop.trf.xlu0
      %v531 = vpop.trf.xlu0
      %v532 = vpop.trf.xlu0
      %v533 = vpop.trf.xlu0
      %v534 = vpop.trf.xlu0
      %535 = vxpose.xlu0.b32.start [1/16] %v459, 128
      %536 = vxpose.xlu0.b32.cont [2/16] %v460, 128
      %537 = vxpose.xlu0.b32.cont [3/16] %v461, 128
      %538 = vxpose.xlu0.b32.cont [4/16] %v462, 128
      %539 = vxpose.xlu0.b32.cont [5/16] %v463, 128
      %540 = vxpose.xlu0.b32.cont [6/16] %v464, 128
      %541 = vxpose.xlu0.b32.cont [7/16] %v465, 128
      %542 = vxpose.xlu0.b32.cont [8/16] %v466, 128
      %543 = vxpose.xlu0.b32.cont [9/16] %v467, 128
      %544 = vxpose.xlu0.b32.cont [10/16] %v468, 128
      %545 = vxpose.xlu0.b32.cont [11/16] %v469, 128
      %546 = vxpose.xlu0.b32.cont [12/16] %v470, 128
      %547 = vxpose.xlu0.b32.cont [13/16] 0.0, 128
      %548 = vxpose.xlu0.b32.cont [14/16] 0.0, 128
      %549 = vxpose.xlu0.b32.cont [15/16] 0.0, 128
      %550 = vxpose.xlu0.b32.end [16/16] 0.0, 128
      %v551 = vpop.trf.xlu0
      %v552 = vpop.trf.xlu0
      %v553 = vpop.trf.xlu0
      %v554 = vpop.trf.xlu0
      %v555 = vpop.trf.xlu0
      %v556 = vpop.trf.xlu0
      %v557 = vpop.trf.xlu0
      %v558 = vpop.trf.xlu0
      %v559 = vpop.trf.xlu0
      %v560 = vpop.trf.xlu0
      %v561 = vpop.trf.xlu0
      %v562 = vpop.trf.xlu0
      %v563 = vpop.trf.xlu0
      %v564 = vpop.trf.xlu0
      %v565 = vpop.trf.xlu0
      %v566 = vpop.trf.xlu0
      %567 = vst [vmem:[#allocation3] sm:$0xff] %v487
      %568 = vst [vmem:[#allocation3 + $0x8] sm:$0xff] %v519
      %569 = vst [vmem:[#allocation3 + $0x10] sm:$0xff] %v488
      %570 = vst [vmem:[#allocation3 + $0x18] sm:$0xff] %v520
      %577 = vrot.lane.b32.xlu0 %v487, 112
      %v578 = vpop.permute.xlu0 %577
      %579 = vrot.lane.b32.xlu0 %v519, 112
      %v580 = vpop.permute.xlu0 %579
      %581 = vrot.lane.b32.xlu0 %v551, 112
      %v582 = vpop.permute.xlu0 %581
      %583 = vrot.lane.b32.xlu0 %v488, 112
      %v584 = vpop.permute.xlu0 %583
      %585 = vrot.lane.b32.xlu0 %v520, 112
      %v586 = vpop.permute.xlu0 %585
      %587 = vrot.lane.b32.xlu0 %v552, 112
      %v588 = vpop.permute.xlu0 %587
      %vm589 = vcmask 916480
      %v590 = vsel %vm589, %v578, %v580
      %v591 = vsel %vm589, %v580, %v582
      %v592 = vsel %vm589, %v584, %v586
      %v593 = vsel %vm589, %v586, %v588
      %598 = vst [vmem:[#allocation3 + $0xe0] sm:$0xff] %v590
      %599 = vst [vmem:[#allocation3 + $0xe8] sm:$0xff] %v591
      %600 = vst [vmem:[#allocation3 + $0xf0] sm:$0xff] %v592
      %601 = vst [vmem:[#allocation3 + $0xf8] sm:$0xff] %v593
      %602 = vrot.lane.b32.xlu0 %v487, 96
      %v603 = vpop.permute.xlu0 %602
      %604 = vrot.lane.b32.xlu0 %v519, 96
      %v605 = vpop.permute.xlu0 %604
      %606 = vrot.lane.b32.xlu0 %v551, 96
      %v607 = vpop.permute.xlu0 %606
      %608 = vrot.lane.b32.xlu0 %v488, 96
      %v609 = vpop.permute.xlu0 %608
      %610 = vrot.lane.b32.xlu0 %v520, 96
      %v611 = vpop.permute.xlu0 %610
      %612 = vrot.lane.b32.xlu0 %v552, 96
      %v613 = vpop.permute.xlu0 %612
      %vm614 = vcmask 785408
      %v615 = vsel %vm614, %v603, %v605
      %v616 = vsel %vm614, %v605, %v607
      %v617 = vsel %vm614, %v609, %v611
      %v618 = vsel %vm614, %v611, %v613
      %623 = vst [vmem:[#allocation3 + $0x1c0] sm:$0xff] %v615
      %624 = vst [vmem:[#allocation3 + $0x1c8] sm:$0xff] %v616
      %625 = vst [vmem:[#allocation3 + $0x1d0] sm:$0xff] %v617
      %626 = vst [vmem:[#allocation3 + $0x1d8] sm:$0xff] %v618
      %627 = vrot.lane.b32.xlu0 %v487, 80
      %v628 = vpop.permute.xlu0 %627
      %629 = vrot.lane.b32.xlu0 %v519, 80
      %v630 = vpop.permute.xlu0 %629
      %631 = vrot.lane.b32.xlu0 %v551, 80
      %v632 = vpop.permute.xlu0 %631
      %633 = vrot.lane.b32.xlu0 %v488, 80
      %v634 = vpop.permute.xlu0 %633
      %635 = vrot.lane.b32.xlu0 %v520, 80
      %v636 = vpop.permute.xlu0 %635
      %637 = vrot.lane.b32.xlu0 %v552, 80
      %v638 = vpop.permute.xlu0 %637
      %vm639 = vcmask 654336
      %v640 = vsel %vm639, %v628, %v630
      %v641 = vsel %vm639, %v630, %v632
      %v642 = vsel %vm639, %v634, %v636
      %v643 = vsel %vm639, %v636, %v638
      %648 = vst [vmem:[#allocation3 + $0x2a0] sm:$0xff] %v640
      %649 = vst [vmem:[#allocation3 + $0x2a8] sm:$0xff] %v641
      %650 = vst [vmem:[#allocation3 + $0x2b0] sm:$0xff] %v642
      %651 = vst [vmem:[#allocation3 + $0x2b8] sm:$0xff] %v643
      %652 = vrot.lane.b32.xlu0 %v487, 64
      %v653 = vpop.permute.xlu0 %652
      %654 = vrot.lane.b32.xlu0 %v519, 64
      %v655 = vpop.permute.xlu0 %654
      %656 = vrot.lane.b32.xlu0 %v551, 64
      %v657 = vpop.permute.xlu0 %656
      %658 = vrot.lane.b32.xlu0 %v488, 64
      %v659 = vpop.permute.xlu0 %658
      %660 = vrot.lane.b32.xlu0 %v520, 64
      %v661 = vpop.permute.xlu0 %660
      %662 = vrot.lane.b32.xlu0 %v552, 64
      %v663 = vpop.permute.xlu0 %662
      %vm664 = vcmask 523264
      %v665 = vsel %vm664, %v653, %v655
      %v666 = vsel %vm664, %v655, %v657
      %v667 = vsel %vm664, %v659, %v661
      %v668 = vsel %vm664, %v661, %v663
      %673 = vst [vmem:[#allocation3 + $0x380] sm:$0xff] %v665
      %674 = vst [vmem:[#allocation3 + $0x388] sm:$0xff] %v666
      %675 = vst [vmem:[#allocation3 + $0x390] sm:$0xff] %v667
      %676 = vst [vmem:[#allocation3 + $0x398] sm:$0xff] %v668
      %677 = vrot.lane.b32.xlu0 %v487, 48
      %v678 = vpop.permute.xlu0 %677
      %679 = vrot.lane.b32.xlu0 %v519, 48
      %v680 = vpop.permute.xlu0 %679
      %681 = vrot.lane.b32.xlu0 %v551, 48
      %v682 = vpop.permute.xlu0 %681
      %683 = vrot.lane.b32.xlu0 %v488, 48
      %v684 = vpop.permute.xlu0 %683
      %685 = vrot.lane.b32.xlu0 %v520, 48
      %v686 = vpop.permute.xlu0 %685
      %687 = vrot.lane.b32.xlu0 %v552, 48
      %v688 = vpop.permute.xlu0 %687
      %vm689 = vcmask 392192
      %v690 = vsel %vm689, %v678, %v680
      %v691 = vsel %vm689, %v680, %v682
      %v692 = vsel %vm689, %v684, %v686
      %v693 = vsel %vm689, %v686, %v688
      %698 = vst [vmem:[#allocation3 + $0x460] sm:$0xff] %v690
      %699 = vst [vmem:[#allocation3 + $0x468] sm:$0xff] %v691
      %700 = vst [vmem:[#allocation3 + $0x470] sm:$0xff] %v692
      %701 = vst [vmem:[#allocation3 + $0x478] sm:$0xff] %v693
      %702 = vrot.lane.b32.xlu0 %v487, 32
      %v703 = vpop.permute.xlu0 %702
      %704 = vrot.lane.b32.xlu0 %v519, 32
      %v705 = vpop.permute.xlu0 %704
      %706 = vrot.lane.b32.xlu0 %v551, 32
      %v707 = vpop.permute.xlu0 %706
      %708 = vrot.lane.b32.xlu0 %v488, 32
      %v709 = vpop.permute.xlu0 %708
      %710 = vrot.lane.b32.xlu0 %v520, 32
      %v711 = vpop.permute.xlu0 %710
      %712 = vrot.lane.b32.xlu0 %v552, 32
      %v713 = vpop.permute.xlu0 %712
      %vm714 = vcmask 261120
      %v715 = vsel %vm714, %v703, %v705
      %v716 = vsel %vm714, %v705, %v707
      %v717 = vsel %vm714, %v709, %v711
      %v718 = vsel %vm714, %v711, %v713
      %723 = vst [vmem:[#allocation3 + $0x540] sm:$0xff] %v715
      %724 = vst [vmem:[#allocation3 + $0x548] sm:$0xff] %v716
      %725 = vst [vmem:[#allocation3 + $0x550] sm:$0xff] %v717
      %726 = vst [vmem:[#allocation3 + $0x558] sm:$0xff] %v718
      %v727 = vld [vmem:[#allocation2 + $0x1] sm:$0xff]
      %v728 = vld [vmem:[#allocation2 + $0x9] sm:$0xff]
      %v729 = vld [vmem:[#allocation2 + $0x19] sm:$0xff]
      %v730 = vld [vmem:[#allocation2 + $0x21] sm:$0xff]
      %v731 = vld [vmem:[#allocation2 + $0x31] sm:$0xff]
      %v732 = vld [vmem:[#allocation2 + $0x39] sm:$0xff]
      %v733 = vld [vmem:[#allocation2 + $0x49] sm:$0xff]
      %v734 = vld [vmem:[#allocation2 + $0x51] sm:$0xff]
      %v735 = vld [vmem:[#allocation2 + $0x61] sm:$0xff]
      %v736 = vld [vmem:[#allocation2 + $0x69] sm:$0xff]
      %v737 = vld [vmem:[#allocation2 + $0x79] sm:$0xff]
      %v738 = vld [vmem:[#allocation2 + $0x81] sm:$0xff]
      %v739 = vld [vmem:[#allocation2 + $0x91] sm:$0xff]
      %v740 = vld [vmem:[#allocation2 + $0x99] sm:$0xff]
      %v741 = vld [vmem:[#allocation2 + $0xa9] sm:$0xff]
      %v742 = vld [vmem:[#allocation2 + $0xb1] sm:$0xff]
      %v743 = vld [vmem:[#allocation2 + $0xc1] sm:$0xff]
      %v744 = vld [vmem:[#allocation2 + $0xc9] sm:$0xff]
      %v745 = vld [vmem:[#allocation2 + $0xd9] sm:$0xff]
      %v746 = vld [vmem:[#allocation2 + $0xe1] sm:$0xff]
      %v747 = vld [vmem:[#allocation2 + $0xf1] sm:$0xff]
      %v748 = vld [vmem:[#allocation2 + $0xf9] sm:$0xff]
      %v749 = vld [vmem:[#allocation2 + $0x109] sm:$0xff]
      %v750 = vld [vmem:[#allocation2 + $0x111] sm:$0xff]
      %v751 = vld [vmem:[#allocation2 + $0x121] sm:$0xff]
      %v752 = vld [vmem:[#allocation2 + $0x129] sm:$0xff]
      %v753 = vld [vmem:[#allocation2 + $0x139] sm:$0xff]
      %v754 = vld [vmem:[#allocation2 + $0x141] sm:$0xff]
      %v755 = vld [vmem:[#allocation2 + $0x151] sm:$0xff]
      %v756 = vld [vmem:[#allocation2 + $0x159] sm:$0xff]
      %v757 = vld [vmem:[#allocation2 + $0x169] sm:$0xff]
      %v758 = vld [vmem:[#allocation2 + $0x171] sm:$0xff]
      %v759 = vld [vmem:[#allocation2 + $0x181] sm:$0xff]
      %v760 = vld [vmem:[#allocation2 + $0x189] sm:$0xff]
      %v761 = vld [vmem:[#allocation2 + $0x199] sm:$0xff]
      %v762 = vld [vmem:[#allocation2 + $0x1a1] sm:$0xff]
      %v763 = vld [vmem:[#allocation2 + $0x1b1] sm:$0xff]
      %v764 = vld [vmem:[#allocation2 + $0x1b9] sm:$0xff]
      %v765 = vld [vmem:[#allocation2 + $0x1c9] sm:$0xff]
      %v766 = vld [vmem:[#allocation2 + $0x1d1] sm:$0xff]
      %v767 = vld [vmem:[#allocation2 + $0x1e1] sm:$0xff]
      %v768 = vld [vmem:[#allocation2 + $0x1e9] sm:$0xff]
      %v769 = vld [vmem:[#allocation2 + $0x1f9] sm:$0xff]
      %v770 = vld [vmem:[#allocation2 + $0x201] sm:$0xff]
      %771 = vxpose.xlu0.b32.start [1/16] %v727, 128
      %772 = vxpose.xlu0.b32.cont [2/16] %v728, 128
      %773 = vxpose.xlu0.b32.cont [3/16] %v729, 128
      %774 = vxpose.xlu0.b32.cont [4/16] %v730, 128
      %775 = vxpose.xlu0.b32.cont [5/16] %v731, 128
      %776 = vxpose.xlu0.b32.cont [6/16] %v732, 128
      %777 = vxpose.xlu0.b32.cont [7/16] %v733, 128
      %778 = vxpose.xlu0.b32.cont [8/16] %v734, 128
      %779 = vxpose.xlu0.b32.cont [9/16] %v735, 128
      %780 = vxpose.xlu0.b32.cont [10/16] %v736, 128
      %781 = vxpose.xlu0.b32.cont [11/16] %v737, 128
      %782 = vxpose.xlu0.b32.cont [12/16] %v738, 128
      %783 = vxpose.xlu0.b32.cont [13/16] %v739, 128
      %784 = vxpose.xlu0.b32.cont [14/16] %v740, 128
      %785 = vxpose.xlu0.b32.cont [15/16] %v741, 128
      %786 = vxpose.xlu0.b32.end [16/16] %v742, 128
      %v787 = vpop.trf.xlu0
      %v788 = vpop.trf.xlu0
      %v789 = vpop.trf.xlu0
      %v790 = vpop.trf.xlu0
      %v791 = vpop.trf.xlu0
      %v792 = vpop.trf.xlu0
      %v793 = vpop.trf.xlu0
      %v794 = vpop.trf.xlu0
      %v795 = vpop.trf.xlu0
      %v796 = vpop.trf.xlu0
      %v797 = vpop.trf.xlu0
      %v798 = vpop.trf.xlu0
      %v799 = vpop.trf.xlu0
      %v800 = vpop.trf.xlu0
      %v801 = vpop.trf.xlu0
      %v802 = vpop.trf.xlu0
      %803 = vxpose.xlu0.b32.start [1/16] %v743, 128
      %804 = vxpose.xlu0.b32.cont [2/16] %v744, 128
      %805 = vxpose.xlu0.b32.cont [3/16] %v745, 128
      %806 = vxpose.xlu0.b32.cont [4/16] %v746, 128
      %807 = vxpose.xlu0.b32.cont [5/16] %v747, 128
      %808 = vxpose.xlu0.b32.cont [6/16] %v748, 128
      %809 = vxpose.xlu0.b32.cont [7/16] %v749, 128
      %810 = vxpose.xlu0.b32.cont [8/16] %v750, 128
      %811 = vxpose.xlu0.b32.cont [9/16] %v751, 128
      %812 = vxpose.xlu0.b32.cont [10/16] %v752, 128
      %813 = vxpose.xlu0.b32.cont [11/16] %v753, 128
      %814 = vxpose.xlu0.b32.cont [12/16] %v754, 128
      %815 = vxpose.xlu0.b32.cont [13/16] %v755, 128
      %816 = vxpose.xlu0.b32.cont [14/16] %v756, 128
      %817 = vxpose.xlu0.b32.cont [15/16] %v757, 128
      %818 = vxpose.xlu0.b32.end [16/16] %v758, 128
      %v819 = vpop.trf.xlu0
      %v820 = vpop.trf.xlu0
      %v821 = vpop.trf.xlu0
      %v822 = vpop.trf.xlu0
      %v823 = vpop.trf.xlu0
      %v824 = vpop.trf.xlu0
      %v825 = vpop.trf.xlu0
      %v826 = vpop.trf.xlu0
      %v827 = vpop.trf.xlu0
      %v828 = vpop.trf.xlu0
      %v829 = vpop.trf.xlu0
      %v830 = vpop.trf.xlu0
      %v831 = vpop.trf.xlu0
      %v832 = vpop.trf.xlu0
      %v833 = vpop.trf.xlu0
      %v834 = vpop.trf.xlu0
      %835 = vxpose.xlu0.b32.start [1/16] %v759, 128
      %836 = vxpose.xlu0.b32.cont [2/16] %v760, 128
      %837 = vxpose.xlu0.b32.cont [3/16] %v761, 128
      %838 = vxpose.xlu0.b32.cont [4/16] %v762, 128
      %839 = vxpose.xlu0.b32.cont [5/16] %v763, 128
      %840 = vxpose.xlu0.b32.cont [6/16] %v764, 128
      %841 = vxpose.xlu0.b32.cont [7/16] %v765, 128
      %842 = vxpose.xlu0.b32.cont [8/16] %v766, 128
      %843 = vxpose.xlu0.b32.cont [9/16] %v767, 128
      %844 = vxpose.xlu0.b32.cont [10/16] %v768, 128
      %845 = vxpose.xlu0.b32.cont [11/16] %v769, 128
      %846 = vxpose.xlu0.b32.cont [12/16] %v770, 128
      %847 = vxpose.xlu0.b32.cont [13/16] 0.0, 128
      %848 = vxpose.xlu0.b32.cont [14/16] 0.0, 128
      %849 = vxpose.xlu0.b32.cont [15/16] 0.0, 128
      %850 = vxpose.xlu0.b32.end [16/16] 0.0, 128
      %v851 = vpop.trf.xlu0
      %v852 = vpop.trf.xlu0
      %v853 = vpop.trf.xlu0
      %v854 = vpop.trf.xlu0
      %v855 = vpop.trf.xlu0
      %v856 = vpop.trf.xlu0
      %v857 = vpop.trf.xlu0
      %v858 = vpop.trf.xlu0
      %v859 = vpop.trf.xlu0
      %v860 = vpop.trf.xlu0
      %v861 = vpop.trf.xlu0
      %v862 = vpop.trf.xlu0
      %v863 = vpop.trf.xlu0
      %v864 = vpop.trf.xlu0
      %v865 = vpop.trf.xlu0
      %v866 = vpop.trf.xlu0
      %867 = vst [vmem:[#allocation3 + $0x20] sm:$0xff] %v787
      %868 = vst [vmem:[#allocation3 + $0x28] sm:$0xff] %v819
      %869 = vst [vmem:[#allocation3 + $0x30] sm:$0xff] %v788
      %870 = vst [vmem:[#allocation3 + $0x38] sm:$0xff] %v820
      %877 = vrot.lane.b32.xlu0 %v787, 112
      %v878 = vpop.permute.xlu0 %877
      %879 = vrot.lane.b32.xlu0 %v819, 112
      %v880 = vpop.permute.xlu0 %879
      %881 = vrot.lane.b32.xlu0 %v851, 112
      %v882 = vpop.permute.xlu0 %881
      %883 = vrot.lane.b32.xlu0 %v788, 112
      %v884 = vpop.permute.xlu0 %883
      %885 = vrot.lane.b32.xlu0 %v820, 112
      %v886 = vpop.permute.xlu0 %885
      %887 = vrot.lane.b32.xlu0 %v852, 112
      %v888 = vpop.permute.xlu0 %887
      %v889 = vsel %vm589, %v878, %v880
      %v890 = vsel %vm589, %v880, %v882
      %v891 = vsel %vm589, %v884, %v886
      %v892 = vsel %vm589, %v886, %v888
      %897 = vst [vmem:[#allocation3 + $0x100] sm:$0xff] %v889
      %898 = vst [vmem:[#allocation3 + $0x108] sm:$0xff] %v890
      %899 = vst [vmem:[#allocation3 + $0x110] sm:$0xff] %v891
      %900 = vst [vmem:[#allocation3 + $0x118] sm:$0xff] %v892
      %901 = vrot.lane.b32.xlu0 %v787, 96
      %v902 = vpop.permute.xlu0 %901
      %903 = vrot.lane.b32.xlu0 %v819, 96
      %v904 = vpop.permute.xlu0 %903
      %905 = vrot.lane.b32.xlu0 %v851, 96
      %v906 = vpop.permute.xlu0 %905
      %907 = vrot.lane.b32.xlu0 %v788, 96
      %v908 = vpop.permute.xlu0 %907
      %909 = vrot.lane.b32.xlu0 %v820, 96
      %v910 = vpop.permute.xlu0 %909
      %911 = vrot.lane.b32.xlu0 %v852, 96
      %v912 = vpop.permute.xlu0 %911
      %v913 = vsel %vm614, %v902, %v904
      %v914 = vsel %vm614, %v904, %v906
      %v915 = vsel %vm614, %v908, %v910
      %v916 = vsel %vm614, %v910, %v912
      %921 = vst [vmem:[#allocation3 + $0x1e0] sm:$0xff] %v913
      %922 = vst [vmem:[#allocation3 + $0x1e8] sm:$0xff] %v914
      %923 = vst [vmem:[#allocation3 + $0x1f0] sm:$0xff] %v915
      %924 = vst [vmem:[#allocation3 + $0x1f8] sm:$0xff] %v916
      %925 = vrot.lane.b32.xlu0 %v787, 80
      %v926 = vpop.permute.xlu0 %925
      %927 = vrot.lane.b32.xlu0 %v819, 80
      %v928 = vpop.permute.xlu0 %927
      %929 = vrot.lane.b32.xlu0 %v851, 80
      %v930 = vpop.permute.xlu0 %929
      %931 = vrot.lane.b32.xlu0 %v788, 80
      %v932 = vpop.permute.xlu0 %931
      %933 = vrot.lane.b32.xlu0 %v820, 80
      %v934 = vpop.permute.xlu0 %933
      %935 = vrot.lane.b32.xlu0 %v852, 80
      %v936 = vpop.permute.xlu0 %935
      %v937 = vsel %vm639, %v926, %v928
      %v938 = vsel %vm639, %v928, %v930
      %v939 = vsel %vm639, %v932, %v934
      %v940 = vsel %vm639, %v934, %v936
      %945 = vst [vmem:[#allocation3 + $0x2c0] sm:$0xff] %v937
      %946 = vst [vmem:[#allocation3 + $0x2c8] sm:$0xff] %v938
      %947 = vst [vmem:[#allocation3 + $0x2d0] sm:$0xff] %v939
      %948 = vst [vmem:[#allocation3 + $0x2d8] sm:$0xff] %v940
      %949 = vrot.lane.b32.xlu0 %v787, 64
      %v950 = vpop.permute.xlu0 %949
      %951 = vrot.lane.b32.xlu0 %v819, 64
      %v952 = vpop.permute.xlu0 %951
      %953 = vrot.lane.b32.xlu0 %v851, 64
      %v954 = vpop.permute.xlu0 %953
      %955 = vrot.lane.b32.xlu0 %v788, 64
      %v956 = vpop.permute.xlu0 %955
      %957 = vrot.lane.b32.xlu0 %v820, 64
      %v958 = vpop.permute.xlu0 %957
      %959 = vrot.lane.b32.xlu0 %v852, 64
      %v960 = vpop.permute.xlu0 %959
      %v961 = vsel %vm664, %v950, %v952
      %v962 = vsel %vm664, %v952, %v954
      %v963 = vsel %vm664, %v956, %v958
      %v964 = vsel %vm664, %v958, %v960
      %969 = vst [vmem:[#allocation3 + $0x3a0] sm:$0xff] %v961
      %970 = vst [vmem:[#allocation3 + $0x3a8] sm:$0xff] %v962
      %971 = vst [vmem:[#allocation3 + $0x3b0] sm:$0xff] %v963
      %972 = vst [vmem:[#allocation3 + $0x3b8] sm:$0xff] %v964
      %973 = vrot.lane.b32.xlu0 %v787, 48
      %v974 = vpop.permute.xlu0 %973
      %975 = vrot.lane.b32.xlu0 %v819, 48
      %v976 = vpop.permute.xlu0 %975
      %977 = vrot.lane.b32.xlu0 %v851, 48
      %v978 = vpop.permute.xlu0 %977
      %979 = vrot.lane.b32.xlu0 %v788, 48
      %v980 = vpop.permute.xlu0 %979
      %981 = vrot.lane.b32.xlu0 %v820, 48
      %v982 = vpop.permute.xlu0 %981
      %983 = vrot.lane.b32.xlu0 %v852, 48
      %v984 = vpop.permute.xlu0 %983
      %v985 = vsel %vm689, %v974, %v976
      %v986 = vsel %vm689, %v976, %v978
      %v987 = vsel %vm689, %v980, %v982
      %v988 = vsel %vm689, %v982, %v984
      %993 = vst [vmem:[#allocation3 + $0x480] sm:$0xff] %v985
      %994 = vst [vmem:[#allocation3 + $0x488] sm:$0xff] %v986
      %995 = vst [vmem:[#allocation3 + $0x490] sm:$0xff] %v987
      %996 = vst [vmem:[#allocation3 + $0x498] sm:$0xff] %v988
      %997 = vrot.lane.b32.xlu0 %v787, 32
      %v998 = vpop.permute.xlu0 %997
      %999 = vrot.lane.b32.xlu0 %v819, 32
      %v1000 = vpop.permute.xlu0 %999
      %1001 = vrot.lane.b32.xlu0 %v851, 32
      %v1002 = vpop.permute.xlu0 %1001
      %1003 = vrot.lane.b32.xlu0 %v788, 32
      %v1004 = vpop.permute.xlu0 %1003
      %1005 = vrot.lane.b32.xlu0 %v820, 32
      %v1006 = vpop.permute.xlu0 %1005
      %1007 = vrot.lane.b32.xlu0 %v852, 32
      %v1008 = vpop.permute.xlu0 %1007
      %v1009 = vsel %vm714, %v998, %v1000
      %v1010 = vsel %vm714, %v1000, %v1002
      %v1011 = vsel %vm714, %v1004, %v1006
      %v1012 = vsel %vm714, %v1006, %v1008
      %1017 = vst [vmem:[#allocation3 + $0x560] sm:$0xff] %v1009
      %1018 = vst [vmem:[#allocation3 + $0x568] sm:$0xff] %v1010
      %1019 = vst [vmem:[#allocation3 + $0x570] sm:$0xff] %v1011
      %1020 = vst [vmem:[#allocation3 + $0x578] sm:$0xff] %v1012
      %v1021 = vld [vmem:[#allocation2 + $0x2] sm:$0xff]
      %v1022 = vld [vmem:[#allocation2 + $0xa] sm:$0xff]
      %v1023 = vld [vmem:[#allocation2 + $0x1a] sm:$0xff]
      %v1024 = vld [vmem:[#allocation2 + $0x22] sm:$0xff]
      %v1025 = vld [vmem:[#allocation2 + $0x32] sm:$0xff]
      %v1026 = vld [vmem:[#allocation2 + $0x3a] sm:$0xff]
      %v1027 = vld [vmem:[#allocation2 + $0x4a] sm:$0xff]
      %v1028 = vld [vmem:[#allocation2 + $0x52] sm:$0xff]
      %v1029 = vld [vmem:[#allocation2 + $0x62] sm:$0xff]
      %v1030 = vld [vmem:[#allocation2 + $0x6a] sm:$0xff]
      %v1031 = vld [vmem:[#allocation2 + $0x7a] sm:$0xff]
      %v1032 = vld [vmem:[#allocation2 + $0x82] sm:$0xff]
      %v1033 = vld [vmem:[#allocation2 + $0x92] sm:$0xff]
      %v1034 = vld [vmem:[#allocation2 + $0x9a] sm:$0xff]
      %v1035 = vld [vmem:[#allocation2 + $0xaa] sm:$0xff]
      %v1036 = vld [vmem:[#allocation2 + $0xb2] sm:$0xff]
      %v1037 = vld [vmem:[#allocation2 + $0xc2] sm:$0xff]
      %v1038 = vld [vmem:[#allocation2 + $0xca] sm:$0xff]
      %v1039 = vld [vmem:[#allocation2 + $0xda] sm:$0xff]
      %v1040 = vld [vmem:[#allocation2 + $0xe2] sm:$0xff]
      %v1041 = vld [vmem:[#allocation2 + $0xf2] sm:$0xff]
      %v1042 = vld [vmem:[#allocation2 + $0xfa] sm:$0xff]
      %v1043 = vld [vmem:[#allocation2 + $0x10a] sm:$0xff]
      %v1044 = vld [vmem:[#allocation2 + $0x112] sm:$0xff]
      %v1045 = vld [vmem:[#allocation2 + $0x122] sm:$0xff]
      %v1046 = vld [vmem:[#allocation2 + $0x12a] sm:$0xff]
      %v1047 = vld [vmem:[#allocation2 + $0x13a] sm:$0xff]
      %v1048 = vld [vmem:[#allocation2 + $0x142] sm:$0xff]
      %v1049 = vld [vmem:[#allocation2 + $0x152] sm:$0xff]
      %v1050 = vld [vmem:[#allocation2 + $0x15a] sm:$0xff]
      %v1051 = vld [vmem:[#allocation2 + $0x16a] sm:$0xff]
      %v1052 = vld [vmem:[#allocation2 + $0x172] sm:$0xff]
      %v1053 = vld [vmem:[#allocation2 + $0x182] sm:$0xff]
      %v1054 = vld [vmem:[#allocation2 + $0x18a] sm:$0xff]
      %v1055 = vld [vmem:[#allocation2 + $0x19a] sm:$0xff]
      %v1056 = vld [vmem:[#allocation2 + $0x1a2] sm:$0xff]
      %v1057 = vld [vmem:[#allocation2 + $0x1b2] sm:$0xff]
      %v1058 = vld [vmem:[#allocation2 + $0x1ba] sm:$0xff]
      %v1059 = vld [vmem:[#allocation2 + $0x1ca] sm:$0xff]
      %v1060 = vld [vmem:[#allocation2 + $0x1d2] sm:$0xff]
      %v1061 = vld [vmem:[#allocation2 + $0x1e2] sm:$0xff]
      %v1062 = vld [vmem:[#allocation2 + $0x1ea] sm:$0xff]
      %v1063 = vld [vmem:[#allocation2 + $0x1fa] sm:$0xff]
      %v1064 = vld [vmem:[#allocation2 + $0x202] sm:$0xff]
      %1065 = vxpose.xlu0.b32.start [1/16] %v1021, 128
      %1066 = vxpose.xlu0.b32.cont [2/16] %v1022, 128
      %1067 = vxpose.xlu0.b32.cont [3/16] %v1023, 128
      %1068 = vxpose.xlu0.b32.cont [4/16] %v1024, 128
      %1069 = vxpose.xlu0.b32.cont [5/16] %v1025, 128
      %1070 = vxpose.xlu0.b32.cont [6/16] %v1026, 128
      %1071 = vxpose.xlu0.b32.cont [7/16] %v1027, 128
      %1072 = vxpose.xlu0.b32.cont [8/16] %v1028, 128
      %1073 = vxpose.xlu0.b32.cont [9/16] %v1029, 128
      %1074 = vxpose.xlu0.b32.cont [10/16] %v1030, 128
      %1075 = vxpose.xlu0.b32.cont [11/16] %v1031, 128
      %1076 = vxpose.xlu0.b32.cont [12/16] %v1032, 128
      %1077 = vxpose.xlu0.b32.cont [13/16] %v1033, 128
      %1078 = vxpose.xlu0.b32.cont [14/16] %v1034, 128
      %1079 = vxpose.xlu0.b32.cont [15/16] %v1035, 128
      %1080 = vxpose.xlu0.b32.end [16/16] %v1036, 128
      %v1081 = vpop.trf.xlu0
      %v1082 = vpop.trf.xlu0
      %v1083 = vpop.trf.xlu0
      %v1084 = vpop.trf.xlu0
      %v1085 = vpop.trf.xlu0
      %v1086 = vpop.trf.xlu0
      %v1087 = vpop.trf.xlu0
      %v1088 = vpop.trf.xlu0
      %v1089 = vpop.trf.xlu0
      %v1090 = vpop.trf.xlu0
      %v1091 = vpop.trf.xlu0
      %v1092 = vpop.trf.xlu0
      %v1093 = vpop.trf.xlu0
      %v1094 = vpop.trf.xlu0
      %v1095 = vpop.trf.xlu0
      %v1096 = vpop.trf.xlu0
      %1097 = vxpose.xlu0.b32.start [1/16] %v1037, 128
      %1098 = vxpose.xlu0.b32.cont [2/16] %v1038, 128
      %1099 = vxpose.xlu0.b32.cont [3/16] %v1039, 128
      %1100 = vxpose.xlu0.b32.cont [4/16] %v1040, 128
      %1101 = vxpose.xlu0.b32.cont [5/16] %v1041, 128
      %1102 = vxpose.xlu0.b32.cont [6/16] %v1042, 128
      %1103 = vxpose.xlu0.b32.cont [7/16] %v1043, 128
      %1104 = vxpose.xlu0.b32.cont [8/16] %v1044, 128
      %1105 = vxpose.xlu0.b32.cont [9/16] %v1045, 128
      %1106 = vxpose.xlu0.b32.cont [10/16] %v1046, 128
      %1107 = vxpose.xlu0.b32.cont [11/16] %v1047, 128
      %1108 = vxpose.xlu0.b32.cont [12/16] %v1048, 128
      %1109 = vxpose.xlu0.b32.cont [13/16] %v1049, 128
      %1110 = vxpose.xlu0.b32.cont [14/16] %v1050, 128
      %1111 = vxpose.xlu0.b32.cont [15/16] %v1051, 128
      %1112 = vxpose.xlu0.b32.end [16/16] %v1052, 128
      %v1113 = vpop.trf.xlu0
      %v1114 = vpop.trf.xlu0
      %v1115 = vpop.trf.xlu0
      %v1116 = vpop.trf.xlu0
      %v1117 = vpop.trf.xlu0
      %v1118 = vpop.trf.xlu0
      %v1119 = vpop.trf.xlu0
      %v1120 = vpop.trf.xlu0
      %v1121 = vpop.trf.xlu0
      %v1122 = vpop.trf.xlu0
      %v1123 = vpop.trf.xlu0
      %v1124 = vpop.trf.xlu0
      %v1125 = vpop.trf.xlu0
      %v1126 = vpop.trf.xlu0
      %v1127 = vpop.trf.xlu0
      %v1128 = vpop.trf.xlu0
      %1129 = vxpose.xlu0.b32.start [1/16] %v1053, 128
      %1130 = vxpose.xlu0.b32.cont [2/16] %v1054, 128
      %1131 = vxpose.xlu0.b32.cont [3/16] %v1055, 128
      %1132 = vxpose.xlu0.b32.cont [4/16] %v1056, 128
      %1133 = vxpose.xlu0.b32.cont [5/16] %v1057, 128
      %1134 = vxpose.xlu0.b32.cont [6/16] %v1058, 128
      %1135 = vxpose.xlu0.b32.cont [7/16] %v1059, 128
      %1136 = vxpose.xlu0.b32.cont [8/16] %v1060, 128
      %1137 = vxpose.xlu0.b32.cont [9/16] %v1061, 128
      %1138 = vxpose.xlu0.b32.cont [10/16] %v1062, 128
      %1139 = vxpose.xlu0.b32.cont [11/16] %v1063, 128
      %1140 = vxpose.xlu0.b32.cont [12/16] %v1064, 128
      %1141 = vxpose.xlu0.b32.cont [13/16] 0.0, 128
      %1142 = vxpose.xlu0.b32.cont [14/16] 0.0, 128
      %1143 = vxpose.xlu0.b32.cont [15/16] 0.0, 128
      %1144 = vxpose.xlu0.b32.end [16/16] 0.0, 128
      %v1145 = vpop.trf.xlu0
      %v1146 = vpop.trf.xlu0
      %v1147 = vpop.trf.xlu0
      %v1148 = vpop.trf.xlu0
      %v1149 = vpop.trf.xlu0
      %v1150 = vpop.trf.xlu0
      %v1151 = vpop.trf.xlu0
      %v1152 = vpop.trf.xlu0
      %v1153 = vpop.trf.xlu0
      %v1154 = vpop.trf.xlu0
      %v1155 = vpop.trf.xlu0
      %v1156 = vpop.trf.xlu0
      %v1157 = vpop.trf.xlu0
      %v1158 = vpop.trf.xlu0
      %v1159 = vpop.trf.xlu0
      %v1160 = vpop.trf.xlu0
      %1161 = vst [vmem:[#allocation3 + $0x40] sm:$0xff] %v1081
      %1162 = vst [vmem:[#allocation3 + $0x48] sm:$0xff] %v1113
      %1163 = vst [vmem:[#allocation3 + $0x50] sm:$0xff] %v1082
      %1164 = vst [vmem:[#allocation3 + $0x58] sm:$0xff] %v1114
      %1171 = vrot.lane.b32.xlu0 %v1081, 112
      %v1172 = vpop.permute.xlu0 %1171
      %1173 = vrot.lane.b32.xlu0 %v1113, 112
      %v1174 = vpop.permute.xlu0 %1173
      %1175 = vrot.lane.b32.xlu0 %v1145, 112
      %v1176 = vpop.permute.xlu0 %1175
      %1177 = vrot.lane.b32.xlu0 %v1082, 112
      %v1178 = vpop.permute.xlu0 %1177
      %1179 = vrot.lane.b32.xlu0 %v1114, 112
      %v1180 = vpop.permute.xlu0 %1179
      %1181 = vrot.lane.b32.xlu0 %v1146, 112
      %v1182 = vpop.permute.xlu0 %1181
      %v1183 = vsel %vm589, %v1172, %v1174
      %v1184 = vsel %vm589, %v1174, %v1176
      %v1185 = vsel %vm589, %v1178, %v1180
      %v1186 = vsel %vm589, %v1180, %v1182
      %1191 = vst [vmem:[#allocation3 + $0x120] sm:$0xff] %v1183
      %1192 = vst [vmem:[#allocation3 + $0x128] sm:$0xff] %v1184
      %1193 = vst [vmem:[#allocation3 + $0x130] sm:$0xff] %v1185
      %1194 = vst [vmem:[#allocation3 + $0x138] sm:$0xff] %v1186
      %1195 = vrot.lane.b32.xlu0 %v1081, 96
      %v1196 = vpop.permute.xlu0 %1195
      %1197 = vrot.lane.b32.xlu0 %v1113, 96
      %v1198 = vpop.permute.xlu0 %1197
      %1199 = vrot.lane.b32.xlu0 %v1145, 96
      %v1200 = vpop.permute.xlu0 %1199
      %1201 = vrot.lane.b32.xlu0 %v1082, 96
      %v1202 = vpop.permute.xlu0 %1201
      %1203 = vrot.lane.b32.xlu0 %v1114, 96
      %v1204 = vpop.permute.xlu0 %1203
      %1205 = vrot.lane.b32.xlu0 %v1146, 96
      %v1206 = vpop.permute.xlu0 %1205
      %v1207 = vsel %vm614, %v1196, %v1198
      %v1208 = vsel %vm614, %v1198, %v1200
      %v1209 = vsel %vm614, %v1202, %v1204
      %v1210 = vsel %vm614, %v1204, %v1206
      %1215 = vst [vmem:[#allocation3 + $0x200] sm:$0xff] %v1207
      %1216 = vst [vmem:[#allocation3 + $0x208] sm:$0xff] %v1208
      %1217 = vst [vmem:[#allocation3 + $0x210] sm:$0xff] %v1209
      %1218 = vst [vmem:[#allocation3 + $0x218] sm:$0xff] %v1210
      %1219 = vrot.lane.b32.xlu0 %v1081, 80
      %v1220 = vpop.permute.xlu0 %1219
      %1221 = vrot.lane.b32.xlu0 %v1113, 80
      %v1222 = vpop.permute.xlu0 %1221
      %1223 = vrot.lane.b32.xlu0 %v1145, 80
      %v1224 = vpop.permute.xlu0 %1223
      %1225 = vrot.lane.b32.xlu0 %v1082, 80
      %v1226 = vpop.permute.xlu0 %1225
      %1227 = vrot.lane.b32.xlu0 %v1114, 80
      %v1228 = vpop.permute.xlu0 %1227
      %1229 = vrot.lane.b32.xlu0 %v1146, 80
      %v1230 = vpop.permute.xlu0 %1229
      %v1231 = vsel %vm639, %v1220, %v1222
      %v1232 = vsel %vm639, %v1222, %v1224
      %v1233 = vsel %vm639, %v1226, %v1228
      %v1234 = vsel %vm639, %v1228, %v1230
      %1239 = vst [vmem:[#allocation3 + $0x2e0] sm:$0xff] %v1231
      %1240 = vst [vmem:[#allocation3 + $0x2e8] sm:$0xff] %v1232
      %1241 = vst [vmem:[#allocation3 + $0x2f0] sm:$0xff] %v1233
      %1242 = vst [vmem:[#allocation3 + $0x2f8] sm:$0xff] %v1234
      %1243 = vrot.lane.b32.xlu0 %v1081, 64
      %v1244 = vpop.permute.xlu0 %1243
      %1245 = vrot.lane.b32.xlu0 %v1113, 64
      %v1246 = vpop.permute.xlu0 %1245
      %1247 = vrot.lane.b32.xlu0 %v1145, 64
      %v1248 = vpop.permute.xlu0 %1247
      %1249 = vrot.lane.b32.xlu0 %v1082, 64
      %v1250 = vpop.permute.xlu0 %1249
      %1251 = vrot.lane.b32.xlu0 %v1114, 64
      %v1252 = vpop.permute.xlu0 %1251
      %1253 = vrot.lane.b32.xlu0 %v1146, 64
      %v1254 = vpop.permute.xlu0 %1253
      %v1255 = vsel %vm664, %v1244, %v1246
      %v1256 = vsel %vm664, %v1246, %v1248
      %v1257 = vsel %vm664, %v1250, %v1252
      %v1258 = vsel %vm664, %v1252, %v1254
      %1263 = vst [vmem:[#allocation3 + $0x3c0] sm:$0xff] %v1255
      %1264 = vst [vmem:[#allocation3 + $0x3c8] sm:$0xff] %v1256
      %1265 = vst [vmem:[#allocation3 + $0x3d0] sm:$0xff] %v1257
      %1266 = vst [vmem:[#allocation3 + $0x3d8] sm:$0xff] %v1258
      %1267 = vrot.lane.b32.xlu0 %v1081, 48
      %v1268 = vpop.permute.xlu0 %1267
      %1269 = vrot.lane.b32.xlu0 %v1113, 48
      %v1270 = vpop.permute.xlu0 %1269
      %1271 = vrot.lane.b32.xlu0 %v1145, 48
      %v1272 = vpop.permute.xlu0 %1271
      %1273 = vrot.lane.b32.xlu0 %v1082, 48
      %v1274 = vpop.permute.xlu0 %1273
      %1275 = vrot.lane.b32.xlu0 %v1114, 48
      %v1276 = vpop.permute.xlu0 %1275
      %1277 = vrot.lane.b32.xlu0 %v1146, 48
      %v1278 = vpop.permute.xlu0 %1277
      %v1279 = vsel %vm689, %v1268, %v1270
      %v1280 = vsel %vm689, %v1270, %v1272
      %v1281 = vsel %vm689, %v1274, %v1276
      %v1282 = vsel %vm689, %v1276, %v1278
      %1287 = vst [vmem:[#allocation3 + $0x4a0] sm:$0xff] %v1279
      %1288 = vst [vmem:[#allocation3 + $0x4a8] sm:$0xff] %v1280
      %1289 = vst [vmem:[#allocation3 + $0x4b0] sm:$0xff] %v1281
      %1290 = vst [vmem:[#allocation3 + $0x4b8] sm:$0xff] %v1282
      %1291 = vrot.lane.b32.xlu0 %v1081, 32
      %v1292 = vpop.permute.xlu0 %1291
      %1293 = vrot.lane.b32.xlu0 %v1113, 32
      %v1294 = vpop.permute.xlu0 %1293
      %1295 = vrot.lane.b32.xlu0 %v1145, 32
      %v1296 = vpop.permute.xlu0 %1295
      %1297 = vrot.lane.b32.xlu0 %v1082, 32
      %v1298 = vpop.permute.xlu0 %1297
      %1299 = vrot.lane.b32.xlu0 %v1114, 32
      %v1300 = vpop.permute.xlu0 %1299
      %1301 = vrot.lane.b32.xlu0 %v1146, 32
      %v1302 = vpop.permute.xlu0 %1301
      %v1303 = vsel %vm714, %v1292, %v1294
      %v1304 = vsel %vm714, %v1294, %v1296
      %v1305 = vsel %vm714, %v1298, %v1300
      %v1306 = vsel %vm714, %v1300, %v1302
      %1311 = vst [vmem:[#allocation3 + $0x580] sm:$0xff] %v1303
      %1312 = vst [vmem:[#allocation3 + $0x588] sm:$0xff] %v1304
      %1313 = vst [vmem:[#allocation3 + $0x590] sm:$0xff] %v1305
      %1314 = vst [vmem:[#allocation3 + $0x598] sm:$0xff] %v1306
      %v1315 = vld [vmem:[#allocation2 + $0x3] sm:$0xff]
      %v1316 = vld [vmem:[#allocation2 + $0xb] sm:$0xff]
      %v1317 = vld [vmem:[#allocation2 + $0x1b] sm:$0xff]
      %v1318 = vld [vmem:[#allocation2 + $0x23] sm:$0xff]
      %v1319 = vld [vmem:[#allocation2 + $0x33] sm:$0xff]
      %v1320 = vld [vmem:[#allocation2 + $0x3b] sm:$0xff]
      %v1321 = vld [vmem:[#allocation2 + $0x4b] sm:$0xff]
      %v1322 = vld [vmem:[#allocation2 + $0x53] sm:$0xff]
      %v1323 = vld [vmem:[#allocation2 + $0x63] sm:$0xff]
      %v1324 = vld [vmem:[#allocation2 + $0x6b] sm:$0xff]
      %v1325 = vld [vmem:[#allocation2 + $0x7b] sm:$0xff]
      %v1326 = vld [vmem:[#allocation2 + $0x83] sm:$0xff]
      %v1327 = vld [vmem:[#allocation2 + $0x93] sm:$0xff]
      %v1328 = vld [vmem:[#allocation2 + $0x9b] sm:$0xff]
      %v1329 = vld [vmem:[#allocation2 + $0xab] sm:$0xff]
      %v1330 = vld [vmem:[#allocation2 + $0xb3] sm:$0xff]
      %v1331 = vld [vmem:[#allocation2 + $0xc3] sm:$0xff]
      %v1332 = vld [vmem:[#allocation2 + $0xcb] sm:$0xff]
      %v1333 = vld [vmem:[#allocation2 + $0xdb] sm:$0xff]
      %v1334 = vld [vmem:[#allocation2 + $0xe3] sm:$0xff]
      %v1335 = vld [vmem:[#allocation2 + $0xf3] sm:$0xff]
      %v1336 = vld [vmem:[#allocation2 + $0xfb] sm:$0xff]
      %v1337 = vld [vmem:[#allocation2 + $0x10b] sm:$0xff]
      %v1338 = vld [vmem:[#allocation2 + $0x113] sm:$0xff]
      %v1339 = vld [vmem:[#allocation2 + $0x123] sm:$0xff]
      %v1340 = vld [vmem:[#allocation2 + $0x12b] sm:$0xff]
      %v1341 = vld [vmem:[#allocation2 + $0x13b] sm:$0xff]
      %v1342 = vld [vmem:[#allocation2 + $0x143] sm:$0xff]
      %v1343 = vld [vmem:[#allocation2 + $0x153] sm:$0xff]
      %v1344 = vld [vmem:[#allocation2 + $0x15b] sm:$0xff]
      %v1345 = vld [vmem:[#allocation2 + $0x16b] sm:$0xff]
      %v1346 = vld [vmem:[#allocation2 + $0x173] sm:$0xff]
      %v1347 = vld [vmem:[#allocation2 + $0x183] sm:$0xff]
      %v1348 = vld [vmem:[#allocation2 + $0x18b] sm:$0xff]
      %v1349 = vld [vmem:[#allocation2 + $0x19b] sm:$0xff]
      %v1350 = vld [vmem:[#allocation2 + $0x1a3] sm:$0xff]
      %v1351 = vld [vmem:[#allocation2 + $0x1b3] sm:$0xff]
      %v1352 = vld [vmem:[#allocation2 + $0x1bb] sm:$0xff]
      %v1353 = vld [vmem:[#allocation2 + $0x1cb] sm:$0xff]
      %v1354 = vld [vmem:[#allocation2 + $0x1d3] sm:$0xff]
      %v1355 = vld [vmem:[#allocation2 + $0x1e3] sm:$0xff]
      %v1356 = vld [vmem:[#allocation2 + $0x1eb] sm:$0xff]
      %v1357 = vld [vmem:[#allocation2 + $0x1fb] sm:$0xff]
      %v1358 = vld [vmem:[#allocation2 + $0x203] sm:$0xff]
      %1359 = vxpose.xlu0.b32.start [1/16] %v1315, 128
      %1360 = vxpose.xlu0.b32.cont [2/16] %v1316, 128
      %1361 = vxpose.xlu0.b32.cont [3/16] %v1317, 128
      %1362 = vxpose.xlu0.b32.cont [4/16] %v1318, 128
      %1363 = vxpose.xlu0.b32.cont [5/16] %v1319, 128
      %1364 = vxpose.xlu0.b32.cont [6/16] %v1320, 128
      %1365 = vxpose.xlu0.b32.cont [7/16] %v1321, 128
      %1366 = vxpose.xlu0.b32.cont [8/16] %v1322, 128
      %1367 = vxpose.xlu0.b32.cont [9/16] %v1323, 128
      %1368 = vxpose.xlu0.b32.cont [10/16] %v1324, 128
      %1369 = vxpose.xlu0.b32.cont [11/16] %v1325, 128
      %1370 = vxpose.xlu0.b32.cont [12/16] %v1326, 128
      %1371 = vxpose.xlu0.b32.cont [13/16] %v1327, 128
      %1372 = vxpose.xlu0.b32.cont [14/16] %v1328, 128
      %1373 = vxpose.xlu0.b32.cont [15/16] %v1329, 128
      %1374 = vxpose.xlu0.b32.end [16/16] %v1330, 128
      %v1375 = vpop.trf.xlu0
      %v1376 = vpop.trf.xlu0
      %v1377 = vpop.trf.xlu0
      %v1378 = vpop.trf.xlu0
      %v1379 = vpop.trf.xlu0
      %v1380 = vpop.trf.xlu0
      %v1381 = vpop.trf.xlu0
      %v1382 = vpop.trf.xlu0
      %v1383 = vpop.trf.xlu0
      %v1384 = vpop.trf.xlu0
      %v1385 = vpop.trf.xlu0
      %v1386 = vpop.trf.xlu0
      %v1387 = vpop.trf.xlu0
      %v1388 = vpop.trf.xlu0
      %v1389 = vpop.trf.xlu0
      %v1390 = vpop.trf.xlu0
      %1391 = vxpose.xlu0.b32.start [1/16] %v1331, 128
      %1392 = vxpose.xlu0.b32.cont [2/16] %v1332, 128
      %1393 = vxpose.xlu0.b32.cont [3/16] %v1333, 128
      %1394 = vxpose.xlu0.b32.cont [4/16] %v1334, 128
      %1395 = vxpose.xlu0.b32.cont [5/16] %v1335, 128
      %1396 = vxpose.xlu0.b32.cont [6/16] %v1336, 128
      %1397 = vxpose.xlu0.b32.cont [7/16] %v1337, 128
      %1398 = vxpose.xlu0.b32.cont [8/16] %v1338, 128
      %1399 = vxpose.xlu0.b32.cont [9/16] %v1339, 128
      %1400 = vxpose.xlu0.b32.cont [10/16] %v1340, 128
      %1401 = vxpose.xlu0.b32.cont [11/16] %v1341, 128
      %1402 = vxpose.xlu0.b32.cont [12/16] %v1342, 128
      %1403 = vxpose.xlu0.b32.cont [13/16] %v1343, 128
      %1404 = vxpose.xlu0.b32.cont [14/16] %v1344, 128
      %1405 = vxpose.xlu0.b32.cont [15/16] %v1345, 128
      %1406 = vxpose.xlu0.b32.end [16/16] %v1346, 128
      %v1407 = vpop.trf.xlu0
      %v1408 = vpop.trf.xlu0
      %v1409 = vpop.trf.xlu0
      %v1410 = vpop.trf.xlu0
      %v1411 = vpop.trf.xlu0
      %v1412 = vpop.trf.xlu0
      %v1413 = vpop.trf.xlu0
      %v1414 = vpop.trf.xlu0
      %v1415 = vpop.trf.xlu0
      %v1416 = vpop.trf.xlu0
      %v1417 = vpop.trf.xlu0
      %v1418 = vpop.trf.xlu0
      %v1419 = vpop.trf.xlu0
      %v1420 = vpop.trf.xlu0
      %v1421 = vpop.trf.xlu0
      %v1422 = vpop.trf.xlu0
      %1423 = vxpose.xlu0.b32.start [1/16] %v1347, 128
      %1424 = vxpose.xlu0.b32.cont [2/16] %v1348, 128
      %1425 = vxpose.xlu0.b32.cont [3/16] %v1349, 128
      %1426 = vxpose.xlu0.b32.cont [4/16] %v1350, 128
      %1427 = vxpose.xlu0.b32.cont [5/16] %v1351, 128
      %1428 = vxpose.xlu0.b32.cont [6/16] %v1352, 128
      %1429 = vxpose.xlu0.b32.cont [7/16] %v1353, 128
      %1430 = vxpose.xlu0.b32.cont [8/16] %v1354, 128
      %1431 = vxpose.xlu0.b32.cont [9/16] %v1355, 128
      %1432 = vxpose.xlu0.b32.cont [10/16] %v1356, 128
      %1433 = vxpose.xlu0.b32.cont [11/16] %v1357, 128
      %1434 = vxpose.xlu0.b32.cont [12/16] %v1358, 128
      %1435 = vxpose.xlu0.b32.cont [13/16] 0.0, 128
      %1436 = vxpose.xlu0.b32.cont [14/16] 0.0, 128
      %1437 = vxpose.xlu0.b32.cont [15/16] 0.0, 128
      %1438 = vxpose.xlu0.b32.end [16/16] 0.0, 128
      %v1439 = vpop.trf.xlu0
      %v1440 = vpop.trf.xlu0
      %v1441 = vpop.trf.xlu0
      %v1442 = vpop.trf.xlu0
      %v1443 = vpop.trf.xlu0
      %v1444 = vpop.trf.xlu0
      %v1445 = vpop.trf.xlu0
      %v1446 = vpop.trf.xlu0
      %v1447 = vpop.trf.xlu0
      %v1448 = vpop.trf.xlu0
      %v1449 = vpop.trf.xlu0
      %v1450 = vpop.trf.xlu0
      %v1451 = vpop.trf.xlu0
      %v1452 = vpop.trf.xlu0
      %v1453 = vpop.trf.xlu0
      %v1454 = vpop.trf.xlu0
      %1455 = vst [vmem:[#allocation3 + $0x60] sm:$0xff] %v1375
      %1456 = vst [vmem:[#allocation3 + $0x68] sm:$0xff] %v1407
      %1457 = vst [vmem:[#allocation3 + $0x70] sm:$0xff] %v1376
      %1458 = vst [vmem:[#allocation3 + $0x78] sm:$0xff] %v1408
      %1465 = vrot.lane.b32.xlu0 %v1375, 112
      %v1466 = vpop.permute.xlu0 %1465
      %1467 = vrot.lane.b32.xlu0 %v1407, 112
      %v1468 = vpop.permute.xlu0 %1467
      %1469 = vrot.lane.b32.xlu0 %v1439, 112
      %v1470 = vpop.permute.xlu0 %1469
      %1471 = vrot.lane.b32.xlu0 %v1376, 112
      %v1472 = vpop.permute.xlu0 %1471
      %1473 = vrot.lane.b32.xlu0 %v1408, 112
      %v1474 = vpop.permute.xlu0 %1473
      %1475 = vrot.lane.b32.xlu0 %v1440, 112
      %v1476 = vpop.permute.xlu0 %1475
      %v1477 = vsel %vm589, %v1466, %v1468
      %v1478 = vsel %vm589, %v1468, %v1470
      %v1479 = vsel %vm589, %v1472, %v1474
      %v1480 = vsel %vm589, %v1474, %v1476
      %1485 = vst [vmem:[#allocation3 + $0x140] sm:$0xff] %v1477
      %1486 = vst [vmem:[#allocation3 + $0x148] sm:$0xff] %v1478
      %1487 = vst [vmem:[#allocation3 + $0x150] sm:$0xff] %v1479
      %1488 = vst [vmem:[#allocation3 + $0x158] sm:$0xff] %v1480
      %1489 = vrot.lane.b32.xlu0 %v1375, 96
      %v1490 = vpop.permute.xlu0 %1489
      %1491 = vrot.lane.b32.xlu0 %v1407, 96
      %v1492 = vpop.permute.xlu0 %1491
      %1493 = vrot.lane.b32.xlu0 %v1439, 96
      %v1494 = vpop.permute.xlu0 %1493
      %1495 = vrot.lane.b32.xlu0 %v1376, 96
      %v1496 = vpop.permute.xlu0 %1495
      %1497 = vrot.lane.b32.xlu0 %v1408, 96
      %v1498 = vpop.permute.xlu0 %1497
      %1499 = vrot.lane.b32.xlu0 %v1440, 96
      %v1500 = vpop.permute.xlu0 %1499
      %v1501 = vsel %vm614, %v1490, %v1492
      %v1502 = vsel %vm614, %v1492, %v1494
      %v1503 = vsel %vm614, %v1496, %v1498
      %v1504 = vsel %vm614, %v1498, %v1500
      %1509 = vst [vmem:[#allocation3 + $0x220] sm:$0xff] %v1501
      %1510 = vst [vmem:[#allocation3 + $0x228] sm:$0xff] %v1502
      %1511 = vst [vmem:[#allocation3 + $0x230] sm:$0xff] %v1503
      %1512 = vst [vmem:[#allocation3 + $0x238] sm:$0xff] %v1504
      %1513 = vrot.lane.b32.xlu0 %v1375, 80
      %v1514 = vpop.permute.xlu0 %1513
      %1515 = vrot.lane.b32.xlu0 %v1407, 80
      %v1516 = vpop.permute.xlu0 %1515
      %1517 = vrot.lane.b32.xlu0 %v1439, 80
      %v1518 = vpop.permute.xlu0 %1517
      %1519 = vrot.lane.b32.xlu0 %v1376, 80
      %v1520 = vpop.permute.xlu0 %1519
      %1521 = vrot.lane.b32.xlu0 %v1408, 80
      %v1522 = vpop.permute.xlu0 %1521
      %1523 = vrot.lane.b32.xlu0 %v1440, 80
      %v1524 = vpop.permute.xlu0 %1523
      %v1525 = vsel %vm639, %v1514, %v1516
      %v1526 = vsel %vm639, %v1516, %v1518
      %v1527 = vsel %vm639, %v1520, %v1522
      %v1528 = vsel %vm639, %v1522, %v1524
      %1533 = vst [vmem:[#allocation3 + $0x300] sm:$0xff] %v1525
      %1534 = vst [vmem:[#allocation3 + $0x308] sm:$0xff] %v1526
      %1535 = vst [vmem:[#allocation3 + $0x310] sm:$0xff] %v1527
      %1536 = vst [vmem:[#allocation3 + $0x318] sm:$0xff] %v1528
      %1537 = vrot.lane.b32.xlu0 %v1375, 64
      %v1538 = vpop.permute.xlu0 %1537
      %1539 = vrot.lane.b32.xlu0 %v1407, 64
      %v1540 = vpop.permute.xlu0 %1539
      %1541 = vrot.lane.b32.xlu0 %v1439, 64
      %v1542 = vpop.permute.xlu0 %1541
      %1543 = vrot.lane.b32.xlu0 %v1376, 64
      %v1544 = vpop.permute.xlu0 %1543
      %1545 = vrot.lane.b32.xlu0 %v1408, 64
      %v1546 = vpop.permute.xlu0 %1545
      %1547 = vrot.lane.b32.xlu0 %v1440, 64
      %v1548 = vpop.permute.xlu0 %1547
      %v1549 = vsel %vm664, %v1538, %v1540
      %v1550 = vsel %vm664, %v1540, %v1542
      %v1551 = vsel %vm664, %v1544, %v1546
      %v1552 = vsel %vm664, %v1546, %v1548
      %1557 = vst [vmem:[#allocation3 + $0x3e0] sm:$0xff] %v1549
      %1558 = vst [vmem:[#allocation3 + $0x3e8] sm:$0xff] %v1550
      %1559 = vst [vmem:[#allocation3 + $0x3f0] sm:$0xff] %v1551
      %1560 = vst [vmem:[#allocation3 + $0x3f8] sm:$0xff] %v1552
      %1561 = vrot.lane.b32.xlu0 %v1375, 48
      %v1562 = vpop.permute.xlu0 %1561
      %1563 = vrot.lane.b32.xlu0 %v1407, 48
      %v1564 = vpop.permute.xlu0 %1563
      %1565 = vrot.lane.b32.xlu0 %v1439, 48
      %v1566 = vpop.permute.xlu0 %1565
      %1567 = vrot.lane.b32.xlu0 %v1376, 48
      %v1568 = vpop.permute.xlu0 %1567
      %1569 = vrot.lane.b32.xlu0 %v1408, 48
      %v1570 = vpop.permute.xlu0 %1569
      %1571 = vrot.lane.b32.xlu0 %v1440, 48
      %v1572 = vpop.permute.xlu0 %1571
      %v1573 = vsel %vm689, %v1562, %v1564
      %v1574 = vsel %vm689, %v1564, %v1566
      %v1575 = vsel %vm689, %v1568, %v1570
      %v1576 = vsel %vm689, %v1570, %v1572
      %1581 = vst [vmem:[#allocation3 + $0x4c0] sm:$0xff] %v1573
      %1582 = vst [vmem:[#allocation3 + $0x4c8] sm:$0xff] %v1574
      %1583 = vst [vmem:[#allocation3 + $0x4d0] sm:$0xff] %v1575
      %1584 = vst [vmem:[#allocation3 + $0x4d8] sm:$0xff] %v1576
      %1585 = vrot.lane.b32.xlu0 %v1375, 32
      %v1586 = vpop.permute.xlu0 %1585
      %1587 = vrot.lane.b32.xlu0 %v1407, 32
      %v1588 = vpop.permute.xlu0 %1587
      %1589 = vrot.lane.b32.xlu0 %v1439, 32
      %v1590 = vpop.permute.xlu0 %1589
      %1591 = vrot.lane.b32.xlu0 %v1376, 32
      %v1592 = vpop.permute.xlu0 %1591
      %1593 = vrot.lane.b32.xlu0 %v1408, 32
      %v1594 = vpop.permute.xlu0 %1593
      %1595 = vrot.lane.b32.xlu0 %v1440, 32
      %v1596 = vpop.permute.xlu0 %1595
      %v1597 = vsel %vm714, %v1586, %v1588
      %v1598 = vsel %vm714, %v1588, %v1590
      %v1599 = vsel %vm714, %v1592, %v1594
      %v1600 = vsel %vm714, %v1594, %v1596
      %1605 = vst [vmem:[#allocation3 + $0x5a0] sm:$0xff] %v1597
      %1606 = vst [vmem:[#allocation3 + $0x5a8] sm:$0xff] %v1598
      %1607 = vst [vmem:[#allocation3 + $0x5b0] sm:$0xff] %v1599
      %1608 = vst [vmem:[#allocation3 + $0x5b8] sm:$0xff] %v1600
      %v1609 = vld [vmem:[#allocation2 + $0x4] sm:$0xff]
      %v1610 = vld [vmem:[#allocation2 + $0xc] sm:$0xff]
      %v1611 = vld [vmem:[#allocation2 + $0x1c] sm:$0xff]
      %v1612 = vld [vmem:[#allocation2 + $0x24] sm:$0xff]
      %v1613 = vld [vmem:[#allocation2 + $0x34] sm:$0xff]
      %v1614 = vld [vmem:[#allocation2 + $0x3c] sm:$0xff]
      %v1615 = vld [vmem:[#allocation2 + $0x4c] sm:$0xff]
      %v1616 = vld [vmem:[#allocation2 + $0x54] sm:$0xff]
      %v1617 = vld [vmem:[#allocation2 + $0x64] sm:$0xff]
      %v1618 = vld [vmem:[#allocation2 + $0x6c] sm:$0xff]
      %v1619 = vld [vmem:[#allocation2 + $0x7c] sm:$0xff]
      %v1620 = vld [vmem:[#allocation2 + $0x84] sm:$0xff]
      %v1621 = vld [vmem:[#allocation2 + $0x94] sm:$0xff]
      %v1622 = vld [vmem:[#allocation2 + $0x9c] sm:$0xff]
      %v1623 = vld [vmem:[#allocation2 + $0xac] sm:$0xff]
      %v1624 = vld [vmem:[#allocation2 + $0xb4] sm:$0xff]
      %v1625 = vld [vmem:[#allocation2 + $0xc4] sm:$0xff]
      %v1626 = vld [vmem:[#allocation2 + $0xcc] sm:$0xff]
      %v1627 = vld [vmem:[#allocation2 + $0xdc] sm:$0xff]
      %v1628 = vld [vmem:[#allocation2 + $0xe4] sm:$0xff]
      %v1629 = vld [vmem:[#allocation2 + $0xf4] sm:$0xff]
      %v1630 = vld [vmem:[#allocation2 + $0xfc] sm:$0xff]
      %v1631 = vld [vmem:[#allocation2 + $0x10c] sm:$0xff]
      %v1632 = vld [vmem:[#allocation2 + $0x114] sm:$0xff]
      %v1633 = vld [vmem:[#allocation2 + $0x124] sm:$0xff]
      %v1634 = vld [vmem:[#allocation2 + $0x12c] sm:$0xff]
      %v1635 = vld [vmem:[#allocation2 + $0x13c] sm:$0xff]
      %v1636 = vld [vmem:[#allocation2 + $0x144] sm:$0xff]
      %v1637 = vld [vmem:[#allocation2 + $0x154] sm:$0xff]
      %v1638 = vld [vmem:[#allocation2 + $0x15c] sm:$0xff]
      %v1639 = vld [vmem:[#allocation2 + $0x16c] sm:$0xff]
      %v1640 = vld [vmem:[#allocation2 + $0x174] sm:$0xff]
      %v1641 = vld [vmem:[#allocation2 + $0x184] sm:$0xff]
      %v1642 = vld [vmem:[#allocation2 + $0x18c] sm:$0xff]
      %v1643 = vld [vmem:[#allocation2 + $0x19c] sm:$0xff]
      %v1644 = vld [vmem:[#allocation2 + $0x1a4] sm:$0xff]
      %v1645 = vld [vmem:[#allocation2 + $0x1b4] sm:$0xff]
      %v1646 = vld [vmem:[#allocation2 + $0x1bc] sm:$0xff]
      %v1647 = vld [vmem:[#allocation2 + $0x1cc] sm:$0xff]
      %v1648 = vld [vmem:[#allocation2 + $0x1d4] sm:$0xff]
      %v1649 = vld [vmem:[#allocation2 + $0x1e4] sm:$0xff]
      %v1650 = vld [vmem:[#allocation2 + $0x1ec] sm:$0xff]
      %v1651 = vld [vmem:[#allocation2 + $0x1fc] sm:$0xff]
      %v1652 = vld [vmem:[#allocation2 + $0x204] sm:$0xff]
      %1653 = vxpose.xlu0.b32.start [1/16] %v1609, 128
      %1654 = vxpose.xlu0.b32.cont [2/16] %v1610, 128
      %1655 = vxpose.xlu0.b32.cont [3/16] %v1611, 128
      %1656 = vxpose.xlu0.b32.cont [4/16] %v1612, 128
      %1657 = vxpose.xlu0.b32.cont [5/16] %v1613, 128
      %1658 = vxpose.xlu0.b32.cont [6/16] %v1614, 128
      %1659 = vxpose.xlu0.b32.cont [7/16] %v1615, 128
      %1660 = vxpose.xlu0.b32.cont [8/16] %v1616, 128
      %1661 = vxpose.xlu0.b32.cont [9/16] %v1617, 128
      %1662 = vxpose.xlu0.b32.cont [10/16] %v1618, 128
      %1663 = vxpose.xlu0.b32.cont [11/16] %v1619, 128
      %1664 = vxpose.xlu0.b32.cont [12/16] %v1620, 128
      %1665 = vxpose.xlu0.b32.cont [13/16] %v1621, 128
      %1666 = vxpose.xlu0.b32.cont [14/16] %v1622, 128
      %1667 = vxpose.xlu0.b32.cont [15/16] %v1623, 128
      %1668 = vxpose.xlu0.b32.end [16/16] %v1624, 128
      %v1669 = vpop.trf.xlu0
      %v1670 = vpop.trf.xlu0
      %v1671 = vpop.trf.xlu0
      %v1672 = vpop.trf.xlu0
      %v1673 = vpop.trf.xlu0
      %v1674 = vpop.trf.xlu0
      %v1675 = vpop.trf.xlu0
      %v1676 = vpop.trf.xlu0
      %v1677 = vpop.trf.xlu0
      %v1678 = vpop.trf.xlu0
      %v1679 = vpop.trf.xlu0
      %v1680 = vpop.trf.xlu0
      %v1681 = vpop.trf.xlu0
      %v1682 = vpop.trf.xlu0
      %v1683 = vpop.trf.xlu0
      %v1684 = vpop.trf.xlu0
      %1685 = vxpose.xlu0.b32.start [1/16] %v1625, 128
      %1686 = vxpose.xlu0.b32.cont [2/16] %v1626, 128
      %1687 = vxpose.xlu0.b32.cont [3/16] %v1627, 128
      %1688 = vxpose.xlu0.b32.cont [4/16] %v1628, 128
      %1689 = vxpose.xlu0.b32.cont [5/16] %v1629, 128
      %1690 = vxpose.xlu0.b32.cont [6/16] %v1630, 128
      %1691 = vxpose.xlu0.b32.cont [7/16] %v1631, 128
      %1692 = vxpose.xlu0.b32.cont [8/16] %v1632, 128
      %1693 = vxpose.xlu0.b32.cont [9/16] %v1633, 128
      %1694 = vxpose.xlu0.b32.cont [10/16] %v1634, 128
      %1695 = vxpose.xlu0.b32.cont [11/16] %v1635, 128
      %1696 = vxpose.xlu0.b32.cont [12/16] %v1636, 128
      %1697 = vxpose.xlu0.b32.cont [13/16] %v1637, 128
      %1698 = vxpose.xlu0.b32.cont [14/16] %v1638, 128
      %1699 = vxpose.xlu0.b32.cont [15/16] %v1639, 128
      %1700 = vxpose.xlu0.b32.end [16/16] %v1640, 128
      %v1701 = vpop.trf.xlu0
      %v1702 = vpop.trf.xlu0
      %v1703 = vpop.trf.xlu0
      %v1704 = vpop.trf.xlu0
      %v1705 = vpop.trf.xlu0
      %v1706 = vpop.trf.xlu0
      %v1707 = vpop.trf.xlu0
      %v1708 = vpop.trf.xlu0
      %v1709 = vpop.trf.xlu0
      %v1710 = vpop.trf.xlu0
      %v1711 = vpop.trf.xlu0
      %v1712 = vpop.trf.xlu0
      %v1713 = vpop.trf.xlu0
      %v1714 = vpop.trf.xlu0
      %v1715 = vpop.trf.xlu0
      %v1716 = vpop.trf.xlu0
      %1717 = vxpose.xlu0.b32.start [1/16] %v1641, 128
      %1718 = vxpose.xlu0.b32.cont [2/16] %v1642, 128
      %1719 = vxpose.xlu0.b32.cont [3/16] %v1643, 128
      %1720 = vxpose.xlu0.b32.cont [4/16] %v1644, 128
      %1721 = vxpose.xlu0.b32.cont [5/16] %v1645, 128
      %1722 = vxpose.xlu0.b32.cont [6/16] %v1646, 128
      %1723 = vxpose.xlu0.b32.cont [7/16] %v1647, 128
      %1724 = vxpose.xlu0.b32.cont [8/16] %v1648, 128
      %1725 = vxpose.xlu0.b32.cont [9/16] %v1649, 128
      %1726 = vxpose.xlu0.b32.cont [10/16] %v1650, 128
      %1727 = vxpose.xlu0.b32.cont [11/16] %v1651, 128
      %1728 = vxpose.xlu0.b32.cont [12/16] %v1652, 128
      %1729 = vxpose.xlu0.b32.cont [13/16] 0.0, 128
      %1730 = vxpose.xlu0.b32.cont [14/16] 0.0, 128
      %1731 = vxpose.xlu0.b32.cont [15/16] 0.0, 128
      %1732 = vxpose.xlu0.b32.end [16/16] 0.0, 128
      %v1733 = vpop.trf.xlu0
      %v1734 = vpop.trf.xlu0
      %v1735 = vpop.trf.xlu0
      %v1736 = vpop.trf.xlu0
      %v1737 = vpop.trf.xlu0
      %v1738 = vpop.trf.xlu0
      %v1739 = vpop.trf.xlu0
      %v1740 = vpop.trf.xlu0
      %v1741 = vpop.trf.xlu0
      %v1742 = vpop.trf.xlu0
      %v1743 = vpop.trf.xlu0
      %v1744 = vpop.trf.xlu0
      %v1745 = vpop.trf.xlu0
      %v1746 = vpop.trf.xlu0
      %v1747 = vpop.trf.xlu0
      %v1748 = vpop.trf.xlu0
      %1749 = vst [vmem:[#allocation3 + $0x80] sm:$0xff] %v1669
      %1750 = vst [vmem:[#allocation3 + $0x88] sm:$0xff] %v1701
      %1751 = vst [vmem:[#allocation3 + $0x90] sm:$0xff] %v1670
      %1752 = vst [vmem:[#allocation3 + $0x98] sm:$0xff] %v1702
      %1759 = vrot.lane.b32.xlu0 %v1669, 112
      %v1760 = vpop.permute.xlu0 %1759
      %1761 = vrot.lane.b32.xlu0 %v1701, 112
      %v1762 = vpop.permute.xlu0 %1761
      %1763 = vrot.lane.b32.xlu0 %v1733, 112
      %v1764 = vpop.permute.xlu0 %1763
      %1765 = vrot.lane.b32.xlu0 %v1670, 112
      %v1766 = vpop.permute.xlu0 %1765
      %1767 = vrot.lane.b32.xlu0 %v1702, 112
      %v1768 = vpop.permute.xlu0 %1767
      %1769 = vrot.lane.b32.xlu0 %v1734, 112
      %v1770 = vpop.permute.xlu0 %1769
      %v1771 = vsel %vm589, %v1760, %v1762
      %v1772 = vsel %vm589, %v1762, %v1764
      %v1773 = vsel %vm589, %v1766, %v1768
      %v1774 = vsel %vm589, %v1768, %v1770
      %1779 = vst [vmem:[#allocation3 + $0x160] sm:$0xff] %v1771
      %1780 = vst [vmem:[#allocation3 + $0x168] sm:$0xff] %v1772
      %1781 = vst [vmem:[#allocation3 + $0x170] sm:$0xff] %v1773
      %1782 = vst [vmem:[#allocation3 + $0x178] sm:$0xff] %v1774
      %1783 = vrot.lane.b32.xlu0 %v1669, 96
      %v1784 = vpop.permute.xlu0 %1783
      %1785 = vrot.lane.b32.xlu0 %v1701, 96
      %v1786 = vpop.permute.xlu0 %1785
      %1787 = vrot.lane.b32.xlu0 %v1733, 96
      %v1788 = vpop.permute.xlu0 %1787
      %1789 = vrot.lane.b32.xlu0 %v1670, 96
      %v1790 = vpop.permute.xlu0 %1789
      %1791 = vrot.lane.b32.xlu0 %v1702, 96
      %v1792 = vpop.permute.xlu0 %1791
      %1793 = vrot.lane.b32.xlu0 %v1734, 96
      %v1794 = vpop.permute.xlu0 %1793
      %v1795 = vsel %vm614, %v1784, %v1786
      %v1796 = vsel %vm614, %v1786, %v1788
      %v1797 = vsel %vm614, %v1790, %v1792
      %v1798 = vsel %vm614, %v1792, %v1794
      %1803 = vst [vmem:[#allocation3 + $0x240] sm:$0xff] %v1795
      %1804 = vst [vmem:[#allocation3 + $0x248] sm:$0xff] %v1796
      %1805 = vst [vmem:[#allocation3 + $0x250] sm:$0xff] %v1797
      %1806 = vst [vmem:[#allocation3 + $0x258] sm:$0xff] %v1798
      %1807 = vrot.lane.b32.xlu0 %v1669, 80
      %v1808 = vpop.permute.xlu0 %1807
      %1809 = vrot.lane.b32.xlu0 %v1701, 80
      %v1810 = vpop.permute.xlu0 %1809
      %1811 = vrot.lane.b32.xlu0 %v1733, 80
      %v1812 = vpop.permute.xlu0 %1811
      %1813 = vrot.lane.b32.xlu0 %v1670, 80
      %v1814 = vpop.permute.xlu0 %1813
      %1815 = vrot.lane.b32.xlu0 %v1702, 80
      %v1816 = vpop.permute.xlu0 %1815
      %1817 = vrot.lane.b32.xlu0 %v1734, 80
      %v1818 = vpop.permute.xlu0 %1817
      %v1819 = vsel %vm639, %v1808, %v1810
      %v1820 = vsel %vm639, %v1810, %v1812
      %v1821 = vsel %vm639, %v1814, %v1816
      %v1822 = vsel %vm639, %v1816, %v1818
      %1827 = vst [vmem:[#allocation3 + $0x320] sm:$0xff] %v1819
      %1828 = vst [vmem:[#allocation3 + $0x328] sm:$0xff] %v1820
      %1829 = vst [vmem:[#allocation3 + $0x330] sm:$0xff] %v1821
      %1830 = vst [vmem:[#allocation3 + $0x338] sm:$0xff] %v1822
      %1831 = vrot.lane.b32.xlu0 %v1669, 64
      %v1832 = vpop.permute.xlu0 %1831
      %1833 = vrot.lane.b32.xlu0 %v1701, 64
      %v1834 = vpop.permute.xlu0 %1833
      %1835 = vrot.lane.b32.xlu0 %v1733, 64
      %v1836 = vpop.permute.xlu0 %1835
      %1837 = vrot.lane.b32.xlu0 %v1670, 64
      %v1838 = vpop.permute.xlu0 %1837
      %1839 = vrot.lane.b32.xlu0 %v1702, 64
      %v1840 = vpop.permute.xlu0 %1839
      %1841 = vrot.lane.b32.xlu0 %v1734, 64
      %v1842 = vpop.permute.xlu0 %1841
      %v1843 = vsel %vm664, %v1832, %v1834
      %v1844 = vsel %vm664, %v1834, %v1836
      %v1845 = vsel %vm664, %v1838, %v1840
      %v1846 = vsel %vm664, %v1840, %v1842
      %1851 = vst [vmem:[#allocation3 + $0x400] sm:$0xff] %v1843
      %1852 = vst [vmem:[#allocation3 + $0x408] sm:$0xff] %v1844
      %1853 = vst [vmem:[#allocation3 + $0x410] sm:$0xff] %v1845
      %1854 = vst [vmem:[#allocation3 + $0x418] sm:$0xff] %v1846
      %1855 = vrot.lane.b32.xlu0 %v1669, 48
      %v1856 = vpop.permute.xlu0 %1855
      %1857 = vrot.lane.b32.xlu0 %v1701, 48
      %v1858 = vpop.permute.xlu0 %1857
      %1859 = vrot.lane.b32.xlu0 %v1733, 48
      %v1860 = vpop.permute.xlu0 %1859
      %1861 = vrot.lane.b32.xlu0 %v1670, 48
      %v1862 = vpop.permute.xlu0 %1861
      %1863 = vrot.lane.b32.xlu0 %v1702, 48
      %v1864 = vpop.permute.xlu0 %1863
      %1865 = vrot.lane.b32.xlu0 %v1734, 48
      %v1866 = vpop.permute.xlu0 %1865
      %v1867 = vsel %vm689, %v1856, %v1858
      %v1868 = vsel %vm689, %v1858, %v1860
      %v1869 = vsel %vm689, %v1862, %v1864
      %v1870 = vsel %vm689, %v1864, %v1866
      %1875 = vst [vmem:[#allocation3 + $0x4e0] sm:$0xff] %v1867
      %1876 = vst [vmem:[#allocation3 + $0x4e8] sm:$0xff] %v1868
      %1877 = vst [vmem:[#allocation3 + $0x4f0] sm:$0xff] %v1869
      %1878 = vst [vmem:[#allocation3 + $0x4f8] sm:$0xff] %v1870
      %1879 = vrot.lane.b32.xlu0 %v1669, 32
      %v1880 = vpop.permute.xlu0 %1879
      %1881 = vrot.lane.b32.xlu0 %v1701, 32
      %v1882 = vpop.permute.xlu0 %1881
      %1883 = vrot.lane.b32.xlu0 %v1733, 32
      %v1884 = vpop.permute.xlu0 %1883
      %1885 = vrot.lane.b32.xlu0 %v1670, 32
      %v1886 = vpop.permute.xlu0 %1885
      %1887 = vrot.lane.b32.xlu0 %v1702, 32
      %v1888 = vpop.permute.xlu0 %1887
      %1889 = vrot.lane.b32.xlu0 %v1734, 32
      %v1890 = vpop.permute.xlu0 %1889
      %v1891 = vsel %vm714, %v1880, %v1882
      %v1892 = vsel %vm714, %v1882, %v1884
      %v1893 = vsel %vm714, %v1886, %v1888
      %v1894 = vsel %vm714, %v1888, %v1890
      %1899 = vst [vmem:[#allocation3 + $0x5c0] sm:$0xff] %v1891
      %1900 = vst [vmem:[#allocation3 + $0x5c8] sm:$0xff] %v1892
      %1901 = vst [vmem:[#allocation3 + $0x5d0] sm:$0xff] %v1893
      %1902 = vst [vmem:[#allocation3 + $0x5d8] sm:$0xff] %v1894
      %v1903 = vld [vmem:[#allocation2 + $0x5] sm:$0xff]
      %v1904 = vld [vmem:[#allocation2 + $0xd] sm:$0xff]
      %v1905 = vld [vmem:[#allocation2 + $0x1d] sm:$0xff]
      %v1906 = vld [vmem:[#allocation2 + $0x25] sm:$0xff]
      %v1907 = vld [vmem:[#allocation2 + $0x35] sm:$0xff]
      %v1908 = vld [vmem:[#allocation2 + $0x3d] sm:$0xff]
      %v1909 = vld [vmem:[#allocation2 + $0x4d] sm:$0xff]
      %v1910 = vld [vmem:[#allocation2 + $0x55] sm:$0xff]
      %v1911 = vld [vmem:[#allocation2 + $0x65] sm:$0xff]
      %v1912 = vld [vmem:[#allocation2 + $0x6d] sm:$0xff]
      %v1913 = vld [vmem:[#allocation2 + $0x7d] sm:$0xff]
      %v1914 = vld [vmem:[#allocation2 + $0x85] sm:$0xff]
      %v1915 = vld [vmem:[#allocation2 + $0x95] sm:$0xff]
      %v1916 = vld [vmem:[#allocation2 + $0x9d] sm:$0xff]
      %v1917 = vld [vmem:[#allocation2 + $0xad] sm:$0xff]
      %v1918 = vld [vmem:[#allocation2 + $0xb5] sm:$0xff]
      %v1919 = vld [vmem:[#allocation2 + $0xc5] sm:$0xff]
      %v1920 = vld [vmem:[#allocation2 + $0xcd] sm:$0xff]
      %v1921 = vld [vmem:[#allocation2 + $0xdd] sm:$0xff]
      %v1922 = vld [vmem:[#allocation2 + $0xe5] sm:$0xff]
      %v1923 = vld [vmem:[#allocation2 + $0xf5] sm:$0xff]
      %v1924 = vld [vmem:[#allocation2 + $0xfd] sm:$0xff]
      %v1925 = vld [vmem:[#allocation2 + $0x10d] sm:$0xff]
      %v1926 = vld [vmem:[#allocation2 + $0x115] sm:$0xff]
      %v1927 = vld [vmem:[#allocation2 + $0x125] sm:$0xff]
      %v1928 = vld [vmem:[#allocation2 + $0x12d] sm:$0xff]
      %v1929 = vld [vmem:[#allocation2 + $0x13d] sm:$0xff]
      %v1930 = vld [vmem:[#allocation2 + $0x145] sm:$0xff]
      %v1931 = vld [vmem:[#allocation2 + $0x155] sm:$0xff]
      %v1932 = vld [vmem:[#allocation2 + $0x15d] sm:$0xff]
      %v1933 = vld [vmem:[#allocation2 + $0x16d] sm:$0xff]
      %v1934 = vld [vmem:[#allocation2 + $0x175] sm:$0xff]
      %v1935 = vld [vmem:[#allocation2 + $0x185] sm:$0xff]
      %v1936 = vld [vmem:[#allocation2 + $0x18d] sm:$0xff]
      %v1937 = vld [vmem:[#allocation2 + $0x19d] sm:$0xff]
      %v1938 = vld [vmem:[#allocation2 + $0x1a5] sm:$0xff]
      %v1939 = vld [vmem:[#allocation2 + $0x1b5] sm:$0xff]
      %v1940 = vld [vmem:[#allocation2 + $0x1bd] sm:$0xff]
      %v1941 = vld [vmem:[#allocation2 + $0x1cd] sm:$0xff]
      %v1942 = vld [vmem:[#allocation2 + $0x1d5] sm:$0xff]
      %v1943 = vld [vmem:[#allocation2 + $0x1e5] sm:$0xff]
      %v1944 = vld [vmem:[#allocation2 + $0x1ed] sm:$0xff]
      %v1945 = vld [vmem:[#allocation2 + $0x1fd] sm:$0xff]
      %v1946 = vld [vmem:[#allocation2 + $0x205] sm:$0xff]
      %1947 = vxpose.xlu0.b32.start [1/16] %v1903, 128
      %1948 = vxpose.xlu0.b32.cont [2/16] %v1904, 128
      %1949 = vxpose.xlu0.b32.cont [3/16] %v1905, 128
      %1950 = vxpose.xlu0.b32.cont [4/16] %v1906, 128
      %1951 = vxpose.xlu0.b32.cont [5/16] %v1907, 128
      %1952 = vxpose.xlu0.b32.cont [6/16] %v1908, 128
      %1953 = vxpose.xlu0.b32.cont [7/16] %v1909, 128
      %1954 = vxpose.xlu0.b32.cont [8/16] %v1910, 128
      %1955 = vxpose.xlu0.b32.cont [9/16] %v1911, 128
      %1956 = vxpose.xlu0.b32.cont [10/16] %v1912, 128
      %1957 = vxpose.xlu0.b32.cont [11/16] %v1913, 128
      %1958 = vxpose.xlu0.b32.cont [12/16] %v1914, 128
      %1959 = vxpose.xlu0.b32.cont [13/16] %v1915, 128
      %1960 = vxpose.xlu0.b32.cont [14/16] %v1916, 128
      %1961 = vxpose.xlu0.b32.cont [15/16] %v1917, 128
      %1962 = vxpose.xlu0.b32.end [16/16] %v1918, 128
      %v1963 = vpop.trf.xlu0
      %v1964 = vpop.trf.xlu0
      %v1965 = vpop.trf.xlu0
      %v1966 = vpop.trf.xlu0
      %v1967 = vpop.trf.xlu0
      %v1968 = vpop.trf.xlu0
      %v1969 = vpop.trf.xlu0
      %v1970 = vpop.trf.xlu0
      %v1971 = vpop.trf.xlu0
      %v1972 = vpop.trf.xlu0
      %v1973 = vpop.trf.xlu0
      %v1974 = vpop.trf.xlu0
      %v1975 = vpop.trf.xlu0
      %v1976 = vpop.trf.xlu0
      %v1977 = vpop.trf.xlu0
      %v1978 = vpop.trf.xlu0
      %1979 = vxpose.xlu0.b32.start [1/16] %v1919, 128
      %1980 = vxpose.xlu0.b32.cont [2/16] %v1920, 128
      %1981 = vxpose.xlu0.b32.cont [3/16] %v1921, 128
      %1982 = vxpose.xlu0.b32.cont [4/16] %v1922, 128
      %1983 = vxpose.xlu0.b32.cont [5/16] %v1923, 128
      %1984 = vxpose.xlu0.b32.cont [6/16] %v1924, 128
      %1985 = vxpose.xlu0.b32.cont [7/16] %v1925, 128
      %1986 = vxpose.xlu0.b32.cont [8/16] %v1926, 128
      %1987 = vxpose.xlu0.b32.cont [9/16] %v1927, 128
      %1988 = vxpose.xlu0.b32.cont [10/16] %v1928, 128
      %1989 = vxpose.xlu0.b32.cont [11/16] %v1929, 128
      %1990 = vxpose.xlu0.b32.cont [12/16] %v1930, 128
      %1991 = vxpose.xlu0.b32.cont [13/16] %v1931, 128
      %1992 = vxpose.xlu0.b32.cont [14/16] %v1932, 128
      %1993 = vxpose.xlu0.b32.cont [15/16] %v1933, 128
      %1994 = vxpose.xlu0.b32.end [16/16] %v1934, 128
      %v1995 = vpop.trf.xlu0
      %v1996 = vpop.trf.xlu0
      %v1997 = vpop.trf.xlu0
      %v1998 = vpop.trf.xlu0
      %v1999 = vpop.trf.xlu0
      %v2000 = vpop.trf.xlu0
      %v2001 = vpop.trf.xlu0
      %v2002 = vpop.trf.xlu0
      %v2003 = vpop.trf.xlu0
      %v2004 = vpop.trf.xlu0
      %v2005 = vpop.trf.xlu0
      %v2006 = vpop.trf.xlu0
      %v2007 = vpop.trf.xlu0
      %v2008 = vpop.trf.xlu0
      %v2009 = vpop.trf.xlu0
      %v2010 = vpop.trf.xlu0
      %2011 = vxpose.xlu0.b32.start [1/16] %v1935, 128
      %2012 = vxpose.xlu0.b32.cont [2/16] %v1936, 128
      %2013 = vxpose.xlu0.b32.cont [3/16] %v1937, 128
      %2014 = vxpose.xlu0.b32.cont [4/16] %v1938, 128
      %2015 = vxpose.xlu0.b32.cont [5/16] %v1939, 128
      %2016 = vxpose.xlu0.b32.cont [6/16] %v1940, 128
      %2017 = vxpose.xlu0.b32.cont [7/16] %v1941, 128
      %2018 = vxpose.xlu0.b32.cont [8/16] %v1942, 128
      %2019 = vxpose.xlu0.b32.cont [9/16] %v1943, 128
      %2020 = vxpose.xlu0.b32.cont [10/16] %v1944, 128
      %2021 = vxpose.xlu0.b32.cont [11/16] %v1945, 128
      %2022 = vxpose.xlu0.b32.cont [12/16] %v1946, 128
      %2023 = vxpose.xlu0.b32.cont [13/16] 0.0, 128
      %2024 = vxpose.xlu0.b32.cont [14/16] 0.0, 128
      %2025 = vxpose.xlu0.b32.cont [15/16] 0.0, 128
      %2026 = vxpose.xlu0.b32.end [16/16] 0.0, 128
      %v2027 = vpop.trf.xlu0
      %v2028 = vpop.trf.xlu0
      %v2029 = vpop.trf.xlu0
      %v2030 = vpop.trf.xlu0
      %v2031 = vpop.trf.xlu0
      %v2032 = vpop.trf.xlu0
      %v2033 = vpop.trf.xlu0
      %v2034 = vpop.trf.xlu0
      %v2035 = vpop.trf.xlu0
      %v2036 = vpop.trf.xlu0
      %v2037 = vpop.trf.xlu0
      %v2038 = vpop.trf.xlu0
      %v2039 = vpop.trf.xlu0
      %v2040 = vpop.trf.xlu0
      %v2041 = vpop.trf.xlu0
      %v2042 = vpop.trf.xlu0
      %2043 = vst [vmem:[#allocation3 + $0xa0] sm:$0xff] %v1963
      %2044 = vst [vmem:[#allocation3 + $0xa8] sm:$0xff] %v1995
      %2045 = vst [vmem:[#allocation3 + $0xb0] sm:$0xff] %v1964
      %2046 = vst [vmem:[#allocation3 + $0xb8] sm:$0xff] %v1996
      %2053 = vrot.lane.b32.xlu0 %v1963, 112
      %v2054 = vpop.permute.xlu0 %2053
      %2055 = vrot.lane.b32.xlu0 %v1995, 112
      %v2056 = vpop.permute.xlu0 %2055
      %2057 = vrot.lane.b32.xlu0 %v2027, 112
      %v2058 = vpop.permute.xlu0 %2057
      %2059 = vrot.lane.b32.xlu0 %v1964, 112
      %v2060 = vpop.permute.xlu0 %2059
      %2061 = vrot.lane.b32.xlu0 %v1996, 112
      %v2062 = vpop.permute.xlu0 %2061
      %2063 = vrot.lane.b32.xlu0 %v2028, 112
      %v2064 = vpop.permute.xlu0 %2063
      %v2065 = vsel %vm589, %v2054, %v2056
      %v2066 = vsel %vm589, %v2056, %v2058
      %v2067 = vsel %vm589, %v2060, %v2062
      %v2068 = vsel %vm589, %v2062, %v2064
      %2073 = vst [vmem:[#allocation3 + $0x180] sm:$0xff] %v2065
      %2074 = vst [vmem:[#allocation3 + $0x188] sm:$0xff] %v2066
      %2075 = vst [vmem:[#allocation3 + $0x190] sm:$0xff] %v2067
      %2076 = vst [vmem:[#allocation3 + $0x198] sm:$0xff] %v2068
      %2077 = vrot.lane.b32.xlu0 %v1963, 96
      %v2078 = vpop.permute.xlu0 %2077
      %2079 = vrot.lane.b32.xlu0 %v1995, 96
      %v2080 = vpop.permute.xlu0 %2079
      %2081 = vrot.lane.b32.xlu0 %v2027, 96
      %v2082 = vpop.permute.xlu0 %2081
      %2083 = vrot.lane.b32.xlu0 %v1964, 96
      %v2084 = vpop.permute.xlu0 %2083
      %2085 = vrot.lane.b32.xlu0 %v1996, 96
      %v2086 = vpop.permute.xlu0 %2085
      %2087 = vrot.lane.b32.xlu0 %v2028, 96
      %v2088 = vpop.permute.xlu0 %2087
      %v2089 = vsel %vm614, %v2078, %v2080
      %v2090 = vsel %vm614, %v2080, %v2082
      %v2091 = vsel %vm614, %v2084, %v2086
      %v2092 = vsel %vm614, %v2086, %v2088
      %2097 = vst [vmem:[#allocation3 + $0x260] sm:$0xff] %v2089
      %2098 = vst [vmem:[#allocation3 + $0x268] sm:$0xff] %v2090
      %2099 = vst [vmem:[#allocation3 + $0x270] sm:$0xff] %v2091
      %2100 = vst [vmem:[#allocation3 + $0x278] sm:$0xff] %v2092
      %2101 = vrot.lane.b32.xlu0 %v1963, 80
      %v2102 = vpop.permute.xlu0 %2101
      %2103 = vrot.lane.b32.xlu0 %v1995, 80
      %v2104 = vpop.permute.xlu0 %2103
      %2105 = vrot.lane.b32.xlu0 %v2027, 80
      %v2106 = vpop.permute.xlu0 %2105
      %2107 = vrot.lane.b32.xlu0 %v1964, 80
      %v2108 = vpop.permute.xlu0 %2107
      %2109 = vrot.lane.b32.xlu0 %v1996, 80
      %v2110 = vpop.permute.xlu0 %2109
      %2111 = vrot.lane.b32.xlu0 %v2028, 80
      %v2112 = vpop.permute.xlu0 %2111
      %v2113 = vsel %vm639, %v2102, %v2104
      %v2114 = vsel %vm639, %v2104, %v2106
      %v2115 = vsel %vm639, %v2108, %v2110
      %v2116 = vsel %vm639, %v2110, %v2112
      %2121 = vst [vmem:[#allocation3 + $0x340] sm:$0xff] %v2113
      %2122 = vst [vmem:[#allocation3 + $0x348] sm:$0xff] %v2114
      %2123 = vst [vmem:[#allocation3 + $0x350] sm:$0xff] %v2115
      %2124 = vst [vmem:[#allocation3 + $0x358] sm:$0xff] %v2116
      %2125 = vrot.lane.b32.xlu0 %v1963, 64
      %v2126 = vpop.permute.xlu0 %2125
      %2127 = vrot.lane.b32.xlu0 %v1995, 64
      %v2128 = vpop.permute.xlu0 %2127
      %2129 = vrot.lane.b32.xlu0 %v2027, 64
      %v2130 = vpop.permute.xlu0 %2129
      %2131 = vrot.lane.b32.xlu0 %v1964, 64
      %v2132 = vpop.permute.xlu0 %2131
      %2133 = vrot.lane.b32.xlu0 %v1996, 64
      %v2134 = vpop.permute.xlu0 %2133
      %2135 = vrot.lane.b32.xlu0 %v2028, 64
      %v2136 = vpop.permute.xlu0 %2135
      %v2137 = vsel %vm664, %v2126, %v2128
      %v2138 = vsel %vm664, %v2128, %v2130
      %v2139 = vsel %vm664, %v2132, %v2134
      %v2140 = vsel %vm664, %v2134, %v2136
      %2145 = vst [vmem:[#allocation3 + $0x420] sm:$0xff] %v2137
      %2146 = vst [vmem:[#allocation3 + $0x428] sm:$0xff] %v2138
      %2147 = vst [vmem:[#allocation3 + $0x430] sm:$0xff] %v2139
      %2148 = vst [vmem:[#allocation3 + $0x438] sm:$0xff] %v2140
      %2149 = vrot.lane.b32.xlu0 %v1963, 48
      %v2150 = vpop.permute.xlu0 %2149
      %2151 = vrot.lane.b32.xlu0 %v1995, 48
      %v2152 = vpop.permute.xlu0 %2151
      %2153 = vrot.lane.b32.xlu0 %v2027, 48
      %v2154 = vpop.permute.xlu0 %2153
      %2155 = vrot.lane.b32.xlu0 %v1964, 48
      %v2156 = vpop.permute.xlu0 %2155
      %2157 = vrot.lane.b32.xlu0 %v1996, 48
      %v2158 = vpop.permute.xlu0 %2157
      %2159 = vrot.lane.b32.xlu0 %v2028, 48
      %v2160 = vpop.permute.xlu0 %2159
      %v2161 = vsel %vm689, %v2150, %v2152
      %v2162 = vsel %vm689, %v2152, %v2154
      %v2163 = vsel %vm689, %v2156, %v2158
      %v2164 = vsel %vm689, %v2158, %v2160
      %2169 = vst [vmem:[#allocation3 + $0x500] sm:$0xff] %v2161
      %2170 = vst [vmem:[#allocation3 + $0x508] sm:$0xff] %v2162
      %2171 = vst [vmem:[#allocation3 + $0x510] sm:$0xff] %v2163
      %2172 = vst [vmem:[#allocation3 + $0x518] sm:$0xff] %v2164
      %2173 = vrot.lane.b32.xlu0 %v1963, 32
      %v2174 = vpop.permute.xlu0 %2173
      %2175 = vrot.lane.b32.xlu0 %v1995, 32
      %v2176 = vpop.permute.xlu0 %2175
      %2177 = vrot.lane.b32.xlu0 %v2027, 32
      %v2178 = vpop.permute.xlu0 %2177
      %2179 = vrot.lane.b32.xlu0 %v1964, 32
      %v2180 = vpop.permute.xlu0 %2179
      %2181 = vrot.lane.b32.xlu0 %v1996, 32
      %v2182 = vpop.permute.xlu0 %2181
      %2183 = vrot.lane.b32.xlu0 %v2028, 32
      %v2184 = vpop.permute.xlu0 %2183
      %v2185 = vsel %vm714, %v2174, %v2176
      %v2186 = vsel %vm714, %v2176, %v2178
      %v2187 = vsel %vm714, %v2180, %v2182
      %v2188 = vsel %vm714, %v2182, %v2184
      %2193 = vst [vmem:[#allocation3 + $0x5e0] sm:$0xff] %v2185
      %2194 = vst [vmem:[#allocation3 + $0x5e8] sm:$0xff] %v2186
      %2195 = vst [vmem:[#allocation3 + $0x5f0] sm:$0xff] %v2187
      %2196 = vst [vmem:[#allocation3 + $0x5f8] sm:$0xff] %v2188
      %v2197 = vld [vmem:[#allocation2 + $0x6] sm:$0xff]
      %v2198 = vld [vmem:[#allocation2 + $0xe] sm:$0xff]
      %v2199 = vld [vmem:[#allocation2 + $0x1e] sm:$0xff]
      %v2200 = vld [vmem:[#allocation2 + $0x26] sm:$0xff]
      %v2201 = vld [vmem:[#allocation2 + $0x36] sm:$0xff]
      %v2202 = vld [vmem:[#allocation2 + $0x3e] sm:$0xff]
      %v2203 = vld [vmem:[#allocation2 + $0x4e] sm:$0xff]
      %v2204 = vld [vmem:[#allocation2 + $0x56] sm:$0xff]
      %v2205 = vld [vmem:[#allocation2 + $0x66] sm:$0xff]
      %v2206 = vld [vmem:[#allocation2 + $0x6e] sm:$0xff]
      %v2207 = vld [vmem:[#allocation2 + $0x7e] sm:$0xff]
      %v2208 = vld [vmem:[#allocation2 + $0x86] sm:$0xff]
      %v2209 = vld [vmem:[#allocation2 + $0x96] sm:$0xff]
      %v2210 = vld [vmem:[#allocation2 + $0x9e] sm:$0xff]
      %v2211 = vld [vmem:[#allocation2 + $0xae] sm:$0xff]
      %v2212 = vld [vmem:[#allocation2 + $0xb6] sm:$0xff]
      %v2213 = vld [vmem:[#allocation2 + $0xc6] sm:$0xff]
      %v2214 = vld [vmem:[#allocation2 + $0xce] sm:$0xff]
      %v2215 = vld [vmem:[#allocation2 + $0xde] sm:$0xff]
      %v2216 = vld [vmem:[#allocation2 + $0xe6] sm:$0xff]
      %v2217 = vld [vmem:[#allocation2 + $0xf6] sm:$0xff]
      %v2218 = vld [vmem:[#allocation2 + $0xfe] sm:$0xff]
      %v2219 = vld [vmem:[#allocation2 + $0x10e] sm:$0xff]
      %v2220 = vld [vmem:[#allocation2 + $0x116] sm:$0xff]
      %v2221 = vld [vmem:[#allocation2 + $0x126] sm:$0xff]
      %v2222 = vld [vmem:[#allocation2 + $0x12e] sm:$0xff]
      %v2223 = vld [vmem:[#allocation2 + $0x13e] sm:$0xff]
      %v2224 = vld [vmem:[#allocation2 + $0x146] sm:$0xff]
      %v2225 = vld [vmem:[#allocation2 + $0x156] sm:$0xff]
      %v2226 = vld [vmem:[#allocation2 + $0x15e] sm:$0xff]
      %v2227 = vld [vmem:[#allocation2 + $0x16e] sm:$0xff]
      %v2228 = vld [vmem:[#allocation2 + $0x176] sm:$0xff]
      %v2229 = vld [vmem:[#allocation2 + $0x186] sm:$0xff]
      %v2230 = vld [vmem:[#allocation2 + $0x18e] sm:$0xff]
      %v2231 = vld [vmem:[#allocation2 + $0x19e] sm:$0xff]
      %v2232 = vld [vmem:[#allocation2 + $0x1a6] sm:$0xff]
      %v2233 = vld [vmem:[#allocation2 + $0x1b6] sm:$0xff]
      %v2234 = vld [vmem:[#allocation2 + $0x1be] sm:$0xff]
      %v2235 = vld [vmem:[#allocation2 + $0x1ce] sm:$0xff]
      %v2236 = vld [vmem:[#allocation2 + $0x1d6] sm:$0xff]
      %v2237 = vld [vmem:[#allocation2 + $0x1e6] sm:$0xff]
      %v2238 = vld [vmem:[#allocation2 + $0x1ee] sm:$0xff]
      %v2239 = vld [vmem:[#allocation2 + $0x1fe] sm:$0xff]
      %v2240 = vld [vmem:[#allocation2 + $0x206] sm:$0xff]
      %2241 = vxpose.xlu0.b32.start [1/16] %v2197, 128
      %2242 = vxpose.xlu0.b32.cont [2/16] %v2198, 128
      %2243 = vxpose.xlu0.b32.cont [3/16] %v2199, 128
      %2244 = vxpose.xlu0.b32.cont [4/16] %v2200, 128
      %2245 = vxpose.xlu0.b32.cont [5/16] %v2201, 128
      %2246 = vxpose.xlu0.b32.cont [6/16] %v2202, 128
      %2247 = vxpose.xlu0.b32.cont [7/16] %v2203, 128
      %2248 = vxpose.xlu0.b32.cont [8/16] %v2204, 128
      %2249 = vxpose.xlu0.b32.cont [9/16] %v2205, 128
      %2250 = vxpose.xlu0.b32.cont [10/16] %v2206, 128
      %2251 = vxpose.xlu0.b32.cont [11/16] %v2207, 128
      %2252 = vxpose.xlu0.b32.cont [12/16] %v2208, 128
      %2253 = vxpose.xlu0.b32.cont [13/16] %v2209, 128
      %2254 = vxpose.xlu0.b32.cont [14/16] %v2210, 128
      %2255 = vxpose.xlu0.b32.cont [15/16] %v2211, 128
      %2256 = vxpose.xlu0.b32.end [16/16] %v2212, 128
      %v2257 = vpop.trf.xlu0
      %v2258 = vpop.trf.xlu0
      %v2259 = vpop.trf.xlu0
      %v2260 = vpop.trf.xlu0
      %v2261 = vpop.trf.xlu0
      %v2262 = vpop.trf.xlu0
      %v2263 = vpop.trf.xlu0
      %v2264 = vpop.trf.xlu0
      %v2265 = vpop.trf.xlu0
      %v2266 = vpop.trf.xlu0
      %v2267 = vpop.trf.xlu0
      %v2268 = vpop.trf.xlu0
      %v2269 = vpop.trf.xlu0
      %v2270 = vpop.trf.xlu0
      %v2271 = vpop.trf.xlu0
      %v2272 = vpop.trf.xlu0
      %2273 = vxpose.xlu0.b32.start [1/16] %v2213, 128
      %2274 = vxpose.xlu0.b32.cont [2/16] %v2214, 128
      %2275 = vxpose.xlu0.b32.cont [3/16] %v2215, 128
      %2276 = vxpose.xlu0.b32.cont [4/16] %v2216, 128
      %2277 = vxpose.xlu0.b32.cont [5/16] %v2217, 128
      %2278 = vxpose.xlu0.b32.cont [6/16] %v2218, 128
      %2279 = vxpose.xlu0.b32.cont [7/16] %v2219, 128
      %2280 = vxpose.xlu0.b32.cont [8/16] %v2220, 128
      %2281 = vxpose.xlu0.b32.cont [9/16] %v2221, 128
      %2282 = vxpose.xlu0.b32.cont [10/16] %v2222, 128
      %2283 = vxpose.xlu0.b32.cont [11/16] %v2223, 128
      %2284 = vxpose.xlu0.b32.cont [12/16] %v2224, 128
      %2285 = vxpose.xlu0.b32.cont [13/16] %v2225, 128
      %2286 = vxpose.xlu0.b32.cont [14/16] %v2226, 128
      %2287 = vxpose.xlu0.b32.cont [15/16] %v2227, 128
      %2288 = vxpose.xlu0.b32.end [16/16] %v2228, 128
      %v2289 = vpop.trf.xlu0
      %v2290 = vpop.trf.xlu0
      %v2291 = vpop.trf.xlu0
      %v2292 = vpop.trf.xlu0
      %v2293 = vpop.trf.xlu0
      %v2294 = vpop.trf.xlu0
      %v2295 = vpop.trf.xlu0
      %v2296 = vpop.trf.xlu0
      %v2297 = vpop.trf.xlu0
      %v2298 = vpop.trf.xlu0
      %v2299 = vpop.trf.xlu0
      %v2300 = vpop.trf.xlu0
      %v2301 = vpop.trf.xlu0
      %v2302 = vpop.trf.xlu0
      %v2303 = vpop.trf.xlu0
      %v2304 = vpop.trf.xlu0
      %2305 = vxpose.xlu0.b32.start [1/16] %v2229, 128
      %2306 = vxpose.xlu0.b32.cont [2/16] %v2230, 128
      %2307 = vxpose.xlu0.b32.cont [3/16] %v2231, 128
      %2308 = vxpose.xlu0.b32.cont [4/16] %v2232, 128
      %2309 = vxpose.xlu0.b32.cont [5/16] %v2233, 128
      %2310 = vxpose.xlu0.b32.cont [6/16] %v2234, 128
      %2311 = vxpose.xlu0.b32.cont [7/16] %v2235, 128
      %2312 = vxpose.xlu0.b32.cont [8/16] %v2236, 128
      %2313 = vxpose.xlu0.b32.cont [9/16] %v2237, 128
      %2314 = vxpose.xlu0.b32.cont [10/16] %v2238, 128
      %2315 = vxpose.xlu0.b32.cont [11/16] %v2239, 128
      %2316 = vxpose.xlu0.b32.cont [12/16] %v2240, 128
      %2317 = vxpose.xlu0.b32.cont [13/16] 0.0, 128
      %2318 = vxpose.xlu0.b32.cont [14/16] 0.0, 128
      %2319 = vxpose.xlu0.b32.cont [15/16] 0.0, 128
      %2320 = vxpose.xlu0.b32.end [16/16] 0.0, 128
      %v2321 = vpop.trf.xlu0
      %v2322 = vpop.trf.xlu0
      %v2323 = vpop.trf.xlu0
      %v2324 = vpop.trf.xlu0
      %v2325 = vpop.trf.xlu0
      %v2326 = vpop.trf.xlu0
      %v2327 = vpop.trf.xlu0
      %v2328 = vpop.trf.xlu0
      %v2329 = vpop.trf.xlu0
      %v2330 = vpop.trf.xlu0
      %v2331 = vpop.trf.xlu0
      %v2332 = vpop.trf.xlu0
      %v2333 = vpop.trf.xlu0
      %v2334 = vpop.trf.xlu0
      %v2335 = vpop.trf.xlu0
      %v2336 = vpop.trf.xlu0
      %2337 = vst [vmem:[#allocation3 + $0xc0] sm:$0xff] %v2257
      %2338 = vst [vmem:[#allocation3 + $0xc8] sm:$0xff] %v2289
      %2339 = vst [vmem:[#allocation3 + $0xd0] sm:$0xff] %v2258
      %2340 = vst [vmem:[#allocation3 + $0xd8] sm:$0xff] %v2290
      %2347 = vrot.lane.b32.xlu0 %v2257, 112
      %v2348 = vpop.permute.xlu0 %2347
      %2349 = vrot.lane.b32.xlu0 %v2289, 112
      %v2350 = vpop.permute.xlu0 %2349
      %2351 = vrot.lane.b32.xlu0 %v2321, 112
      %v2352 = vpop.permute.xlu0 %2351
      %2353 = vrot.lane.b32.xlu0 %v2258, 112
      %v2354 = vpop.permute.xlu0 %2353
      %2355 = vrot.lane.b32.xlu0 %v2290, 112
      %v2356 = vpop.permute.xlu0 %2355
      %2357 = vrot.lane.b32.xlu0 %v2322, 112
      %v2358 = vpop.permute.xlu0 %2357
      %v2359 = vsel %vm589, %v2348, %v2350
      %v2360 = vsel %vm589, %v2350, %v2352
      %v2361 = vsel %vm589, %v2354, %v2356
      %v2362 = vsel %vm589, %v2356, %v2358
      %2367 = vst [vmem:[#allocation3 + $0x1a0] sm:$0xff] %v2359
      %2368 = vst [vmem:[#allocation3 + $0x1a8] sm:$0xff] %v2360
      %2369 = vst [vmem:[#allocation3 + $0x1b0] sm:$0xff] %v2361
      %2370 = vst [vmem:[#allocation3 + $0x1b8] sm:$0xff] %v2362
      %2371 = vrot.lane.b32.xlu0 %v2257, 96
      %v2372 = vpop.permute.xlu0 %2371
      %2373 = vrot.lane.b32.xlu0 %v2289, 96
      %v2374 = vpop.permute.xlu0 %2373
      %2375 = vrot.lane.b32.xlu0 %v2321, 96
      %v2376 = vpop.permute.xlu0 %2375
      %2377 = vrot.lane.b32.xlu0 %v2258, 96
      %v2378 = vpop.permute.xlu0 %2377
      %2379 = vrot.lane.b32.xlu0 %v2290, 96
      %v2380 = vpop.permute.xlu0 %2379
      %2381 = vrot.lane.b32.xlu0 %v2322, 96
      %v2382 = vpop.permute.xlu0 %2381
      %v2383 = vsel %vm614, %v2372, %v2374
      %v2384 = vsel %vm614, %v2374, %v2376
      %v2385 = vsel %vm614, %v2378, %v2380
      %v2386 = vsel %vm614, %v2380, %v2382
      %2391 = vst [vmem:[#allocation3 + $0x280] sm:$0xff] %v2383
      %2392 = vst [vmem:[#allocation3 + $0x288] sm:$0xff] %v2384
      %2393 = vst [vmem:[#allocation3 + $0x290] sm:$0xff] %v2385
      %2394 = vst [vmem:[#allocation3 + $0x298] sm:$0xff] %v2386
      %2395 = vrot.lane.b32.xlu0 %v2257, 80
      %v2396 = vpop.permute.xlu0 %2395
      %2397 = vrot.lane.b32.xlu0 %v2289, 80
      %v2398 = vpop.permute.xlu0 %2397
      %2399 = vrot.lane.b32.xlu0 %v2321, 80
      %v2400 = vpop.permute.xlu0 %2399
      %2401 = vrot.lane.b32.xlu0 %v2258, 80
      %v2402 = vpop.permute.xlu0 %2401
      %2403 = vrot.lane.b32.xlu0 %v2290, 80
      %v2404 = vpop.permute.xlu0 %2403
      %2405 = vrot.lane.b32.xlu0 %v2322, 80
      %v2406 = vpop.permute.xlu0 %2405
      %v2407 = vsel %vm639, %v2396, %v2398
      %v2408 = vsel %vm639, %v2398, %v2400
      %v2409 = vsel %vm639, %v2402, %v2404
      %v2410 = vsel %vm639, %v2404, %v2406
      %2415 = vst [vmem:[#allocation3 + $0x360] sm:$0xff] %v2407
      %2416 = vst [vmem:[#allocation3 + $0x368] sm:$0xff] %v2408
      %2417 = vst [vmem:[#allocation3 + $0x370] sm:$0xff] %v2409
      %2418 = vst [vmem:[#allocation3 + $0x378] sm:$0xff] %v2410
      %2419 = vrot.lane.b32.xlu0 %v2257, 64
      %v2420 = vpop.permute.xlu0 %2419
      %2421 = vrot.lane.b32.xlu0 %v2289, 64
      %v2422 = vpop.permute.xlu0 %2421
      %2423 = vrot.lane.b32.xlu0 %v2321, 64
      %v2424 = vpop.permute.xlu0 %2423
      %2425 = vrot.lane.b32.xlu0 %v2258, 64
      %v2426 = vpop.permute.xlu0 %2425
      %2427 = vrot.lane.b32.xlu0 %v2290, 64
      %v2428 = vpop.permute.xlu0 %2427
      %2429 = vrot.lane.b32.xlu0 %v2322, 64
      %v2430 = vpop.permute.xlu0 %2429
      %v2431 = vsel %vm664, %v2420, %v2422
      %v2432 = vsel %vm664, %v2422, %v2424
      %v2433 = vsel %vm664, %v2426, %v2428
      %v2434 = vsel %vm664, %v2428, %v2430
      %2439 = vst [vmem:[#allocation3 + $0x440] sm:$0xff] %v2431
      %2440 = vst [vmem:[#allocation3 + $0x448] sm:$0xff] %v2432
      %2441 = vst [vmem:[#allocation3 + $0x450] sm:$0xff] %v2433
      %2442 = vst [vmem:[#allocation3 + $0x458] sm:$0xff] %v2434
      %2443 = vrot.lane.b32.xlu0 %v2257, 48
      %v2444 = vpop.permute.xlu0 %2443
      %2445 = vrot.lane.b32.xlu0 %v2289, 48
      %v2446 = vpop.permute.xlu0 %2445
      %2447 = vrot.lane.b32.xlu0 %v2321, 48
      %v2448 = vpop.permute.xlu0 %2447
      %2449 = vrot.lane.b32.xlu0 %v2258, 48
      %v2450 = vpop.permute.xlu0 %2449
      %2451 = vrot.lane.b32.xlu0 %v2290, 48
      %v2452 = vpop.permute.xlu0 %2451
      %2453 = vrot.lane.b32.xlu0 %v2322, 48
      %v2454 = vpop.permute.xlu0 %2453
      %v2455 = vsel %vm689, %v2444, %v2446
      %v2456 = vsel %vm689, %v2446, %v2448
      %v2457 = vsel %vm689, %v2450, %v2452
      %v2458 = vsel %vm689, %v2452, %v2454
      %2463 = vst [vmem:[#allocation3 + $0x520] sm:$0xff] %v2455
      %2464 = vst [vmem:[#allocation3 + $0x528] sm:$0xff] %v2456
      %2465 = vst [vmem:[#allocation3 + $0x530] sm:$0xff] %v2457
      %2466 = vst [vmem:[#allocation3 + $0x538] sm:$0xff] %v2458
      %2467 = vrot.lane.b32.xlu0 %v2257, 32
      %v2468 = vpop.permute.xlu0 %2467
      %2469 = vrot.lane.b32.xlu0 %v2289, 32
      %v2470 = vpop.permute.xlu0 %2469
      %2471 = vrot.lane.b32.xlu0 %v2321, 32
      %v2472 = vpop.permute.xlu0 %2471
      %2473 = vrot.lane.b32.xlu0 %v2258, 32
      %v2474 = vpop.permute.xlu0 %2473
      %2475 = vrot.lane.b32.xlu0 %v2290, 32
      %v2476 = vpop.permute.xlu0 %2475
      %2477 = vrot.lane.b32.xlu0 %v2322, 32
      %v2478 = vpop.permute.xlu0 %2477
      %v2479 = vsel %vm714, %v2468, %v2470
      %v2480 = vsel %vm714, %v2470, %v2472
      %v2481 = vsel %vm714, %v2474, %v2476
      %v2482 = vsel %vm714, %v2476, %v2478
      %2487 = vst [vmem:[#allocation3 + $0x600] sm:$0xff] %v2479
      %2488 = vst [vmem:[#allocation3 + $0x608] sm:$0xff] %v2480
      %2489 = vst [vmem:[#allocation3 + $0x610] sm:$0xff] %v2481
      %2490 = vst [vmem:[#allocation3 + $0x618] sm:$0xff] %v2482
      %v2491 = vld [vmem:[%s2] sm:$0xff]
      %v2492 = vld [vmem:[%s2 + $0x8] sm:$0xff]
      %v2493 = vld [vmem:[%s2 + $0x10] sm:$0xff]
      %v2494 = vld [vmem:[%s2 + $0x18] sm:$0xff]
      %v2495 = vld [vmem:[%s2 + $0x20] sm:$0xff]
      %v2496 = vld [vmem:[%s2 + $0x28] sm:$0xff]
      %v2497 = vld [vmem:[%s2 + $0x30] sm:$0xff]
      %v2498 = vld [vmem:[%s2 + $0x38] sm:$0xff]
      %v2499 = vld [vmem:[%s2 + $0x40] sm:$0xff]
      %v2500 = vld [vmem:[%s2 + $0x48] sm:$0xff]
      %v2501 = vld [vmem:[%s2 + $0x50] sm:$0xff]
      %v2502 = vld [vmem:[%s2 + $0x58] sm:$0xff]
      %v2503 = vld [vmem:[%s2 + $0x60] sm:$0xff]
      %v2504 = vld [vmem:[%s2 + $0x68] sm:$0xff]
      %v2505 = vld [vmem:[%s2 + $0x70] sm:$0xff]
      %v2506 = vld [vmem:[%s2 + $0x78] sm:$0xff]
      %v2507 = vld [vmem:[%s2 + $0x80] sm:$0xff]
      %v2508 = vld [vmem:[%s2 + $0x88] sm:$0xff]
      %v2509 = vld [vmem:[%s2 + $0x90] sm:$0xff]
      %v2510 = vld [vmem:[%s2 + $0x98] sm:$0xff]
      %v2511 = vld [vmem:[%s2 + $0xa0] sm:$0xff]
      %v2512 = vld [vmem:[%s2 + $0xa8] sm:$0xff]
      %v2513 = vld [vmem:[%s2 + $0xb0] sm:$0xff]
      %v2514 = vld [vmem:[%s2 + $0xb8] sm:$0xff]
      %v2515 = vld [vmem:[%s2 + $0xc0] sm:$0xff]
      %v2516 = vld [vmem:[%s2 + $0xc8] sm:$0xff]
      %v2517 = vld [vmem:[%s2 + $0xd0] sm:$0xff]
      %v2518 = vld [vmem:[%s2 + $0xd8] sm:$0xff]
      %v2519 = vld [vmem:[#allocation3] sm:$0xff]
      %v2520 = vld [vmem:[#allocation3 + $0x8] sm:$0xff]
      %v2521 = vld [vmem:[#allocation3 + $0x10] sm:$0xff]
      %v2522 = vld [vmem:[#allocation3 + $0x18] sm:$0xff]
      %v2523 = vld [vmem:[#allocation3 + $0x20] sm:$0xff]
      %v2524 = vld [vmem:[#allocation3 + $0x28] sm:$0xff]
      %v2525 = vld [vmem:[#allocation3 + $0x30] sm:$0xff]
      %v2526 = vld [vmem:[#allocation3 + $0x38] sm:$0xff]
      %v2527 = vld [vmem:[#allocation3 + $0x40] sm:$0xff]
      %v2528 = vld [vmem:[#allocation3 + $0x48] sm:$0xff]
      %v2529 = vld [vmem:[#allocation3 + $0x50] sm:$0xff]
      %v2530 = vld [vmem:[#allocation3 + $0x58] sm:$0xff]
      %v2531 = vld [vmem:[#allocation3 + $0x60] sm:$0xff]
      %v2532 = vld [vmem:[#allocation3 + $0x68] sm:$0xff]
      %v2533 = vld [vmem:[#allocation3 + $0x70] sm:$0xff]
      %v2534 = vld [vmem:[#allocation3 + $0x78] sm:$0xff]
      %v2535 = vld [vmem:[#allocation3 + $0x80] sm:$0xff]
      %v2536 = vld [vmem:[#allocation3 + $0x88] sm:$0xff]
      %v2537 = vld [vmem:[#allocation3 + $0x90] sm:$0xff]
      %v2538 = vld [vmem:[#allocation3 + $0x98] sm:$0xff]
      %v2539 = vld [vmem:[#allocation3 + $0xa0] sm:$0xff]
      %v2540 = vld [vmem:[#allocation3 + $0xa8] sm:$0xff]
      %v2541 = vld [vmem:[#allocation3 + $0xb0] sm:$0xff]
      %v2542 = vld [vmem:[#allocation3 + $0xb8] sm:$0xff]
      %v2543 = vld [vmem:[#allocation3 + $0xc0] sm:$0xff]
      %v2544 = vld [vmem:[#allocation3 + $0xc8] sm:$0xff]
      %v2545 = vld [vmem:[#allocation3 + $0xd0] sm:$0xff]
      %v2546 = vld [vmem:[#allocation3 + $0xd8] sm:$0xff]
      %v2547 = vld [vmem:[#allocation3 + $0xe0] sm:$0xff]
      %v2548 = vld [vmem:[#allocation3 + $0xe8] sm:$0xff]
      %v2549 = vld [vmem:[#allocation3 + $0xf0] sm:$0xff]
      %v2550 = vld [vmem:[#allocation3 + $0xf8] sm:$0xff]
      %v2551 = vld [vmem:[#allocation3 + $0x100] sm:$0xff]
      %v2552 = vld [vmem:[#allocation3 + $0x108] sm:$0xff]
      %v2553 = vld [vmem:[#allocation3 + $0x110] sm:$0xff]
      %v2554 = vld [vmem:[#allocation3 + $0x118] sm:$0xff]
      %v2555 = vld [vmem:[#allocation3 + $0x120] sm:$0xff]
      %v2556 = vld [vmem:[#allocation3 + $0x128] sm:$0xff]
      %v2557 = vld [vmem:[#allocation3 + $0x130] sm:$0xff]
      %v2558 = vld [vmem:[#allocation3 + $0x138] sm:$0xff]
      %v2559 = vld [vmem:[#allocation3 + $0x140] sm:$0xff]
      %v2560 = vld [vmem:[#allocation3 + $0x148] sm:$0xff]
      %v2561 = vld [vmem:[#allocation3 + $0x150] sm:$0xff]
      %v2562 = vld [vmem:[#allocation3 + $0x158] sm:$0xff]
      %v2563 = vld [vmem:[#allocation3 + $0x160] sm:$0xff]
      %v2564 = vld [vmem:[#allocation3 + $0x168] sm:$0xff]
      %v2565 = vld [vmem:[#allocation3 + $0x170] sm:$0xff]
      %v2566 = vld [vmem:[#allocation3 + $0x178] sm:$0xff]
      %v2567 = vld [vmem:[#allocation3 + $0x180] sm:$0xff]
      %v2568 = vld [vmem:[#allocation3 + $0x188] sm:$0xff]
      %v2569 = vld [vmem:[#allocation3 + $0x190] sm:$0xff]
      %v2570 = vld [vmem:[#allocation3 + $0x198] sm:$0xff]
      %v2571 = vld [vmem:[#allocation3 + $0x1a0] sm:$0xff]
      %v2572 = vld [vmem:[#allocation3 + $0x1a8] sm:$0xff]
      %v2573 = vld [vmem:[#allocation3 + $0x1b0] sm:$0xff]
      %v2574 = vld [vmem:[#allocation3 + $0x1b8] sm:$0xff]
      %v2575 = vld [vmem:[#allocation3 + $0x1c0] sm:$0xff]
      %v2576 = vld [vmem:[#allocation3 + $0x1c8] sm:$0xff]
      %v2577 = vld [vmem:[#allocation3 + $0x1d0] sm:$0xff]
      %v2578 = vld [vmem:[#allocation3 + $0x1d8] sm:$0xff]
      %v2579 = vld [vmem:[#allocation3 + $0x1e0] sm:$0xff]
      %v2580 = vld [vmem:[#allocation3 + $0x1e8] sm:$0xff]
      %v2581 = vld [vmem:[#allocation3 + $0x1f0] sm:$0xff]
      %v2582 = vld [vmem:[#allocation3 + $0x1f8] sm:$0xff]
      %v2583 = vld [vmem:[#allocation3 + $0x200] sm:$0xff]
      %v2584 = vld [vmem:[#allocation3 + $0x208] sm:$0xff]
      %v2585 = vld [vmem:[#allocation3 + $0x210] sm:$0xff]
      %v2586 = vld [vmem:[#allocation3 + $0x218] sm:$0xff]
      %v2587 = vld [vmem:[#allocation3 + $0x220] sm:$0xff]
      %v2588 = vld [vmem:[#allocation3 + $0x228] sm:$0xff]
      %v2589 = vld [vmem:[#allocation3 + $0x230] sm:$0xff]
      %v2590 = vld [vmem:[#allocation3 + $0x238] sm:$0xff]
      %v2591 = vld [vmem:[#allocation3 + $0x240] sm:$0xff]
      %v2592 = vld [vmem:[#allocation3 + $0x248] sm:$0xff]
      %v2593 = vld [vmem:[#allocation3 + $0x250] sm:$0xff]
      %v2594 = vld [vmem:[#allocation3 + $0x258] sm:$0xff]
      %v2595 = vld [vmem:[#allocation3 + $0x260] sm:$0xff]
      %v2596 = vld [vmem:[#allocation3 + $0x268] sm:$0xff]
      %v2597 = vld [vmem:[#allocation3 + $0x270] sm:$0xff]
      %v2598 = vld [vmem:[#allocation3 + $0x278] sm:$0xff]
      %v2599 = vld [vmem:[#allocation3 + $0x280] sm:$0xff]
      %v2600 = vld [vmem:[#allocation3 + $0x288] sm:$0xff]
      %v2601 = vld [vmem:[#allocation3 + $0x290] sm:$0xff]
      %v2602 = vld [vmem:[#allocation3 + $0x298] sm:$0xff]
      %v2603 = vld [vmem:[#allocation3 + $0x2a0] sm:$0xff]
      %v2604 = vld [vmem:[#allocation3 + $0x2a8] sm:$0xff]
      %v2605 = vld [vmem:[#allocation3 + $0x2b0] sm:$0xff]
      %v2606 = vld [vmem:[#allocation3 + $0x2b8] sm:$0xff]
      %v2607 = vld [vmem:[#allocation3 + $0x2c0] sm:$0xff]
      %v2608 = vld [vmem:[#allocation3 + $0x2c8] sm:$0xff]
      %v2609 = vld [vmem:[#allocation3 + $0x2d0] sm:$0xff]
      %v2610 = vld [vmem:[#allocation3 + $0x2d8] sm:$0xff]
      %v2611 = vld [vmem:[#allocation3 + $0x2e0] sm:$0xff]
      %v2612 = vld [vmem:[#allocation3 + $0x2e8] sm:$0xff]
      %v2613 = vld [vmem:[#allocation3 + $0x2f0] sm:$0xff]
      %v2614 = vld [vmem:[#allocation3 + $0x2f8] sm:$0xff]
      %v2615 = vld [vmem:[#allocation3 + $0x300] sm:$0xff]
      %v2616 = vld [vmem:[#allocation3 + $0x308] sm:$0xff]
      %v2617 = vld [vmem:[#allocation3 + $0x310] sm:$0xff]
      %v2618 = vld [vmem:[#allocation3 + $0x318] sm:$0xff]
      %v2619 = vld [vmem:[#allocation3 + $0x320] sm:$0xff]
      %v2620 = vld [vmem:[#allocation3 + $0x328] sm:$0xff]
      %v2621 = vld [vmem:[#allocation3 + $0x330] sm:$0xff]
      %v2622 = vld [vmem:[#allocation3 + $0x338] sm:$0xff]
      %v2623 = vld [vmem:[#allocation3 + $0x340] sm:$0xff]
      %v2624 = vld [vmem:[#allocation3 + $0x348] sm:$0xff]
      %v2625 = vld [vmem:[#allocation3 + $0x350] sm:$0xff]
      %v2626 = vld [vmem:[#allocation3 + $0x358] sm:$0xff]
      %v2627 = vld [vmem:[#allocation3 + $0x360] sm:$0xff]
      %v2628 = vld [vmem:[#allocation3 + $0x368] sm:$0xff]
      %v2629 = vld [vmem:[#allocation3 + $0x370] sm:$0xff]
      %v2630 = vld [vmem:[#allocation3 + $0x378] sm:$0xff]
      %v2631 = vld [vmem:[#allocation3 + $0x380] sm:$0xff]
      %v2632 = vld [vmem:[#allocation3 + $0x388] sm:$0xff]
      %v2633 = vld [vmem:[#allocation3 + $0x390] sm:$0xff]
      %v2634 = vld [vmem:[#allocation3 + $0x398] sm:$0xff]
      %v2635 = vld [vmem:[#allocation3 + $0x3a0] sm:$0xff]
      %v2636 = vld [vmem:[#allocation3 + $0x3a8] sm:$0xff]
      %v2637 = vld [vmem:[#allocation3 + $0x3b0] sm:$0xff]
      %v2638 = vld [vmem:[#allocation3 + $0x3b8] sm:$0xff]
      %v2639 = vld [vmem:[#allocation3 + $0x3c0] sm:$0xff]
      %v2640 = vld [vmem:[#allocation3 + $0x3c8] sm:$0xff]
      %v2641 = vld [vmem:[#allocation3 + $0x3d0] sm:$0xff]
      %v2642 = vld [vmem:[#allocation3 + $0x3d8] sm:$0xff]
      %v2643 = vld [vmem:[#allocation3 + $0x3e0] sm:$0xff]
      %v2644 = vld [vmem:[#allocation3 + $0x3e8] sm:$0xff]
      %v2645 = vld [vmem:[#allocation3 + $0x3f0] sm:$0xff]
      %v2646 = vld [vmem:[#allocation3 + $0x3f8] sm:$0xff]
      %v2647 = vld [vmem:[#allocation3 + $0x400] sm:$0xff]
      %v2648 = vld [vmem:[#allocation3 + $0x408] sm:$0xff]
      %v2649 = vld [vmem:[#allocation3 + $0x410] sm:$0xff]
      %v2650 = vld [vmem:[#allocation3 + $0x418] sm:$0xff]
      %v2651 = vld [vmem:[#allocation3 + $0x420] sm:$0xff]
      %v2652 = vld [vmem:[#allocation3 + $0x428] sm:$0xff]
      %v2653 = vld [vmem:[#allocation3 + $0x430] sm:$0xff]
      %v2654 = vld [vmem:[#allocation3 + $0x438] sm:$0xff]
      %v2655 = vld [vmem:[#allocation3 + $0x440] sm:$0xff]
      %v2656 = vld [vmem:[#allocation3 + $0x448] sm:$0xff]
      %v2657 = vld [vmem:[#allocation3 + $0x450] sm:$0xff]
      %v2658 = vld [vmem:[#allocation3 + $0x458] sm:$0xff]
      %v2659 = vld [vmem:[#allocation3 + $0x460] sm:$0xff]
      %v2660 = vld [vmem:[#allocation3 + $0x468] sm:$0xff]
      %v2661 = vld [vmem:[#allocation3 + $0x470] sm:$0xff]
      %v2662 = vld [vmem:[#allocation3 + $0x478] sm:$0xff]
      %v2663 = vld [vmem:[#allocation3 + $0x480] sm:$0xff]
      %v2664 = vld [vmem:[#allocation3 + $0x488] sm:$0xff]
      %v2665 = vld [vmem:[#allocation3 + $0x490] sm:$0xff]
      %v2666 = vld [vmem:[#allocation3 + $0x498] sm:$0xff]
      %v2667 = vld [vmem:[#allocation3 + $0x4a0] sm:$0xff]
      %v2668 = vld [vmem:[#allocation3 + $0x4a8] sm:$0xff]
      %v2669 = vld [vmem:[#allocation3 + $0x4b0] sm:$0xff]
      %v2670 = vld [vmem:[#allocation3 + $0x4b8] sm:$0xff]
      %v2671 = vld [vmem:[#allocation3 + $0x4c0] sm:$0xff]
      %v2672 = vld [vmem:[#allocation3 + $0x4c8] sm:$0xff]
      %v2673 = vld [vmem:[#allocation3 + $0x4d0] sm:$0xff]
      %v2674 = vld [vmem:[#allocation3 + $0x4d8] sm:$0xff]
      %v2675 = vld [vmem:[#allocation3 + $0x4e0] sm:$0xff]
      %v2676 = vld [vmem:[#allocation3 + $0x4e8] sm:$0xff]
      %v2677 = vld [vmem:[#allocation3 + $0x4f0] sm:$0xff]
      %v2678 = vld [vmem:[#allocation3 + $0x4f8] sm:$0xff]
      %v2679 = vld [vmem:[#allocation3 + $0x500] sm:$0xff]
      %v2680 = vld [vmem:[#allocation3 + $0x508] sm:$0xff]
      %v2681 = vld [vmem:[#allocation3 + $0x510] sm:$0xff]
      %v2682 = vld [vmem:[#allocation3 + $0x518] sm:$0xff]
      %v2683 = vld [vmem:[#allocation3 + $0x520] sm:$0xff]
      %v2684 = vld [vmem:[#allocation3 + $0x528] sm:$0xff]
      %v2685 = vld [vmem:[#allocation3 + $0x530] sm:$0xff]
      %v2686 = vld [vmem:[#allocation3 + $0x538] sm:$0xff]
      %v2687 = vld [vmem:[#allocation3 + $0x540] sm:$0xff]
      %v2688 = vld [vmem:[#allocation3 + $0x548] sm:$0xff]
      %v2689 = vld [vmem:[#allocation3 + $0x550] sm:$0xff]
      %v2690 = vld [vmem:[#allocation3 + $0x558] sm:$0xff]
      %v2691 = vld [vmem:[#allocation3 + $0x560] sm:$0xff]
      %v2692 = vld [vmem:[#allocation3 + $0x568] sm:$0xff]
      %v2693 = vld [vmem:[#allocation3 + $0x570] sm:$0xff]
      %v2694 = vld [vmem:[#allocation3 + $0x578] sm:$0xff]
      %v2695 = vld [vmem:[#allocation3 + $0x580] sm:$0xff]
      %v2696 = vld [vmem:[#allocation3 + $0x588] sm:$0xff]
      %v2697 = vld [vmem:[#allocation3 + $0x590] sm:$0xff]
      %v2698 = vld [vmem:[#allocation3 + $0x598] sm:$0xff]
      %v2699 = vld [vmem:[#allocation3 + $0x5a0] sm:$0xff]
      %v2700 = vld [vmem:[#allocation3 + $0x5a8] sm:$0xff]
      %v2701 = vld [vmem:[#allocation3 + $0x5b0] sm:$0xff]
      %v2702 = vld [vmem:[#allocation3 + $0x5b8] sm:$0xff]
      %v2703 = vld [vmem:[#allocation3 + $0x5c0] sm:$0xff]
      %v2704 = vld [vmem:[#allocation3 + $0x5c8] sm:$0xff]
      %v2705 = vld [vmem:[#allocation3 + $0x5d0] sm:$0xff]
      %v2706 = vld [vmem:[#allocation3 + $0x5d8] sm:$0xff]
      %v2707 = vld [vmem:[#allocation3 + $0x5e0] sm:$0xff]
      %v2708 = vld [vmem:[#allocation3 + $0x5e8] sm:$0xff]
      %v2709 = vld [vmem:[#allocation3 + $0x5f0] sm:$0xff]
      %v2710 = vld [vmem:[#allocation3 + $0x5f8] sm:$0xff]
      %v2711 = vld [vmem:[#allocation3 + $0x600] sm:$0xff]
      %v2712 = vld [vmem:[#allocation3 + $0x608] sm:$0xff]
      %v2713 = vld [vmem:[#allocation3 + $0x610] sm:$0xff]
      %v2714 = vld [vmem:[#allocation3 + $0x618] sm:$0xff]
      %v2715 = vld [vmem:[%s3] sm:$0xff]
      %v2716 = vld [vmem:[%s3 + $0x8] sm:$0xff]
      %v2717 = vld [vmem:[%s3 + $0x10] sm:$0xff]
      %v2718 = vld [vmem:[%s3 + $0x18] sm:$0xff]
      %2720 = vset.pattern.permute.xlu0 0
      %2721 = vperm.xlu0 %2720, %v2715
      %v2722 = vpop.permute.xlu0 %2721
      %2725 = vset.pattern.permute.xlu0 0
      %2726 = vperm.xlu0 %2725, %v2716
      %v2727 = vpop.permute.xlu0 %2726
      %2730 = vset.pattern.permute.xlu0 0
      %2731 = vperm.xlu0 %2730, %v2717
      %v2732 = vpop.permute.xlu0 %2731
      %2735 = vset.pattern.permute.xlu0 0
      %2736 = vperm.xlu0 %2735, %v2718
      %v2737 = vpop.permute.xlu0 %2736
      %v2740 = vsel %vm272, %v2497, 0
      %v2743 = vsel %vm272, %v2504, 0
      %v2746 = vsel %vm272, %v2511, 0
      %v2749 = vsel %vm272, %v2518, 0
      %2751 = vmatprep.subr.mxu0 %v2520
      %2752 = vmatpush1.msra.mxu0 %v2519
      %2753 = vmatprep.subr.mxu0 %v2522
      %2754 = vmatpush1.msra.mxu0 %v2521
      %2755 = vmatprep.subr.mxu0 %v2524
      %2756 = vmatpush1.msra.mxu0 %v2523
      %2757 = vmatprep.subr.mxu0 %v2526
      %2758 = vmatpush1.msra.mxu0 %v2525
      %2759 = vmatprep.subr.mxu0 %v2528
      %2760 = vmatpush1.msra.mxu0 %v2527
      %2761 = vmatprep.subr.mxu0 %v2530
      %2762 = vmatpush1.msra.mxu0 %v2529
      %2763 = vmatprep.subr.mxu0 %v2532
      %2764 = vmatpush1.msra.mxu0 %v2531
      %2765 = vmatprep.subr.mxu0 %v2534
      %2766 = vmatpush1.msra.mxu0 %v2533
      %2767 = vmatprep.subr.mxu0 %v2536
      %2768 = vmatpush1.msra.mxu0 %v2535
      %2769 = vmatprep.subr.mxu0 %v2538
      %2770 = vmatpush1.msra.mxu0 %v2537
      %2771 = vmatprep.subr.mxu0 %v2540
      %2772 = vmatpush1.msra.mxu0 %v2539
      %2773 = vmatprep.subr.mxu0 %v2542
      %2774 = vmatpush1.msra.mxu0 %v2541
      %2775 = vmatprep.subr.mxu0 %v2544
      %2776 = vmatpush1.msra.mxu0 %v2543
      %2777 = vmatprep.subr.mxu0 %v2546
      %2778 = vmatpush1.msra.mxu0 %v2545
      %2779 = vmatprep.subr.mxu0 %v2548
      %2780 = vmatpush1.msra.mxu0 %v2547
      %2781 = vmatprep.subr.mxu0 %v2550
      %2782 = vmatpush1.msra.mxu0 %v2549
      %2783 = vmatprep.subr.mxu0 %v2552
      %2784 = vmatpush1.msra.mxu0 %v2551
      %2785 = vmatprep.subr.mxu0 %v2554
      %2786 = vmatpush1.msra.mxu0 %v2553
      %2787 = vmatprep.subr.mxu0 %v2556
      %2788 = vmatpush1.msra.mxu0 %v2555
      %2789 = vmatprep.subr.mxu0 %v2558
      %2790 = vmatpush1.msra.mxu0 %v2557
      %2791 = vmatprep.subr.mxu0 %v2560
      %2792 = vmatpush1.msra.mxu0 %v2559
      %2793 = vmatprep.subr.mxu0 %v2562
      %2794 = vmatpush1.msra.mxu0 %v2561
      %2795 = vmatprep.subr.mxu0 %v2564
      %2796 = vmatpush1.msra.mxu0 %v2563
      %2797 = vmatprep.subr.mxu0 %v2566
      %2798 = vmatpush1.msra.mxu0 %v2565
      %2799 = vmatprep.subr.mxu0 %v2568
      %2800 = vmatpush1.msra.mxu0 %v2567
      %2801 = vmatprep.subr.mxu0 %v2570
      %2802 = vmatpush1.msra.mxu0 %v2569
      %2803 = vmatprep.subr.mxu0 %v2572
      %2804 = vmatpush1.msra.mxu0 %v2571
      %2805 = vmatprep.subr.mxu0 %v2574
      %2806 = vmatpush1.msra.mxu0 %v2573
      %2807 = vmatprep.subr.mxu0 %v2576
      %2808 = vmatpush1.msra.mxu0 %v2575
      %2809 = vmatprep.subr.mxu0 %v2578
      %2810 = vmatpush1.msra.mxu0 %v2577
      %2811 = vmatprep.subr.mxu0 %v2580
      %2812 = vmatpush1.msra.mxu0 %v2579
      %2813 = vmatprep.subr.mxu0 %v2582
      %2814 = vmatpush1.msra.mxu0 %v2581
      %2815 = vmatprep.mubr.f32.mxu0 %v2492
      %2816 = vmatmul.mubr.f32.gmra.mrb[0].mxu0 %v2491
      %v2817 = vpop.f32.mrb[0].mxu0
      %v2818 = vadd.f32 %v2722, %v2817
      %v2819 = vpop.f32.mrb[0].mxu0
      %v2820 = vadd.f32 %v2722, %v2819
      %2821 = vmatprep.mubr.f32.mxu0 %v2499
      %2822 = vmatmul.mubr.f32.gmra.mrb[0].mxu0 %v2498
      %v2823 = vpop.f32.mrb[0].mxu0
      %v2824 = vadd.f32 %v2727, %v2823
      %v2825 = vpop.f32.mrb[0].mxu0
      %v2826 = vadd.f32 %v2727, %v2825
      %2827 = vmatprep.mubr.f32.mxu0 %v2506
      %2828 = vmatmul.mubr.f32.gmra.mrb[0].mxu0 %v2505
      %v2829 = vpop.f32.mrb[0].mxu0
      %v2830 = vadd.f32 %v2732, %v2829
      %v2831 = vpop.f32.mrb[0].mxu0
      %v2832 = vadd.f32 %v2732, %v2831
      %2833 = vmatprep.mubr.f32.mxu0 %v2513
      %2834 = vmatmul.mubr.f32.gmra.mrb[0].mxu0 %v2512
      %v2835 = vpop.f32.mrb[0].mxu0
      %v2836 = vadd.f32 %v2737, %v2835
      %v2837 = vpop.f32.mrb[0].mxu0
      %v2838 = vadd.f32 %v2737, %v2837
      %2839 = vdwg.mxu0
      %2840 = vmatprep.subr.mxu0 %v2584
      %2841 = vmatpush1.msra.mxu0 %v2583
      %2842 = vmatprep.subr.mxu0 %v2586
      %2843 = vmatpush1.msra.mxu0 %v2585
      %2844 = vmatprep.subr.mxu0 %v2588
      %2845 = vmatpush1.msra.mxu0 %v2587
      %2846 = vmatprep.subr.mxu0 %v2590
      %2847 = vmatpush1.msra.mxu0 %v2589
      %2848 = vmatprep.subr.mxu0 %v2592
      %2849 = vmatpush1.msra.mxu0 %v2591
      %2850 = vmatprep.subr.mxu0 %v2594
      %2851 = vmatpush1.msra.mxu0 %v2593
      %2852 = vmatprep.subr.mxu0 %v2596
      %2853 = vmatpush1.msra.mxu0 %v2595
      %2854 = vmatprep.subr.mxu0 %v2598
      %2855 = vmatpush1.msra.mxu0 %v2597
      %2856 = vmatprep.subr.mxu0 %v2600
      %2857 = vmatpush1.msra.mxu0 %v2599
      %2858 = vmatprep.subr.mxu0 %v2602
      %2859 = vmatpush1.msra.mxu0 %v2601
      %2860 = vmatprep.subr.mxu0 %v2604
      %2861 = vmatpush1.msra.mxu0 %v2603
      %2862 = vmatprep.subr.mxu0 %v2606
      %2863 = vmatpush1.msra.mxu0 %v2605
      %2864 = vmatprep.subr.mxu0 %v2608
      %2865 = vmatpush1.msra.mxu0 %v2607
      %2866 = vmatprep.subr.mxu0 %v2610
      %2867 = vmatpush1.msra.mxu0 %v2609
      %2868 = vmatprep.subr.mxu0 %v2612
      %2869 = vmatpush1.msra.mxu0 %v2611
      %2870 = vmatprep.subr.mxu0 %v2614
      %2871 = vmatpush1.msra.mxu0 %v2613
      %2872 = vmatprep.subr.mxu0 %v2616
      %2873 = vmatpush1.msra.mxu0 %v2615
      %2874 = vmatprep.subr.mxu0 %v2618
      %2875 = vmatpush1.msra.mxu0 %v2617
      %2876 = vmatprep.subr.mxu0 %v2620
      %2877 = vmatpush1.msra.mxu0 %v2619
      %2878 = vmatprep.subr.mxu0 %v2622
      %2879 = vmatpush1.msra.mxu0 %v2621
      %2880 = vmatprep.subr.mxu0 %v2624
      %2881 = vmatpush1.msra.mxu0 %v2623
      %2882 = vmatprep.subr.mxu0 %v2626
      %2883 = vmatpush1.msra.mxu0 %v2625
      %2884 = vmatprep.subr.mxu0 %v2628
      %2885 = vmatpush1.msra.mxu0 %v2627
      %2886 = vmatprep.subr.mxu0 %v2630
      %2887 = vmatpush1.msra.mxu0 %v2629
      %2888 = vmatprep.subr.mxu0 %v2632
      %2889 = vmatpush1.msra.mxu0 %v2631
      %2890 = vmatprep.subr.mxu0 %v2634
      %2891 = vmatpush1.msra.mxu0 %v2633
      %2892 = vmatprep.subr.mxu0 %v2636
      %2893 = vmatpush1.msra.mxu0 %v2635
      %2894 = vmatprep.subr.mxu0 %v2638
      %2895 = vmatpush1.msra.mxu0 %v2637
      %2896 = vmatprep.subr.mxu0 %v2640
      %2897 = vmatpush1.msra.mxu0 %v2639
      %2898 = vmatprep.subr.mxu0 %v2642
      %2899 = vmatpush1.msra.mxu0 %v2641
      %2900 = vmatprep.subr.mxu0 %v2644
      %2901 = vmatpush1.msra.mxu0 %v2643
      %2902 = vmatprep.subr.mxu0 %v2646
      %2903 = vmatpush1.msra.mxu0 %v2645
      %2904 = vmatprep.mubr.f32.mxu0 %v2494
      %2905 = vmatmul.mubr.f32.gmra.mrb[0].mxu0 %v2493
      %v2906 = vpop.f32.mrb[0].mxu0
      %v2907 = vadd.f32 %v2818, %v2906
      %v2908 = vpop.f32.mrb[0].mxu0
      %v2909 = vadd.f32 %v2820, %v2908
      %2910 = vmatprep.mubr.f32.mxu0 %v2501
      %2911 = vmatmul.mubr.f32.gmra.mrb[0].mxu0 %v2500
      %v2912 = vpop.f32.mrb[0].mxu0
      %v2913 = vadd.f32 %v2824, %v2912
      %v2914 = vpop.f32.mrb[0].mxu0
      %v2915 = vadd.f32 %v2826, %v2914
      %2916 = vmatprep.mubr.f32.mxu0 %v2508
      %2917 = vmatmul.mubr.f32.gmra.mrb[0].mxu0 %v2507
      %v2918 = vpop.f32.mrb[0].mxu0
      %v2919 = vadd.f32 %v2830, %v2918
      %v2920 = vpop.f32.mrb[0].mxu0
      %v2921 = vadd.f32 %v2832, %v2920
      %2922 = vmatprep.mubr.f32.mxu0 %v2515
      %2923 = vmatmul.mubr.f32.gmra.mrb[0].mxu0 %v2514
      %v2924 = vpop.f32.mrb[0].mxu0
      %v2925 = vadd.f32 %v2836, %v2924
      %v2926 = vpop.f32.mrb[0].mxu0
      %v2927 = vadd.f32 %v2838, %v2926
      %2928 = vdwg.mxu0
      %2929 = vmatprep.subr.mxu0 %v2648
      %2930 = vmatpush1.msra.mxu0 %v2647
      %2931 = vmatprep.subr.mxu0 %v2650
      %2932 = vmatpush1.msra.mxu0 %v2649
      %2933 = vmatprep.subr.mxu0 %v2652
      %2934 = vmatpush1.msra.mxu0 %v2651
      %2935 = vmatprep.subr.mxu0 %v2654
      %2936 = vmatpush1.msra.mxu0 %v2653
      %2937 = vmatprep.subr.mxu0 %v2656
      %2938 = vmatpush1.msra.mxu0 %v2655
      %2939 = vmatprep.subr.mxu0 %v2658
      %2940 = vmatpush1.msra.mxu0 %v2657
      %2941 = vmatprep.subr.mxu0 %v2660
      %2942 = vmatpush1.msra.mxu0 %v2659
      %2943 = vmatprep.subr.mxu0 %v2662
      %2944 = vmatpush1.msra.mxu0 %v2661
      %2945 = vmatprep.subr.mxu0 %v2664
      %2946 = vmatpush1.msra.mxu0 %v2663
      %2947 = vmatprep.subr.mxu0 %v2666
      %2948 = vmatpush1.msra.mxu0 %v2665
      %2949 = vmatprep.subr.mxu0 %v2668
      %2950 = vmatpush1.msra.mxu0 %v2667
      %2951 = vmatprep.subr.mxu0 %v2670
      %2952 = vmatpush1.msra.mxu0 %v2669
      %2953 = vmatprep.subr.mxu0 %v2672
      %2954 = vmatpush1.msra.mxu0 %v2671
      %2955 = vmatprep.subr.mxu0 %v2674
      %2956 = vmatpush1.msra.mxu0 %v2673
      %2957 = vmatprep.subr.mxu0 %v2676
      %2958 = vmatpush1.msra.mxu0 %v2675
      %2959 = vmatprep.subr.mxu0 %v2678
      %2960 = vmatpush1.msra.mxu0 %v2677
      %2961 = vmatprep.subr.mxu0 %v2680
      %2962 = vmatpush1.msra.mxu0 %v2679
      %2963 = vmatprep.subr.mxu0 %v2682
      %2964 = vmatpush1.msra.mxu0 %v2681
      %2965 = vmatprep.subr.mxu0 %v2684
      %2966 = vmatpush1.msra.mxu0 %v2683
      %2967 = vmatprep.subr.mxu0 %v2686
      %2968 = vmatpush1.msra.mxu0 %v2685
      %2969 = vmatprep.subr.mxu0 %v2688
      %2970 = vmatpush1.msra.mxu0 %v2687
      %2971 = vmatprep.subr.mxu0 %v2690
      %2972 = vmatpush1.msra.mxu0 %v2689
      %2973 = vmatprep.subr.mxu0 %v2692
      %2974 = vmatpush1.msra.mxu0 %v2691
      %2975 = vmatprep.subr.mxu0 %v2694
      %2976 = vmatpush1.msra.mxu0 %v2693
      %2977 = vmatprep.subr.mxu0 %v2696
      %2978 = vmatpush1.msra.mxu0 %v2695
      %2979 = vmatprep.subr.mxu0 %v2698
      %2980 = vmatpush1.msra.mxu0 %v2697
      %2981 = vmatprep.subr.mxu0 %v2700
      %2982 = vmatpush1.msra.mxu0 %v2699
      %2983 = vmatprep.subr.mxu0 %v2702
      %2984 = vmatpush1.msra.mxu0 %v2701
      %2985 = vmatprep.subr.mxu0 %v2704
      %2986 = vmatpush1.msra.mxu0 %v2703
      %2987 = vmatprep.subr.mxu0 %v2706
      %2988 = vmatpush1.msra.mxu0 %v2705
      %2989 = vmatprep.subr.mxu0 %v2708
      %2990 = vmatpush1.msra.mxu0 %v2707
      %2991 = vmatprep.subr.mxu0 %v2710
      %2992 = vmatpush1.msra.mxu0 %v2709
      %2993 = vmatprep.mubr.f32.mxu0 %v2496
      %2994 = vmatmul.mubr.f32.gmra.mrb[0].mxu0 %v2495
      %v2995 = vpop.f32.mrb[0].mxu0
      %v2996 = vadd.f32 %v2907, %v2995
      %v2997 = vpop.f32.mrb[0].mxu0
      %v2998 = vadd.f32 %v2909, %v2997
      %2999 = vmatprep.mubr.f32.mxu0 %v2503
      %3000 = vmatmul.mubr.f32.gmra.mrb[0].mxu0 %v2502
      %v3001 = vpop.f32.mrb[0].mxu0
      %v3002 = vadd.f32 %v2913, %v3001
      %v3003 = vpop.f32.mrb[0].mxu0
      %v3004 = vadd.f32 %v2915, %v3003
      %3005 = vmatprep.mubr.f32.mxu0 %v2510
      %3006 = vmatmul.mubr.f32.gmra.mrb[0].mxu0 %v2509
      %v3007 = vpop.f32.mrb[0].mxu0
      %v3008 = vadd.f32 %v2919, %v3007
      %v3009 = vpop.f32.mrb[0].mxu0
      %v3010 = vadd.f32 %v2921, %v3009
      %3011 = vmatprep.mubr.f32.mxu0 %v2517
      %3012 = vmatmul.mubr.f32.gmra.mrb[0].mxu0 %v2516
      %v3013 = vpop.f32.mrb[0].mxu0
      %v3014 = vadd.f32 %v2925, %v3013
      %v3015 = vpop.f32.mrb[0].mxu0
      %v3016 = vadd.f32 %v2927, %v3015
      %3017 = vdwg.mxu0
      %3018 = vmatprep.subr.mxu0 %v2712
      %3019 = vmatpush1.msra.mxu0 %v2711
      %3020 = vmatprep.subr.mxu0 %v2714
      %3021 = vmatpush1.msra.mxu0 %v2713
      %3022 = vmatprep.subr.mxu0 0.0
      %3023 = vmatpush1.msra.mxu0 0.0
      %3024 = vmatprep.subr.mxu0 0.0
      %3025 = vmatpush1.msra.mxu0 0.0
      %3026 = vmatprep.subr.mxu0 0.0
      %3027 = vmatpush1.msra.mxu0 0.0
      %3028 = vmatprep.subr.mxu0 0.0
      %3029 = vmatpush1.msra.mxu0 0.0
      %3030 = vmatprep.subr.mxu0 0.0
      %3031 = vmatpush1.msra.mxu0 0.0
      %3032 = vmatprep.subr.mxu0 0.0
      %3033 = vmatpush1.msra.mxu0 0.0
      %3034 = vmatprep.subr.mxu0 0.0
      %3035 = vmatpush1.msra.mxu0 0.0
      %3036 = vmatprep.subr.mxu0 0.0
      %3037 = vmatpush1.msra.mxu0 0.0
      %3038 = vmatprep.subr.mxu0 0.0
      %3039 = vmatpush1.msra.mxu0 0.0
      %3040 = vmatprep.subr.mxu0 0.0
      %3041 = vmatpush1.msra.mxu0 0.0
      %3042 = vmatprep.subr.mxu0 0.0
      %3043 = vmatpush1.msra.mxu0 0.0
      %3044 = vmatprep.subr.mxu0 0.0
      %3045 = vmatpush1.msra.mxu0 0.0
      %3046 = vmatprep.subr.mxu0 0.0
      %3047 = vmatpush1.msra.mxu0 0.0
      %3048 = vmatprep.subr.mxu0 0.0
      %3049 = vmatpush1.msra.mxu0 0.0
      %3050 = vmatprep.subr.mxu0 0.0
      %3051 = vmatpush1.msra.mxu0 0.0
      %3052 = vmatprep.subr.mxu0 0.0
      %3053 = vmatpush1.msra.mxu0 0.0
      %3054 = vmatprep.subr.mxu0 0.0
      %3055 = vmatpush1.msra.mxu0 0.0
      %3056 = vmatprep.subr.mxu0 0.0
      %3057 = vmatpush1.msra.mxu0 0.0
      %3058 = vmatprep.subr.mxu0 0.0
      %3059 = vmatpush1.msra.mxu0 0.0
      %3060 = vmatprep.subr.mxu0 0.0
      %3061 = vmatpush1.msra.mxu0 0.0
      %3062 = vmatprep.subr.mxu0 0.0
      %3063 = vmatpush1.msra.mxu0 0.0
      %3064 = vmatprep.subr.mxu0 0.0
      %3065 = vmatpush1.msra.mxu0 0.0
      %3066 = vmatprep.subr.mxu0 0.0
      %3067 = vmatpush1.msra.mxu0 0.0
      %3068 = vmatprep.subr.mxu0 0.0
      %3069 = vmatpush1.msra.mxu0 0.0
      %3070 = vmatprep.subr.mxu0 0.0
      %3071 = vmatpush1.msra.mxu0 0.0
      %3072 = vmatprep.subr.mxu0 0.0
      %3073 = vmatpush1.msra.mxu0 0.0
      %3074 = vmatprep.subr.mxu0 0.0
      %3075 = vmatpush1.msra.mxu0 0.0
      %3076 = vmatprep.subr.mxu0 0.0
      %3077 = vmatpush1.msra.mxu0 0.0
      %3078 = vmatprep.subr.mxu0 0.0
      %3079 = vmatpush1.msra.mxu0 0.0
      %3080 = vmatprep.subr.mxu0 0.0
      %3081 = vmatpush1.msra.mxu0 0.0
      %3082 = vmatprep.mubr.f32.mxu0 0.0
      %3083 = vmatmul.mubr.f32.gmra.mrb[0].mxu0 %v2740
      %v3084 = vpop.f32.mrb[0].mxu0
      %v3085 = vadd.f32 %v2996, %v3084
      %v3086 = vpop.f32.mrb[0].mxu0
      %v3087 = vadd.f32 %v2998, %v3086
      %3088 = vmatprep.mubr.f32.mxu0 0.0
      %3089 = vmatmul.mubr.f32.gmra.mrb[0].mxu0 %v2743
      %v3090 = vpop.f32.mrb[0].mxu0
      %v3091 = vadd.f32 %v3002, %v3090
      %v3092 = vpop.f32.mrb[0].mxu0
      %v3093 = vadd.f32 %v3004, %v3092
      %3094 = vmatprep.mubr.f32.mxu0 0.0
      %3095 = vmatmul.mubr.f32.gmra.mrb[0].mxu0 %v2746
      %v3096 = vpop.f32.mrb[0].mxu0
      %v3097 = vadd.f32 %v3008, %v3096
      %v3098 = vpop.f32.mrb[0].mxu0
      %v3099 = vadd.f32 %v3010, %v3098
      %3100 = vmatprep.mubr.f32.mxu0 0.0
      %3101 = vmatmul.mubr.f32.gmra.mrb[0].mxu0 %v2749
      %v3102 = vpop.f32.mrb[0].mxu0
      %v3103 = vadd.f32 %v3014, %v3102
      %v3104 = vpop.f32.mrb[0].mxu0
      %v3105 = vadd.f32 %v3016, %v3104
      %3106 = vdwg.mxu0
      %v3107 = vld [vmem:[%s266] sm:$0xff]
      %v3108 = vld [vmem:[%s266 + $0x8] sm:$0xff]
      %v3109 = vld [vmem:[%s266 + $0x10] sm:$0xff]
      %v3110 = vld [vmem:[%s266 + $0x18] sm:$0xff]
      %v3111 = vadd.f32 %v3085, %v3107
      %v3112 = vadd.f32 %v3087, %v3108
      %v3113 = vadd.f32 %v3091, %v3109
      %v3114 = vadd.f32 %v3093, %v3110
      %v3115 = vmax.f32 %v3111, 0.0
      %v3116 = vmax.f32 %v3112, 0.0
      %v3117 = vmax.f32 %v3113, 0.0
      %v3118 = vmax.f32 %v3114, 0.0
      %v3119 = vadd.f32 %v3115, %v3097
      %v3120 = vadd.f32 %v3116, %v3099
      %v3121 = vadd.f32 %v3117, %v3103
      %v3122 = vadd.f32 %v3118, %v3105
      %3123 = vxpose.xlu0.b32.start [1/16] %v3119, 128
      %3124 = vxpose.xlu0.b32.cont [2/16] %v3121, 128
      %3125 = vxpose.xlu0.b32.cont [3/16] 0.0, 128
      %3126 = vxpose.xlu0.b32.cont [4/16] 0.0, 128
      %3127 = vxpose.xlu0.b32.cont [5/16] 0.0, 128
      %3128 = vxpose.xlu0.b32.cont [6/16] 0.0, 128
      %3129 = vxpose.xlu0.b32.cont [7/16] 0.0, 128
      %3130 = vxpose.xlu0.b32.cont [8/16] 0.0, 128
      %3131 = vxpose.xlu0.b32.cont [9/16] 0.0, 128
      %3132 = vxpose.xlu0.b32.cont [10/16] 0.0, 128
      %3133 = vxpose.xlu0.b32.cont [11/16] 0.0, 128
      %3134 = vxpose.xlu0.b32.cont [12/16] 0.0, 128
      %3135 = vxpose.xlu0.b32.cont [13/16] 0.0, 128
      %3136 = vxpose.xlu0.b32.cont [14/16] 0.0, 128
      %3137 = vxpose.xlu0.b32.cont [15/16] 0.0, 128
      %3138 = vxpose.xlu0.b32.end [16/16] 0.0, 128
      %v3139 = vpop.trf.xlu0
      %v3140 = vpop.trf.xlu0
      %v3141 = vpop.trf.xlu0
      %v3142 = vpop.trf.xlu0
      %v3143 = vpop.trf.xlu0
      %v3144 = vpop.trf.xlu0
      %v3145 = vpop.trf.xlu0
      %v3146 = vpop.trf.xlu0
      %v3147 = vpop.trf.xlu0
      %v3148 = vpop.trf.xlu0
      %v3149 = vpop.trf.xlu0
      %v3150 = vpop.trf.xlu0
      %v3151 = vpop.trf.xlu0
      %v3152 = vpop.trf.xlu0
      %v3153 = vpop.trf.xlu0
      %v3154 = vpop.trf.xlu0
      %3155 = vxpose.xlu0.b32.start [1/16] %v3120, 128
      %3156 = vxpose.xlu0.b32.cont [2/16] %v3122, 128
      %3157 = vxpose.xlu0.b32.cont [3/16] 0.0, 128
      %3158 = vxpose.xlu0.b32.cont [4/16] 0.0, 128
      %3159 = vxpose.xlu0.b32.cont [5/16] 0.0, 128
      %3160 = vxpose.xlu0.b32.cont [6/16] 0.0, 128
      %3161 = vxpose.xlu0.b32.cont [7/16] 0.0, 128
      %3162 = vxpose.xlu0.b32.cont [8/16] 0.0, 128
      %3163 = vxpose.xlu0.b32.cont [9/16] 0.0, 128
      %3164 = vxpose.xlu0.b32.cont [10/16] 0.0, 128
      %3165 = vxpose.xlu0.b32.cont [11/16] 0.0, 128
      %3166 = vxpose.xlu0.b32.cont [12/16] 0.0, 128
      %3167 = vxpose.xlu0.b32.cont [13/16] 0.0, 128
      %3168 = vxpose.xlu0.b32.cont [14/16] 0.0, 128
      %3169 = vxpose.xlu0.b32.cont [15/16] 0.0, 128
      %3170 = vxpose.xlu0.b32.end [16/16] 0.0, 128
      %v3171 = vpop.trf.xlu0
      %v3172 = vpop.trf.xlu0
      %v3173 = vpop.trf.xlu0
      %v3174 = vpop.trf.xlu0
      %v3175 = vpop.trf.xlu0
      %v3176 = vpop.trf.xlu0
      %v3177 = vpop.trf.xlu0
      %v3178 = vpop.trf.xlu0
      %v3179 = vpop.trf.xlu0
      %v3180 = vpop.trf.xlu0
      %v3181 = vpop.trf.xlu0
      %v3182 = vpop.trf.xlu0
      %v3183 = vpop.trf.xlu0
      %v3184 = vpop.trf.xlu0
      %v3185 = vpop.trf.xlu0
      %v3186 = vpop.trf.xlu0
      %3187 = vst.msk [vmem:[%s293 + $0x3] sm:$0xff] %vm272, %v3139
      %3188 = vst.msk [vmem:[%s293 + $0xb] sm:$0xff] %vm272, %v3140
      %3189 = vst.msk [vmem:[%s293 + $0x1b] sm:$0xff] %vm272, %v3141
      %3190 = vst.msk [vmem:[%s293 + $0x23] sm:$0xff] %vm272, %v3142
      %3191 = vst.msk [vmem:[%s293 + $0x33] sm:$0xff] %vm272, %v3143
      %3192 = vst.msk [vmem:[%s293 + $0x3b] sm:$0xff] %vm272, %v3144
      %3193 = vst.msk [vmem:[%s293 + $0x4b] sm:$0xff] %vm272, %v3145
      %3194 = vst.msk [vmem:[%s293 + $0x53] sm:$0xff] %vm272, %v3146
      %3195 = vst.msk [vmem:[%s293 + $0x63] sm:$0xff] %vm272, %v3147
      %3196 = vst.msk [vmem:[%s293 + $0x6b] sm:$0xff] %vm272, %v3148
      %3197 = vst.msk [vmem:[%s293 + $0x7b] sm:$0xff] %vm272, %v3149
      %3198 = vst.msk [vmem:[%s293 + $0x83] sm:$0xff] %vm272, %v3150
      %3199 = vst.msk [vmem:[%s293 + $0x93] sm:$0xff] %vm272, %v3151
      %3200 = vst.msk [vmem:[%s293 + $0x9b] sm:$0xff] %vm272, %v3152
      %3201 = vst.msk [vmem:[%s293 + $0xab] sm:$0xff] %vm272, %v3153
      %3202 = vst.msk [vmem:[%s293 + $0xb3] sm:$0xff] %vm272, %v3154
      %3203 = vst.msk [vmem:[%s293 + $0xc3] sm:$0xff] %vm272, %v3171
      %3204 = vst.msk [vmem:[%s293 + $0xcb] sm:$0xff] %vm272, %v3172
      %3205 = vst.msk [vmem:[%s293 + $0xdb] sm:$0xff] %vm272, %v3173
      %3206 = vst.msk [vmem:[%s293 + $0xe3] sm:$0xff] %vm272, %v3174
      %3207 = vst.msk [vmem:[%s293 + $0xf3] sm:$0xff] %vm272, %v3175
      %3208 = vst.msk [vmem:[%s293 + $0xfb] sm:$0xff] %vm272, %v3176
      %3209 = vst.msk [vmem:[%s293 + $0x10b] sm:$0xff] %vm272, %v3177
      %3210 = vst.msk [vmem:[%s293 + $0x113] sm:$0xff] %vm272, %v3178
      %3211 = vst.msk [vmem:[%s293 + $0x123] sm:$0xff] %vm272, %v3179
      %3212 = vst.msk [vmem:[%s293 + $0x12b] sm:$0xff] %vm272, %v3180
      %3213 = vst.msk [vmem:[%s293 + $0x13b] sm:$0xff] %vm272, %v3181
      %3214 = vst.msk [vmem:[%s293 + $0x143] sm:$0xff] %vm272, %v3182
      %3215 = vst.msk [vmem:[%s293 + $0x153] sm:$0xff] %vm272, %v3183
      %3216 = vst.msk [vmem:[%s293 + $0x15b] sm:$0xff] %vm272, %v3184
      %3217 = vst.msk [vmem:[%s293 + $0x16b] sm:$0xff] %vm272, %v3185
      %3218 = vst.msk [vmem:[%s293 + $0x173] sm:$0xff] %vm272, %v3186
      %v3219 = vld [vmem:[#allocation2] sm:$0xff]
      %v3220 = vld [vmem:[#allocation2 + $0x8] sm:$0xff]
      %v3221 = vld [vmem:[#allocation2 + $0x18] sm:$0xff]
      %v3222 = vld [vmem:[#allocation2 + $0x20] sm:$0xff]
      %v3223 = vld [vmem:[#allocation2 + $0x30] sm:$0xff]
      %v3224 = vld [vmem:[#allocation2 + $0x38] sm:$0xff]
      %v3225 = vld [vmem:[#allocation2 + $0x48] sm:$0xff]
      %v3226 = vld [vmem:[#allocation2 + $0x50] sm:$0xff]
      %v3227 = vld [vmem:[#allocation2 + $0x60] sm:$0xff]
      %v3228 = vld [vmem:[#allocation2 + $0x68] sm:$0xff]
      %v3229 = vld [vmem:[#allocation2 + $0x78] sm:$0xff]
      %v3230 = vld [vmem:[#allocation2 + $0x80] sm:$0xff]
      %v3231 = vld [vmem:[#allocation2 + $0x90] sm:$0xff]
      %v3232 = vld [vmem:[#allocation2 + $0x98] sm:$0xff]
      %v3233 = vld [vmem:[#allocation2 + $0xa8] sm:$0xff]
      %v3234 = vld [vmem:[#allocation2 + $0xb0] sm:$0xff]
      %v3235 = vld [vmem:[#allocation2 + $0xc0] sm:$0xff]
      %v3236 = vld [vmem:[#allocation2 + $0xc8] sm:$0xff]
      %v3237 = vld [vmem:[#allocation2 + $0xd8] sm:$0xff]
      %v3238 = vld [vmem:[#allocation2 + $0xe0] sm:$0xff]
      %v3239 = vld [vmem:[#allocation2 + $0xf0] sm:$0xff]
      %v3240 = vld [vmem:[#allocation2 + $0xf8] sm:$0xff]
      %v3241 = vld [vmem:[#allocation2 + $0x108] sm:$0xff]
      %v3242 = vld [vmem:[#allocation2 + $0x110] sm:$0xff]
      %v3243 = vld [vmem:[#allocation2 + $0x120] sm:$0xff]
      %v3244 = vld [vmem:[#allocation2 + $0x128] sm:$0xff]
      %v3245 = vld [vmem:[#allocation2 + $0x138] sm:$0xff]
      %v3246 = vld [vmem:[#allocation2 + $0x140] sm:$0xff]
      %v3247 = vld [vmem:[#allocation2 + $0x150] sm:$0xff]
      %v3248 = vld [vmem:[#allocation2 + $0x158] sm:$0xff]
      %v3249 = vld [vmem:[#allocation2 + $0x168] sm:$0xff]
      %v3250 = vld [vmem:[#allocation2 + $0x170] sm:$0xff]
      %v3251 = vld [vmem:[#allocation2 + $0x180] sm:$0xff]
      %v3252 = vld [vmem:[#allocation2 + $0x188] sm:$0xff]
      %v3253 = vld [vmem:[#allocation2 + $0x198] sm:$0xff]
      %v3254 = vld [vmem:[#allocation2 + $0x1a0] sm:$0xff]
      %v3255 = vld [vmem:[#allocation2 + $0x1b0] sm:$0xff]
      %v3256 = vld [vmem:[#allocation2 + $0x1b8] sm:$0xff]
      %v3257 = vld [vmem:[#allocation2 + $0x1c8] sm:$0xff]
      %v3258 = vld [vmem:[#allocation2 + $0x1d0] sm:$0xff]
      %v3259 = vld [vmem:[#allocation2 + $0x1e0] sm:$0xff]
      %v3260 = vld [vmem:[#allocation2 + $0x1e8] sm:$0xff]
      %v3261 = vld [vmem:[#allocation2 + $0x1f8] sm:$0xff]
      %v3262 = vld [vmem:[#allocation2 + $0x200] sm:$0xff]
      %3263 = vxpose.xlu0.b32.start [1/16] %v3219, 128
      %3264 = vxpose.xlu0.b32.cont [2/16] %v3220, 128
      %3265 = vxpose.xlu0.b32.cont [3/16] %v3221, 128
      %3266 = vxpose.xlu0.b32.cont [4/16] %v3222, 128
      %3267 = vxpose.xlu0.b32.cont [5/16] %v3223, 128
      %3268 = vxpose.xlu0.b32.cont [6/16] %v3224, 128
      %3269 = vxpose.xlu0.b32.cont [7/16] %v3225, 128
      %3270 = vxpose.xlu0.b32.cont [8/16] %v3226, 128
      %3271 = vxpose.xlu0.b32.cont [9/16] %v3227, 128
      %3272 = vxpose.xlu0.b32.cont [10/16] %v3228, 128
      %3273 = vxpose.xlu0.b32.cont [11/16] %v3229, 128
      %3274 = vxpose.xlu0.b32.cont [12/16] %v3230, 128
      %3275 = vxpose.xlu0.b32.cont [13/16] %v3231, 128
      %3276 = vxpose.xlu0.b32.cont [14/16] %v3232, 128
      %3277 = vxpose.xlu0.b32.cont [15/16] %v3233, 128
      %3278 = vxpose.xlu0.b32.end [16/16] %v3234, 128
      %v3279 = vpop.trf.xlu0
      %v3280 = vpop.trf.xlu0
      %v3281 = vpop.trf.xlu0
      %v3282 = vpop.trf.xlu0
      %v3283 = vpop.trf.xlu0
      %v3284 = vpop.trf.xlu0
      %v3285 = vpop.trf.xlu0
      %v3286 = vpop.trf.xlu0
      %v3287 = vpop.trf.xlu0
      %v3288 = vpop.trf.xlu0
      %v3289 = vpop.trf.xlu0
      %v3290 = vpop.trf.xlu0
      %v3291 = vpop.trf.xlu0
      %v3292 = vpop.trf.xlu0
      %v3293 = vpop.trf.xlu0
      %v3294 = vpop.trf.xlu0
      %3295 = vxpose.xlu0.b32.start [1/16] %v3235, 128
      %3296 = vxpose.xlu0.b32.cont [2/16] %v3236, 128
      %3297 = vxpose.xlu0.b32.cont [3/16] %v3237, 128
      %3298 = vxpose.xlu0.b32.cont [4/16] %v3238, 128
      %3299 = vxpose.xlu0.b32.cont [5/16] %v3239, 128
      %3300 = vxpose.xlu0.b32.cont [6/16] %v3240, 128
      %3301 = vxpose.xlu0.b32.cont [7/16] %v3241, 128
      %3302 = vxpose.xlu0.b32.cont [8/16] %v3242, 128
      %3303 = vxpose.xlu0.b32.cont [9/16] %v3243, 128
      %3304 = vxpose.xlu0.b32.cont [10/16] %v3244, 128
      %3305 = vxpose.xlu0.b32.cont [11/16] %v3245, 128
      %3306 = vxpose.xlu0.b32.cont [12/16] %v3246, 128
      %3307 = vxpose.xlu0.b32.cont [13/16] %v3247, 128
      %3308 = vxpose.xlu0.b32.cont [14/16] %v3248, 128
      %3309 = vxpose.xlu0.b32.cont [15/16] %v3249, 128
      %3310 = vxpose.xlu0.b32.end [16/16] %v3250, 128
      %v3311 = vpop.trf.xlu0
      %v3312 = vpop.trf.xlu0
      %v3313 = vpop.trf.xlu0
      %v3314 = vpop.trf.xlu0
      %v3315 = vpop.trf.xlu0
      %v3316 = vpop.trf.xlu0
      %v3317 = vpop.trf.xlu0
      %v3318 = vpop.trf.xlu0
      %v3319 = vpop.trf.xlu0
      %v3320 = vpop.trf.xlu0
      %v3321 = vpop.trf.xlu0
      %v3322 = vpop.trf.xlu0
      %v3323 = vpop.trf.xlu0
      %v3324 = vpop.trf.xlu0
      %v3325 = vpop.trf.xlu0
      %v3326 = vpop.trf.xlu0
      %3327 = vxpose.xlu0.b32.start [1/16] %v3251, 128
      %3328 = vxpose.xlu0.b32.cont [2/16] %v3252, 128
      %3329 = vxpose.xlu0.b32.cont [3/16] %v3253, 128
      %3330 = vxpose.xlu0.b32.cont [4/16] %v3254, 128
      %3331 = vxpose.xlu0.b32.cont [5/16] %v3255, 128
      %3332 = vxpose.xlu0.b32.cont [6/16] %v3256, 128
      %3333 = vxpose.xlu0.b32.cont [7/16] %v3257, 128
      %3334 = vxpose.xlu0.b32.cont [8/16] %v3258, 128
      %3335 = vxpose.xlu0.b32.cont [9/16] %v3259, 128
      %3336 = vxpose.xlu0.b32.cont [10/16] %v3260, 128
      %3337 = vxpose.xlu0.b32.cont [11/16] %v3261, 128
      %3338 = vxpose.xlu0.b32.cont [12/16] %v3262, 128
      %3339 = vxpose.xlu0.b32.cont [13/16] 0.0, 128
      %3340 = vxpose.xlu0.b32.cont [14/16] 0.0, 128
      %3341 = vxpose.xlu0.b32.cont [15/16] 0.0, 128
      %3342 = vxpose.xlu0.b32.end [16/16] 0.0, 128
      %v3343 = vpop.trf.xlu0
      %v3344 = vpop.trf.xlu0
      %v3345 = vpop.trf.xlu0
      %v3346 = vpop.trf.xlu0
      %v3347 = vpop.trf.xlu0
      %v3348 = vpop.trf.xlu0
      %v3349 = vpop.trf.xlu0
      %v3350 = vpop.trf.xlu0
      %v3351 = vpop.trf.xlu0
      %v3352 = vpop.trf.xlu0
      %v3353 = vpop.trf.xlu0
      %v3354 = vpop.trf.xlu0
      %v3355 = vpop.trf.xlu0
      %v3356 = vpop.trf.xlu0
      %v3357 = vpop.trf.xlu0
      %v3358 = vpop.trf.xlu0
      %3359 = vst [vmem:[#allocation3] sm:$0xff] %v3279
      %3360 = vst [vmem:[#allocation3 + $0x8] sm:$0xff] %v3311
      %3361 = vst [vmem:[#allocation3 + $0x10] sm:$0xff] %v3280
      %3362 = vst [vmem:[#allocation3 + $0x18] sm:$0xff] %v3312
      %3369 = vrot.lane.b32.xlu0 %v3279, 112
      %v3370 = vpop.permute.xlu0 %3369
      %3371 = vrot.lane.b32.xlu0 %v3311, 112
      %v3372 = vpop.permute.xlu0 %3371
      %3373 = vrot.lane.b32.xlu0 %v3343, 112
      %v3374 = vpop.permute.xlu0 %3373
      %3375 = vrot.lane.b32.xlu0 %v3280, 112
      %v3376 = vpop.permute.xlu0 %3375
      %3377 = vrot.lane.b32.xlu0 %v3312, 112
      %v3378 = vpop.permute.xlu0 %3377
      %3379 = vrot.lane.b32.xlu0 %v3344, 112
      %v3380 = vpop.permute.xlu0 %3379
      %v3381 = vsel %vm589, %v3370, %v3372
      %v3382 = vsel %vm589, %v3372, %v3374
      %v3383 = vsel %vm589, %v3376, %v3378
      %v3384 = vsel %vm589, %v3378, %v3380
      %3389 = vst [vmem:[#allocation3 + $0xe0] sm:$0xff] %v3381
      %3390 = vst [vmem:[#allocation3 + $0xe8] sm:$0xff] %v3382
      %3391 = vst [vmem:[#allocation3 + $0xf0] sm:$0xff] %v3383
      %3392 = vst [vmem:[#allocation3 + $0xf8] sm:$0xff] %v3384
      %3393 = vrot.lane.b32.xlu0 %v3279, 96
      %v3394 = vpop.permute.xlu0 %3393
      %3395 = vrot.lane.b32.xlu0 %v3311, 96
      %v3396 = vpop.permute.xlu0 %3395
      %3397 = vrot.lane.b32.xlu0 %v3343, 96
      %v3398 = vpop.permute.xlu0 %3397
      %3399 = vrot.lane.b32.xlu0 %v3280, 96
      %v3400 = vpop.permute.xlu0 %3399
      %3401 = vrot.lane.b32.xlu0 %v3312, 96
      %v3402 = vpop.permute.xlu0 %3401
      %3403 = vrot.lane.b32.xlu0 %v3344, 96
      %v3404 = vpop.permute.xlu0 %3403
      %v3405 = vsel %vm614, %v3394, %v3396
      %v3406 = vsel %vm614, %v3396, %v3398
      %v3407 = vsel %vm614, %v3400, %v3402
      %v3408 = vsel %vm614, %v3402, %v3404
      %3413 = vst [vmem:[#allocation3 + $0x1c0] sm:$0xff] %v3405
      %3414 = vst [vmem:[#allocation3 + $0x1c8] sm:$0xff] %v3406
      %3415 = vst [vmem:[#allocation3 + $0x1d0] sm:$0xff] %v3407
      %3416 = vst [vmem:[#allocation3 + $0x1d8] sm:$0xff] %v3408
      %3417 = vrot.lane.b32.xlu0 %v3279, 80
      %v3418 = vpop.permute.xlu0 %3417
      %3419 = vrot.lane.b32.xlu0 %v3311, 80
      %v3420 = vpop.permute.xlu0 %3419
      %3421 = vrot.lane.b32.xlu0 %v3343, 80
      %v3422 = vpop.permute.xlu0 %3421
      %3423 = vrot.lane.b32.xlu0 %v3280, 80
      %v3424 = vpop.permute.xlu0 %3423
      %3425 = vrot.lane.b32.xlu0 %v3312, 80
      %v3426 = vpop.permute.xlu0 %3425
      %3427 = vrot.lane.b32.xlu0 %v3344, 80
      %v3428 = vpop.permute.xlu0 %3427
      %v3429 = vsel %vm639, %v3418, %v3420
      %v3430 = vsel %vm639, %v3420, %v3422
      %v3431 = vsel %vm639, %v3424, %v3426
      %v3432 = vsel %vm639, %v3426, %v3428
      %3437 = vst [vmem:[#allocation3 + $0x2a0] sm:$0xff] %v3429
      %3438 = vst [vmem:[#allocation3 + $0x2a8] sm:$0xff] %v3430
      %3439 = vst [vmem:[#allocation3 + $0x2b0] sm:$0xff] %v3431
      %3440 = vst [vmem:[#allocation3 + $0x2b8] sm:$0xff] %v3432
      %3441 = vrot.lane.b32.xlu0 %v3279, 64
      %v3442 = vpop.permute.xlu0 %3441
      %3443 = vrot.lane.b32.xlu0 %v3311, 64
      %v3444 = vpop.permute.xlu0 %3443
      %3445 = vrot.lane.b32.xlu0 %v3343, 64
      %v3446 = vpop.permute.xlu0 %3445
      %3447 = vrot.lane.b32.xlu0 %v3280, 64
      %v3448 = vpop.permute.xlu0 %3447
      %3449 = vrot.lane.b32.xlu0 %v3312, 64
      %v3450 = vpop.permute.xlu0 %3449
      %3451 = vrot.lane.b32.xlu0 %v3344, 64
      %v3452 = vpop.permute.xlu0 %3451
      %v3453 = vsel %vm664, %v3442, %v3444
      %v3454 = vsel %vm664, %v3444, %v3446
      %v3455 = vsel %vm664, %v3448, %v3450
      %v3456 = vsel %vm664, %v3450, %v3452
      %3461 = vst [vmem:[#allocation3 + $0x380] sm:$0xff] %v3453
      %3462 = vst [vmem:[#allocation3 + $0x388] sm:$0xff] %v3454
      %3463 = vst [vmem:[#allocation3 + $0x390] sm:$0xff] %v3455
      %3464 = vst [vmem:[#allocation3 + $0x398] sm:$0xff] %v3456
      %3465 = vrot.lane.b32.xlu0 %v3279, 48
      %v3466 = vpop.permute.xlu0 %3465
      %3467 = vrot.lane.b32.xlu0 %v3311, 48
      %v3468 = vpop.permute.xlu0 %3467
      %3469 = vrot.lane.b32.xlu0 %v3343, 48
      %v3470 = vpop.permute.xlu0 %3469
      %3471 = vrot.lane.b32.xlu0 %v3280, 48
      %v3472 = vpop.permute.xlu0 %3471
      %3473 = vrot.lane.b32.xlu0 %v3312, 48
      %v3474 = vpop.permute.xlu0 %3473
      %3475 = vrot.lane.b32.xlu0 %v3344, 48
      %v3476 = vpop.permute.xlu0 %3475
      %v3477 = vsel %vm689, %v3466, %v3468
      %v3478 = vsel %vm689, %v3468, %v3470
      %v3479 = vsel %vm689, %v3472, %v3474
      %v3480 = vsel %vm689, %v3474, %v3476
      %3485 = vst [vmem:[#allocation3 + $0x460] sm:$0xff] %v3477
      %3486 = vst [vmem:[#allocation3 + $0x468] sm:$0xff] %v3478
      %3487 = vst [vmem:[#allocation3 + $0x470] sm:$0xff] %v3479
      %3488 = vst [vmem:[#allocation3 + $0x478] sm:$0xff] %v3480
      %3489 = vrot.lane.b32.xlu0 %v3279, 32
      %v3490 = vpop.permute.xlu0 %3489
      %3491 = vrot.lane.b32.xlu0 %v3311, 32
      %v3492 = vpop.permute.xlu0 %3491
      %3493 = vrot.lane.b32.xlu0 %v3343, 32
      %v3494 = vpop.permute.xlu0 %3493
      %3495 = vrot.lane.b32.xlu0 %v3280, 32
      %v3496 = vpop.permute.xlu0 %3495
      %3497 = vrot.lane.b32.xlu0 %v3312, 32
      %v3498 = vpop.permute.xlu0 %3497
      %3499 = vrot.lane.b32.xlu0 %v3344, 32
      %v3500 = vpop.permute.xlu0 %3499
      %v3501 = vsel %vm714, %v3490, %v3492
      %v3502 = vsel %vm714, %v3492, %v3494
      %v3503 = vsel %vm714, %v3496, %v3498
      %v3504 = vsel %vm714, %v3498, %v3500
      %3509 = vst [vmem:[#allocation3 + $0x540] sm:$0xff] %v3501
      %3510 = vst [vmem:[#allocation3 + $0x548] sm:$0xff] %v3502
      %3511 = vst [vmem:[#allocation3 + $0x550] sm:$0xff] %v3503
      %3512 = vst [vmem:[#allocation3 + $0x558] sm:$0xff] %v3504
      %v3513 = vld [vmem:[#allocation2 + $0x1] sm:$0xff]
      %v3514 = vld [vmem:[#allocation2 + $0x9] sm:$0xff]
      %v3515 = vld [vmem:[#allocation2 + $0x19] sm:$0xff]
      %v3516 = vld [vmem:[#allocation2 + $0x21] sm:$0xff]
      %v3517 = vld [vmem:[#allocation2 + $0x31] sm:$0xff]
      %v3518 = vld [vmem:[#allocation2 + $0x39] sm:$0xff]
      %v3519 = vld [vmem:[#allocation2 + $0x49] sm:$0xff]
      %v3520 = vld [vmem:[#allocation2 + $0x51] sm:$0xff]
      %v3521 = vld [vmem:[#allocation2 + $0x61] sm:$0xff]
      %v3522 = vld [vmem:[#allocation2 + $0x69] sm:$0xff]
      %v3523 = vld [vmem:[#allocation2 + $0x79] sm:$0xff]
      %v3524 = vld [vmem:[#allocation2 + $0x81] sm:$0xff]
      %v3525 = vld [vmem:[#allocation2 + $0x91] sm:$0xff]
      %v3526 = vld [vmem:[#allocation2 + $0x99] sm:$0xff]
      %v3527 = vld [vmem:[#allocation2 + $0xa9] sm:$0xff]
      %v3528 = vld [vmem:[#allocation2 + $0xb1] sm:$0xff]
      %v3529 = vld [vmem:[#allocation2 + $0xc1] sm:$0xff]
      %v3530 = vld [vmem:[#allocation2 + $0xc9] sm:$0xff]
      %v3531 = vld [vmem:[#allocation2 + $0xd9] sm:$0xff]
      %v3532 = vld [vmem:[#allocation2 + $0xe1] sm:$0xff]
      %v3533 = vld [vmem:[#allocation2 + $0xf1] sm:$0xff]
      %v3534 = vld [vmem:[#allocation2 + $0xf9] sm:$0xff]
      %v3535 = vld [vmem:[#allocation2 + $0x109] sm:$0xff]
      %v3536 = vld [vmem:[#allocation2 + $0x111] sm:$0xff]
      %v3537 = vld [vmem:[#allocation2 + $0x121] sm:$0xff]
      %v3538 = vld [vmem:[#allocation2 + $0x129] sm:$0xff]
      %v3539 = vld [vmem:[#allocation2 + $0x139] sm:$0xff]
      %v3540 = vld [vmem:[#allocation2 + $0x141] sm:$0xff]
      %v3541 = vld [vmem:[#allocation2 + $0x151] sm:$0xff]
      %v3542 = vld [vmem:[#allocation2 + $0x159] sm:$0xff]
      %v3543 = vld [vmem:[#allocation2 + $0x169] sm:$0xff]
      %v3544 = vld [vmem:[#allocation2 + $0x171] sm:$0xff]
      %v3545 = vld [vmem:[#allocation2 + $0x181] sm:$0xff]
      %v3546 = vld [vmem:[#allocation2 + $0x189] sm:$0xff]
      %v3547 = vld [vmem:[#allocation2 + $0x199] sm:$0xff]
      %v3548 = vld [vmem:[#allocation2 + $0x1a1] sm:$0xff]
      %v3549 = vld [vmem:[#allocation2 + $0x1b1] sm:$0xff]
      %v3550 = vld [vmem:[#allocation2 + $0x1b9] sm:$0xff]
      %v3551 = vld [vmem:[#allocation2 + $0x1c9] sm:$0xff]
      %v3552 = vld [vmem:[#allocation2 + $0x1d1] sm:$0xff]
      %v3553 = vld [vmem:[#allocation2 + $0x1e1] sm:$0xff]
      %v3554 = vld [vmem:[#allocation2 + $0x1e9] sm:$0xff]
      %v3555 = vld [vmem:[#allocation2 + $0x1f9] sm:$0xff]
      %v3556 = vld [vmem:[#allocation2 + $0x201] sm:$0xff]
      %3557 = vxpose.xlu0.b32.start [1/16] %v3513, 128
      %3558 = vxpose.xlu0.b32.cont [2/16] %v3514, 128
      %3559 = vxpose.xlu0.b32.cont [3/16] %v3515, 128
      %3560 = vxpose.xlu0.b32.cont [4/16] %v3516, 128
      %3561 = vxpose.xlu0.b32.cont [5/16] %v3517, 128
      %3562 = vxpose.xlu0.b32.cont [6/16] %v3518, 128
      %3563 = vxpose.xlu0.b32.cont [7/16] %v3519, 128
      %3564 = vxpose.xlu0.b32.cont [8/16] %v3520, 128
      %3565 = vxpose.xlu0.b32.cont [9/16] %v3521, 128
      %3566 = vxpose.xlu0.b32.cont [10/16] %v3522, 128
      %3567 = vxpose.xlu0.b32.cont [11/16] %v3523, 128
      %3568 = vxpose.xlu0.b32.cont [12/16] %v3524, 128
      %3569 = vxpose.xlu0.b32.cont [13/16] %v3525, 128
      %3570 = vxpose.xlu0.b32.cont [14/16] %v3526, 128
      %3571 = vxpose.xlu0.b32.cont [15/16] %v3527, 128
      %3572 = vxpose.xlu0.b32.end [16/16] %v3528, 128
      %v3573 = vpop.trf.xlu0
      %v3574 = vpop.trf.xlu0
      %v3575 = vpop.trf.xlu0
      %v3576 = vpop.trf.xlu0
      %v3577 = vpop.trf.xlu0
      %v3578 = vpop.trf.xlu0
      %v3579 = vpop.trf.xlu0
      %v3580 = vpop.trf.xlu0
      %v3581 = vpop.trf.xlu0
      %v3582 = vpop.trf.xlu0
      %v3583 = vpop.trf.xlu0
      %v3584 = vpop.trf.xlu0
      %v3585 = vpop.trf.xlu0
      %v3586 = vpop.trf.xlu0
      %v3587 = vpop.trf.xlu0
      %v3588 = vpop.trf.xlu0
      %3589 = vxpose.xlu0.b32.start [1/16] %v3529, 128
      %3590 = vxpose.xlu0.b32.cont [2/16] %v3530, 128
      %3591 = vxpose.xlu0.b32.cont [3/16] %v3531, 128
      %3592 = vxpose.xlu0.b32.cont [4/16] %v3532, 128
      %3593 = vxpose.xlu0.b32.cont [5/16] %v3533, 128
      %3594 = vxpose.xlu0.b32.cont [6/16] %v3534, 128
      %3595 = vxpose.xlu0.b32.cont [7/16] %v3535, 128
      %3596 = vxpose.xlu0.b32.cont [8/16] %v3536, 128
      %3597 = vxpose.xlu0.b32.cont [9/16] %v3537, 128
      %3598 = vxpose.xlu0.b32.cont [10/16] %v3538, 128
      %3599 = vxpose.xlu0.b32.cont [11/16] %v3539, 128
      %3600 = vxpose.xlu0.b32.cont [12/16] %v3540, 128
      %3601 = vxpose.xlu0.b32.cont [13/16] %v3541, 128
      %3602 = vxpose.xlu0.b32.cont [14/16] %v3542, 128
      %3603 = vxpose.xlu0.b32.cont [15/16] %v3543, 128
      %3604 = vxpose.xlu0.b32.end [16/16] %v3544, 128
      %v3605 = vpop.trf.xlu0
      %v3606 = vpop.trf.xlu0
      %v3607 = vpop.trf.xlu0
      %v3608 = vpop.trf.xlu0
      %v3609 = vpop.trf.xlu0
      %v3610 = vpop.trf.xlu0
      %v3611 = vpop.trf.xlu0
      %v3612 = vpop.trf.xlu0
      %v3613 = vpop.trf.xlu0
      %v3614 = vpop.trf.xlu0
      %v3615 = vpop.trf.xlu0
      %v3616 = vpop.trf.xlu0
      %v3617 = vpop.trf.xlu0
      %v3618 = vpop.trf.xlu0
      %v3619 = vpop.trf.xlu0
      %v3620 = vpop.trf.xlu0
      %3621 = vxpose.xlu0.b32.start [1/16] %v3545, 128
      %3622 = vxpose.xlu0.b32.cont [2/16] %v3546, 128
      %3623 = vxpose.xlu0.b32.cont [3/16] %v3547, 128
      %3624 = vxpose.xlu0.b32.cont [4/16] %v3548, 128
      %3625 = vxpose.xlu0.b32.cont [5/16] %v3549, 128
      %3626 = vxpose.xlu0.b32.cont [6/16] %v3550, 128
      %3627 = vxpose.xlu0.b32.cont [7/16] %v3551, 128
      %3628 = vxpose.xlu0.b32.cont [8/16] %v3552, 128
      %3629 = vxpose.xlu0.b32.cont [9/16] %v3553, 128
      %3630 = vxpose.xlu0.b32.cont [10/16] %v3554, 128
      %3631 = vxpose.xlu0.b32.cont [11/16] %v3555, 128
      %3632 = vxpose.xlu0.b32.cont [12/16] %v3556, 128
      %3633 = vxpose.xlu0.b32.cont [13/16] 0.0, 128
      %3634 = vxpose.xlu0.b32.cont [14/16] 0.0, 128
      %3635 = vxpose.xlu0.b32.cont [15/16] 0.0, 128
      %3636 = vxpose.xlu0.b32.end [16/16] 0.0, 128
      %v3637 = vpop.trf.xlu0
      %v3638 = vpop.trf.xlu0
      %v3639 = vpop.trf.xlu0
      %v3640 = vpop.trf.xlu0
      %v3641 = vpop.trf.xlu0
      %v3642 = vpop.trf.xlu0
      %v3643 = vpop.trf.xlu0
      %v3644 = vpop.trf.xlu0
      %v3645 = vpop.trf.xlu0
      %v3646 = vpop.trf.xlu0
      %v3647 = vpop.trf.xlu0
      %v3648 = vpop.trf.xlu0
      %v3649 = vpop.trf.xlu0
      %v3650 = vpop.trf.xlu0
      %v3651 = vpop.trf.xlu0
      %v3652 = vpop.trf.xlu0
      %3653 = vst [vmem:[#allocation3 + $0x20] sm:$0xff] %v3573
      %3654 = vst [vmem:[#allocation3 + $0x28] sm:$0xff] %v3605
      %3655 = vst [vmem:[#allocation3 + $0x30] sm:$0xff] %v3574
      %3656 = vst [vmem:[#allocation3 + $0x38] sm:$0xff] %v3606
      %3663 = vrot.lane.b32.xlu0 %v3573, 112
      %v3664 = vpop.permute.xlu0 %3663
      %3665 = vrot.lane.b32.xlu0 %v3605, 112
      %v3666 = vpop.permute.xlu0 %3665
      %3667 = vrot.lane.b32.xlu0 %v3637, 112
      %v3668 = vpop.permute.xlu0 %3667
      %3669 = vrot.lane.b32.xlu0 %v3574, 112
      %v3670 = vpop.permute.xlu0 %3669
      %3671 = vrot.lane.b32.xlu0 %v3606, 112
      %v3672 = vpop.permute.xlu0 %3671
      %3673 = vrot.lane.b32.xlu0 %v3638, 112
      %v3674 = vpop.permute.xlu0 %3673
      %v3675 = vsel %vm589, %v3664, %v3666
      %v3676 = vsel %vm589, %v3666, %v3668
      %v3677 = vsel %vm589, %v3670, %v3672
      %v3678 = vsel %vm589, %v3672, %v3674
      %3683 = vst [vmem:[#allocation3 + $0x100] sm:$0xff] %v3675
      %3684 = vst [vmem:[#allocation3 + $0x108] sm:$0xff] %v3676
      %3685 = vst [vmem:[#allocation3 + $0x110] sm:$0xff] %v3677
      %3686 = vst [vmem:[#allocation3 + $0x118] sm:$0xff] %v3678
      %3687 = vrot.lane.b32.xlu0 %v3573, 96
      %v3688 = vpop.permute.xlu0 %3687
      %3689 = vrot.lane.b32.xlu0 %v3605, 96
      %v3690 = vpop.permute.xlu0 %3689
      %3691 = vrot.lane.b32.xlu0 %v3637, 96
      %v3692 = vpop.permute.xlu0 %3691
      %3693 = vrot.lane.b32.xlu0 %v3574, 96
      %v3694 = vpop.permute.xlu0 %3693
      %3695 = vrot.lane.b32.xlu0 %v3606, 96
      %v3696 = vpop.permute.xlu0 %3695
      %3697 = vrot.lane.b32.xlu0 %v3638, 96
      %v3698 = vpop.permute.xlu0 %3697
      %v3699 = vsel %vm614, %v3688, %v3690
      %v3700 = vsel %vm614, %v3690, %v3692
      %v3701 = vsel %vm614, %v3694, %v3696
      %v3702 = vsel %vm614, %v3696, %v3698
      %3707 = vst [vmem:[#allocation3 + $0x1e0] sm:$0xff] %v3699
      %3708 = vst [vmem:[#allocation3 + $0x1e8] sm:$0xff] %v3700
      %3709 = vst [vmem:[#allocation3 + $0x1f0] sm:$0xff] %v3701
      %3710 = vst [vmem:[#allocation3 + $0x1f8] sm:$0xff] %v3702
      %3711 = vrot.lane.b32.xlu0 %v3573, 80
      %v3712 = vpop.permute.xlu0 %3711
      %3713 = vrot.lane.b32.xlu0 %v3605, 80
      %v3714 = vpop.permute.xlu0 %3713
      %3715 = vrot.lane.b32.xlu0 %v3637, 80
      %v3716 = vpop.permute.xlu0 %3715
      %3717 = vrot.lane.b32.xlu0 %v3574, 80
      %v3718 = vpop.permute.xlu0 %3717
      %3719 = vrot.lane.b32.xlu0 %v3606, 80
      %v3720 = vpop.permute.xlu0 %3719
      %3721 = vrot.lane.b32.xlu0 %v3638, 80
      %v3722 = vpop.permute.xlu0 %3721
      %v3723 = vsel %vm639, %v3712, %v3714
      %v3724 = vsel %vm639, %v3714, %v3716
      %v3725 = vsel %vm639, %v3718, %v3720
      %v3726 = vsel %vm639, %v3720, %v3722
      %3731 = vst [vmem:[#allocation3 + $0x2c0] sm:$0xff] %v3723
      %3732 = vst [vmem:[#allocation3 + $0x2c8] sm:$0xff] %v3724
      %3733 = vst [vmem:[#allocation3 + $0x2d0] sm:$0xff] %v3725
      %3734 = vst [vmem:[#allocation3 + $0x2d8] sm:$0xff] %v3726
      %3735 = vrot.lane.b32.xlu0 %v3573, 64
      %v3736 = vpop.permute.xlu0 %3735
      %3737 = vrot.lane.b32.xlu0 %v3605, 64
      %v3738 = vpop.permute.xlu0 %3737
      %3739 = vrot.lane.b32.xlu0 %v3637, 64
      %v3740 = vpop.permute.xlu0 %3739
      %3741 = vrot.lane.b32.xlu0 %v3574, 64
      %v3742 = vpop.permute.xlu0 %3741
      %3743 = vrot.lane.b32.xlu0 %v3606, 64
      %v3744 = vpop.permute.xlu0 %3743
      %3745 = vrot.lane.b32.xlu0 %v3638, 64
      %v3746 = vpop.permute.xlu0 %3745
      %v3747 = vsel %vm664, %v3736, %v3738
      %v3748 = vsel %vm664, %v3738, %v3740
      %v3749 = vsel %vm664, %v3742, %v3744
      %v3750 = vsel %vm664, %v3744, %v3746
      %3755 = vst [vmem:[#allocation3 + $0x3a0] sm:$0xff] %v3747
      %3756 = vst [vmem:[#allocation3 + $0x3a8] sm:$0xff] %v3748
      %3757 = vst [vmem:[#allocation3 + $0x3b0] sm:$0xff] %v3749
      %3758 = vst [vmem:[#allocation3 + $0x3b8] sm:$0xff] %v3750
      %3759 = vrot.lane.b32.xlu0 %v3573, 48
      %v3760 = vpop.permute.xlu0 %3759
      %3761 = vrot.lane.b32.xlu0 %v3605, 48
      %v3762 = vpop.permute.xlu0 %3761
      %3763 = vrot.lane.b32.xlu0 %v3637, 48
      %v3764 = vpop.permute.xlu0 %3763
      %3765 = vrot.lane.b32.xlu0 %v3574, 48
      %v3766 = vpop.permute.xlu0 %3765
      %3767 = vrot.lane.b32.xlu0 %v3606, 48
      %v3768 = vpop.permute.xlu0 %3767
      %3769 = vrot.lane.b32.xlu0 %v3638, 48
      %v3770 = vpop.permute.xlu0 %3769
      %v3771 = vsel %vm689, %v3760, %v3762
      %v3772 = vsel %vm689, %v3762, %v3764
      %v3773 = vsel %vm689, %v3766, %v3768
      %v3774 = vsel %vm689, %v3768, %v3770
      %3779 = vst [vmem:[#allocation3 + $0x480] sm:$0xff] %v3771
      %3780 = vst [vmem:[#allocation3 + $0x488] sm:$0xff] %v3772
      %3781 = vst [vmem:[#allocation3 + $0x490] sm:$0xff] %v3773
      %3782 = vst [vmem:[#allocation3 + $0x498] sm:$0xff] %v3774
      %3783 = vrot.lane.b32.xlu0 %v3573, 32
      %v3784 = vpop.permute.xlu0 %3783
      %3785 = vrot.lane.b32.xlu0 %v3605, 32
      %v3786 = vpop.permute.xlu0 %3785
      %3787 = vrot.lane.b32.xlu0 %v3637, 32
      %v3788 = vpop.permute.xlu0 %3787
      %3789 = vrot.lane.b32.xlu0 %v3574, 32
      %v3790 = vpop.permute.xlu0 %3789
      %3791 = vrot.lane.b32.xlu0 %v3606, 32
      %v3792 = vpop.permute.xlu0 %3791
      %3793 = vrot.lane.b32.xlu0 %v3638, 32
      %v3794 = vpop.permute.xlu0 %3793
      %v3795 = vsel %vm714, %v3784, %v3786
      %v3796 = vsel %vm714, %v3786, %v3788
      %v3797 = vsel %vm714, %v3790, %v3792
      %v3798 = vsel %vm714, %v3792, %v3794
      %3803 = vst [vmem:[#allocation3 + $0x560] sm:$0xff] %v3795
      %3804 = vst [vmem:[#allocation3 + $0x568] sm:$0xff] %v3796
      %3805 = vst [vmem:[#allocation3 + $0x570] sm:$0xff] %v3797
      %3806 = vst [vmem:[#allocation3 + $0x578] sm:$0xff] %v3798
      %v3807 = vld [vmem:[#allocation2 + $0x2] sm:$0xff]
      %v3808 = vld [vmem:[#allocation2 + $0xa] sm:$0xff]
      %v3809 = vld [vmem:[#allocation2 + $0x1a] sm:$0xff]
      %v3810 = vld [vmem:[#allocation2 + $0x22] sm:$0xff]
      %v3811 = vld [vmem:[#allocation2 + $0x32] sm:$0xff]
      %v3812 = vld [vmem:[#allocation2 + $0x3a] sm:$0xff]
      %v3813 = vld [vmem:[#allocation2 + $0x4a] sm:$0xff]
      %v3814 = vld [vmem:[#allocation2 + $0x52] sm:$0xff]
      %v3815 = vld [vmem:[#allocation2 + $0x62] sm:$0xff]
      %v3816 = vld [vmem:[#allocation2 + $0x6a] sm:$0xff]
      %v3817 = vld [vmem:[#allocation2 + $0x7a] sm:$0xff]
      %v3818 = vld [vmem:[#allocation2 + $0x82] sm:$0xff]
      %v3819 = vld [vmem:[#allocation2 + $0x92] sm:$0xff]
      %v3820 = vld [vmem:[#allocation2 + $0x9a] sm:$0xff]
      %v3821 = vld [vmem:[#allocation2 + $0xaa] sm:$0xff]
      %v3822 = vld [vmem:[#allocation2 + $0xb2] sm:$0xff]
      %v3823 = vld [vmem:[#allocation2 + $0xc2] sm:$0xff]
      %v3824 = vld [vmem:[#allocation2 + $0xca] sm:$0xff]
      %v3825 = vld [vmem:[#allocation2 + $0xda] sm:$0xff]
      %v3826 = vld [vmem:[#allocation2 + $0xe2] sm:$0xff]
      %v3827 = vld [vmem:[#allocation2 + $0xf2] sm:$0xff]
      %v3828 = vld [vmem:[#allocation2 + $0xfa] sm:$0xff]
      %v3829 = vld [vmem:[#allocation2 + $0x10a] sm:$0xff]
      %v3830 = vld [vmem:[#allocation2 + $0x112] sm:$0xff]
      %v3831 = vld [vmem:[#allocation2 + $0x122] sm:$0xff]
      %v3832 = vld [vmem:[#allocation2 + $0x12a] sm:$0xff]
      %v3833 = vld [vmem:[#allocation2 + $0x13a] sm:$0xff]
      %v3834 = vld [vmem:[#allocation2 + $0x142] sm:$0xff]
      %v3835 = vld [vmem:[#allocation2 + $0x152] sm:$0xff]
      %v3836 = vld [vmem:[#allocation2 + $0x15a] sm:$0xff]
      %v3837 = vld [vmem:[#allocation2 + $0x16a] sm:$0xff]
      %v3838 = vld [vmem:[#allocation2 + $0x172] sm:$0xff]
      %v3839 = vld [vmem:[#allocation2 + $0x182] sm:$0xff]
      %v3840 = vld [vmem:[#allocation2 + $0x18a] sm:$0xff]
      %v3841 = vld [vmem:[#allocation2 + $0x19a] sm:$0xff]
      %v3842 = vld [vmem:[#allocation2 + $0x1a2] sm:$0xff]
      %v3843 = vld [vmem:[#allocation2 + $0x1b2] sm:$0xff]
      %v3844 = vld [vmem:[#allocation2 + $0x1ba] sm:$0xff]
      %v3845 = vld [vmem:[#allocation2 + $0x1ca] sm:$0xff]
      %v3846 = vld [vmem:[#allocation2 + $0x1d2] sm:$0xff]
      %v3847 = vld [vmem:[#allocation2 + $0x1e2] sm:$0xff]
      %v3848 = vld [vmem:[#allocation2 + $0x1ea] sm:$0xff]
      %v3849 = vld [vmem:[#allocation2 + $0x1fa] sm:$0xff]
      %v3850 = vld [vmem:[#allocation2 + $0x202] sm:$0xff]
      %3851 = vxpose.xlu0.b32.start [1/16] %v3807, 128
      %3852 = vxpose.xlu0.b32.cont [2/16] %v3808, 128
      %3853 = vxpose.xlu0.b32.cont [3/16] %v3809, 128
      %3854 = vxpose.xlu0.b32.cont [4/16] %v3810, 128
      %3855 = vxpose.xlu0.b32.cont [5/16] %v3811, 128
      %3856 = vxpose.xlu0.b32.cont [6/16] %v3812, 128
      %3857 = vxpose.xlu0.b32.cont [7/16] %v3813, 128
      %3858 = vxpose.xlu0.b32.cont [8/16] %v3814, 128
      %3859 = vxpose.xlu0.b32.cont [9/16] %v3815, 128
      %3860 = vxpose.xlu0.b32.cont [10/16] %v3816, 128
      %3861 = vxpose.xlu0.b32.cont [11/16] %v3817, 128
      %3862 = vxpose.xlu0.b32.cont [12/16] %v3818, 128
      %3863 = vxpose.xlu0.b32.cont [13/16] %v3819, 128
      %3864 = vxpose.xlu0.b32.cont [14/16] %v3820, 128
      %3865 = vxpose.xlu0.b32.cont [15/16] %v3821, 128
      %3866 = vxpose.xlu0.b32.end [16/16] %v3822, 128
      %v3867 = vpop.trf.xlu0
      %v3868 = vpop.trf.xlu0
      %v3869 = vpop.trf.xlu0
      %v3870 = vpop.trf.xlu0
      %v3871 = vpop.trf.xlu0
      %v3872 = vpop.trf.xlu0
      %v3873 = vpop.trf.xlu0
      %v3874 = vpop.trf.xlu0
      %v3875 = vpop.trf.xlu0
      %v3876 = vpop.trf.xlu0
      %v3877 = vpop.trf.xlu0
      %v3878 = vpop.trf.xlu0
      %v3879 = vpop.trf.xlu0
      %v3880 = vpop.trf.xlu0
      %v3881 = vpop.trf.xlu0
      %v3882 = vpop.trf.xlu0
      %3883 = vxpose.xlu0.b32.start [1/16] %v3823, 128
      %3884 = vxpose.xlu0.b32.cont [2/16] %v3824, 128
      %3885 = vxpose.xlu0.b32.cont [3/16] %v3825, 128
      %3886 = vxpose.xlu0.b32.cont [4/16] %v3826, 128
      %3887 = vxpose.xlu0.b32.cont [5/16] %v3827, 128
      %3888 = vxpose.xlu0.b32.cont [6/16] %v3828, 128
      %3889 = vxpose.xlu0.b32.cont [7/16] %v3829, 128
      %3890 = vxpose.xlu0.b32.cont [8/16] %v3830, 128
      %3891 = vxpose.xlu0.b32.cont [9/16] %v3831, 128
      %3892 = vxpose.xlu0.b32.cont [10/16] %v3832, 128
      %3893 = vxpose.xlu0.b32.cont [11/16] %v3833, 128
      %3894 = vxpose.xlu0.b32.cont [12/16] %v3834, 128
      %3895 = vxpose.xlu0.b32.cont [13/16] %v3835, 128
      %3896 = vxpose.xlu0.b32.cont [14/16] %v3836, 128
      %3897 = vxpose.xlu0.b32.cont [15/16] %v3837, 128
      %3898 = vxpose.xlu0.b32.end [16/16] %v3838, 128
      %v3899 = vpop.trf.xlu0
      %v3900 = vpop.trf.xlu0
      %v3901 = vpop.trf.xlu0
      %v3902 = vpop.trf.xlu0
      %v3903 = vpop.trf.xlu0
      %v3904 = vpop.trf.xlu0
      %v3905 = vpop.trf.xlu0
      %v3906 = vpop.trf.xlu0
      %v3907 = vpop.trf.xlu0
      %v3908 = vpop.trf.xlu0
      %v3909 = vpop.trf.xlu0
      %v3910 = vpop.trf.xlu0
      %v3911 = vpop.trf.xlu0
      %v3912 = vpop.trf.xlu0
      %v3913 = vpop.trf.xlu0
      %v3914 = vpop.trf.xlu0
      %3915 = vxpose.xlu0.b32.start [1/16] %v3839, 128
      %3916 = vxpose.xlu0.b32.cont [2/16] %v3840, 128
      %3917 = vxpose.xlu0.b32.cont [3/16] %v3841, 128
      %3918 = vxpose.xlu0.b32.cont [4/16] %v3842, 128
      %3919 = vxpose.xlu0.b32.cont [5/16] %v3843, 128
      %3920 = vxpose.xlu0.b32.cont [6/16] %v3844, 128
      %3921 = vxpose.xlu0.b32.cont [7/16] %v3845, 128
      %3922 = vxpose.xlu0.b32.cont [8/16] %v3846, 128
      %3923 = vxpose.xlu0.b32.cont [9/16] %v3847, 128
      %3924 = vxpose.xlu0.b32.cont [10/16] %v3848, 128
      %3925 = vxpose.xlu0.b32.cont [11/16] %v3849, 128
      %3926 = vxpose.xlu0.b32.cont [12/16] %v3850, 128
      %3927 = vxpose.xlu0.b32.cont [13/16] 0.0, 128
      %3928 = vxpose.xlu0.b32.cont [14/16] 0.0, 128
      %3929 = vxpose.xlu0.b32.cont [15/16] 0.0, 128
      %3930 = vxpose.xlu0.b32.end [16/16] 0.0, 128
      %v3931 = vpop.trf.xlu0
      %v3932 = vpop.trf.xlu0
      %v3933 = vpop.trf.xlu0
      %v3934 = vpop.trf.xlu0
      %v3935 = vpop.trf.xlu0
      %v3936 = vpop.trf.xlu0
      %v3937 = vpop.trf.xlu0
      %v3938 = vpop.trf.xlu0
      %v3939 = vpop.trf.xlu0
      %v3940 = vpop.trf.xlu0
      %v3941 = vpop.trf.xlu0
      %v3942 = vpop.trf.xlu0
      %v3943 = vpop.trf.xlu0
      %v3944 = vpop.trf.xlu0
      %v3945 = vpop.trf.xlu0
      %v3946 = vpop.trf.xlu0
      %3947 = vst [vmem:[#allocation3 + $0x40] sm:$0xff] %v3867
      %3948 = vst [vmem:[#allocation3 + $0x48] sm:$0xff] %v3899
      %3949 = vst [vmem:[#allocation3 + $0x50] sm:$0xff] %v3868
      %3950 = vst [vmem:[#allocation3 + $0x58] sm:$0xff] %v3900
      %3957 = vrot.lane.b32.xlu0 %v3867, 112
      %v3958 = vpop.permute.xlu0 %3957
      %3959 = vrot.lane.b32.xlu0 %v3899, 112
      %v3960 = vpop.permute.xlu0 %3959
      %3961 = vrot.lane.b32.xlu0 %v3931, 112
      %v3962 = vpop.permute.xlu0 %3961
      %3963 = vrot.lane.b32.xlu0 %v3868, 112
      %v3964 = vpop.permute.xlu0 %3963
      %3965 = vrot.lane.b32.xlu0 %v3900, 112
      %v3966 = vpop.permute.xlu0 %3965
      %3967 = vrot.lane.b32.xlu0 %v3932, 112
      %v3968 = vpop.permute.xlu0 %3967
      %v3969 = vsel %vm589, %v3958, %v3960
      %v3970 = vsel %vm589, %v3960, %v3962
      %v3971 = vsel %vm589, %v3964, %v3966
      %v3972 = vsel %vm589, %v3966, %v3968
      %3977 = vst [vmem:[#allocation3 + $0x120] sm:$0xff] %v3969
      %3978 = vst [vmem:[#allocation3 + $0x128] sm:$0xff] %v3970
      %3979 = vst [vmem:[#allocation3 + $0x130] sm:$0xff] %v3971
      %3980 = vst [vmem:[#allocation3 + $0x138] sm:$0xff] %v3972
      %3981 = vrot.lane.b32.xlu0 %v3867, 96
      %v3982 = vpop.permute.xlu0 %3981
      %3983 = vrot.lane.b32.xlu0 %v3899, 96
      %v3984 = vpop.permute.xlu0 %3983
      %3985 = vrot.lane.b32.xlu0 %v3931, 96
      %v3986 = vpop.permute.xlu0 %3985
      %3987 = vrot.lane.b32.xlu0 %v3868, 96
      %v3988 = vpop.permute.xlu0 %3987
      %3989 = vrot.lane.b32.xlu0 %v3900, 96
      %v3990 = vpop.permute.xlu0 %3989
      %3991 = vrot.lane.b32.xlu0 %v3932, 96
      %v3992 = vpop.permute.xlu0 %3991
      %v3993 = vsel %vm614, %v3982, %v3984
      %v3994 = vsel %vm614, %v3984, %v3986
      %v3995 = vsel %vm614, %v3988, %v3990
      %v3996 = vsel %vm614, %v3990, %v3992
      %4001 = vst [vmem:[#allocation3 + $0x200] sm:$0xff] %v3993
      %4002 = vst [vmem:[#allocation3 + $0x208] sm:$0xff] %v3994
      %4003 = vst [vmem:[#allocation3 + $0x210] sm:$0xff] %v3995
      %4004 = vst [vmem:[#allocation3 + $0x218] sm:$0xff] %v3996
      %4005 = vrot.lane.b32.xlu0 %v3867, 80
      %v4006 = vpop.permute.xlu0 %4005
      %4007 = vrot.lane.b32.xlu0 %v3899, 80
      %v4008 = vpop.permute.xlu0 %4007
      %4009 = vrot.lane.b32.xlu0 %v3931, 80
      %v4010 = vpop.permute.xlu0 %4009
      %4011 = vrot.lane.b32.xlu0 %v3868, 80
      %v4012 = vpop.permute.xlu0 %4011
      %4013 = vrot.lane.b32.xlu0 %v3900, 80
      %v4014 = vpop.permute.xlu0 %4013
      %4015 = vrot.lane.b32.xlu0 %v3932, 80
      %v4016 = vpop.permute.xlu0 %4015
      %v4017 = vsel %vm639, %v4006, %v4008
      %v4018 = vsel %vm639, %v4008, %v4010
      %v4019 = vsel %vm639, %v4012, %v4014
      %v4020 = vsel %vm639, %v4014, %v4016
      %4025 = vst [vmem:[#allocation3 + $0x2e0] sm:$0xff] %v4017
      %4026 = vst [vmem:[#allocation3 + $0x2e8] sm:$0xff] %v4018
      %4027 = vst [vmem:[#allocation3 + $0x2f0] sm:$0xff] %v4019
      %4028 = vst [vmem:[#allocation3 + $0x2f8] sm:$0xff] %v4020
      %4029 = vrot.lane.b32.xlu0 %v3867, 64
      %v4030 = vpop.permute.xlu0 %4029
      %4031 = vrot.lane.b32.xlu0 %v3899, 64
      %v4032 = vpop.permute.xlu0 %4031
      %4033 = vrot.lane.b32.xlu0 %v3931, 64
      %v4034 = vpop.permute.xlu0 %4033
      %4035 = vrot.lane.b32.xlu0 %v3868, 64
      %v4036 = vpop.permute.xlu0 %4035
      %4037 = vrot.lane.b32.xlu0 %v3900, 64
      %v4038 = vpop.permute.xlu0 %4037
      %4039 = vrot.lane.b32.xlu0 %v3932, 64
      %v4040 = vpop.permute.xlu0 %4039
      %v4041 = vsel %vm664, %v4030, %v4032
      %v4042 = vsel %vm664, %v4032, %v4034
      %v4043 = vsel %vm664, %v4036, %v4038
      %v4044 = vsel %vm664, %v4038, %v4040
      %4049 = vst [vmem:[#allocation3 + $0x3c0] sm:$0xff] %v4041
      %4050 = vst [vmem:[#allocation3 + $0x3c8] sm:$0xff] %v4042
      %4051 = vst [vmem:[#allocation3 + $0x3d0] sm:$0xff] %v4043
      %4052 = vst [vmem:[#allocation3 + $0x3d8] sm:$0xff] %v4044
      %4053 = vrot.lane.b32.xlu0 %v3867, 48
      %v4054 = vpop.permute.xlu0 %4053
      %4055 = vrot.lane.b32.xlu0 %v3899, 48
      %v4056 = vpop.permute.xlu0 %4055
      %4057 = vrot.lane.b32.xlu0 %v3931, 48
      %v4058 = vpop.permute.xlu0 %4057
      %4059 = vrot.lane.b32.xlu0 %v3868, 48
      %v4060 = vpop.permute.xlu0 %4059
      %4061 = vrot.lane.b32.xlu0 %v3900, 48
      %v4062 = vpop.permute.xlu0 %4061
      %4063 = vrot.lane.b32.xlu0 %v3932, 48
      %v4064 = vpop.permute.xlu0 %4063
      %v4065 = vsel %vm689, %v4054, %v4056
      %v4066 = vsel %vm689, %v4056, %v4058
      %v4067 = vsel %vm689, %v4060, %v4062
      %v4068 = vsel %vm689, %v4062, %v4064
      %4073 = vst [vmem:[#allocation3 + $0x4a0] sm:$0xff] %v4065
      %4074 = vst [vmem:[#allocation3 + $0x4a8] sm:$0xff] %v4066
      %4075 = vst [vmem:[#allocation3 + $0x4b0] sm:$0xff] %v4067
      %4076 = vst [vmem:[#allocation3 + $0x4b8] sm:$0xff] %v4068
      %4077 = vrot.lane.b32.xlu0 %v3867, 32
      %v4078 = vpop.permute.xlu0 %4077
      %4079 = vrot.lane.b32.xlu0 %v3899, 32
      %v4080 = vpop.permute.xlu0 %4079
      %4081 = vrot.lane.b32.xlu0 %v3931, 32
      %v4082 = vpop.permute.xlu0 %4081
      %4083 = vrot.lane.b32.xlu0 %v3868, 32
      %v4084 = vpop.permute.xlu0 %4083
      %4085 = vrot.lane.b32.xlu0 %v3900, 32
      %v4086 = vpop.permute.xlu0 %4085
      %4087 = vrot.lane.b32.xlu0 %v3932, 32
      %v4088 = vpop.permute.xlu0 %4087
      %v4089 = vsel %vm714, %v4078, %v4080
      %v4090 = vsel %vm714, %v4080, %v4082
      %v4091 = vsel %vm714, %v4084, %v4086
      %v4092 = vsel %vm714, %v4086, %v4088
      %4097 = vst [vmem:[#allocation3 + $0x580] sm:$0xff] %v4089
      %4098 = vst [vmem:[#allocation3 + $0x588] sm:$0xff] %v4090
      %4099 = vst [vmem:[#allocation3 + $0x590] sm:$0xff] %v4091
      %4100 = vst [vmem:[#allocation3 + $0x598] sm:$0xff] %v4092
      %v4101 = vld [vmem:[#allocation2 + $0x3] sm:$0xff]
      %v4102 = vld [vmem:[#allocation2 + $0xb] sm:$0xff]
      %v4103 = vld [vmem:[#allocation2 + $0x1b] sm:$0xff]
      %v4104 = vld [vmem:[#allocation2 + $0x23] sm:$0xff]
      %v4105 = vld [vmem:[#allocation2 + $0x33] sm:$0xff]
      %v4106 = vld [vmem:[#allocation2 + $0x3b] sm:$0xff]
      %v4107 = vld [vmem:[#allocation2 + $0x4b] sm:$0xff]
      %v4108 = vld [vmem:[#allocation2 + $0x53] sm:$0xff]
      %v4109 = vld [vmem:[#allocation2 + $0x63] sm:$0xff]
      %v4110 = vld [vmem:[#allocation2 + $0x6b] sm:$0xff]
      %v4111 = vld [vmem:[#allocation2 + $0x7b] sm:$0xff]
      %v4112 = vld [vmem:[#allocation2 + $0x83] sm:$0xff]
      %v4113 = vld [vmem:[#allocation2 + $0x93] sm:$0xff]
      %v4114 = vld [vmem:[#allocation2 + $0x9b] sm:$0xff]
      %v4115 = vld [vmem:[#allocation2 + $0xab] sm:$0xff]
      %v4116 = vld [vmem:[#allocation2 + $0xb3] sm:$0xff]
      %v4117 = vld [vmem:[#allocation2 + $0xc3] sm:$0xff]
      %v4118 = vld [vmem:[#allocation2 + $0xcb] sm:$0xff]
      %v4119 = vld [vmem:[#allocation2 + $0xdb] sm:$0xff]
      %v4120 = vld [vmem:[#allocation2 + $0xe3] sm:$0xff]
      %v4121 = vld [vmem:[#allocation2 + $0xf3] sm:$0xff]
      %v4122 = vld [vmem:[#allocation2 + $0xfb] sm:$0xff]
      %v4123 = vld [vmem:[#allocation2 + $0x10b] sm:$0xff]
      %v4124 = vld [vmem:[#allocation2 + $0x113] sm:$0xff]
      %v4125 = vld [vmem:[#allocation2 + $0x123] sm:$0xff]
      %v4126 = vld [vmem:[#allocation2 + $0x12b] sm:$0xff]
      %v4127 = vld [vmem:[#allocation2 + $0x13b] sm:$0xff]
      %v4128 = vld [vmem:[#allocation2 + $0x143] sm:$0xff]
      %v4129 = vld [vmem:[#allocation2 + $0x153] sm:$0xff]
      %v4130 = vld [vmem:[#allocation2 + $0x15b] sm:$0xff]
      %v4131 = vld [vmem:[#allocation2 + $0x16b] sm:$0xff]
      %v4132 = vld [vmem:[#allocation2 + $0x173] sm:$0xff]
      %v4133 = vld [vmem:[#allocation2 + $0x183] sm:$0xff]
      %v4134 = vld [vmem:[#allocation2 + $0x18b] sm:$0xff]
      %v4135 = vld [vmem:[#allocation2 + $0x19b] sm:$0xff]
      %v4136 = vld [vmem:[#allocation2 + $0x1a3] sm:$0xff]
      %v4137 = vld [vmem:[#allocation2 + $0x1b3] sm:$0xff]
      %v4138 = vld [vmem:[#allocation2 + $0x1bb] sm:$0xff]
      %v4139 = vld [vmem:[#allocation2 + $0x1cb] sm:$0xff]
      %v4140 = vld [vmem:[#allocation2 + $0x1d3] sm:$0xff]
      %v4141 = vld [vmem:[#allocation2 + $0x1e3] sm:$0xff]
      %v4142 = vld [vmem:[#allocation2 + $0x1eb] sm:$0xff]
      %v4143 = vld [vmem:[#allocation2 + $0x1fb] sm:$0xff]
      %v4144 = vld [vmem:[#allocation2 + $0x203] sm:$0xff]
      %4145 = vxpose.xlu0.b32.start [1/16] %v4101, 128
      %4146 = vxpose.xlu0.b32.cont [2/16] %v4102, 128
      %4147 = vxpose.xlu0.b32.cont [3/16] %v4103, 128
      %4148 = vxpose.xlu0.b32.cont [4/16] %v4104, 128
      %4149 = vxpose.xlu0.b32.cont [5/16] %v4105, 128
      %4150 = vxpose.xlu0.b32.cont [6/16] %v4106, 128
      %4151 = vxpose.xlu0.b32.cont [7/16] %v4107, 128
      %4152 = vxpose.xlu0.b32.cont [8/16] %v4108, 128
      %4153 = vxpose.xlu0.b32.cont [9/16] %v4109, 128
      %4154 = vxpose.xlu0.b32.cont [10/16] %v4110, 128
      %4155 = vxpose.xlu0.b32.cont [11/16] %v4111, 128
      %4156 = vxpose.xlu0.b32.cont [12/16] %v4112, 128
      %4157 = vxpose.xlu0.b32.cont [13/16] %v4113, 128
      %4158 = vxpose.xlu0.b32.cont [14/16] %v4114, 128
      %4159 = vxpose.xlu0.b32.cont [15/16] %v4115, 128
      %4160 = vxpose.xlu0.b32.end [16/16] %v4116, 128
      %v4161 = vpop.trf.xlu0
      %v4162 = vpop.trf.xlu0
      %v4163 = vpop.trf.xlu0
      %v4164 = vpop.trf.xlu0
      %v4165 = vpop.trf.xlu0
      %v4166 = vpop.trf.xlu0
      %v4167 = vpop.trf.xlu0
      %v4168 = vpop.trf.xlu0
      %v4169 = vpop.trf.xlu0
      %v4170 = vpop.trf.xlu0
      %v4171 = vpop.trf.xlu0
      %v4172 = vpop.trf.xlu0
      %v4173 = vpop.trf.xlu0
      %v4174 = vpop.trf.xlu0
      %v4175 = vpop.trf.xlu0
      %v4176 = vpop.trf.xlu0
      %4177 = vxpose.xlu0.b32.start [1/16] %v4117, 128
      %4178 = vxpose.xlu0.b32.cont [2/16] %v4118, 128
      %4179 = vxpose.xlu0.b32.cont [3/16] %v4119, 128
      %4180 = vxpose.xlu0.b32.cont [4/16] %v4120, 128
      %4181 = vxpose.xlu0.b32.cont [5/16] %v4121, 128
      %4182 = vxpose.xlu0.b32.cont [6/16] %v4122, 128
      %4183 = vxpose.xlu0.b32.cont [7/16] %v4123, 128
      %4184 = vxpose.xlu0.b32.cont [8/16] %v4124, 128
      %4185 = vxpose.xlu0.b32.cont [9/16] %v4125, 128
      %4186 = vxpose.xlu0.b32.cont [10/16] %v4126, 128
      %4187 = vxpose.xlu0.b32.cont [11/16] %v4127, 128
      %4188 = vxpose.xlu0.b32.cont [12/16] %v4128, 128
      %4189 = vxpose.xlu0.b32.cont [13/16] %v4129, 128
      %4190 = vxpose.xlu0.b32.cont [14/16] %v4130, 128
      %4191 = vxpose.xlu0.b32.cont [15/16] %v4131, 128
      %4192 = vxpose.xlu0.b32.end [16/16] %v4132, 128
      %v4193 = vpop.trf.xlu0
      %v4194 = vpop.trf.xlu0
      %v4195 = vpop.trf.xlu0
      %v4196 = vpop.trf.xlu0
      %v4197 = vpop.trf.xlu0
      %v4198 = vpop.trf.xlu0
      %v4199 = vpop.trf.xlu0
      %v4200 = vpop.trf.xlu0
      %v4201 = vpop.trf.xlu0
      %v4202 = vpop.trf.xlu0
      %v4203 = vpop.trf.xlu0
      %v4204 = vpop.trf.xlu0
      %v4205 = vpop.trf.xlu0
      %v4206 = vpop.trf.xlu0
      %v4207 = vpop.trf.xlu0
      %v4208 = vpop.trf.xlu0
      %4209 = vxpose.xlu0.b32.start [1/16] %v4133, 128
      %4210 = vxpose.xlu0.b32.cont [2/16] %v4134, 128
      %4211 = vxpose.xlu0.b32.cont [3/16] %v4135, 128
      %4212 = vxpose.xlu0.b32.cont [4/16] %v4136, 128
      %4213 = vxpose.xlu0.b32.cont [5/16] %v4137, 128
      %4214 = vxpose.xlu0.b32.cont [6/16] %v4138, 128
      %4215 = vxpose.xlu0.b32.cont [7/16] %v4139, 128
      %4216 = vxpose.xlu0.b32.cont [8/16] %v4140, 128
      %4217 = vxpose.xlu0.b32.cont [9/16] %v4141, 128
      %4218 = vxpose.xlu0.b32.cont [10/16] %v4142, 128
      %4219 = vxpose.xlu0.b32.cont [11/16] %v4143, 128
      %4220 = vxpose.xlu0.b32.cont [12/16] %v4144, 128
      %4221 = vxpose.xlu0.b32.cont [13/16] 0.0, 128
      %4222 = vxpose.xlu0.b32.cont [14/16] 0.0, 128
      %4223 = vxpose.xlu0.b32.cont [15/16] 0.0, 128
      %4224 = vxpose.xlu0.b32.end [16/16] 0.0, 128
      %v4225 = vpop.trf.xlu0
      %v4226 = vpop.trf.xlu0
      %v4227 = vpop.trf.xlu0
      %v4228 = vpop.trf.xlu0
      %v4229 = vpop.trf.xlu0
      %v4230 = vpop.trf.xlu0
      %v4231 = vpop.trf.xlu0
      %v4232 = vpop.trf.xlu0
      %v4233 = vpop.trf.xlu0
      %v4234 = vpop.trf.xlu0
      %v4235 = vpop.trf.xlu0
      %v4236 = vpop.trf.xlu0
      %v4237 = vpop.trf.xlu0
      %v4238 = vpop.trf.xlu0
      %v4239 = vpop.trf.xlu0
      %v4240 = vpop.trf.xlu0
      %4241 = vst [vmem:[#allocation3 + $0x60] sm:$0xff] %v4161
      %4242 = vst [vmem:[#allocation3 + $0x68] sm:$0xff] %v4193
      %4243 = vst [vmem:[#allocation3 + $0x70] sm:$0xff] %v4162
      %4244 = vst [vmem:[#allocation3 + $0x78] sm:$0xff] %v4194
      %4251 = vrot.lane.b32.xlu0 %v4161, 112
      %v4252 = vpop.permute.xlu0 %4251
      %4253 = vrot.lane.b32.xlu0 %v4193, 112
      %v4254 = vpop.permute.xlu0 %4253
      %4255 = vrot.lane.b32.xlu0 %v4225, 112
      %v4256 = vpop.permute.xlu0 %4255
      %4257 = vrot.lane.b32.xlu0 %v4162, 112
      %v4258 = vpop.permute.xlu0 %4257
      %4259 = vrot.lane.b32.xlu0 %v4194, 112
      %v4260 = vpop.permute.xlu0 %4259
      %4261 = vrot.lane.b32.xlu0 %v4226, 112
      %v4262 = vpop.permute.xlu0 %4261
      %v4263 = vsel %vm589, %v4252, %v4254
      %v4264 = vsel %vm589, %v4254, %v4256
      %v4265 = vsel %vm589, %v4258, %v4260
      %v4266 = vsel %vm589, %v4260, %v4262
      %4271 = vst [vmem:[#allocation3 + $0x140] sm:$0xff] %v4263
      %4272 = vst [vmem:[#allocation3 + $0x148] sm:$0xff] %v4264
      %4273 = vst [vmem:[#allocation3 + $0x150] sm:$0xff] %v4265
      %4274 = vst [vmem:[#allocation3 + $0x158] sm:$0xff] %v4266
      %4275 = vrot.lane.b32.xlu0 %v4161, 96
      %v4276 = vpop.permute.xlu0 %4275
      %4277 = vrot.lane.b32.xlu0 %v4193, 96
      %v4278 = vpop.permute.xlu0 %4277
      %4279 = vrot.lane.b32.xlu0 %v4225, 96
      %v4280 = vpop.permute.xlu0 %4279
      %4281 = vrot.lane.b32.xlu0 %v4162, 96
      %v4282 = vpop.permute.xlu0 %4281
      %4283 = vrot.lane.b32.xlu0 %v4194, 96
      %v4284 = vpop.permute.xlu0 %4283
      %4285 = vrot.lane.b32.xlu0 %v4226, 96
      %v4286 = vpop.permute.xlu0 %4285
      %v4287 = vsel %vm614, %v4276, %v4278
      %v4288 = vsel %vm614, %v4278, %v4280
      %v4289 = vsel %vm614, %v4282, %v4284
      %v4290 = vsel %vm614, %v4284, %v4286
      %4295 = vst [vmem:[#allocation3 + $0x220] sm:$0xff] %v4287
      %4296 = vst [vmem:[#allocation3 + $0x228] sm:$0xff] %v4288
      %4297 = vst [vmem:[#allocation3 + $0x230] sm:$0xff] %v4289
      %4298 = vst [vmem:[#allocation3 + $0x238] sm:$0xff] %v4290
      %4299 = vrot.lane.b32.xlu0 %v4161, 80
      %v4300 = vpop.permute.xlu0 %4299
      %4301 = vrot.lane.b32.xlu0 %v4193, 80
      %v4302 = vpop.permute.xlu0 %4301
      %4303 = vrot.lane.b32.xlu0 %v4225, 80
      %v4304 = vpop.permute.xlu0 %4303
      %4305 = vrot.lane.b32.xlu0 %v4162, 80
      %v4306 = vpop.permute.xlu0 %4305
      %4307 = vrot.lane.b32.xlu0 %v4194, 80
      %v4308 = vpop.permute.xlu0 %4307
      %4309 = vrot.lane.b32.xlu0 %v4226, 80
      %v4310 = vpop.permute.xlu0 %4309
      %v4311 = vsel %vm639, %v4300, %v4302
      %v4312 = vsel %vm639, %v4302, %v4304
      %v4313 = vsel %vm639, %v4306, %v4308
      %v4314 = vsel %vm639, %v4308, %v4310
      %4319 = vst [vmem:[#allocation3 + $0x300] sm:$0xff] %v4311
      %4320 = vst [vmem:[#allocation3 + $0x308] sm:$0xff] %v4312
      %4321 = vst [vmem:[#allocation3 + $0x310] sm:$0xff] %v4313
      %4322 = vst [vmem:[#allocation3 + $0x318] sm:$0xff] %v4314
      %4323 = vrot.lane.b32.xlu0 %v4161, 64
      %v4324 = vpop.permute.xlu0 %4323
      %4325 = vrot.lane.b32.xlu0 %v4193, 64
      %v4326 = vpop.permute.xlu0 %4325
      %4327 = vrot.lane.b32.xlu0 %v4225, 64
      %v4328 = vpop.permute.xlu0 %4327
      %4329 = vrot.lane.b32.xlu0 %v4162, 64
      %v4330 = vpop.permute.xlu0 %4329
      %4331 = vrot.lane.b32.xlu0 %v4194, 64
      %v4332 = vpop.permute.xlu0 %4331
      %4333 = vrot.lane.b32.xlu0 %v4226, 64
      %v4334 = vpop.permute.xlu0 %4333
      %v4335 = vsel %vm664, %v4324, %v4326
      %v4336 = vsel %vm664, %v4326, %v4328
      %v4337 = vsel %vm664, %v4330, %v4332
      %v4338 = vsel %vm664, %v4332, %v4334
      %4343 = vst [vmem:[#allocation3 + $0x3e0] sm:$0xff] %v4335
      %4344 = vst [vmem:[#allocation3 + $0x3e8] sm:$0xff] %v4336
      %4345 = vst [vmem:[#allocation3 + $0x3f0] sm:$0xff] %v4337
      %4346 = vst [vmem:[#allocation3 + $0x3f8] sm:$0xff] %v4338
      %4347 = vrot.lane.b32.xlu0 %v4161, 48
      %v4348 = vpop.permute.xlu0 %4347
      %4349 = vrot.lane.b32.xlu0 %v4193, 48
      %v4350 = vpop.permute.xlu0 %4349
      %4351 = vrot.lane.b32.xlu0 %v4225, 48
      %v4352 = vpop.permute.xlu0 %4351
      %4353 = vrot.lane.b32.xlu0 %v4162, 48
      %v4354 = vpop.permute.xlu0 %4353
      %4355 = vrot.lane.b32.xlu0 %v4194, 48
      %v4356 = vpop.permute.xlu0 %4355
      %4357 = vrot.lane.b32.xlu0 %v4226, 48
      %v4358 = vpop.permute.xlu0 %4357
      %v4359 = vsel %vm689, %v4348, %v4350
      %v4360 = vsel %vm689, %v4350, %v4352
      %v4361 = vsel %vm689, %v4354, %v4356
      %v4362 = vsel %vm689, %v4356, %v4358
      %4367 = vst [vmem:[#allocation3 + $0x4c0] sm:$0xff] %v4359
      %4368 = vst [vmem:[#allocation3 + $0x4c8] sm:$0xff] %v4360
      %4369 = vst [vmem:[#allocation3 + $0x4d0] sm:$0xff] %v4361
      %4370 = vst [vmem:[#allocation3 + $0x4d8] sm:$0xff] %v4362
      %4371 = vrot.lane.b32.xlu0 %v4161, 32
      %v4372 = vpop.permute.xlu0 %4371
      %4373 = vrot.lane.b32.xlu0 %v4193, 32
      %v4374 = vpop.permute.xlu0 %4373
      %4375 = vrot.lane.b32.xlu0 %v4225, 32
      %v4376 = vpop.permute.xlu0 %4375
      %4377 = vrot.lane.b32.xlu0 %v4162, 32
      %v4378 = vpop.permute.xlu0 %4377
      %4379 = vrot.lane.b32.xlu0 %v4194, 32
      %v4380 = vpop.permute.xlu0 %4379
      %4381 = vrot.lane.b32.xlu0 %v4226, 32
      %v4382 = vpop.permute.xlu0 %4381
      %v4383 = vsel %vm714, %v4372, %v4374
      %v4384 = vsel %vm714, %v4374, %v4376
      %v4385 = vsel %vm714, %v4378, %v4380
      %v4386 = vsel %vm714, %v4380, %v4382
      %4391 = vst [vmem:[#allocation3 + $0x5a0] sm:$0xff] %v4383
      %4392 = vst [vmem:[#allocation3 + $0x5a8] sm:$0xff] %v4384
      %4393 = vst [vmem:[#allocation3 + $0x5b0] sm:$0xff] %v4385
      %4394 = vst [vmem:[#allocation3 + $0x5b8] sm:$0xff] %v4386
      %v4395 = vld [vmem:[#allocation2 + $0x4] sm:$0xff]
      %v4396 = vld [vmem:[#allocation2 + $0xc] sm:$0xff]
      %v4397 = vld [vmem:[#allocation2 + $0x1c] sm:$0xff]
      %v4398 = vld [vmem:[#allocation2 + $0x24] sm:$0xff]
      %v4399 = vld [vmem:[#allocation2 + $0x34] sm:$0xff]
      %v4400 = vld [vmem:[#allocation2 + $0x3c] sm:$0xff]
      %v4401 = vld [vmem:[#allocation2 + $0x4c] sm:$0xff]
      %v4402 = vld [vmem:[#allocation2 + $0x54] sm:$0xff]
      %v4403 = vld [vmem:[#allocation2 + $0x64] sm:$0xff]
      %v4404 = vld [vmem:[#allocation2 + $0x6c] sm:$0xff]
      %v4405 = vld [vmem:[#allocation2 + $0x7c] sm:$0xff]
      %v4406 = vld [vmem:[#allocation2 + $0x84] sm:$0xff]
      %v4407 = vld [vmem:[#allocation2 + $0x94] sm:$0xff]
      %v4408 = vld [vmem:[#allocation2 + $0x9c] sm:$0xff]
      %v4409 = vld [vmem:[#allocation2 + $0xac] sm:$0xff]
      %v4410 = vld [vmem:[#allocation2 + $0xb4] sm:$0xff]
      %v4411 = vld [vmem:[#allocation2 + $0xc4] sm:$0xff]
      %v4412 = vld [vmem:[#allocation2 + $0xcc] sm:$0xff]
      %v4413 = vld [vmem:[#allocation2 + $0xdc] sm:$0xff]
      %v4414 = vld [vmem:[#allocation2 + $0xe4] sm:$0xff]
      %v4415 = vld [vmem:[#allocation2 + $0xf4] sm:$0xff]
      %v4416 = vld [vmem:[#allocation2 + $0xfc] sm:$0xff]
      %v4417 = vld [vmem:[#allocation2 + $0x10c] sm:$0xff]
      %v4418 = vld [vmem:[#allocation2 + $0x114] sm:$0xff]
      %v4419 = vld [vmem:[#allocation2 + $0x124] sm:$0xff]
      %v4420 = vld [vmem:[#allocation2 + $0x12c] sm:$0xff]
      %v4421 = vld [vmem:[#allocation2 + $0x13c] sm:$0xff]
      %v4422 = vld [vmem:[#allocation2 + $0x144] sm:$0xff]
      %v4423 = vld [vmem:[#allocation2 + $0x154] sm:$0xff]
      %v4424 = vld [vmem:[#allocation2 + $0x15c] sm:$0xff]
      %v4425 = vld [vmem:[#allocation2 + $0x16c] sm:$0xff]
      %v4426 = vld [vmem:[#allocation2 + $0x174] sm:$0xff]
      %v4427 = vld [vmem:[#allocation2 + $0x184] sm:$0xff]
      %v4428 = vld [vmem:[#allocation2 + $0x18c] sm:$0xff]
      %v4429 = vld [vmem:[#allocation2 + $0x19c] sm:$0xff]
      %v4430 = vld [vmem:[#allocation2 + $0x1a4] sm:$0xff]
      %v4431 = vld [vmem:[#allocation2 + $0x1b4] sm:$0xff]
      %v4432 = vld [vmem:[#allocation2 + $0x1bc] sm:$0xff]
      %v4433 = vld [vmem:[#allocation2 + $0x1cc] sm:$0xff]
      %v4434 = vld [vmem:[#allocation2 + $0x1d4] sm:$0xff]
      %v4435 = vld [vmem:[#allocation2 + $0x1e4] sm:$0xff]
      %v4436 = vld [vmem:[#allocation2 + $0x1ec] sm:$0xff]
      %v4437 = vld [vmem:[#allocation2 + $0x1fc] sm:$0xff]
      %v4438 = vld [vmem:[#allocation2 + $0x204] sm:$0xff]
      %4439 = vxpose.xlu0.b32.start [1/16] %v4395, 128
      %4440 = vxpose.xlu0.b32.cont [2/16] %v4396, 128
      %4441 = vxpose.xlu0.b32.cont [3/16] %v4397, 128
      %4442 = vxpose.xlu0.b32.cont [4/16] %v4398, 128
      %4443 = vxpose.xlu0.b32.cont [5/16] %v4399, 128
      %4444 = vxpose.xlu0.b32.cont [6/16] %v4400, 128
      %4445 = vxpose.xlu0.b32.cont [7/16] %v4401, 128
      %4446 = vxpose.xlu0.b32.cont [8/16] %v4402, 128
      %4447 = vxpose.xlu0.b32.cont [9/16] %v4403, 128
      %4448 = vxpose.xlu0.b32.cont [10/16] %v4404, 128
      %4449 = vxpose.xlu0.b32.cont [11/16] %v4405, 128
      %4450 = vxpose.xlu0.b32.cont [12/16] %v4406, 128
      %4451 = vxpose.xlu0.b32.cont [13/16] %v4407, 128
      %4452 = vxpose.xlu0.b32.cont [14/16] %v4408, 128
      %4453 = vxpose.xlu0.b32.cont [15/16] %v4409, 128
      %4454 = vxpose.xlu0.b32.end [16/16] %v4410, 128
      %v4455 = vpop.trf.xlu0
      %v4456 = vpop.trf.xlu0
      %v4457 = vpop.trf.xlu0
      %v4458 = vpop.trf.xlu0
      %v4459 = vpop.trf.xlu0
      %v4460 = vpop.trf.xlu0
      %v4461 = vpop.trf.xlu0
      %v4462 = vpop.trf.xlu0
      %v4463 = vpop.trf.xlu0
      %v4464 = vpop.trf.xlu0
      %v4465 = vpop.trf.xlu0
      %v4466 = vpop.trf.xlu0
      %v4467 = vpop.trf.xlu0
      %v4468 = vpop.trf.xlu0
      %v4469 = vpop.trf.xlu0
      %v4470 = vpop.trf.xlu0
      %4471 = vxpose.xlu0.b32.start [1/16] %v4411, 128
      %4472 = vxpose.xlu0.b32.cont [2/16] %v4412, 128
      %4473 = vxpose.xlu0.b32.cont [3/16] %v4413, 128
      %4474 = vxpose.xlu0.b32.cont [4/16] %v4414, 128
      %4475 = vxpose.xlu0.b32.cont [5/16] %v4415, 128
      %4476 = vxpose.xlu0.b32.cont [6/16] %v4416, 128
      %4477 = vxpose.xlu0.b32.cont [7/16] %v4417, 128
      %4478 = vxpose.xlu0.b32.cont [8/16] %v4418, 128
      %4479 = vxpose.xlu0.b32.cont [9/16] %v4419, 128
      %4480 = vxpose.xlu0.b32.cont [10/16] %v4420, 128
      %4481 = vxpose.xlu0.b32.cont [11/16] %v4421, 128
      %4482 = vxpose.xlu0.b32.cont [12/16] %v4422, 128
      %4483 = vxpose.xlu0.b32.cont [13/16] %v4423, 128
      %4484 = vxpose.xlu0.b32.cont [14/16] %v4424, 128
      %4485 = vxpose.xlu0.b32.cont [15/16] %v4425, 128
      %4486 = vxpose.xlu0.b32.end [16/16] %v4426, 128
      %v4487 = vpop.trf.xlu0
      %v4488 = vpop.trf.xlu0
      %v4489 = vpop.trf.xlu0
      %v4490 = vpop.trf.xlu0
      %v4491 = vpop.trf.xlu0
      %v4492 = vpop.trf.xlu0
      %v4493 = vpop.trf.xlu0
      %v4494 = vpop.trf.xlu0
      %v4495 = vpop.trf.xlu0
      %v4496 = vpop.trf.xlu0
      %v4497 = vpop.trf.xlu0
      %v4498 = vpop.trf.xlu0
      %v4499 = vpop.trf.xlu0
      %v4500 = vpop.trf.xlu0
      %v4501 = vpop.trf.xlu0
      %v4502 = vpop.trf.xlu0
      %4503 = vxpose.xlu0.b32.start [1/16] %v4427, 128
      %4504 = vxpose.xlu0.b32.cont [2/16] %v4428, 128
      %4505 = vxpose.xlu0.b32.cont [3/16] %v4429, 128
      %4506 = vxpose.xlu0.b32.cont [4/16] %v4430, 128
      %4507 = vxpose.xlu0.b32.cont [5/16] %v4431, 128
      %4508 = vxpose.xlu0.b32.cont [6/16] %v4432, 128
      %4509 = vxpose.xlu0.b32.cont [7/16] %v4433, 128
      %4510 = vxpose.xlu0.b32.cont [8/16] %v4434, 128
      %4511 = vxpose.xlu0.b32.cont [9/16] %v4435, 128
      %4512 = vxpose.xlu0.b32.cont [10/16] %v4436, 128
      %4513 = vxpose.xlu0.b32.cont [11/16] %v4437, 128
      %4514 = vxpose.xlu0.b32.cont [12/16] %v4438, 128
      %4515 = vxpose.xlu0.b32.cont [13/16] 0.0, 128
      %4516 = vxpose.xlu0.b32.cont [14/16] 0.0, 128
      %4517 = vxpose.xlu0.b32.cont [15/16] 0.0, 128
      %4518 = vxpose.xlu0.b32.end [16/16] 0.0, 128
      %v4519 = vpop.trf.xlu0
      %v4520 = vpop.trf.xlu0
      %v4521 = vpop.trf.xlu0
      %v4522 = vpop.trf.xlu0
      %v4523 = vpop.trf.xlu0
      %v4524 = vpop.trf.xlu0
      %v4525 = vpop.trf.xlu0
      %v4526 = vpop.trf.xlu0
      %v4527 = vpop.trf.xlu0
      %v4528 = vpop.trf.xlu0
      %v4529 = vpop.trf.xlu0
      %v4530 = vpop.trf.xlu0
      %v4531 = vpop.trf.xlu0
      %v4532 = vpop.trf.xlu0
      %v4533 = vpop.trf.xlu0
      %v4534 = vpop.trf.xlu0
      %4535 = vst [vmem:[#allocation3 + $0x80] sm:$0xff] %v4455
      %4536 = vst [vmem:[#allocation3 + $0x88] sm:$0xff] %v4487
      %4537 = vst [vmem:[#allocation3 + $0x90] sm:$0xff] %v4456
      %4538 = vst [vmem:[#allocation3 + $0x98] sm:$0xff] %v4488
      %4545 = vrot.lane.b32.xlu0 %v4455, 112
      %v4546 = vpop.permute.xlu0 %4545
      %4547 = vrot.lane.b32.xlu0 %v4487, 112
      %v4548 = vpop.permute.xlu0 %4547
      %4549 = vrot.lane.b32.xlu0 %v4519, 112
      %v4550 = vpop.permute.xlu0 %4549
      %4551 = vrot.lane.b32.xlu0 %v4456, 112
      %v4552 = vpop.permute.xlu0 %4551
      %4553 = vrot.lane.b32.xlu0 %v4488, 112
      %v4554 = vpop.permute.xlu0 %4553
      %4555 = vrot.lane.b32.xlu0 %v4520, 112
      %v4556 = vpop.permute.xlu0 %4555
      %v4557 = vsel %vm589, %v4546, %v4548
      %v4558 = vsel %vm589, %v4548, %v4550
      %v4559 = vsel %vm589, %v4552, %v4554
      %v4560 = vsel %vm589, %v4554, %v4556
      %4565 = vst [vmem:[#allocation3 + $0x160] sm:$0xff] %v4557
      %4566 = vst [vmem:[#allocation3 + $0x168] sm:$0xff] %v4558
      %4567 = vst [vmem:[#allocation3 + $0x170] sm:$0xff] %v4559
      %4568 = vst [vmem:[#allocation3 + $0x178] sm:$0xff] %v4560
      %4569 = vrot.lane.b32.xlu0 %v4455, 96
      %v4570 = vpop.permute.xlu0 %4569
      %4571 = vrot.lane.b32.xlu0 %v4487, 96
      %v4572 = vpop.permute.xlu0 %4571
      %4573 = vrot.lane.b32.xlu0 %v4519, 96
      %v4574 = vpop.permute.xlu0 %4573
      %4575 = vrot.lane.b32.xlu0 %v4456, 96
      %v4576 = vpop.permute.xlu0 %4575
      %4577 = vrot.lane.b32.xlu0 %v4488, 96
      %v4578 = vpop.permute.xlu0 %4577
      %4579 = vrot.lane.b32.xlu0 %v4520, 96
      %v4580 = vpop.permute.xlu0 %4579
      %v4581 = vsel %vm614, %v4570, %v4572
      %v4582 = vsel %vm614, %v4572, %v4574
      %v4583 = vsel %vm614, %v4576, %v4578
      %v4584 = vsel %vm614, %v4578, %v4580
      %4589 = vst [vmem:[#allocation3 + $0x240] sm:$0xff] %v4581
      %4590 = vst [vmem:[#allocation3 + $0x248] sm:$0xff] %v4582
      %4591 = vst [vmem:[#allocation3 + $0x250] sm:$0xff] %v4583
      %4592 = vst [vmem:[#allocation3 + $0x258] sm:$0xff] %v4584
      %4593 = vrot.lane.b32.xlu0 %v4455, 80
      %v4594 = vpop.permute.xlu0 %4593
      %4595 = vrot.lane.b32.xlu0 %v4487, 80
      %v4596 = vpop.permute.xlu0 %4595
      %4597 = vrot.lane.b32.xlu0 %v4519, 80
      %v4598 = vpop.permute.xlu0 %4597
      %4599 = vrot.lane.b32.xlu0 %v4456, 80
      %v4600 = vpop.permute.xlu0 %4599
      %4601 = vrot.lane.b32.xlu0 %v4488, 80
      %v4602 = vpop.permute.xlu0 %4601
      %4603 = vrot.lane.b32.xlu0 %v4520, 80
      %v4604 = vpop.permute.xlu0 %4603
      %v4605 = vsel %vm639, %v4594, %v4596
      %v4606 = vsel %vm639, %v4596, %v4598
      %v4607 = vsel %vm639, %v4600, %v4602
      %v4608 = vsel %vm639, %v4602, %v4604
      %4613 = vst [vmem:[#allocation3 + $0x320] sm:$0xff] %v4605
      %4614 = vst [vmem:[#allocation3 + $0x328] sm:$0xff] %v4606
      %4615 = vst [vmem:[#allocation3 + $0x330] sm:$0xff] %v4607
      %4616 = vst [vmem:[#allocation3 + $0x338] sm:$0xff] %v4608
      %4617 = vrot.lane.b32.xlu0 %v4455, 64
      %v4618 = vpop.permute.xlu0 %4617
      %4619 = vrot.lane.b32.xlu0 %v4487, 64
      %v4620 = vpop.permute.xlu0 %4619
      %4621 = vrot.lane.b32.xlu0 %v4519, 64
      %v4622 = vpop.permute.xlu0 %4621
      %4623 = vrot.lane.b32.xlu0 %v4456, 64
      %v4624 = vpop.permute.xlu0 %4623
      %4625 = vrot.lane.b32.xlu0 %v4488, 64
      %v4626 = vpop.permute.xlu0 %4625
      %4627 = vrot.lane.b32.xlu0 %v4520, 64
      %v4628 = vpop.permute.xlu0 %4627
      %v4629 = vsel %vm664, %v4618, %v4620
      %v4630 = vsel %vm664, %v4620, %v4622
      %v4631 = vsel %vm664, %v4624, %v4626
      %v4632 = vsel %vm664, %v4626, %v4628
      %4637 = vst [vmem:[#allocation3 + $0x400] sm:$0xff] %v4629
      %4638 = vst [vmem:[#allocation3 + $0x408] sm:$0xff] %v4630
      %4639 = vst [vmem:[#allocation3 + $0x410] sm:$0xff] %v4631
      %4640 = vst [vmem:[#allocation3 + $0x418] sm:$0xff] %v4632
      %4641 = vrot.lane.b32.xlu0 %v4455, 48
      %v4642 = vpop.permute.xlu0 %4641
      %4643 = vrot.lane.b32.xlu0 %v4487, 48
      %v4644 = vpop.permute.xlu0 %4643
      %4645 = vrot.lane.b32.xlu0 %v4519, 48
      %v4646 = vpop.permute.xlu0 %4645
      %4647 = vrot.lane.b32.xlu0 %v4456, 48
      %v4648 = vpop.permute.xlu0 %4647
      %4649 = vrot.lane.b32.xlu0 %v4488, 48
      %v4650 = vpop.permute.xlu0 %4649
      %4651 = vrot.lane.b32.xlu0 %v4520, 48
      %v4652 = vpop.permute.xlu0 %4651
      %v4653 = vsel %vm689, %v4642, %v4644
      %v4654 = vsel %vm689, %v4644, %v4646
      %v4655 = vsel %vm689, %v4648, %v4650
      %v4656 = vsel %vm689, %v4650, %v4652
      %4661 = vst [vmem:[#allocation3 + $0x4e0] sm:$0xff] %v4653
      %4662 = vst [vmem:[#allocation3 + $0x4e8] sm:$0xff] %v4654
      %4663 = vst [vmem:[#allocation3 + $0x4f0] sm:$0xff] %v4655
      %4664 = vst [vmem:[#allocation3 + $0x4f8] sm:$0xff] %v4656
      %4665 = vrot.lane.b32.xlu0 %v4455, 32
      %v4666 = vpop.permute.xlu0 %4665
      %4667 = vrot.lane.b32.xlu0 %v4487, 32
      %v4668 = vpop.permute.xlu0 %4667
      %4669 = vrot.lane.b32.xlu0 %v4519, 32
      %v4670 = vpop.permute.xlu0 %4669
      %4671 = vrot.lane.b32.xlu0 %v4456, 32
      %v4672 = vpop.permute.xlu0 %4671
      %4673 = vrot.lane.b32.xlu0 %v4488, 32
      %v4674 = vpop.permute.xlu0 %4673
      %4675 = vrot.lane.b32.xlu0 %v4520, 32
      %v4676 = vpop.permute.xlu0 %4675
      %v4677 = vsel %vm714, %v4666, %v4668
      %v4678 = vsel %vm714, %v4668, %v4670
      %v4679 = vsel %vm714, %v4672, %v4674
      %v4680 = vsel %vm714, %v4674, %v4676
      %4685 = vst [vmem:[#allocation3 + $0x5c0] sm:$0xff] %v4677
      %4686 = vst [vmem:[#allocation3 + $0x5c8] sm:$0xff] %v4678
      %4687 = vst [vmem:[#allocation3 + $0x5d0] sm:$0xff] %v4679
      %4688 = vst [vmem:[#allocation3 + $0x5d8] sm:$0xff] %v4680
      %v4689 = vld [vmem:[#allocation2 + $0x5] sm:$0xff]
      %v4690 = vld [vmem:[#allocation2 + $0xd] sm:$0xff]
      %v4691 = vld [vmem:[#allocation2 + $0x1d] sm:$0xff]
      %v4692 = vld [vmem:[#allocation2 + $0x25] sm:$0xff]
      %v4693 = vld [vmem:[#allocation2 + $0x35] sm:$0xff]
      %v4694 = vld [vmem:[#allocation2 + $0x3d] sm:$0xff]
      %v4695 = vld [vmem:[#allocation2 + $0x4d] sm:$0xff]
      %v4696 = vld [vmem:[#allocation2 + $0x55] sm:$0xff]
      %v4697 = vld [vmem:[#allocation2 + $0x65] sm:$0xff]
      %v4698 = vld [vmem:[#allocation2 + $0x6d] sm:$0xff]
      %v4699 = vld [vmem:[#allocation2 + $0x7d] sm:$0xff]
      %v4700 = vld [vmem:[#allocation2 + $0x85] sm:$0xff]
      %v4701 = vld [vmem:[#allocation2 + $0x95] sm:$0xff]
      %v4702 = vld [vmem:[#allocation2 + $0x9d] sm:$0xff]
      %v4703 = vld [vmem:[#allocation2 + $0xad] sm:$0xff]
      %v4704 = vld [vmem:[#allocation2 + $0xb5] sm:$0xff]
      %v4705 = vld [vmem:[#allocation2 + $0xc5] sm:$0xff]
      %v4706 = vld [vmem:[#allocation2 + $0xcd] sm:$0xff]
      %v4707 = vld [vmem:[#allocation2 + $0xdd] sm:$0xff]
      %v4708 = vld [vmem:[#allocation2 + $0xe5] sm:$0xff]
      %v4709 = vld [vmem:[#allocation2 + $0xf5] sm:$0xff]
      %v4710 = vld [vmem:[#allocation2 + $0xfd] sm:$0xff]
      %v4711 = vld [vmem:[#allocation2 + $0x10d] sm:$0xff]
      %v4712 = vld [vmem:[#allocation2 + $0x115] sm:$0xff]
      %v4713 = vld [vmem:[#allocation2 + $0x125] sm:$0xff]
      %v4714 = vld [vmem:[#allocation2 + $0x12d] sm:$0xff]
      %v4715 = vld [vmem:[#allocation2 + $0x13d] sm:$0xff]
      %v4716 = vld [vmem:[#allocation2 + $0x145] sm:$0xff]
      %v4717 = vld [vmem:[#allocation2 + $0x155] sm:$0xff]
      %v4718 = vld [vmem:[#allocation2 + $0x15d] sm:$0xff]
      %v4719 = vld [vmem:[#allocation2 + $0x16d] sm:$0xff]
      %v4720 = vld [vmem:[#allocation2 + $0x175] sm:$0xff]
      %v4721 = vld [vmem:[#allocation2 + $0x185] sm:$0xff]
      %v4722 = vld [vmem:[#allocation2 + $0x18d] sm:$0xff]
      %v4723 = vld [vmem:[#allocation2 + $0x19d] sm:$0xff]
      %v4724 = vld [vmem:[#allocation2 + $0x1a5] sm:$0xff]
      %v4725 = vld [vmem:[#allocation2 + $0x1b5] sm:$0xff]
      %v4726 = vld [vmem:[#allocation2 + $0x1bd] sm:$0xff]
      %v4727 = vld [vmem:[#allocation2 + $0x1cd] sm:$0xff]
      %v4728 = vld [vmem:[#allocation2 + $0x1d5] sm:$0xff]
      %v4729 = vld [vmem:[#allocation2 + $0x1e5] sm:$0xff]
      %v4730 = vld [vmem:[#allocation2 + $0x1ed] sm:$0xff]
      %v4731 = vld [vmem:[#allocation2 + $0x1fd] sm:$0xff]
      %v4732 = vld [vmem:[#allocation2 + $0x205] sm:$0xff]
      %4733 = vxpose.xlu0.b32.start [1/16] %v4689, 128
      %4734 = vxpose.xlu0.b32.cont [2/16] %v4690, 128
      %4735 = vxpose.xlu0.b32.cont [3/16] %v4691, 128
      %4736 = vxpose.xlu0.b32.cont [4/16] %v4692, 128
      %4737 = vxpose.xlu0.b32.cont [5/16] %v4693, 128
      %4738 = vxpose.xlu0.b32.cont [6/16] %v4694, 128
      %4739 = vxpose.xlu0.b32.cont [7/16] %v4695, 128
      %4740 = vxpose.xlu0.b32.cont [8/16] %v4696, 128
      %4741 = vxpose.xlu0.b32.cont [9/16] %v4697, 128
      %4742 = vxpose.xlu0.b32.cont [10/16] %v4698, 128
      %4743 = vxpose.xlu0.b32.cont [11/16] %v4699, 128
      %4744 = vxpose.xlu0.b32.cont [12/16] %v4700, 128
      %4745 = vxpose.xlu0.b32.cont [13/16] %v4701, 128
      %4746 = vxpose.xlu0.b32.cont [14/16] %v4702, 128
      %4747 = vxpose.xlu0.b32.cont [15/16] %v4703, 128
      %4748 = vxpose.xlu0.b32.end [16/16] %v4704, 128
      %v4749 = vpop.trf.xlu0
      %v4750 = vpop.trf.xlu0
      %v4751 = vpop.trf.xlu0
      %v4752 = vpop.trf.xlu0
      %v4753 = vpop.trf.xlu0
      %v4754 = vpop.trf.xlu0
      %v4755 = vpop.trf.xlu0
      %v4756 = vpop.trf.xlu0
      %v4757 = vpop.trf.xlu0
      %v4758 = vpop.trf.xlu0
      %v4759 = vpop.trf.xlu0
      %v4760 = vpop.trf.xlu0
      %v4761 = vpop.trf.xlu0
      %v4762 = vpop.trf.xlu0
      %v4763 = vpop.trf.xlu0
      %v4764 = vpop.trf.xlu0
      %4765 = vxpose.xlu0.b32.start [1/16] %v4705, 128
      %4766 = vxpose.xlu0.b32.cont [2/16] %v4706, 128
      %4767 = vxpose.xlu0.b32.cont [3/16] %v4707, 128
      %4768 = vxpose.xlu0.b32.cont [4/16] %v4708, 128
      %4769 = vxpose.xlu0.b32.cont [5/16] %v4709, 128
      %4770 = vxpose.xlu0.b32.cont [6/16] %v4710, 128
      %4771 = vxpose.xlu0.b32.cont [7/16] %v4711, 128
      %4772 = vxpose.xlu0.b32.cont [8/16] %v4712, 128
      %4773 = vxpose.xlu0.b32.cont [9/16] %v4713, 128
      %4774 = vxpose.xlu0.b32.cont [10/16] %v4714, 128
      %4775 = vxpose.xlu0.b32.cont [11/16] %v4715, 128
      %4776 = vxpose.xlu0.b32.cont [12/16] %v4716, 128
      %4777 = vxpose.xlu0.b32.cont [13/16] %v4717, 128
      %4778 = vxpose.xlu0.b32.cont [14/16] %v4718, 128
      %4779 = vxpose.xlu0.b32.cont [15/16] %v4719, 128
      %4780 = vxpose.xlu0.b32.end [16/16] %v4720, 128
      %v4781 = vpop.trf.xlu0
      %v4782 = vpop.trf.xlu0
      %v4783 = vpop.trf.xlu0
      %v4784 = vpop.trf.xlu0
      %v4785 = vpop.trf.xlu0
      %v4786 = vpop.trf.xlu0
      %v4787 = vpop.trf.xlu0
      %v4788 = vpop.trf.xlu0
      %v4789 = vpop.trf.xlu0
      %v4790 = vpop.trf.xlu0
      %v4791 = vpop.trf.xlu0
      %v4792 = vpop.trf.xlu0
      %v4793 = vpop.trf.xlu0
      %v4794 = vpop.trf.xlu0
      %v4795 = vpop.trf.xlu0
      %v4796 = vpop.trf.xlu0
      %4797 = vxpose.xlu0.b32.start [1/16] %v4721, 128
      %4798 = vxpose.xlu0.b32.cont [2/16] %v4722, 128
      %4799 = vxpose.xlu0.b32.cont [3/16] %v4723, 128
      %4800 = vxpose.xlu0.b32.cont [4/16] %v4724, 128
      %4801 = vxpose.xlu0.b32.cont [5/16] %v4725, 128
      %4802 = vxpose.xlu0.b32.cont [6/16] %v4726, 128
      %4803 = vxpose.xlu0.b32.cont [7/16] %v4727, 128
      %4804 = vxpose.xlu0.b32.cont [8/16] %v4728, 128
      %4805 = vxpose.xlu0.b32.cont [9/16] %v4729, 128
      %4806 = vxpose.xlu0.b32.cont [10/16] %v4730, 128
      %4807 = vxpose.xlu0.b32.cont [11/16] %v4731, 128
      %4808 = vxpose.xlu0.b32.cont [12/16] %v4732, 128
      %4809 = vxpose.xlu0.b32.cont [13/16] 0.0, 128
      %4810 = vxpose.xlu0.b32.cont [14/16] 0.0, 128
      %4811 = vxpose.xlu0.b32.cont [15/16] 0.0, 128
      %4812 = vxpose.xlu0.b32.end [16/16] 0.0, 128
      %v4813 = vpop.trf.xlu0
      %v4814 = vpop.trf.xlu0
      %v4815 = vpop.trf.xlu0
      %v4816 = vpop.trf.xlu0
      %v4817 = vpop.trf.xlu0
      %v4818 = vpop.trf.xlu0
      %v4819 = vpop.trf.xlu0
      %v4820 = vpop.trf.xlu0
      %v4821 = vpop.trf.xlu0
      %v4822 = vpop.trf.xlu0
      %v4823 = vpop.trf.xlu0
      %v4824 = vpop.trf.xlu0
      %v4825 = vpop.trf.xlu0
      %v4826 = vpop.trf.xlu0
      %v4827 = vpop.trf.xlu0
      %v4828 = vpop.trf.xlu0
      %4829 = vst [vmem:[#allocation3 + $0xa0] sm:$0xff] %v4749
      %4830 = vst [vmem:[#allocation3 + $0xa8] sm:$0xff] %v4781
      %4831 = vst [vmem:[#allocation3 + $0xb0] sm:$0xff] %v4750
      %4832 = vst [vmem:[#allocation3 + $0xb8] sm:$0xff] %v4782
      %4839 = vrot.lane.b32.xlu0 %v4749, 112
      %v4840 = vpop.permute.xlu0 %4839
      %4841 = vrot.lane.b32.xlu0 %v4781, 112
      %v4842 = vpop.permute.xlu0 %4841
      %4843 = vrot.lane.b32.xlu0 %v4813, 112
      %v4844 = vpop.permute.xlu0 %4843
      %4845 = vrot.lane.b32.xlu0 %v4750, 112
      %v4846 = vpop.permute.xlu0 %4845
      %4847 = vrot.lane.b32.xlu0 %v4782, 112
      %v4848 = vpop.permute.xlu0 %4847
      %4849 = vrot.lane.b32.xlu0 %v4814, 112
      %v4850 = vpop.permute.xlu0 %4849
      %v4851 = vsel %vm589, %v4840, %v4842
      %v4852 = vsel %vm589, %v4842, %v4844
      %v4853 = vsel %vm589, %v4846, %v4848
      %v4854 = vsel %vm589, %v4848, %v4850
      %4859 = vst [vmem:[#allocation3 + $0x180] sm:$0xff] %v4851
      %4860 = vst [vmem:[#allocation3 + $0x188] sm:$0xff] %v4852
      %4861 = vst [vmem:[#allocation3 + $0x190] sm:$0xff] %v4853
      %4862 = vst [vmem:[#allocation3 + $0x198] sm:$0xff] %v4854
      %4863 = vrot.lane.b32.xlu0 %v4749, 96
      %v4864 = vpop.permute.xlu0 %4863
      %4865 = vrot.lane.b32.xlu0 %v4781, 96
      %v4866 = vpop.permute.xlu0 %4865
      %4867 = vrot.lane.b32.xlu0 %v4813, 96
      %v4868 = vpop.permute.xlu0 %4867
      %4869 = vrot.lane.b32.xlu0 %v4750, 96
      %v4870 = vpop.permute.xlu0 %4869
      %4871 = vrot.lane.b32.xlu0 %v4782, 96
      %v4872 = vpop.permute.xlu0 %4871
      %4873 = vrot.lane.b32.xlu0 %v4814, 96
      %v4874 = vpop.permute.xlu0 %4873
      %v4875 = vsel %vm614, %v4864, %v4866
      %v4876 = vsel %vm614, %v4866, %v4868
      %v4877 = vsel %vm614, %v4870, %v4872
      %v4878 = vsel %vm614, %v4872, %v4874
      %4883 = vst [vmem:[#allocation3 + $0x260] sm:$0xff] %v4875
      %4884 = vst [vmem:[#allocation3 + $0x268] sm:$0xff] %v4876
      %4885 = vst [vmem:[#allocation3 + $0x270] sm:$0xff] %v4877
      %4886 = vst [vmem:[#allocation3 + $0x278] sm:$0xff] %v4878
      %4887 = vrot.lane.b32.xlu0 %v4749, 80
      %v4888 = vpop.permute.xlu0 %4887
      %4889 = vrot.lane.b32.xlu0 %v4781, 80
      %v4890 = vpop.permute.xlu0 %4889
      %4891 = vrot.lane.b32.xlu0 %v4813, 80
      %v4892 = vpop.permute.xlu0 %4891
      %4893 = vrot.lane.b32.xlu0 %v4750, 80
      %v4894 = vpop.permute.xlu0 %4893
      %4895 = vrot.lane.b32.xlu0 %v4782, 80
      %v4896 = vpop.permute.xlu0 %4895
      %4897 = vrot.lane.b32.xlu0 %v4814, 80
      %v4898 = vpop.permute.xlu0 %4897
      %v4899 = vsel %vm639, %v4888, %v4890
      %v4900 = vsel %vm639, %v4890, %v4892
      %v4901 = vsel %vm639, %v4894, %v4896
      %v4902 = vsel %vm639, %v4896, %v4898
      %4907 = vst [vmem:[#allocation3 + $0x340] sm:$0xff] %v4899
      %4908 = vst [vmem:[#allocation3 + $0x348] sm:$0xff] %v4900
      %4909 = vst [vmem:[#allocation3 + $0x350] sm:$0xff] %v4901
      %4910 = vst [vmem:[#allocation3 + $0x358] sm:$0xff] %v4902
      %4911 = vrot.lane.b32.xlu0 %v4749, 64
      %v4912 = vpop.permute.xlu0 %4911
      %4913 = vrot.lane.b32.xlu0 %v4781, 64
      %v4914 = vpop.permute.xlu0 %4913
      %4915 = vrot.lane.b32.xlu0 %v4813, 64
      %v4916 = vpop.permute.xlu0 %4915
      %4917 = vrot.lane.b32.xlu0 %v4750, 64
      %v4918 = vpop.permute.xlu0 %4917
      %4919 = vrot.lane.b32.xlu0 %v4782, 64
      %v4920 = vpop.permute.xlu0 %4919
      %4921 = vrot.lane.b32.xlu0 %v4814, 64
      %v4922 = vpop.permute.xlu0 %4921
      %v4923 = vsel %vm664, %v4912, %v4914
      %v4924 = vsel %vm664, %v4914, %v4916
      %v4925 = vsel %vm664, %v4918, %v4920
      %v4926 = vsel %vm664, %v4920, %v4922
      %4931 = vst [vmem:[#allocation3 + $0x420] sm:$0xff] %v4923
      %4932 = vst [vmem:[#allocation3 + $0x428] sm:$0xff] %v4924
      %4933 = vst [vmem:[#allocation3 + $0x430] sm:$0xff] %v4925
      %4934 = vst [vmem:[#allocation3 + $0x438] sm:$0xff] %v4926
      %4935 = vrot.lane.b32.xlu0 %v4749, 48
      %v4936 = vpop.permute.xlu0 %4935
      %4937 = vrot.lane.b32.xlu0 %v4781, 48
      %v4938 = vpop.permute.xlu0 %4937
      %4939 = vrot.lane.b32.xlu0 %v4813, 48
      %v4940 = vpop.permute.xlu0 %4939
      %4941 = vrot.lane.b32.xlu0 %v4750, 48
      %v4942 = vpop.permute.xlu0 %4941
      %4943 = vrot.lane.b32.xlu0 %v4782, 48
      %v4944 = vpop.permute.xlu0 %4943
      %4945 = vrot.lane.b32.xlu0 %v4814, 48
      %v4946 = vpop.permute.xlu0 %4945
      %v4947 = vsel %vm689, %v4936, %v4938
      %v4948 = vsel %vm689, %v4938, %v4940
      %v4949 = vsel %vm689, %v4942, %v4944
      %v4950 = vsel %vm689, %v4944, %v4946
      %4955 = vst [vmem:[#allocation3 + $0x500] sm:$0xff] %v4947
      %4956 = vst [vmem:[#allocation3 + $0x508] sm:$0xff] %v4948
      %4957 = vst [vmem:[#allocation3 + $0x510] sm:$0xff] %v4949
      %4958 = vst [vmem:[#allocation3 + $0x518] sm:$0xff] %v4950
      %4959 = vrot.lane.b32.xlu0 %v4749, 32
      %v4960 = vpop.permute.xlu0 %4959
      %4961 = vrot.lane.b32.xlu0 %v4781, 32
      %v4962 = vpop.permute.xlu0 %4961
      %4963 = vrot.lane.b32.xlu0 %v4813, 32
      %v4964 = vpop.permute.xlu0 %4963
      %4965 = vrot.lane.b32.xlu0 %v4750, 32
      %v4966 = vpop.permute.xlu0 %4965
      %4967 = vrot.lane.b32.xlu0 %v4782, 32
      %v4968 = vpop.permute.xlu0 %4967
      %4969 = vrot.lane.b32.xlu0 %v4814, 32
      %v4970 = vpop.permute.xlu0 %4969
      %v4971 = vsel %vm714, %v4960, %v4962
      %v4972 = vsel %vm714, %v4962, %v4964
      %v4973 = vsel %vm714, %v4966, %v4968
      %v4974 = vsel %vm714, %v4968, %v4970
      %4979 = vst [vmem:[#allocation3 + $0x5e0] sm:$0xff] %v4971
      %4980 = vst [vmem:[#allocation3 + $0x5e8] sm:$0xff] %v4972
      %4981 = vst [vmem:[#allocation3 + $0x5f0] sm:$0xff] %v4973
      %4982 = vst [vmem:[#allocation3 + $0x5f8] sm:$0xff] %v4974
      %v4983 = vld [vmem:[#allocation2 + $0x6] sm:$0xff]
      %v4984 = vld [vmem:[#allocation2 + $0xe] sm:$0xff]
      %v4985 = vld [vmem:[#allocation2 + $0x1e] sm:$0xff]
      %v4986 = vld [vmem:[#allocation2 + $0x26] sm:$0xff]
      %v4987 = vld [vmem:[#allocation2 + $0x36] sm:$0xff]
      %v4988 = vld [vmem:[#allocation2 + $0x3e] sm:$0xff]
      %v4989 = vld [vmem:[#allocation2 + $0x4e] sm:$0xff]
      %v4990 = vld [vmem:[#allocation2 + $0x56] sm:$0xff]
      %v4991 = vld [vmem:[#allocation2 + $0x66] sm:$0xff]
      %v4992 = vld [vmem:[#allocation2 + $0x6e] sm:$0xff]
      %v4993 = vld [vmem:[#allocation2 + $0x7e] sm:$0xff]
      %v4994 = vld [vmem:[#allocation2 + $0x86] sm:$0xff]
      %v4995 = vld [vmem:[#allocation2 + $0x96] sm:$0xff]
      %v4996 = vld [vmem:[#allocation2 + $0x9e] sm:$0xff]
      %v4997 = vld [vmem:[#allocation2 + $0xae] sm:$0xff]
      %v4998 = vld [vmem:[#allocation2 + $0xb6] sm:$0xff]
      %v4999 = vld [vmem:[#allocation2 + $0xc6] sm:$0xff]
      %v5000 = vld [vmem:[#allocation2 + $0xce] sm:$0xff]
      %v5001 = vld [vmem:[#allocation2 + $0xde] sm:$0xff]
      %v5002 = vld [vmem:[#allocation2 + $0xe6] sm:$0xff]
      %v5003 = vld [vmem:[#allocation2 + $0xf6] sm:$0xff]
      %v5004 = vld [vmem:[#allocation2 + $0xfe] sm:$0xff]
      %v5005 = vld [vmem:[#allocation2 + $0x10e] sm:$0xff]
      %v5006 = vld [vmem:[#allocation2 + $0x116] sm:$0xff]
      %v5007 = vld [vmem:[#allocation2 + $0x126] sm:$0xff]
      %v5008 = vld [vmem:[#allocation2 + $0x12e] sm:$0xff]
      %v5009 = vld [vmem:[#allocation2 + $0x13e] sm:$0xff]
      %v5010 = vld [vmem:[#allocation2 + $0x146] sm:$0xff]
      %v5011 = vld [vmem:[#allocation2 + $0x156] sm:$0xff]
      %v5012 = vld [vmem:[#allocation2 + $0x15e] sm:$0xff]
      %v5013 = vld [vmem:[#allocation2 + $0x16e] sm:$0xff]
      %v5014 = vld [vmem:[#allocation2 + $0x176] sm:$0xff]
      %v5015 = vld [vmem:[#allocation2 + $0x186] sm:$0xff]
      %v5016 = vld [vmem:[#allocation2 + $0x18e] sm:$0xff]
      %v5017 = vld [vmem:[#allocation2 + $0x19e] sm:$0xff]
      %v5018 = vld [vmem:[#allocation2 + $0x1a6] sm:$0xff]
      %v5019 = vld [vmem:[#allocation2 + $0x1b6] sm:$0xff]
      %v5020 = vld [vmem:[#allocation2 + $0x1be] sm:$0xff]
      %v5021 = vld [vmem:[#allocation2 + $0x1ce] sm:$0xff]
      %v5022 = vld [vmem:[#allocation2 + $0x1d6] sm:$0xff]
      %v5023 = vld [vmem:[#allocation2 + $0x1e6] sm:$0xff]
      %v5024 = vld [vmem:[#allocation2 + $0x1ee] sm:$0xff]
      %v5025 = vld [vmem:[#allocation2 + $0x1fe] sm:$0xff]
      %v5026 = vld [vmem:[#allocation2 + $0x206] sm:$0xff]
      %5027 = vxpose.xlu0.b32.start [1/16] %v4983, 128
      %5028 = vxpose.xlu0.b32.cont [2/16] %v4984, 128
      %5029 = vxpose.xlu0.b32.cont [3/16] %v4985, 128
      %5030 = vxpose.xlu0.b32.cont [4/16] %v4986, 128
      %5031 = vxpose.xlu0.b32.cont [5/16] %v4987, 128
      %5032 = vxpose.xlu0.b32.cont [6/16] %v4988, 128
      %5033 = vxpose.xlu0.b32.cont [7/16] %v4989, 128
      %5034 = vxpose.xlu0.b32.cont [8/16] %v4990, 128
      %5035 = vxpose.xlu0.b32.cont [9/16] %v4991, 128
      %5036 = vxpose.xlu0.b32.cont [10/16] %v4992, 128
      %5037 = vxpose.xlu0.b32.cont [11/16] %v4993, 128
      %5038 = vxpose.xlu0.b32.cont [12/16] %v4994, 128
      %5039 = vxpose.xlu0.b32.cont [13/16] %v4995, 128
      %5040 = vxpose.xlu0.b32.cont [14/16] %v4996, 128
      %5041 = vxpose.xlu0.b32.cont [15/16] %v4997, 128
      %5042 = vxpose.xlu0.b32.end [16/16] %v4998, 128
      %v5043 = vpop.trf.xlu0
      %v5044 = vpop.trf.xlu0
      %v5045 = vpop.trf.xlu0
      %v5046 = vpop.trf.xlu0
      %v5047 = vpop.trf.xlu0
      %v5048 = vpop.trf.xlu0
      %v5049 = vpop.trf.xlu0
      %v5050 = vpop.trf.xlu0
      %v5051 = vpop.trf.xlu0
      %v5052 = vpop.trf.xlu0
      %v5053 = vpop.trf.xlu0
      %v5054 = vpop.trf.xlu0
      %v5055 = vpop.trf.xlu0
      %v5056 = vpop.trf.xlu0
      %v5057 = vpop.trf.xlu0
      %v5058 = vpop.trf.xlu0
      %5059 = vxpose.xlu0.b32.start [1/16] %v4999, 128
      %5060 = vxpose.xlu0.b32.cont [2/16] %v5000, 128
      %5061 = vxpose.xlu0.b32.cont [3/16] %v5001, 128
      %5062 = vxpose.xlu0.b32.cont [4/16] %v5002, 128
      %5063 = vxpose.xlu0.b32.cont [5/16] %v5003, 128
      %5064 = vxpose.xlu0.b32.cont [6/16] %v5004, 128
      %5065 = vxpose.xlu0.b32.cont [7/16] %v5005, 128
      %5066 = vxpose.xlu0.b32.cont [8/16] %v5006, 128
      %5067 = vxpose.xlu0.b32.cont [9/16] %v5007, 128
      %5068 = vxpose.xlu0.b32.cont [10/16] %v5008, 128
      %5069 = vxpose.xlu0.b32.cont [11/16] %v5009, 128
      %5070 = vxpose.xlu0.b32.cont [12/16] %v5010, 128
      %5071 = vxpose.xlu0.b32.cont [13/16] %v5011, 128
      %5072 = vxpose.xlu0.b32.cont [14/16] %v5012, 128
      %5073 = vxpose.xlu0.b32.cont [15/16] %v5013, 128
      %5074 = vxpose.xlu0.b32.end [16/16] %v5014, 128
      %v5075 = vpop.trf.xlu0
      %v5076 = vpop.trf.xlu0
      %v5077 = vpop.trf.xlu0
      %v5078 = vpop.trf.xlu0
      %v5079 = vpop.trf.xlu0
      %v5080 = vpop.trf.xlu0
      %v5081 = vpop.trf.xlu0
      %v5082 = vpop.trf.xlu0
      %v5083 = vpop.trf.xlu0
      %v5084 = vpop.trf.xlu0
      %v5085 = vpop.trf.xlu0
      %v5086 = vpop.trf.xlu0
      %v5087 = vpop.trf.xlu0
      %v5088 = vpop.trf.xlu0
      %v5089 = vpop.trf.xlu0
      %v5090 = vpop.trf.xlu0
      %5091 = vxpose.xlu0.b32.start [1/16] %v5015, 128
      %5092 = vxpose.xlu0.b32.cont [2/16] %v5016, 128
      %5093 = vxpose.xlu0.b32.cont [3/16] %v5017, 128
      %5094 = vxpose.xlu0.b32.cont [4/16] %v5018, 128
      %5095 = vxpose.xlu0.b32.cont [5/16] %v5019, 128
      %5096 = vxpose.xlu0.b32.cont [6/16] %v5020, 128
      %5097 = vxpose.xlu0.b32.cont [7/16] %v5021, 128
      %5098 = vxpose.xlu0.b32.cont [8/16] %v5022, 128
      %5099 = vxpose.xlu0.b32.cont [9/16] %v5023, 128
      %5100 = vxpose.xlu0.b32.cont [10/16] %v5024, 128
      %5101 = vxpose.xlu0.b32.cont [11/16] %v5025, 128
      %5102 = vxpose.xlu0.b32.cont [12/16] %v5026, 128
      %5103 = vxpose.xlu0.b32.cont [13/16] 0.0, 128
      %5104 = vxpose.xlu0.b32.cont [14/16] 0.0, 128
      %5105 = vxpose.xlu0.b32.cont [15/16] 0.0, 128
      %5106 = vxpose.xlu0.b32.end [16/16] 0.0, 128
      %v5107 = vpop.trf.xlu0
      %v5108 = vpop.trf.xlu0
      %v5109 = vpop.trf.xlu0
      %v5110 = vpop.trf.xlu0
      %v5111 = vpop.trf.xlu0
      %v5112 = vpop.trf.xlu0
      %v5113 = vpop.trf.xlu0
      %v5114 = vpop.trf.xlu0
      %v5115 = vpop.trf.xlu0
      %v5116 = vpop.trf.xlu0
      %v5117 = vpop.trf.xlu0
      %v5118 = vpop.trf.xlu0
      %v5119 = vpop.trf.xlu0
      %v5120 = vpop.trf.xlu0
      %v5121 = vpop.trf.xlu0
      %v5122 = vpop.trf.xlu0
      %5123 = vst [vmem:[#allocation3 + $0xc0] sm:$0xff] %v5043
      %5124 = vst [vmem:[#allocation3 + $0xc8] sm:$0xff] %v5075
      %5125 = vst [vmem:[#allocation3 + $0xd0] sm:$0xff] %v5044
      %5126 = vst [vmem:[#allocation3 + $0xd8] sm:$0xff] %v5076
      %5133 = vrot.lane.b32.xlu0 %v5043, 112
      %v5134 = vpop.permute.xlu0 %5133
      %5135 = vrot.lane.b32.xlu0 %v5075, 112
      %v5136 = vpop.permute.xlu0 %5135
      %5137 = vrot.lane.b32.xlu0 %v5107, 112
      %v5138 = vpop.permute.xlu0 %5137
      %5139 = vrot.lane.b32.xlu0 %v5044, 112
      %v5140 = vpop.permute.xlu0 %5139
      %5141 = vrot.lane.b32.xlu0 %v5076, 112
      %v5142 = vpop.permute.xlu0 %5141
      %5143 = vrot.lane.b32.xlu0 %v5108, 112
      %v5144 = vpop.permute.xlu0 %5143
      %v5145 = vsel %vm589, %v5134, %v5136
      %v5146 = vsel %vm589, %v5136, %v5138
      %v5147 = vsel %vm589, %v5140, %v5142
      %v5148 = vsel %vm589, %v5142, %v5144
      %5153 = vst [vmem:[#allocation3 + $0x1a0] sm:$0xff] %v5145
      %5154 = vst [vmem:[#allocation3 + $0x1a8] sm:$0xff] %v5146
      %5155 = vst [vmem:[#allocation3 + $0x1b0] sm:$0xff] %v5147
      %5156 = vst [vmem:[#allocation3 + $0x1b8] sm:$0xff] %v5148
      %5157 = vrot.lane.b32.xlu0 %v5043, 96
      %v5158 = vpop.permute.xlu0 %5157
      %5159 = vrot.lane.b32.xlu0 %v5075, 96
      %v5160 = vpop.permute.xlu0 %5159
      %5161 = vrot.lane.b32.xlu0 %v5107, 96
      %v5162 = vpop.permute.xlu0 %5161
      %5163 = vrot.lane.b32.xlu0 %v5044, 96
      %v5164 = vpop.permute.xlu0 %5163
      %5165 = vrot.lane.b32.xlu0 %v5076, 96
      %v5166 = vpop.permute.xlu0 %5165
      %5167 = vrot.lane.b32.xlu0 %v5108, 96
      %v5168 = vpop.permute.xlu0 %5167
      %v5169 = vsel %vm614, %v5158, %v5160
      %v5170 = vsel %vm614, %v5160, %v5162
      %v5171 = vsel %vm614, %v5164, %v5166
      %v5172 = vsel %vm614, %v5166, %v5168
      %5177 = vst [vmem:[#allocation3 + $0x280] sm:$0xff] %v5169
      %5178 = vst [vmem:[#allocation3 + $0x288] sm:$0xff] %v5170
      %5179 = vst [vmem:[#allocation3 + $0x290] sm:$0xff] %v5171
      %5180 = vst [vmem:[#allocation3 + $0x298] sm:$0xff] %v5172
      %5181 = vrot.lane.b32.xlu0 %v5043, 80
      %v5182 = vpop.permute.xlu0 %5181
      %5183 = vrot.lane.b32.xlu0 %v5075, 80
      %v5184 = vpop.permute.xlu0 %5183
      %5185 = vrot.lane.b32.xlu0 %v5107, 80
      %v5186 = vpop.permute.xlu0 %5185
      %5187 = vrot.lane.b32.xlu0 %v5044, 80
      %v5188 = vpop.permute.xlu0 %5187
      %5189 = vrot.lane.b32.xlu0 %v5076, 80
      %v5190 = vpop.permute.xlu0 %5189
      %5191 = vrot.lane.b32.xlu0 %v5108, 80
      %v5192 = vpop.permute.xlu0 %5191
      %v5193 = vsel %vm639, %v5182, %v5184
      %v5194 = vsel %vm639, %v5184, %v5186
      %v5195 = vsel %vm639, %v5188, %v5190
      %v5196 = vsel %vm639, %v5190, %v5192
      %5201 = vst [vmem:[#allocation3 + $0x360] sm:$0xff] %v5193
      %5202 = vst [vmem:[#allocation3 + $0x368] sm:$0xff] %v5194
      %5203 = vst [vmem:[#allocation3 + $0x370] sm:$0xff] %v5195
      %5204 = vst [vmem:[#allocation3 + $0x378] sm:$0xff] %v5196
      %5205 = vrot.lane.b32.xlu0 %v5043, 64
      %v5206 = vpop.permute.xlu0 %5205
      %5207 = vrot.lane.b32.xlu0 %v5075, 64
      %v5208 = vpop.permute.xlu0 %5207
      %5209 = vrot.lane.b32.xlu0 %v5107, 64
      %v5210 = vpop.permute.xlu0 %5209
      %5211 = vrot.lane.b32.xlu0 %v5044, 64
      %v5212 = vpop.permute.xlu0 %5211
      %5213 = vrot.lane.b32.xlu0 %v5076, 64
      %v5214 = vpop.permute.xlu0 %5213
      %5215 = vrot.lane.b32.xlu0 %v5108, 64
      %v5216 = vpop.permute.xlu0 %5215
      %v5217 = vsel %vm664, %v5206, %v5208
      %v5218 = vsel %vm664, %v5208, %v5210
      %v5219 = vsel %vm664, %v5212, %v5214
      %v5220 = vsel %vm664, %v5214, %v5216
      %5225 = vst [vmem:[#allocation3 + $0x440] sm:$0xff] %v5217
      %5226 = vst [vmem:[#allocation3 + $0x448] sm:$0xff] %v5218
      %5227 = vst [vmem:[#allocation3 + $0x450] sm:$0xff] %v5219
      %5228 = vst [vmem:[#allocation3 + $0x458] sm:$0xff] %v5220
      %5229 = vrot.lane.b32.xlu0 %v5043, 48
      %v5230 = vpop.permute.xlu0 %5229
      %5231 = vrot.lane.b32.xlu0 %v5075, 48
      %v5232 = vpop.permute.xlu0 %5231
      %5233 = vrot.lane.b32.xlu0 %v5107, 48
      %v5234 = vpop.permute.xlu0 %5233
      %5235 = vrot.lane.b32.xlu0 %v5044, 48
      %v5236 = vpop.permute.xlu0 %5235
      %5237 = vrot.lane.b32.xlu0 %v5076, 48
      %v5238 = vpop.permute.xlu0 %5237
      %5239 = vrot.lane.b32.xlu0 %v5108, 48
      %v5240 = vpop.permute.xlu0 %5239
      %v5241 = vsel %vm689, %v5230, %v5232
      %v5242 = vsel %vm689, %v5232, %v5234
      %v5243 = vsel %vm689, %v5236, %v5238
      %v5244 = vsel %vm689, %v5238, %v5240
      %5249 = vst [vmem:[#allocation3 + $0x520] sm:$0xff] %v5241
      %5250 = vst [vmem:[#allocation3 + $0x528] sm:$0xff] %v5242
      %5251 = vst [vmem:[#allocation3 + $0x530] sm:$0xff] %v5243
      %5252 = vst [vmem:[#allocation3 + $0x538] sm:$0xff] %v5244
      %5253 = vrot.lane.b32.xlu0 %v5043, 32
      %v5254 = vpop.permute.xlu0 %5253
      %5255 = vrot.lane.b32.xlu0 %v5075, 32
      %v5256 = vpop.permute.xlu0 %5255
      %5257 = vrot.lane.b32.xlu0 %v5107, 32
      %v5258 = vpop.permute.xlu0 %5257
      %5259 = vrot.lane.b32.xlu0 %v5044, 32
      %v5260 = vpop.permute.xlu0 %5259
      %5261 = vrot.lane.b32.xlu0 %v5076, 32
      %v5262 = vpop.permute.xlu0 %5261
      %5263 = vrot.lane.b32.xlu0 %v5108, 32
      %v5264 = vpop.permute.xlu0 %5263
      %v5265 = vsel %vm714, %v5254, %v5256
      %v5266 = vsel %vm714, %v5256, %v5258
      %v5267 = vsel %vm714, %v5260, %v5262
      %v5268 = vsel %vm714, %v5262, %v5264
      %5273 = vst [vmem:[#allocation3 + $0x600] sm:$0xff] %v5265
      %5274 = vst [vmem:[#allocation3 + $0x608] sm:$0xff] %v5266
      %5275 = vst [vmem:[#allocation3 + $0x610] sm:$0xff] %v5267
      %5276 = vst [vmem:[#allocation3 + $0x618] sm:$0xff] %v5268
      %v5277 = vld [vmem:[%s4] sm:$0xff]
      %v5278 = vld [vmem:[%s4 + $0x8] sm:$0xff]
      %v5279 = vld [vmem:[%s4 + $0x10] sm:$0xff]
      %v5280 = vld [vmem:[%s4 + $0x18] sm:$0xff]
      %v5281 = vld [vmem:[%s4 + $0x20] sm:$0xff]
      %v5282 = vld [vmem:[%s4 + $0x28] sm:$0xff]
      %v5283 = vld [vmem:[%s4 + $0x30] sm:$0xff]
      %v5284 = vld [vmem:[%s4 + $0x38] sm:$0xff]
      %v5285 = vld [vmem:[%s4 + $0x40] sm:$0xff]
      %v5286 = vld [vmem:[%s4 + $0x48] sm:$0xff]
      %v5287 = vld [vmem:[%s4 + $0x50] sm:$0xff]
      %v5288 = vld [vmem:[%s4 + $0x58] sm:$0xff]
      %v5289 = vld [vmem:[%s4 + $0x60] sm:$0xff]
      %v5290 = vld [vmem:[%s4 + $0x68] sm:$0xff]
      %v5291 = vld [vmem:[#allocation3] sm:$0xff]
      %v5292 = vld [vmem:[#allocation3 + $0x8] sm:$0xff]
      %v5293 = vld [vmem:[#allocation3 + $0x10] sm:$0xff]
      %v5294 = vld [vmem:[#allocation3 + $0x18] sm:$0xff]
      %v5295 = vld [vmem:[#allocation3 + $0x20] sm:$0xff]
      %v5296 = vld [vmem:[#allocation3 + $0x28] sm:$0xff]
      %v5297 = vld [vmem:[#allocation3 + $0x30] sm:$0xff]
      %v5298 = vld [vmem:[#allocation3 + $0x38] sm:$0xff]
      %v5299 = vld [vmem:[#allocation3 + $0x40] sm:$0xff]
      %v5300 = vld [vmem:[#allocation3 + $0x48] sm:$0xff]
      %v5301 = vld [vmem:[#allocation3 + $0x50] sm:$0xff]
      %v5302 = vld [vmem:[#allocation3 + $0x58] sm:$0xff]
      %v5303 = vld [vmem:[#allocation3 + $0x60] sm:$0xff]
      %v5304 = vld [vmem:[#allocation3 + $0x68] sm:$0xff]
      %v5305 = vld [vmem:[#allocation3 + $0x70] sm:$0xff]
      %v5306 = vld [vmem:[#allocation3 + $0x78] sm:$0xff]
      %v5307 = vld [vmem:[#allocation3 + $0x80] sm:$0xff]
      %v5308 = vld [vmem:[#allocation3 + $0x88] sm:$0xff]
      %v5309 = vld [vmem:[#allocation3 + $0x90] sm:$0xff]
      %v5310 = vld [vmem:[#allocation3 + $0x98] sm:$0xff]
      %v5311 = vld [vmem:[#allocation3 + $0xa0] sm:$0xff]
      %v5312 = vld [vmem:[#allocation3 + $0xa8] sm:$0xff]
      %v5313 = vld [vmem:[#allocation3 + $0xb0] sm:$0xff]
      %v5314 = vld [vmem:[#allocation3 + $0xb8] sm:$0xff]
      %v5315 = vld [vmem:[#allocation3 + $0xc0] sm:$0xff]
      %v5316 = vld [vmem:[#allocation3 + $0xc8] sm:$0xff]
      %v5317 = vld [vmem:[#allocation3 + $0xd0] sm:$0xff]
      %v5318 = vld [vmem:[#allocation3 + $0xd8] sm:$0xff]
      %v5319 = vld [vmem:[#allocation3 + $0xe0] sm:$0xff]
      %v5320 = vld [vmem:[#allocation3 + $0xe8] sm:$0xff]
      %v5321 = vld [vmem:[#allocation3 + $0xf0] sm:$0xff]
      %v5322 = vld [vmem:[#allocation3 + $0xf8] sm:$0xff]
      %v5323 = vld [vmem:[#allocation3 + $0x100] sm:$0xff]
      %v5324 = vld [vmem:[#allocation3 + $0x108] sm:$0xff]
      %v5325 = vld [vmem:[#allocation3 + $0x110] sm:$0xff]
      %v5326 = vld [vmem:[#allocation3 + $0x118] sm:$0xff]
      %v5327 = vld [vmem:[#allocation3 + $0x120] sm:$0xff]
      %v5328 = vld [vmem:[#allocation3 + $0x128] sm:$0xff]
      %v5329 = vld [vmem:[#allocation3 + $0x130] sm:$0xff]
      %v5330 = vld [vmem:[#allocation3 + $0x138] sm:$0xff]
      %v5331 = vld [vmem:[#allocation3 + $0x140] sm:$0xff]
      %v5332 = vld [vmem:[#allocation3 + $0x148] sm:$0xff]
      %v5333 = vld [vmem:[#allocation3 + $0x150] sm:$0xff]
      %v5334 = vld [vmem:[#allocation3 + $0x158] sm:$0xff]
      %v5335 = vld [vmem:[#allocation3 + $0x160] sm:$0xff]
      %v5336 = vld [vmem:[#allocation3 + $0x168] sm:$0xff]
      %v5337 = vld [vmem:[#allocation3 + $0x170] sm:$0xff]
      %v5338 = vld [vmem:[#allocation3 + $0x178] sm:$0xff]
      %v5339 = vld [vmem:[#allocation3 + $0x180] sm:$0xff]
      %v5340 = vld [vmem:[#allocation3 + $0x188] sm:$0xff]
      %v5341 = vld [vmem:[#allocation3 + $0x190] sm:$0xff]
      %v5342 = vld [vmem:[#allocation3 + $0x198] sm:$0xff]
      %v5343 = vld [vmem:[#allocation3 + $0x1a0] sm:$0xff]
      %v5344 = vld [vmem:[#allocation3 + $0x1a8] sm:$0xff]
      %v5345 = vld [vmem:[#allocation3 + $0x1b0] sm:$0xff]
      %v5346 = vld [vmem:[#allocation3 + $0x1b8] sm:$0xff]
      %v5347 = vld [vmem:[#allocation3 + $0x1c0] sm:$0xff]
      %v5348 = vld [vmem:[#allocation3 + $0x1c8] sm:$0xff]
      %v5349 = vld [vmem:[#allocation3 + $0x1d0] sm:$0xff]
      %v5350 = vld [vmem:[#allocation3 + $0x1d8] sm:$0xff]
      %v5351 = vld [vmem:[#allocation3 + $0x1e0] sm:$0xff]
      %v5352 = vld [vmem:[#allocation3 + $0x1e8] sm:$0xff]
      %v5353 = vld [vmem:[#allocation3 + $0x1f0] sm:$0xff]
      %v5354 = vld [vmem:[#allocation3 + $0x1f8] sm:$0xff]
      %v5355 = vld [vmem:[#allocation3 + $0x200] sm:$0xff]
      %v5356 = vld [vmem:[#allocation3 + $0x208] sm:$0xff]
      %v5357 = vld [vmem:[#allocation3 + $0x210] sm:$0xff]
      %v5358 = vld [vmem:[#allocation3 + $0x218] sm:$0xff]
      %v5359 = vld [vmem:[#allocation3 + $0x220] sm:$0xff]
      %v5360 = vld [vmem:[#allocation3 + $0x228] sm:$0xff]
      %v5361 = vld [vmem:[#allocation3 + $0x230] sm:$0xff]
      %v5362 = vld [vmem:[#allocation3 + $0x238] sm:$0xff]
      %v5363 = vld [vmem:[#allocation3 + $0x240] sm:$0xff]
      %v5364 = vld [vmem:[#allocation3 + $0x248] sm:$0xff]
      %v5365 = vld [vmem:[#allocation3 + $0x250] sm:$0xff]
      %v5366 = vld [vmem:[#allocation3 + $0x258] sm:$0xff]
      %v5367 = vld [vmem:[#allocation3 + $0x260] sm:$0xff]
      %v5368 = vld [vmem:[#allocation3 + $0x268] sm:$0xff]
      %v5369 = vld [vmem:[#allocation3 + $0x270] sm:$0xff]
      %v5370 = vld [vmem:[#allocation3 + $0x278] sm:$0xff]
      %v5371 = vld [vmem:[#allocation3 + $0x280] sm:$0xff]
      %v5372 = vld [vmem:[#allocation3 + $0x288] sm:$0xff]
      %v5373 = vld [vmem:[#allocation3 + $0x290] sm:$0xff]
      %v5374 = vld [vmem:[#allocation3 + $0x298] sm:$0xff]
      %v5375 = vld [vmem:[#allocation3 + $0x2a0] sm:$0xff]
      %v5376 = vld [vmem:[#allocation3 + $0x2a8] sm:$0xff]
      %v5377 = vld [vmem:[#allocation3 + $0x2b0] sm:$0xff]
      %v5378 = vld [vmem:[#allocation3 + $0x2b8] sm:$0xff]
      %v5379 = vld [vmem:[#allocation3 + $0x2c0] sm:$0xff]
      %v5380 = vld [vmem:[#allocation3 + $0x2c8] sm:$0xff]
      %v5381 = vld [vmem:[#allocation3 + $0x2d0] sm:$0xff]
      %v5382 = vld [vmem:[#allocation3 + $0x2d8] sm:$0xff]
      %v5383 = vld [vmem:[#allocation3 + $0x2e0] sm:$0xff]
      %v5384 = vld [vmem:[#allocation3 + $0x2e8] sm:$0xff]
      %v5385 = vld [vmem:[#allocation3 + $0x2f0] sm:$0xff]
      %v5386 = vld [vmem:[#allocation3 + $0x2f8] sm:$0xff]
      %v5387 = vld [vmem:[#allocation3 + $0x300] sm:$0xff]
      %v5388 = vld [vmem:[#allocation3 + $0x308] sm:$0xff]
      %v5389 = vld [vmem:[#allocation3 + $0x310] sm:$0xff]
      %v5390 = vld [vmem:[#allocation3 + $0x318] sm:$0xff]
      %v5391 = vld [vmem:[#allocation3 + $0x320] sm:$0xff]
      %v5392 = vld [vmem:[#allocation3 + $0x328] sm:$0xff]
      %v5393 = vld [vmem:[#allocation3 + $0x330] sm:$0xff]
      %v5394 = vld [vmem:[#allocation3 + $0x338] sm:$0xff]
      %v5395 = vld [vmem:[#allocation3 + $0x340] sm:$0xff]
      %v5396 = vld [vmem:[#allocation3 + $0x348] sm:$0xff]
      %v5397 = vld [vmem:[#allocation3 + $0x350] sm:$0xff]
      %v5398 = vld [vmem:[#allocation3 + $0x358] sm:$0xff]
      %v5399 = vld [vmem:[#allocation3 + $0x360] sm:$0xff]
      %v5400 = vld [vmem:[#allocation3 + $0x368] sm:$0xff]
      %v5401 = vld [vmem:[#allocation3 + $0x370] sm:$0xff]
      %v5402 = vld [vmem:[#allocation3 + $0x378] sm:$0xff]
      %v5403 = vld [vmem:[#allocation3 + $0x380] sm:$0xff]
      %v5404 = vld [vmem:[#allocation3 + $0x388] sm:$0xff]
      %v5405 = vld [vmem:[#allocation3 + $0x390] sm:$0xff]
      %v5406 = vld [vmem:[#allocation3 + $0x398] sm:$0xff]
      %v5407 = vld [vmem:[#allocation3 + $0x3a0] sm:$0xff]
      %v5408 = vld [vmem:[#allocation3 + $0x3a8] sm:$0xff]
      %v5409 = vld [vmem:[#allocation3 + $0x3b0] sm:$0xff]
      %v5410 = vld [vmem:[#allocation3 + $0x3b8] sm:$0xff]
      %v5411 = vld [vmem:[#allocation3 + $0x3c0] sm:$0xff]
      %v5412 = vld [vmem:[#allocation3 + $0x3c8] sm:$0xff]
      %v5413 = vld [vmem:[#allocation3 + $0x3d0] sm:$0xff]
      %v5414 = vld [vmem:[#allocation3 + $0x3d8] sm:$0xff]
      %v5415 = vld [vmem:[#allocation3 + $0x3e0] sm:$0xff]
      %v5416 = vld [vmem:[#allocation3 + $0x3e8] sm:$0xff]
      %v5417 = vld [vmem:[#allocation3 + $0x3f0] sm:$0xff]
      %v5418 = vld [vmem:[#allocation3 + $0x3f8] sm:$0xff]
      %v5419 = vld [vmem:[#allocation3 + $0x400] sm:$0xff]
      %v5420 = vld [vmem:[#allocation3 + $0x408] sm:$0xff]
      %v5421 = vld [vmem:[#allocation3 + $0x410] sm:$0xff]
      %v5422 = vld [vmem:[#allocation3 + $0x418] sm:$0xff]
      %v5423 = vld [vmem:[#allocation3 + $0x420] sm:$0xff]
      %v5424 = vld [vmem:[#allocation3 + $0x428] sm:$0xff]
      %v5425 = vld [vmem:[#allocation3 + $0x430] sm:$0xff]
      %v5426 = vld [vmem:[#allocation3 + $0x438] sm:$0xff]
      %v5427 = vld [vmem:[#allocation3 + $0x440] sm:$0xff]
      %v5428 = vld [vmem:[#allocation3 + $0x448] sm:$0xff]
      %v5429 = vld [vmem:[#allocation3 + $0x450] sm:$0xff]
      %v5430 = vld [vmem:[#allocation3 + $0x458] sm:$0xff]
      %v5431 = vld [vmem:[#allocation3 + $0x460] sm:$0xff]
      %v5432 = vld [vmem:[#allocation3 + $0x468] sm:$0xff]
      %v5433 = vld [vmem:[#allocation3 + $0x470] sm:$0xff]
      %v5434 = vld [vmem:[#allocation3 + $0x478] sm:$0xff]
      %v5435 = vld [vmem:[#allocation3 + $0x480] sm:$0xff]
      %v5436 = vld [vmem:[#allocation3 + $0x488] sm:$0xff]
      %v5437 = vld [vmem:[#allocation3 + $0x490] sm:$0xff]
      %v5438 = vld [vmem:[#allocation3 + $0x498] sm:$0xff]
      %v5439 = vld [vmem:[#allocation3 + $0x4a0] sm:$0xff]
      %v5440 = vld [vmem:[#allocation3 + $0x4a8] sm:$0xff]
      %v5441 = vld [vmem:[#allocation3 + $0x4b0] sm:$0xff]
      %v5442 = vld [vmem:[#allocation3 + $0x4b8] sm:$0xff]
      %v5443 = vld [vmem:[#allocation3 + $0x4c0] sm:$0xff]
      %v5444 = vld [vmem:[#allocation3 + $0x4c8] sm:$0xff]
      %v5445 = vld [vmem:[#allocation3 + $0x4d0] sm:$0xff]
      %v5446 = vld [vmem:[#allocation3 + $0x4d8] sm:$0xff]
      %v5447 = vld [vmem:[#allocation3 + $0x4e0] sm:$0xff]
      %v5448 = vld [vmem:[#allocation3 + $0x4e8] sm:$0xff]
      %v5449 = vld [vmem:[#allocation3 + $0x4f0] sm:$0xff]
      %v5450 = vld [vmem:[#allocation3 + $0x4f8] sm:$0xff]
      %v5451 = vld [vmem:[#allocation3 + $0x500] sm:$0xff]
      %v5452 = vld [vmem:[#allocation3 + $0x508] sm:$0xff]
      %v5453 = vld [vmem:[#allocation3 + $0x510] sm:$0xff]
      %v5454 = vld [vmem:[#allocation3 + $0x518] sm:$0xff]
      %v5455 = vld [vmem:[#allocation3 + $0x520] sm:$0xff]
      %v5456 = vld [vmem:[#allocation3 + $0x528] sm:$0xff]
      %v5457 = vld [vmem:[#allocation3 + $0x530] sm:$0xff]
      %v5458 = vld [vmem:[#allocation3 + $0x538] sm:$0xff]
      %v5459 = vld [vmem:[#allocation3 + $0x540] sm:$0xff]
      %v5460 = vld [vmem:[#allocation3 + $0x548] sm:$0xff]
      %v5461 = vld [vmem:[#allocation3 + $0x550] sm:$0xff]
      %v5462 = vld [vmem:[#allocation3 + $0x558] sm:$0xff]
      %v5463 = vld [vmem:[#allocation3 + $0x560] sm:$0xff]
      %v5464 = vld [vmem:[#allocation3 + $0x568] sm:$0xff]
      %v5465 = vld [vmem:[#allocation3 + $0x570] sm:$0xff]
      %v5466 = vld [vmem:[#allocation3 + $0x578] sm:$0xff]
      %v5467 = vld [vmem:[#allocation3 + $0x580] sm:$0xff]
      %v5468 = vld [vmem:[#allocation3 + $0x588] sm:$0xff]
      %v5469 = vld [vmem:[#allocation3 + $0x590] sm:$0xff]
      %v5470 = vld [vmem:[#allocation3 + $0x598] sm:$0xff]
      %v5471 = vld [vmem:[#allocation3 + $0x5a0] sm:$0xff]
      %v5472 = vld [vmem:[#allocation3 + $0x5a8] sm:$0xff]
      %v5473 = vld [vmem:[#allocation3 + $0x5b0] sm:$0xff]
      %v5474 = vld [vmem:[#allocation3 + $0x5b8] sm:$0xff]
      %v5475 = vld [vmem:[#allocation3 + $0x5c0] sm:$0xff]
      %v5476 = vld [vmem:[#allocation3 + $0x5c8] sm:$0xff]
      %v5477 = vld [vmem:[#allocation3 + $0x5d0] sm:$0xff]
      %v5478 = vld [vmem:[#allocation3 + $0x5d8] sm:$0xff]
      %v5479 = vld [vmem:[#allocation3 + $0x5e0] sm:$0xff]
      %v5480 = vld [vmem:[#allocation3 + $0x5e8] sm:$0xff]
      %v5481 = vld [vmem:[#allocation3 + $0x5f0] sm:$0xff]
      %v5482 = vld [vmem:[#allocation3 + $0x5f8] sm:$0xff]
      %v5483 = vld [vmem:[#allocation3 + $0x600] sm:$0xff]
      %v5484 = vld [vmem:[#allocation3 + $0x608] sm:$0xff]
      %v5485 = vld [vmem:[#allocation3 + $0x610] sm:$0xff]
      %v5486 = vld [vmem:[#allocation3 + $0x618] sm:$0xff]
      %v5487 = vld [vmem:[%s5] sm:$0xff]
      %v5488 = vld [vmem:[%s5 + $0x8] sm:$0xff]
      %5490 = vset.pattern.permute.xlu0 0
      %5491 = vperm.xlu0 %5490, %v5487
      %v5492 = vpop.permute.xlu0 %5491
      %5495 = vset.pattern.permute.xlu0 0
      %5496 = vperm.xlu0 %5495, %v5488
      %v5497 = vpop.permute.xlu0 %5496
      %v5500 = vsel %vm272, %v5283, 0
      %v5503 = vsel %vm272, %v5290, 0
      %5505 = vmatprep.subr.mxu0 %v5292
      %5506 = vmatpush1.msra.mxu0 %v5291
      %5507 = vmatprep.subr.mxu0 %v5294
      %5508 = vmatpush1.msra.mxu0 %v5293
      %5509 = vmatprep.subr.mxu0 %v5296
      %5510 = vmatpush1.msra.mxu0 %v5295
      %5511 = vmatprep.subr.mxu0 %v5298
      %5512 = vmatpush1.msra.mxu0 %v5297
      %5513 = vmatprep.subr.mxu0 %v5300
      %5514 = vmatpush1.msra.mxu0 %v5299
      %5515 = vmatprep.subr.mxu0 %v5302
      %5516 = vmatpush1.msra.mxu0 %v5301
      %5517 = vmatprep.subr.mxu0 %v5304
      %5518 = vmatpush1.msra.mxu0 %v5303
      %5519 = vmatprep.subr.mxu0 %v5306
      %5520 = vmatpush1.msra.mxu0 %v5305
      %5521 = vmatprep.subr.mxu0 %v5308
      %5522 = vmatpush1.msra.mxu0 %v5307
      %5523 = vmatprep.subr.mxu0 %v5310
      %5524 = vmatpush1.msra.mxu0 %v5309
      %5525 = vmatprep.subr.mxu0 %v5312
      %5526 = vmatpush1.msra.mxu0 %v5311
      %5527 = vmatprep.subr.mxu0 %v5314
      %5528 = vmatpush1.msra.mxu0 %v5313
      %5529 = vmatprep.subr.mxu0 %v5316
      %5530 = vmatpush1.msra.mxu0 %v5315
      %5531 = vmatprep.subr.mxu0 %v5318
      %5532 = vmatpush1.msra.mxu0 %v5317
      %5533 = vmatprep.subr.mxu0 %v5320
      %5534 = vmatpush1.msra.mxu0 %v5319
      %5535 = vmatprep.subr.mxu0 %v5322
      %5536 = vmatpush1.msra.mxu0 %v5321
      %5537 = vmatprep.subr.mxu0 %v5324
      %5538 = vmatpush1.msra.mxu0 %v5323
      %5539 = vmatprep.subr.mxu0 %v5326
      %5540 = vmatpush1.msra.mxu0 %v5325
      %5541 = vmatprep.subr.mxu0 %v5328
      %5542 = vmatpush1.msra.mxu0 %v5327
      %5543 = vmatprep.subr.mxu0 %v5330
      %5544 = vmatpush1.msra.mxu0 %v5329
      %5545 = vmatprep.subr.mxu0 %v5332
      %5546 = vmatpush1.msra.mxu0 %v5331
      %5547 = vmatprep.subr.mxu0 %v5334
      %5548 = vmatpush1.msra.mxu0 %v5333
      %5549 = vmatprep.subr.mxu0 %v5336
      %5550 = vmatpush1.msra.mxu0 %v5335
      %5551 = vmatprep.subr.mxu0 %v5338
      %5552 = vmatpush1.msra.mxu0 %v5337
      %5553 = vmatprep.subr.mxu0 %v5340
      %5554 = vmatpush1.msra.mxu0 %v5339
      %5555 = vmatprep.subr.mxu0 %v5342
      %5556 = vmatpush1.msra.mxu0 %v5341
      %5557 = vmatprep.subr.mxu0 %v5344
      %5558 = vmatpush1.msra.mxu0 %v5343
      %5559 = vmatprep.subr.mxu0 %v5346
      %5560 = vmatpush1.msra.mxu0 %v5345
      %5561 = vmatprep.subr.mxu0 %v5348
      %5562 = vmatpush1.msra.mxu0 %v5347
      %5563 = vmatprep.subr.mxu0 %v5350
      %5564 = vmatpush1.msra.mxu0 %v5349
      %5565 = vmatprep.subr.mxu0 %v5352
      %5566 = vmatpush1.msra.mxu0 %v5351
      %5567 = vmatprep.subr.mxu0 %v5354
      %5568 = vmatpush1.msra.mxu0 %v5353
      %5569 = vmatprep.mubr.f32.mxu0 %v5278
      %5570 = vmatmul.mubr.f32.gmra.mrb[0].mxu0 %v5277
      %v5571 = vpop.f32.mrb[0].mxu0
      %v5572 = vadd.f32 %v5492, %v5571
      %v5573 = vpop.f32.mrb[0].mxu0
      %v5574 = vadd.f32 %v5492, %v5573
      %5575 = vmatprep.mubr.f32.mxu0 %v5285
      %5576 = vmatmul.mubr.f32.gmra.mrb[0].mxu0 %v5284
      %v5577 = vpop.f32.mrb[0].mxu0
      %v5578 = vadd.f32 %v5497, %v5577
      %v5579 = vpop.f32.mrb[0].mxu0
      %v5580 = vadd.f32 %v5497, %v5579
      %5581 = vdwg.mxu0
      %5582 = vmatprep.subr.mxu0 %v5356
      %5583 = vmatpush1.msra.mxu0 %v5355
      %5584 = vmatprep.subr.mxu0 %v5358
      %5585 = vmatpush1.msra.mxu0 %v5357
      %5586 = vmatprep.subr.mxu0 %v5360
      %5587 = vmatpush1.msra.mxu0 %v5359
      %5588 = vmatprep.subr.mxu0 %v5362
      %5589 = vmatpush1.msra.mxu0 %v5361
      %5590 = vmatprep.subr.mxu0 %v5364
      %5591 = vmatpush1.msra.mxu0 %v5363
      %5592 = vmatprep.subr.mxu0 %v5366
      %5593 = vmatpush1.msra.mxu0 %v5365
      %5594 = vmatprep.subr.mxu0 %v5368
      %5595 = vmatpush1.msra.mxu0 %v5367
      %5596 = vmatprep.subr.mxu0 %v5370
      %5597 = vmatpush1.msra.mxu0 %v5369
      %5598 = vmatprep.subr.mxu0 %v5372
      %5599 = vmatpush1.msra.mxu0 %v5371
      %5600 = vmatprep.subr.mxu0 %v5374
      %5601 = vmatpush1.msra.mxu0 %v5373
      %5602 = vmatprep.subr.mxu0 %v5376
      %5603 = vmatpush1.msra.mxu0 %v5375
      %5604 = vmatprep.subr.mxu0 %v5378
      %5605 = vmatpush1.msra.mxu0 %v5377
      %5606 = vmatprep.subr.mxu0 %v5380
      %5607 = vmatpush1.msra.mxu0 %v5379
      %5608 = vmatprep.subr.mxu0 %v5382
      %5609 = vmatpush1.msra.mxu0 %v5381
      %5610 = vmatprep.subr.mxu0 %v5384
      %5611 = vmatpush1.msra.mxu0 %v5383
      %5612 = vmatprep.subr.mxu0 %v5386
      %5613 = vmatpush1.msra.mxu0 %v5385
      %5614 = vmatprep.subr.mxu0 %v5388
      %5615 = vmatpush1.msra.mxu0 %v5387
      %5616 = vmatprep.subr.mxu0 %v5390
      %5617 = vmatpush1.msra.mxu0 %v5389
      %5618 = vmatprep.subr.mxu0 %v5392
      %5619 = vmatpush1.msra.mxu0 %v5391
      %5620 = vmatprep.subr.mxu0 %v5394
      %5621 = vmatpush1.msra.mxu0 %v5393
      %5622 = vmatprep.subr.mxu0 %v5396
      %5623 = vmatpush1.msra.mxu0 %v5395
      %5624 = vmatprep.subr.mxu0 %v5398
      %5625 = vmatpush1.msra.mxu0 %v5397
      %5626 = vmatprep.subr.mxu0 %v5400
      %5627 = vmatpush1.msra.mxu0 %v5399
      %5628 = vmatprep.subr.mxu0 %v5402
      %5629 = vmatpush1.msra.mxu0 %v5401
      %5630 = vmatprep.subr.mxu0 %v5404
      %5631 = vmatpush1.msra.mxu0 %v5403
      %5632 = vmatprep.subr.mxu0 %v5406
      %5633 = vmatpush1.msra.mxu0 %v5405
      %5634 = vmatprep.subr.mxu0 %v5408
      %5635 = vmatpush1.msra.mxu0 %v5407
      %5636 = vmatprep.subr.mxu0 %v5410
      %5637 = vmatpush1.msra.mxu0 %v5409
      %5638 = vmatprep.subr.mxu0 %v5412
      %5639 = vmatpush1.msra.mxu0 %v5411
      %5640 = vmatprep.subr.mxu0 %v5414
      %5641 = vmatpush1.msra.mxu0 %v5413
      %5642 = vmatprep.subr.mxu0 %v5416
      %5643 = vmatpush1.msra.mxu0 %v5415
      %5644 = vmatprep.subr.mxu0 %v5418
      %5645 = vmatpush1.msra.mxu0 %v5417
      %5646 = vmatprep.mubr.f32.mxu0 %v5280
      %5647 = vmatmul.mubr.f32.gmra.mrb[0].mxu0 %v5279
      %v5648 = vpop.f32.mrb[0].mxu0
      %v5649 = vadd.f32 %v5572, %v5648
      %v5650 = vpop.f32.mrb[0].mxu0
      %v5651 = vadd.f32 %v5574, %v5650
      %5652 = vmatprep.mubr.f32.mxu0 %v5287
      %5653 = vmatmul.mubr.f32.gmra.mrb[0].mxu0 %v5286
      %v5654 = vpop.f32.mrb[0].mxu0
      %v5655 = vadd.f32 %v5578, %v5654
      %v5656 = vpop.f32.mrb[0].mxu0
      %v5657 = vadd.f32 %v5580, %v5656
      %5658 = vdwg.mxu0
      %5659 = vmatprep.subr.mxu0 %v5420
      %5660 = vmatpush1.msra.mxu0 %v5419
      %5661 = vmatprep.subr.mxu0 %v5422
      %5662 = vmatpush1.msra.mxu0 %v5421
      %5663 = vmatprep.subr.mxu0 %v5424
      %5664 = vmatpush1.msra.mxu0 %v5423
      %5665 = vmatprep.subr.mxu0 %v5426
      %5666 = vmatpush1.msra.mxu0 %v5425
      %5667 = vmatprep.subr.mxu0 %v5428
      %5668 = vmatpush1.msra.mxu0 %v5427
      %5669 = vmatprep.subr.mxu0 %v5430
      %5670 = vmatpush1.msra.mxu0 %v5429
      %5671 = vmatprep.subr.mxu0 %v5432
      %5672 = vmatpush1.msra.mxu0 %v5431
      %5673 = vmatprep.subr.mxu0 %v5434
      %5674 = vmatpush1.msra.mxu0 %v5433
      %5675 = vmatprep.subr.mxu0 %v5436
      %5676 = vmatpush1.msra.mxu0 %v5435
      %5677 = vmatprep.subr.mxu0 %v5438
      %5678 = vmatpush1.msra.mxu0 %v5437
      %5679 = vmatprep.subr.mxu0 %v5440
      %5680 = vmatpush1.msra.mxu0 %v5439
      %5681 = vmatprep.subr.mxu0 %v5442
      %5682 = vmatpush1.msra.mxu0 %v5441
      %5683 = vmatprep.subr.mxu0 %v5444
      %5684 = vmatpush1.msra.mxu0 %v5443
      %5685 = vmatprep.subr.mxu0 %v5446
      %5686 = vmatpush1.msra.mxu0 %v5445
      %5687 = vmatprep.subr.mxu0 %v5448
      %5688 = vmatpush1.msra.mxu0 %v5447
      %5689 = vmatprep.subr.mxu0 %v5450
      %5690 = vmatpush1.msra.mxu0 %v5449
      %5691 = vmatprep.subr.mxu0 %v5452
      %5692 = vmatpush1.msra.mxu0 %v5451
      %5693 = vmatprep.subr.mxu0 %v5454
      %5694 = vmatpush1.msra.mxu0 %v5453
      %5695 = vmatprep.subr.mxu0 %v5456
      %5696 = vmatpush1.msra.mxu0 %v5455
      %5697 = vmatprep.subr.mxu0 %v5458
      %5698 = vmatpush1.msra.mxu0 %v5457
      %5699 = vmatprep.subr.mxu0 %v5460
      %5700 = vmatpush1.msra.mxu0 %v5459
      %5701 = vmatprep.subr.mxu0 %v5462
      %5702 = vmatpush1.msra.mxu0 %v5461
      %5703 = vmatprep.subr.mxu0 %v5464
      %5704 = vmatpush1.msra.mxu0 %v5463
      %5705 = vmatprep.subr.mxu0 %v5466
      %5706 = vmatpush1.msra.mxu0 %v5465
      %5707 = vmatprep.subr.mxu0 %v5468
      %5708 = vmatpush1.msra.mxu0 %v5467
      %5709 = vmatprep.subr.mxu0 %v5470
      %5710 = vmatpush1.msra.mxu0 %v5469
      %5711 = vmatprep.subr.mxu0 %v5472
      %5712 = vmatpush1.msra.mxu0 %v5471
      %5713 = vmatprep.subr.mxu0 %v5474
      %5714 = vmatpush1.msra.mxu0 %v5473
      %5715 = vmatprep.subr.mxu0 %v5476
      %5716 = vmatpush1.msra.mxu0 %v5475
      %5717 = vmatprep.subr.mxu0 %v5478
      %5718 = vmatpush1.msra.mxu0 %v5477
      %5719 = vmatprep.subr.mxu0 %v5480
      %5720 = vmatpush1.msra.mxu0 %v5479
      %5721 = vmatprep.subr.mxu0 %v5482
      %5722 = vmatpush1.msra.mxu0 %v5481
      %5723 = vmatprep.mubr.f32.mxu0 %v5282
      %5724 = vmatmul.mubr.f32.gmra.mrb[0].mxu0 %v5281
      %v5725 = vpop.f32.mrb[0].mxu0
      %v5726 = vadd.f32 %v5649, %v5725
      %v5727 = vpop.f32.mrb[0].mxu0
      %v5728 = vadd.f32 %v5651, %v5727
      %5729 = vmatprep.mubr.f32.mxu0 %v5289
      %5730 = vmatmul.mubr.f32.gmra.mrb[0].mxu0 %v5288
      %v5731 = vpop.f32.mrb[0].mxu0
      %v5732 = vadd.f32 %v5655, %v5731
      %v5733 = vpop.f32.mrb[0].mxu0
      %v5734 = vadd.f32 %v5657, %v5733
      %5735 = vdwg.mxu0
      %5736 = vmatprep.subr.mxu0 %v5484
      %5737 = vmatpush1.msra.mxu0 %v5483
      %5738 = vmatprep.subr.mxu0 %v5486
      %5739 = vmatpush1.msra.mxu0 %v5485
      %5740 = vmatprep.subr.mxu0 0.0
      %5741 = vmatpush1.msra.mxu0 0.0
      %5742 = vmatprep.subr.mxu0 0.0
      %5743 = vmatpush1.msra.mxu0 0.0
      %5744 = vmatprep.subr.mxu0 0.0
      %5745 = vmatpush1.msra.mxu0 0.0
      %5746 = vmatprep.subr.mxu0 0.0
      %5747 = vmatpush1.msra.mxu0 0.0
      %5748 = vmatprep.subr.mxu0 0.0
      %5749 = vmatpush1.msra.mxu0 0.0
      %5750 = vmatprep.subr.mxu0 0.0
      %5751 = vmatpush1.msra.mxu0 0.0
      %5752 = vmatprep.subr.mxu0 0.0
      %5753 = vmatpush1.msra.mxu0 0.0
      %5754 = vmatprep.subr.mxu0 0.0
      %5755 = vmatpush1.msra.mxu0 0.0
      %5756 = vmatprep.subr.mxu0 0.0
      %5757 = vmatpush1.msra.mxu0 0.0
      %5758 = vmatprep.subr.mxu0 0.0
      %5759 = vmatpush1.msra.mxu0 0.0
      %5760 = vmatprep.subr.mxu0 0.0
      %5761 = vmatpush1.msra.mxu0 0.0
      %5762 = vmatprep.subr.mxu0 0.0
      %5763 = vmatpush1.msra.mxu0 0.0
      %5764 = vmatprep.subr.mxu0 0.0
      %5765 = vmatpush1.msra.mxu0 0.0
      %5766 = vmatprep.subr.mxu0 0.0
      %5767 = vmatpush1.msra.mxu0 0.0
      %5768 = vmatprep.subr.mxu0 0.0
      %5769 = vmatpush1.msra.mxu0 0.0
      %5770 = vmatprep.subr.mxu0 0.0
      %5771 = vmatpush1.msra.mxu0 0.0
      %5772 = vmatprep.subr.mxu0 0.0
      %5773 = vmatpush1.msra.mxu0 0.0
      %5774 = vmatprep.subr.mxu0 0.0
      %5775 = vmatpush1.msra.mxu0 0.0
      %5776 = vmatprep.subr.mxu0 0.0
      %5777 = vmatpush1.msra.mxu0 0.0
      %5778 = vmatprep.subr.mxu0 0.0
      %5779 = vmatpush1.msra.mxu0 0.0
      %5780 = vmatprep.subr.mxu0 0.0
      %5781 = vmatpush1.msra.mxu0 0.0
      %5782 = vmatprep.subr.mxu0 0.0
      %5783 = vmatpush1.msra.mxu0 0.0
      %5784 = vmatprep.subr.mxu0 0.0
      %5785 = vmatpush1.msra.mxu0 0.0
      %5786 = vmatprep.subr.mxu0 0.0
      %5787 = vmatpush1.msra.mxu0 0.0
      %5788 = vmatprep.subr.mxu0 0.0
      %5789 = vmatpush1.msra.mxu0 0.0
      %5790 = vmatprep.subr.mxu0 0.0
      %5791 = vmatpush1.msra.mxu0 0.0
      %5792 = vmatprep.subr.mxu0 0.0
      %5793 = vmatpush1.msra.mxu0 0.0
      %5794 = vmatprep.subr.mxu0 0.0
      %5795 = vmatpush1.msra.mxu0 0.0
      %5796 = vmatprep.subr.mxu0 0.0
      %5797 = vmatpush1.msra.mxu0 0.0
      %5798 = vmatprep.subr.mxu0 0.0
      %5799 = vmatpush1.msra.mxu0 0.0
      %5800 = vmatprep.mubr.f32.mxu0 0.0
      %5801 = vmatmul.mubr.f32.gmra.mrb[0].mxu0 %v5500
      %v5802 = vpop.f32.mrb[0].mxu0
      %v5803 = vadd.f32 %v5726, %v5802
      %v5804 = vpop.f32.mrb[0].mxu0
      %v5805 = vadd.f32 %v5728, %v5804
      %5806 = vmatprep.mubr.f32.mxu0 0.0
      %5807 = vmatmul.mubr.f32.gmra.mrb[0].mxu0 %v5503
      %v5808 = vpop.f32.mrb[0].mxu0
      %v5809 = vadd.f32 %v5732, %v5808
      %v5810 = vpop.f32.mrb[0].mxu0
      %v5811 = vadd.f32 %v5734, %v5810
      %5812 = vdwg.mxu0
      %v5813 = vadd.f32 %v5803, %v3119
      %v5814 = vadd.f32 %v5805, %v3120
      %v5815 = vadd.f32 %v5809, %v3121
      %v5816 = vadd.f32 %v5811, %v3122
      %v5817 = vmax.f32 %v5813, 0.0
      %v5818 = vmax.f32 %v5814, 0.0
      %v5819 = vmax.f32 %v5815, 0.0
      %v5820 = vmax.f32 %v5816, 0.0
      %v5821 = vadd.f32 %v5817, %v3119
      %v5822 = vadd.f32 %v5818, %v3120
      %v5823 = vadd.f32 %v5819, %v3121
      %v5824 = vadd.f32 %v5820, %v3122
      %v5825 = vmax.f32 %v5821, 0.0
      %v5826 = vmax.f32 %v5822, 0.0
      %v5827 = vmax.f32 %v5823, 0.0
      %v5828 = vmax.f32 %v5824, 0.0
      %5829 = vst [vmem:[%s271] sm:$0xff] %v5825
      %5830 = vst [vmem:[%s271 + $0x8] sm:$0xff] %v5826
      %5831 = vst [vmem:[%s271 + $0x10] sm:$0xff] %v5827
      %5832 = vst [vmem:[%s271 + $0x18] sm:$0xff] %v5828
      %p5833 = scmp.lt.s32.totalorder %s17, 1
      %s5834 = scalar_select %p5833, %s17, 1
      %s5835 = smul.addr %s5834, 4
      %s5836 = smul.addr %s5835, 8
      %s5837 = scalar_lea.vmem %s6, %s5836
      // Predicated region
      $region45: #{model_forward.1} parent=43 // pred_check
        %p5838 = pneg %p171
      $region46: #{model_forward.1} parent=43 // pred_check_branch
        %5840 = sbr.rel (%p5838) target = $region48
      $region47: #{model_forward.1} parent=43 // pred_region
        _
      $region48: #{model_forward.1} parent=43 // pred_fallthru
        _
    $region44: #{model_forward.1} parent=5 // pred_fallthru
      _
    %p5841 = scmp.le.s32.totalorder 2, %s12
    // Predicated region
    $region49: #{model_forward.1} parent=5 // pred_check
      %p5842 = pneg %p5841
    $region50: #{model_forward.1} parent=5 // pred_check_branch
      %5844 = sbr.rel (%p5842) target = $region52
    $region51: #{model_forward.1} parent=5 // pred_region
      %s5845 = ssub.s32 %s12, 2
      // Predicated region
      $region53: #{model_forward.1} parent=51 // pred_check
        %p5846 = pneg %p177
      $region54: #{model_forward.1} parent=51 // pred_check_branch
        %5848 = sbr.rel (%p5846) target = $region56
      $region55: #{model_forward.1} parent=51 // pred_region
        %p5849 = scmp.lt.s32.totalorder %s18, 1
        %s5850 = scalar_select %p5849, %s18, 1
        %s5851 = smul.addr %s5850, 4
        %s5852 = smul.addr %s5851, 8
        %s5853 = scalar_lea.vmem %s6, %s5852
      $region56: #{model_forward.1} parent=51 // pred_fallthru
        _
    $region52: #{model_forward.1} parent=5 // pred_fallthru
      _
  $region6: #{model_forward.1} parent=0 // loop_footer
    %s16 = sadd.s32 1, %s12
  $region7: #{model_forward.1} parent=0 // loop_footer_branch
    %11 = sbr.rel target = $region3
  $region8: #{model_forward.1} parent=0 // loop_exit
    _

</llo_original>
